<compile_context>
chip_gen: v5e
topology: v5e:2x2
jax: 0.10.0
libtpu: 0.0.40
codegen_flags: <defaults>
</compile_context>

<pallas_src>
import math
import functools

import numpy as np
import jax
import jax.numpy as jnp
from jax.experimental import pallas as pl
from jax.experimental.pallas import tpu as pltpu


# ----------------------------------------------------------------------------
# In-kernel helpers (operate on VMEM-resident jnp values)
# ----------------------------------------------------------------------------

def _vmem():
    return pl.BlockSpec(memory_space=pltpu.MemorySpace.VMEM)


def _linear(x, w, b, relu=False):
    """y = x @ w.T + b  (PyTorch nn.Linear semantics). x:[M,K], w:[N,K], b:[1,N]."""
    y = jax.lax.dot_general(
        x, w, dimension_numbers=(((1,), (1,)), ((), ())),
        preferred_element_type=jnp.float32) + b
    if relu:
        y = jnp.maximum(y, 0.0)
    return y


def _layernorm(x, g, b, eps=1e-5):
    """Row-wise LayerNorm (PyTorch semantics, biased variance)."""
    mean = jnp.mean(x, axis=-1, keepdims=True)
    var = jnp.mean(jnp.square(x - mean), axis=-1, keepdims=True)
    return (x - mean) * jax.lax.rsqrt(var + eps) * g + b


def _softmax_rows(s):
    m = jnp.max(s, axis=-1, keepdims=True)
    p = jnp.exp(s - m)
    return p * pl.reciprocal(jnp.sum(p, axis=-1, keepdims=True), approx=True)


def _mha(q, k, v, wo, bo, Sq, Sk, B, H, dh, mask):
    """Multi-head attention on batch-major slabs.

    q: [B*Sq, H*dh], k/v: [B*Sk, H*dh] (row = b*seq + s).
    mask: additive [Sq, Sk] or None.  Returns [B*Sq, H*dh] after out-proj.
    """
    scale = 1.0 / math.sqrt(dh)
    outs = []
    for b in range(B):
        qb = q[b * Sq:(b + 1) * Sq, :]
        kb = k[b * Sk:(b + 1) * Sk, :]
        vb = v[b * Sk:(b + 1) * Sk, :]
        heads = []
        for h in range(H):
            lo = h * dh
            qh = qb[:, lo:lo + dh] * scale                       # [Sq, dh]
            kh = kb[:, lo:lo + dh]                               # [Sk, dh]
            vh = vb[:, lo:lo + dh]                               # [Sk, dh]
            s = jax.lax.dot_general(                             # [Sq, Sk]
                qh, kh, dimension_numbers=(((1,), (1,)), ((), ())),
                preferred_element_type=jnp.float32)
            if mask is not None:
                s = s + mask
            p = _softmax_rows(s)
            heads.append(jnp.dot(p, vh, preferred_element_type=jnp.float32))
        outs.append(jnp.concatenate(heads, axis=-1))             # [Sq, E]
    o = jnp.concatenate(outs, axis=0)                            # [B*Sq, E]
    return _linear(o, wo, bo)


# ----------------------------------------------------------------------------
# Fused whole-model kernel
# ----------------------------------------------------------------------------

def build_fused_forward_kernel(S, T, B, F, E, Hf, Le, Ld, He, Hd):
    assert E % He == 0 and E % Hd == 0
    dhe = E // He
    dhd = E // Hd
    sqrt_d = math.sqrt(E)

    def kernel(
        # activations / inputs
        src_ref, tgt_ref, mask_ref, enc_pe_ref, dec_pe_ref,
        # embedding / output-head weights
        enc_in_w_ref, enc_in_b_ref, dec_in_w_ref, dec_in_b_ref,
        out_w_ref, out_b_ref,
        # encoder stack (stacked over Le along leading axis)
        e_qkv_w, e_qkv_b, e_wo, e_bo,
        e_l1_w, e_l1_b, e_l2_w, e_l2_b,
        e_n1_g, e_n1_b, e_n2_g, e_n2_b,
        # decoder stack (stacked over Ld along leading axis)
        d_qkv_w, d_qkv_b, d_so_w, d_so_b,
        d_cq_w, d_cq_b, d_ckv_w, d_ckv_b, d_co_w, d_co_b,
        d_l1_w, d_l1_b, d_l2_w, d_l2_b,
        d_n1_g, d_n1_b, d_n2_g, d_n2_b, d_n3_g, d_n3_b,
        # output
        out_ref,
    ):
        # ---- encoder input Conv1d(F->E, k=1) + sqrt(d_model) scale + PE -----
        x = _linear(src_ref[...], enc_in_w_ref[...], enc_in_b_ref[...])  # [B*S, E]
        x = x * sqrt_d + enc_pe_ref[...]

        # ---- encoder stack (post-norm, ReLU) --------------------------------
        for l in range(Le):
            qkv = _linear(x, e_qkv_w[l], e_qkv_b[l])                     # [B*S, 3E]
            q, k, v = qkv[:, :E], qkv[:, E:2 * E], qkv[:, 2 * E:]
            a = _mha(q, k, v, e_wo[l], e_bo[l], S, S, B, He, dhe, None)
            x = _layernorm(x + a, e_n1_g[l], e_n1_b[l])
            h = _linear(x, e_l1_w[l], e_l1_b[l], relu=True)
            h = _linear(h, e_l2_w[l], e_l2_b[l])
            x = _layernorm(x + h, e_n2_g[l], e_n2_b[l])
        memory = x                                                       # [B*S, E]

        # ---- decoder input Conv1d(1->E, k=1) as broadcast + scale + PE ------
        y = tgt_ref[...] * dec_in_w_ref[...] + dec_in_b_ref[...]         # [B*T, E]
        y = y * sqrt_d + dec_pe_ref[...]
        mask = mask_ref[...]                                             # [T, T]

        # ---- decoder stack (post-norm, ReLU) --------------------------------
        for l in range(Ld):
            qkv = _linear(y, d_qkv_w[l], d_qkv_b[l])                     # [B*T, 3E]
            q, k, v = qkv[:, :E], qkv[:, E:2 * E], qkv[:, 2 * E:]
            a = _mha(q, k, v, d_so_w[l], d_so_b[l], T, T, B, Hd, dhd, mask)
            y = _layernorm(y + a, d_n1_g[l], d_n1_b[l])
            q2 = _linear(y, d_cq_w[l], d_cq_b[l])                        # [B*T, E]
            kv = _linear(memory, d_ckv_w[l], d_ckv_b[l])                 # [B*S, 2E]
            k2, v2 = kv[:, :E], kv[:, E:]
            a = _mha(q2, k2, v2, d_co_w[l], d_co_b[l], T, S, B, Hd, dhd, None)
            y = _layernorm(y + a, d_n2_g[l], d_n2_b[l])
            h = _linear(y, d_l1_w[l], d_l1_b[l], relu=True)
            h = _linear(h, d_l2_w[l], d_l2_b[l])
            y = _layernorm(y + h, d_n3_g[l], d_n3_b[l])

        # ---- output Conv1d(E->1, k=1) as a lane reduction -------------------
        out = jnp.sum(y * out_w_ref[...], axis=-1, keepdims=True) + out_b_ref[...]
        out_ref[...] = out.astype(out_ref.dtype)

    return kernel


# ----------------------------------------------------------------------------
# Forward wrapper (tiny XLA glue: boundary reorders + ref packing only)
# ----------------------------------------------------------------------------

def my_transformer_forward(params, source, target, tgt_mask):
    """Mirrors MyTransformer.forward.

    source: [S, B, F], target: [T, B, 1], tgt_mask: [T, T]
    returns: [T*B, 1, 1]  (exactly what the PyTorch code returns)
    """
    S, B, F = source.shape
    T = target.shape[0]
    E = params["d_model"]
    He = params["enc_nhead"]
    Hd = params["dec_nhead"]
    enc = params["enc"]
    dec = params["dec"]
    Le = enc["qkv_w"].shape[0]
    Ld = dec["qkv_w"].shape[0]
    Hf = enc["lin1_w"].shape[1]

    # Batch-major flattening (row = b*seq + s) so attention slices are contiguous.
    src_bm = jnp.transpose(source, (1, 0, 2)).reshape(B * S, F)
    tgt_bm = jnp.transpose(target, (1, 0, 2)).reshape(B * T, 1)
    enc_pe = jnp.tile(params["enc_pe"][:S], (B, 1))   # [B*S, E]
    dec_pe = jnp.tile(params["dec_pe"][:T], (B, 1))   # [B*T, E]

    args = [
        src_bm, tgt_bm, tgt_mask, enc_pe, dec_pe,
        params["enc_in_w"], params["enc_in_b"].reshape(1, E),
        params["dec_in_w"].reshape(1, E), params["dec_in_b"].reshape(1, E),
        params["out_w"].reshape(1, E), params["out_b"].reshape(1, 1),
        # encoder stack
        enc["qkv_w"], enc["qkv_b"].reshape(Le, 1, 3 * E),
        enc["wo"], enc["bo"].reshape(Le, 1, E),
        enc["lin1_w"], enc["lin1_b"].reshape(Le, 1, Hf),
        enc["lin2_w"], enc["lin2_b"].reshape(Le, 1, E),
        enc["n1_g"].reshape(Le, 1, E), enc["n1_b"].reshape(Le, 1, E),
        enc["n2_g"].reshape(Le, 1, E), enc["n2_b"].reshape(Le, 1, E),
        # decoder stack
        dec["qkv_w"], dec["qkv_b"].reshape(Ld, 1, 3 * E),
        dec["so_w"], dec["so_b"].reshape(Ld, 1, E),
        dec["cq_w"], dec["cq_b"].reshape(Ld, 1, E),
        dec["ckv_w"], dec["ckv_b"].reshape(Ld, 1, 2 * E),
        dec["co_w"], dec["co_b"].reshape(Ld, 1, E),
        dec["lin1_w"], dec["lin1_b"].reshape(Ld, 1, Hf),
        dec["lin2_w"], dec["lin2_b"].reshape(Ld, 1, E),
        dec["n1_g"].reshape(Ld, 1, E), dec["n1_b"].reshape(Ld, 1, E),
        dec["n2_g"].reshape(Ld, 1, E), dec["n2_b"].reshape(Ld, 1, E),
        dec["n3_g"].reshape(Ld, 1, E), dec["n3_b"].reshape(Ld, 1, E),
    ]

    kernel = build_fused_forward_kernel(S, T, B, F, E, Hf, Le, Ld, He, Hd)

    out_bm = pl.pallas_call(
        kernel,
        out_shape=jax.ShapeDtypeStruct((B * T, 1), jnp.float32),
        in_specs=[_vmem() for _ in args],
        out_specs=_vmem(),
        compiler_params=pltpu.CompilerParams(
            # Everything (weights + activations) is < 1 MiB; stay well inside
            # the 32 MiB scoped default so this also fits v7x's 64 MiB VMEM.
            vmem_limit_bytes=32 * 1024 * 1024,
        ),
    )(*args)

    # Back to PyTorch's seq-major flattening (row = t*B + b), shape [T*B, 1, 1].
    out = jnp.transpose(out_bm.reshape(B, T), (1, 0)).reshape(T * B, 1, 1)
    return out


# ----------------------------------------------------------------------------
# Deterministic parameter init (fused / stacked layout)
# ----------------------------------------------------------------------------

def _positional_encoding_buffer(d_model, max_seq_len=30):
    """Replicates the (buggy) PositionalEncoder buffer exactly; stored [L, E]."""
    pe = np.zeros((max_seq_len, d_model), dtype=np.float32)
    for pos in range(max_seq_len):
        for i in range(0, d_model):
            if i % 2 == 0:
                pe[pos, i] = math.sin(pos / 10000 ** (2 * i / d_model))
            else:
                pe[pos, 1] = math.cos(pos / 10000 ** (2 * i / d_model))
    return jnp.asarray(pe)


def _stack_layers(layers):
    return jax.tree_util.tree_map(lambda *xs: jnp.stack(xs, axis=0), *layers)


def _init_encoder_layer(key, E, Hf, scale):
    ks = jax.random.split(key, 4)
    return dict(
        qkv_w=scale * jax.random.normal(ks[0], (3 * E, E), jnp.float32),
        qkv_b=jnp.zeros((3 * E,), jnp.float32),
        wo=scale * jax.random.normal(ks[1], (E, E), jnp.float32),
        bo=jnp.zeros((E,), jnp.float32),
        lin1_w=scale * jax.random.normal(ks[2], (Hf, E), jnp.float32),
        lin1_b=jnp.zeros((Hf,), jnp.float32),
        lin2_w=scale * jax.random.normal(ks[3], (E, Hf), jnp.float32),
        lin2_b=jnp.zeros((E,), jnp.float32),
        n1_g=jnp.ones((E,), jnp.float32), n1_b=jnp.zeros((E,), jnp.float32),
        n2_g=jnp.ones((E,), jnp.float32), n2_b=jnp.zeros((E,), jnp.float32),
    )


def _init_decoder_layer(key, E, Hf, scale):
    ks = jax.random.split(key, 7)
    return dict(
        qkv_w=scale * jax.random.normal(ks[0], (3 * E, E), jnp.float32),
        qkv_b=jnp.zeros((3 * E,), jnp.float32),
        so_w=scale * jax.random.normal(ks[1], (E, E), jnp.float32),
        so_b=jnp.zeros((E,), jnp.float32),
        cq_w=scale * jax.random.normal(ks[2], (E, E), jnp.float32),
        cq_b=jnp.zeros((E,), jnp.float32),
        ckv_w=scale * jax.random.normal(ks[3], (2 * E, E), jnp.float32),
        ckv_b=jnp.zeros((2 * E,), jnp.float32),
        co_w=scale * jax.random.normal(ks[4], (E, E), jnp.float32),
        co_b=jnp.zeros((E,), jnp.float32),
        lin1_w=scale * jax.random.normal(ks[5], (Hf, E), jnp.float32),
        lin1_b=jnp.zeros((Hf,), jnp.float32),
        lin2_w=scale * jax.random.normal(ks[6], (E, Hf), jnp.float32),
        lin2_b=jnp.zeros((E,), jnp.float32),
        n1_g=jnp.ones((E,), jnp.float32), n1_b=jnp.zeros((E,), jnp.float32),
        n2_g=jnp.ones((E,), jnp.float32), n2_b=jnp.zeros((E,), jnp.float32),
        n3_g=jnp.ones((E,), jnp.float32), n3_b=jnp.zeros((E,), jnp.float32),
    )


def init_params(key, num_features, d_model, nhid,
                encoder_nlayers, encoder_nhead, decoder_nlayers, decoder_nhead,
                scale=0.02):
    ks = jax.random.split(key, 5)
    enc_keys = jax.random.split(ks[3], encoder_nlayers)
    dec_keys = jax.random.split(ks[4], decoder_nlayers)
    return dict(
        d_model=d_model,
        enc_nhead=encoder_nhead,
        dec_nhead=decoder_nhead,
        enc_pe=_positional_encoding_buffer(d_model),
        dec_pe=_positional_encoding_buffer(d_model),
        # Conv1d(ks=1) weights stored as [out_channels, in_channels]
        enc_in_w=scale * jax.random.normal(ks[0], (d_model, num_features), jnp.float32),
        enc_in_b=jnp.zeros((d_model,), jnp.float32),
        dec_in_w=scale * jax.random.normal(ks[1], (d_model, 1), jnp.float32),
        dec_in_b=jnp.zeros((d_model,), jnp.float32),
        out_w=scale * jax.random.normal(ks[2], (1, d_model), jnp.float32),
        out_b=jnp.zeros((1,), jnp.float32),
        enc=_stack_layers([_init_encoder_layer(k, d_model, nhid, scale)
                           for k in enc_keys]),
        dec=_stack_layers([_init_decoder_layer(k, d_model, nhid, scale)
                           for k in dec_keys]),
    )


def generate_square_subsequent_mask(sz):
    tri = jnp.tril(jnp.ones((sz, sz), jnp.float32))
    return jnp.where(tri == 1.0, 0.0, -jnp.inf).astype(jnp.float32)


# ----------------------------------------------------------------------------
# Main
# ----------------------------------------------------------------------------

if __name__ == "__main__":
    NUM_FEATURES = 6
    D_MODEL = 32
    NHID = 64
    ENC_LAYERS = 2
    DEC_LAYERS = 2
    ENC_NHEAD = 4
    DEC_NHEAD = 4
    S, T, B = 8, 4, 2

    key = jax.random.PRNGKey(0)
    kp, ks, kt = jax.random.split(key, 3)

    params = init_params(kp, NUM_FEATURES, D_MODEL, NHID,
                         ENC_LAYERS, ENC_NHEAD, DEC_LAYERS, DEC_NHEAD)

    source = jax.random.normal(ks, (S, B, NUM_FEATURES), jnp.float32)
    target = jax.random.normal(kt, (T, B, 1), jnp.float32)
    tgt_mask = generate_square_subsequent_mask(T)

    fwd = jax.jit(functools.partial(my_transformer_forward, params))
    out = fwd(source, target, tgt_mask)
    out = jax.block_until_ready(out)

    assert out.shape == (T * B, 1, 1), out.shape
    assert bool(jnp.all(jnp.isfinite(out)))
    print("KERNEL_OK")
</pallas_src>

<mosaic_0001>
module attributes {stable_mosaic.version = 11 : i64} {
  func.func @kernel(%arg0: memref<16x6xf32, #tpu.memory_space<vmem>>, %arg1: memref<8x1xf32, #tpu.memory_space<vmem>>, %arg2: memref<4x4xf32, #tpu.memory_space<vmem>>, %arg3: memref<16x32xf32, #tpu.memory_space<vmem>>, %arg4: memref<8x32xf32, #tpu.memory_space<vmem>>, %arg5: memref<32x6xf32, #tpu.memory_space<vmem>>, %arg6: memref<1x32xf32, #tpu.memory_space<vmem>>, %arg7: memref<1x32xf32, #tpu.memory_space<vmem>>, %arg8: memref<1x32xf32, #tpu.memory_space<vmem>>, %arg9: memref<1x32xf32, #tpu.memory_space<vmem>>, %arg10: memref<1x1xf32, #tpu.memory_space<vmem>>, %arg11: memref<2x96x32xf32, #tpu.memory_space<vmem>>, %arg12: memref<2x1x96xf32, #tpu.memory_space<vmem>>, %arg13: memref<2x32x32xf32, #tpu.memory_space<vmem>>, %arg14: memref<2x1x32xf32, #tpu.memory_space<vmem>>, %arg15: memref<2x64x32xf32, #tpu.memory_space<vmem>>, %arg16: memref<2x1x64xf32, #tpu.memory_space<vmem>>, %arg17: memref<2x32x64xf32, #tpu.memory_space<vmem>>, %arg18: memref<2x1x32xf32, #tpu.memory_space<vmem>>, %arg19: memref<2x1x32xf32, #tpu.memory_space<vmem>>, %arg20: memref<2x1x32xf32, #tpu.memory_space<vmem>>, %arg21: memref<2x1x32xf32, #tpu.memory_space<vmem>>, %arg22: memref<2x1x32xf32, #tpu.memory_space<vmem>>, %arg23: memref<2x96x32xf32, #tpu.memory_space<vmem>>, %arg24: memref<2x1x96xf32, #tpu.memory_space<vmem>>, %arg25: memref<2x32x32xf32, #tpu.memory_space<vmem>>, %arg26: memref<2x1x32xf32, #tpu.memory_space<vmem>>, %arg27: memref<2x32x32xf32, #tpu.memory_space<vmem>>, %arg28: memref<2x1x32xf32, #tpu.memory_space<vmem>>, %arg29: memref<2x64x32xf32, #tpu.memory_space<vmem>>, %arg30: memref<2x1x64xf32, #tpu.memory_space<vmem>>, %arg31: memref<2x32x32xf32, #tpu.memory_space<vmem>>, %arg32: memref<2x1x32xf32, #tpu.memory_space<vmem>>, %arg33: memref<2x64x32xf32, #tpu.memory_space<vmem>>, %arg34: memref<2x1x64xf32, #tpu.memory_space<vmem>>, %arg35: memref<2x32x64xf32, #tpu.memory_space<vmem>>, %arg36: memref<2x1x32xf32, #tpu.memory_space<vmem>>, %arg37: memref<2x1x32xf32, #tpu.memory_space<vmem>>, %arg38: memref<2x1x32xf32, #tpu.memory_space<vmem>>, %arg39: memref<2x1x32xf32, #tpu.memory_space<vmem>>, %arg40: memref<2x1x32xf32, #tpu.memory_space<vmem>>, %arg41: memref<2x1x32xf32, #tpu.memory_space<vmem>>, %arg42: memref<2x1x32xf32, #tpu.memory_space<vmem>>, %arg43: memref<8x1xf32, #tpu.memory_space<vmem>>) attributes {dimension_semantics = [], scalar_prefetch = 0 : i64, scratch_operands = 0 : i64, tpu.core_type = #tpu.core_type<tc>} {
    %c0 = arith.constant 0 : index
    %c0_0 = arith.constant 0 : index
    %0 = vector.load %arg0[%c0, %c0_0] : memref<16x6xf32, #tpu.memory_space<vmem>>, vector<16x6xf32>
    %c0_1 = arith.constant 0 : index
    %c0_2 = arith.constant 0 : index
    %1 = vector.load %arg5[%c0_1, %c0_2] : memref<32x6xf32, #tpu.memory_space<vmem>>, vector<32x6xf32>
    %c0_3 = arith.constant 0 : index
    %c0_4 = arith.constant 0 : index
    %2 = vector.load %arg6[%c0_3, %c0_4] : memref<1x32xf32, #tpu.memory_space<vmem>>, vector<1x32xf32>
    %cst = arith.constant dense<0.000000e+00> : vector<16x32xf32>
    %3 = tpu.matmul %0, %1, %cst {dimension_numbers = #tpu.dot_dimension_numbers<[1], [1], [0], [0], [0, 0, 1, 0], [], []>} : vector<16x6xf32>, vector<32x6xf32>, vector<16x32xf32> -> vector<16x32xf32>
    %4 = vector.broadcast %2 : vector<1x32xf32> to vector<16x32xf32>
    %5 = arith.addf %3, %4 : vector<16x32xf32>
    %cst_5 = arith.constant 5.65685415 : f32
    %6 = vector.broadcast %cst_5 : f32 to vector<16x32xf32>
    %7 = arith.mulf %5, %6 : vector<16x32xf32>
    %c0_6 = arith.constant 0 : index
    %c0_7 = arith.constant 0 : index
    %8 = vector.load %arg3[%c0_6, %c0_7] : memref<16x32xf32, #tpu.memory_space<vmem>>, vector<16x32xf32>
    %9 = arith.addf %7, %8 : vector<16x32xf32>
    %c0_8 = arith.constant 0 : index
    %c0_9 = arith.constant 0 : index
    %c0_10 = arith.constant 0 : index
    %10 = vector.load %arg11[%c0_8, %c0_9, %c0_10] : memref<2x96x32xf32, #tpu.memory_space<vmem>>, vector<1x96x32xf32>
    %11 = vector.shape_cast %10 : vector<1x96x32xf32> to vector<96x32xf32>
    %c0_11 = arith.constant 0 : index
    %c0_12 = arith.constant 0 : index
    %c0_13 = arith.constant 0 : index
    %12 = vector.load %arg12[%c0_11, %c0_12, %c0_13] : memref<2x1x96xf32, #tpu.memory_space<vmem>>, vector<1x1x96xf32>
    %13 = vector.shape_cast %12 : vector<1x1x96xf32> to vector<1x96xf32>
    %cst_14 = arith.constant dense<0.000000e+00> : vector<16x96xf32>
    %14 = tpu.matmul %9, %11, %cst_14 {dimension_numbers = #tpu.dot_dimension_numbers<[1], [1], [0], [0], [0, 0, 1, 0], [], []>} : vector<16x32xf32>, vector<96x32xf32>, vector<16x96xf32> -> vector<16x96xf32>
    %15 = vector.broadcast %13 : vector<1x96xf32> to vector<16x96xf32>
    %16 = arith.addf %14, %15 : vector<16x96xf32>
    %17 = vector.extract_strided_slice %16 {offsets = [0, 0], sizes = [16, 32], strides = [1, 1]} : vector<16x96xf32> to vector<16x32xf32>
    %18 = vector.extract_strided_slice %16 {offsets = [0, 32], sizes = [16, 32], strides = [1, 1]} : vector<16x96xf32> to vector<16x32xf32>
    %19 = vector.extract_strided_slice %16 {offsets = [0, 64], sizes = [16, 32], strides = [1, 1]} : vector<16x96xf32> to vector<16x32xf32>
    %c0_15 = arith.constant 0 : index
    %c0_16 = arith.constant 0 : index
    %c0_17 = arith.constant 0 : index
    %20 = vector.load %arg13[%c0_15, %c0_16, %c0_17] : memref<2x32x32xf32, #tpu.memory_space<vmem>>, vector<1x32x32xf32>
    %21 = vector.shape_cast %20 : vector<1x32x32xf32> to vector<32x32xf32>
    %c0_18 = arith.constant 0 : index
    %c0_19 = arith.constant 0 : index
    %c0_20 = arith.constant 0 : index
    %22 = vector.load %arg14[%c0_18, %c0_19, %c0_20] : memref<2x1x32xf32, #tpu.memory_space<vmem>>, vector<1x1x32xf32>
    %23 = vector.shape_cast %22 : vector<1x1x32xf32> to vector<1x32xf32>
    %24 = vector.extract_strided_slice %17 {offsets = [0, 0], sizes = [8, 32], strides = [1, 1]} : vector<16x32xf32> to vector<8x32xf32>
    %25 = vector.extract_strided_slice %18 {offsets = [0, 0], sizes = [8, 32], strides = [1, 1]} : vector<16x32xf32> to vector<8x32xf32>
    %26 = vector.extract_strided_slice %19 {offsets = [0, 0], sizes = [8, 32], strides = [1, 1]} : vector<16x32xf32> to vector<8x32xf32>
    %27 = vector.extract_strided_slice %24 {offsets = [0, 0], sizes = [8, 8], strides = [1, 1]} : vector<8x32xf32> to vector<8x8xf32>
    %cst_21 = arith.constant 0.353553385 : f32
    %28 = vector.broadcast %cst_21 : f32 to vector<8x8xf32>
    %29 = arith.mulf %27, %28 : vector<8x8xf32>
    %30 = vector.extract_strided_slice %25 {offsets = [0, 0], sizes = [8, 8], strides = [1, 1]} : vector<8x32xf32> to vector<8x8xf32>
    %31 = vector.extract_strided_slice %26 {offsets = [0, 0], sizes = [8, 8], strides = [1, 1]} : vector<8x32xf32> to vector<8x8xf32>
    %cst_22 = arith.constant dense<0.000000e+00> : vector<8x8xf32>
    %32 = tpu.matmul %29, %30, %cst_22 {dimension_numbers = #tpu.dot_dimension_numbers<[1], [1], [0], [0], [0, 0, 1, 0], [], []>} : vector<8x8xf32>, vector<8x8xf32>, vector<8x8xf32> -> vector<8x8xf32>
    %cst_23 = arith.constant dense<0xFF800000> : vector<8xf32>
    %33 = vector.multi_reduction <maximumf>, %32, %cst_23 [1] : vector<8x8xf32> to vector<8xf32>
    %34 = vector.shape_cast %33 : vector<8xf32> to vector<8x1xf32>
    %35 = vector.broadcast %34 : vector<8x1xf32> to vector<8x8xf32>
    %36 = arith.subf %32, %35 : vector<8x8xf32>
    %37 = math.exp %36 : vector<8x8xf32>
    %cst_24 = arith.constant dense<0.000000e+00> : vector<8xf32>
    %38 = vector.multi_reduction <add>, %37, %cst_24 [1] : vector<8x8xf32> to vector<8xf32>
    %39 = vector.shape_cast %38 : vector<8xf32> to vector<8x1xf32>
    %40 = tpu.reciprocal %39 {approx = true} : vector<8x1xf32> -> vector<8x1xf32>
    %41 = vector.broadcast %40 : vector<8x1xf32> to vector<8x8xf32>
    %42 = arith.mulf %37, %41 : vector<8x8xf32>
    %cst_25 = arith.constant dense<0.000000e+00> : vector<8x8xf32>
    %43 = tpu.matmul %42, %31, %cst_25 {dimension_numbers = #tpu.dot_dimension_numbers<[1], [0], [0], [1], [0, 0, 1, 1], [], []>} : vector<8x8xf32>, vector<8x8xf32>, vector<8x8xf32> -> vector<8x8xf32>
    %44 = vector.extract_strided_slice %24 {offsets = [0, 8], sizes = [8, 8], strides = [1, 1]} : vector<8x32xf32> to vector<8x8xf32>
    %cst_26 = arith.constant 0.353553385 : f32
    %45 = vector.broadcast %cst_26 : f32 to vector<8x8xf32>
    %46 = arith.mulf %44, %45 : vector<8x8xf32>
    %47 = vector.extract_strided_slice %25 {offsets = [0, 8], sizes = [8, 8], strides = [1, 1]} : vector<8x32xf32> to vector<8x8xf32>
    %48 = vector.extract_strided_slice %26 {offsets = [0, 8], sizes = [8, 8], strides = [1, 1]} : vector<8x32xf32> to vector<8x8xf32>
    %cst_27 = arith.constant dense<0.000000e+00> : vector<8x8xf32>
    %49 = tpu.matmul %46, %47, %cst_27 {dimension_numbers = #tpu.dot_dimension_numbers<[1], [1], [0], [0], [0, 0, 1, 0], [], []>} : vector<8x8xf32>, vector<8x8xf32>, vector<8x8xf32> -> vector<8x8xf32>
    %cst_28 = arith.constant dense<0xFF800000> : vector<8xf32>
    %50 = vector.multi_reduction <maximumf>, %49, %cst_28 [1] : vector<8x8xf32> to vector<8xf32>
    %51 = vector.shape_cast %50 : vector<8xf32> to vector<8x1xf32>
    %52 = vector.broadcast %51 : vector<8x1xf32> to vector<8x8xf32>
    %53 = arith.subf %49, %52 : vector<8x8xf32>
    %54 = math.exp %53 : vector<8x8xf32>
    %cst_29 = arith.constant dense<0.000000e+00> : vector<8xf32>
    %55 = vector.multi_reduction <add>, %54, %cst_29 [1] : vector<8x8xf32> to vector<8xf32>
    %56 = vector.shape_cast %55 : vector<8xf32> to vector<8x1xf32>
    %57 = tpu.reciprocal %56 {approx = true} : vector<8x1xf32> -> vector<8x1xf32>
    %58 = vector.broadcast %57 : vector<8x1xf32> to vector<8x8xf32>
    %59 = arith.mulf %54, %58 : vector<8x8xf32>
    %cst_30 = arith.constant dense<0.000000e+00> : vector<8x8xf32>
    %60 = tpu.matmul %59, %48, %cst_30 {dimension_numbers = #tpu.dot_dimension_numbers<[1], [0], [0], [1], [0, 0, 1, 1], [], []>} : vector<8x8xf32>, vector<8x8xf32>, vector<8x8xf32> -> vector<8x8xf32>
    %61 = vector.extract_strided_slice %24 {offsets = [0, 16], sizes = [8, 8], strides = [1, 1]} : vector<8x32xf32> to vector<8x8xf32>
    %cst_31 = arith.constant 0.353553385 : f32
    %62 = vector.broadcast %cst_31 : f32 to vector<8x8xf32>
    %63 = arith.mulf %61, %62 : vector<8x8xf32>
    %64 = vector.extract_strided_slice %25 {offsets = [0, 16], sizes = [8, 8], strides = [1, 1]} : vector<8x32xf32> to vector<8x8xf32>
    %65 = vector.extract_strided_slice %26 {offsets = [0, 16], sizes = [8, 8], strides = [1, 1]} : vector<8x32xf32> to vector<8x8xf32>
    %cst_32 = arith.constant dense<0.000000e+00> : vector<8x8xf32>
    %66 = tpu.matmul %63, %64, %cst_32 {dimension_numbers = #tpu.dot_dimension_numbers<[1], [1], [0], [0], [0, 0, 1, 0], [], []>} : vector<8x8xf32>, vector<8x8xf32>, vector<8x8xf32> -> vector<8x8xf32>
    %cst_33 = arith.constant dense<0xFF800000> : vector<8xf32>
    %67 = vector.multi_reduction <maximumf>, %66, %cst_33 [1] : vector<8x8xf32> to vector<8xf32>
    %68 = vector.shape_cast %67 : vector<8xf32> to vector<8x1xf32>
    %69 = vector.broadcast %68 : vector<8x1xf32> to vector<8x8xf32>
    %70 = arith.subf %66, %69 : vector<8x8xf32>
    %71 = math.exp %70 : vector<8x8xf32>
    %cst_34 = arith.constant dense<0.000000e+00> : vector<8xf32>
    %72 = vector.multi_reduction <add>, %71, %cst_34 [1] : vector<8x8xf32> to vector<8xf32>
    %73 = vector.shape_cast %72 : vector<8xf32> to vector<8x1xf32>
    %74 = tpu.reciprocal %73 {approx = true} : vector<8x1xf32> -> vector<8x1xf32>
    %75 = vector.broadcast %74 : vector<8x1xf32> to vector<8x8xf32>
    %76 = arith.mulf %71, %75 : vector<8x8xf32>
    %cst_35 = arith.constant dense<0.000000e+00> : vector<8x8xf32>
    %77 = tpu.matmul %76, %65, %cst_35 {dimension_numbers = #tpu.dot_dimension_numbers<[1], [0], [0], [1], [0, 0, 1, 1], [], []>} : vector<8x8xf32>, vector<8x8xf32>, vector<8x8xf32> -> vector<8x8xf32>
    %78 = vector.extract_strided_slice %24 {offsets = [0, 24], sizes = [8, 8], strides = [1, 1]} : vector<8x32xf32> to vector<8x8xf32>
    %cst_36 = arith.constant 0.353553385 : f32
    %79 = vector.broadcast %cst_36 : f32 to vector<8x8xf32>
    %80 = arith.mulf %78, %79 : vector<8x8xf32>
    %81 = vector.extract_strided_slice %25 {offsets = [0, 24], sizes = [8, 8], strides = [1, 1]} : vector<8x32xf32> to vector<8x8xf32>
    %82 = vector.extract_strided_slice %26 {offsets = [0, 24], sizes = [8, 8], strides = [1, 1]} : vector<8x32xf32> to vector<8x8xf32>
    %cst_37 = arith.constant dense<0.000000e+00> : vector<8x8xf32>
    %83 = tpu.matmul %80, %81, %cst_37 {dimension_numbers = #tpu.dot_dimension_numbers<[1], [1], [0], [0], [0, 0, 1, 0], [], []>} : vector<8x8xf32>, vector<8x8xf32>, vector<8x8xf32> -> vector<8x8xf32>
    %cst_38 = arith.constant dense<0xFF800000> : vector<8xf32>
    %84 = vector.multi_reduction <maximumf>, %83, %cst_38 [1] : vector<8x8xf32> to vector<8xf32>
    %85 = vector.shape_cast %84 : vector<8xf32> to vector<8x1xf32>
    %86 = vector.broadcast %85 : vector<8x1xf32> to vector<8x8xf32>
    %87 = arith.subf %83, %86 : vector<8x8xf32>
    %88 = math.exp %87 : vector<8x8xf32>
    %cst_39 = arith.constant dense<0.000000e+00> : vector<8xf32>
    %89 = vector.multi_reduction <add>, %88, %cst_39 [1] : vector<8x8xf32> to vector<8xf32>
    %90 = vector.shape_cast %89 : vector<8xf32> to vector<8x1xf32>
    %91 = tpu.reciprocal %90 {approx = true} : vector<8x1xf32> -> vector<8x1xf32>
    %92 = vector.broadcast %91 : vector<8x1xf32> to vector<8x8xf32>
    %93 = arith.mulf %88, %92 : vector<8x8xf32>
    %cst_40 = arith.constant dense<0.000000e+00> : vector<8x8xf32>
    %94 = tpu.matmul %93, %82, %cst_40 {dimension_numbers = #tpu.dot_dimension_numbers<[1], [0], [0], [1], [0, 0, 1, 1], [], []>} : vector<8x8xf32>, vector<8x8xf32>, vector<8x8xf32> -> vector<8x8xf32>
    %95 = tpu.concatenate %43, %60, %77, %94 in 1 : vector<8x8xf32>, vector<8x8xf32>, vector<8x8xf32>, vector<8x8xf32> -> vector<8x32xf32>
    %96 = vector.extract_strided_slice %17 {offsets = [8, 0], sizes = [8, 32], strides = [1, 1]} : vector<16x32xf32> to vector<8x32xf32>
    %97 = vector.extract_strided_slice %18 {offsets = [8, 0], sizes = [8, 32], strides = [1, 1]} : vector<16x32xf32> to vector<8x32xf32>
    %98 = vector.extract_strided_slice %19 {offsets = [8, 0], sizes = [8, 32], strides = [1, 1]} : vector<16x32xf32> to vector<8x32xf32>
    %99 = vector.extract_strided_slice %96 {offsets = [0, 0], sizes = [8, 8], strides = [1, 1]} : vector<8x32xf32> to vector<8x8xf32>
    %cst_41 = arith.constant 0.353553385 : f32
    %100 = vector.broadcast %cst_41 : f32 to vector<8x8xf32>
    %101 = arith.mulf %99, %100 : vector<8x8xf32>
    %102 = vector.extract_strided_slice %97 {offsets = [0, 0], sizes = [8, 8], strides = [1, 1]} : vector<8x32xf32> to vector<8x8xf32>
    %103 = vector.extract_strided_slice %98 {offsets = [0, 0], sizes = [8, 8], strides = [1, 1]} : vector<8x32xf32> to vector<8x8xf32>
    %cst_42 = arith.constant dense<0.000000e+00> : vector<8x8xf32>
    %104 = tpu.matmul %101, %102, %cst_42 {dimension_numbers = #tpu.dot_dimension_numbers<[1], [1], [0], [0], [0, 0, 1, 0], [], []>} : vector<8x8xf32>, vector<8x8xf32>, vector<8x8xf32> -> vector<8x8xf32>
    %cst_43 = arith.constant dense<0xFF800000> : vector<8xf32>
    %105 = vector.multi_reduction <maximumf>, %104, %cst_43 [1] : vector<8x8xf32> to vector<8xf32>
    %106 = vector.shape_cast %105 : vector<8xf32> to vector<8x1xf32>
    %107 = vector.broadcast %106 : vector<8x1xf32> to vector<8x8xf32>
    %108 = arith.subf %104, %107 : vector<8x8xf32>
    %109 = math.exp %108 : vector<8x8xf32>
    %cst_44 = arith.constant dense<0.000000e+00> : vector<8xf32>
    %110 = vector.multi_reduction <add>, %109, %cst_44 [1] : vector<8x8xf32> to vector<8xf32>
    %111 = vector.shape_cast %110 : vector<8xf32> to vector<8x1xf32>
    %112 = tpu.reciprocal %111 {approx = true} : vector<8x1xf32> -> vector<8x1xf32>
    %113 = vector.broadcast %112 : vector<8x1xf32> to vector<8x8xf32>
    %114 = arith.mulf %109, %113 : vector<8x8xf32>
    %cst_45 = arith.constant dense<0.000000e+00> : vector<8x8xf32>
    %115 = tpu.matmul %114, %103, %cst_45 {dimension_numbers = #tpu.dot_dimension_numbers<[1], [0], [0], [1], [0, 0, 1, 1], [], []>} : vector<8x8xf32>, vector<8x8xf32>, vector<8x8xf32> -> vector<8x8xf32>
    %116 = vector.extract_strided_slice %96 {offsets = [0, 8], sizes = [8, 8], strides = [1, 1]} : vector<8x32xf32> to vector<8x8xf32>
    %cst_46 = arith.constant 0.353553385 : f32
    %117 = vector.broadcast %cst_46 : f32 to vector<8x8xf32>
    %118 = arith.mulf %116, %117 : vector<8x8xf32>
    %119 = vector.extract_strided_slice %97 {offsets = [0, 8], sizes = [8, 8], strides = [1, 1]} : vector<8x32xf32> to vector<8x8xf32>
    %120 = vector.extract_strided_slice %98 {offsets = [0, 8], sizes = [8, 8], strides = [1, 1]} : vector<8x32xf32> to vector<8x8xf32>
    %cst_47 = arith.constant dense<0.000000e+00> : vector<8x8xf32>
    %121 = tpu.matmul %118, %119, %cst_47 {dimension_numbers = #tpu.dot_dimension_numbers<[1], [1], [0], [0], [0, 0, 1, 0], [], []>} : vector<8x8xf32>, vector<8x8xf32>, vector<8x8xf32> -> vector<8x8xf32>
    %cst_48 = arith.constant dense<0xFF800000> : vector<8xf32>
    %122 = vector.multi_reduction <maximumf>, %121, %cst_48 [1] : vector<8x8xf32> to vector<8xf32>
    %123 = vector.shape_cast %122 : vector<8xf32> to vector<8x1xf32>
    %124 = vector.broadcast %123 : vector<8x1xf32> to vector<8x8xf32>
    %125 = arith.subf %121, %124 : vector<8x8xf32>
    %126 = math.exp %125 : vector<8x8xf32>
    %cst_49 = arith.constant dense<0.000000e+00> : vector<8xf32>
    %127 = vector.multi_reduction <add>, %126, %cst_49 [1] : vector<8x8xf32> to vector<8xf32>
    %128 = vector.shape_cast %127 : vector<8xf32> to vector<8x1xf32>
    %129 = tpu.reciprocal %128 {approx = true} : vector<8x1xf32> -> vector<8x1xf32>
    %130 = vector.broadcast %129 : vector<8x1xf32> to vector<8x8xf32>
    %131 = arith.mulf %126, %130 : vector<8x8xf32>
    %cst_50 = arith.constant dense<0.000000e+00> : vector<8x8xf32>
    %132 = tpu.matmul %131, %120, %cst_50 {dimension_numbers = #tpu.dot_dimension_numbers<[1], [0], [0], [1], [0, 0, 1, 1], [], []>} : vector<8x8xf32>, vector<8x8xf32>, vector<8x8xf32> -> vector<8x8xf32>
    %133 = vector.extract_strided_slice %96 {offsets = [0, 16], sizes = [8, 8], strides = [1, 1]} : vector<8x32xf32> to vector<8x8xf32>
    %cst_51 = arith.constant 0.353553385 : f32
    %134 = vector.broadcast %cst_51 : f32 to vector<8x8xf32>
    %135 = arith.mulf %133, %134 : vector<8x8xf32>
    %136 = vector.extract_strided_slice %97 {offsets = [0, 16], sizes = [8, 8], strides = [1, 1]} : vector<8x32xf32> to vector<8x8xf32>
    %137 = vector.extract_strided_slice %98 {offsets = [0, 16], sizes = [8, 8], strides = [1, 1]} : vector<8x32xf32> to vector<8x8xf32>
    %cst_52 = arith.constant dense<0.000000e+00> : vector<8x8xf32>
    %138 = tpu.matmul %135, %136, %cst_52 {dimension_numbers = #tpu.dot_dimension_numbers<[1], [1], [0], [0], [0, 0, 1, 0], [], []>} : vector<8x8xf32>, vector<8x8xf32>, vector<8x8xf32> -> vector<8x8xf32>
    %cst_53 = arith.constant dense<0xFF800000> : vector<8xf32>
    %139 = vector.multi_reduction <maximumf>, %138, %cst_53 [1] : vector<8x8xf32> to vector<8xf32>
    %140 = vector.shape_cast %139 : vector<8xf32> to vector<8x1xf32>
    %141 = vector.broadcast %140 : vector<8x1xf32> to vector<8x8xf32>
    %142 = arith.subf %138, %141 : vector<8x8xf32>
    %143 = math.exp %142 : vector<8x8xf32>
    %cst_54 = arith.constant dense<0.000000e+00> : vector<8xf32>
    %144 = vector.multi_reduction <add>, %143, %cst_54 [1] : vector<8x8xf32> to vector<8xf32>
    %145 = vector.shape_cast %144 : vector<8xf32> to vector<8x1xf32>
    %146 = tpu.reciprocal %145 {approx = true} : vector<8x1xf32> -> vector<8x1xf32>
    %147 = vector.broadcast %146 : vector<8x1xf32> to vector<8x8xf32>
    %148 = arith.mulf %143, %147 : vector<8x8xf32>
    %cst_55 = arith.constant dense<0.000000e+00> : vector<8x8xf32>
    %149 = tpu.matmul %148, %137, %cst_55 {dimension_numbers = #tpu.dot_dimension_numbers<[1], [0], [0], [1], [0, 0, 1, 1], [], []>} : vector<8x8xf32>, vector<8x8xf32>, vector<8x8xf32> -> vector<8x8xf32>
    %150 = vector.extract_strided_slice %96 {offsets = [0, 24], sizes = [8, 8], strides = [1, 1]} : vector<8x32xf32> to vector<8x8xf32>
    %cst_56 = arith.constant 0.353553385 : f32
    %151 = vector.broadcast %cst_56 : f32 to vector<8x8xf32>
    %152 = arith.mulf %150, %151 : vector<8x8xf32>
    %153 = vector.extract_strided_slice %97 {offsets = [0, 24], sizes = [8, 8], strides = [1, 1]} : vector<8x32xf32> to vector<8x8xf32>
    %154 = vector.extract_strided_slice %98 {offsets = [0, 24], sizes = [8, 8], strides = [1, 1]} : vector<8x32xf32> to vector<8x8xf32>
    %cst_57 = arith.constant dense<0.000000e+00> : vector<8x8xf32>
    %155 = tpu.matmul %152, %153, %cst_57 {dimension_numbers = #tpu.dot_dimension_numbers<[1], [1], [0], [0], [0, 0, 1, 0], [], []>} : vector<8x8xf32>, vector<8x8xf32>, vector<8x8xf32> -> vector<8x8xf32>
    %cst_58 = arith.constant dense<0xFF800000> : vector<8xf32>
    %156 = vector.multi_reduction <maximumf>, %155, %cst_58 [1] : vector<8x8xf32> to vector<8xf32>
    %157 = vector.shape_cast %156 : vector<8xf32> to vector<8x1xf32>
    %158 = vector.broadcast %157 : vector<8x1xf32> to vector<8x8xf32>
    %159 = arith.subf %155, %158 : vector<8x8xf32>
    %160 = math.exp %159 : vector<8x8xf32>
    %cst_59 = arith.constant dense<0.000000e+00> : vector<8xf32>
    %161 = vector.multi_reduction <add>, %160, %cst_59 [1] : vector<8x8xf32> to vector<8xf32>
    %162 = vector.shape_cast %161 : vector<8xf32> to vector<8x1xf32>
    %163 = tpu.reciprocal %162 {approx = true} : vector<8x1xf32> -> vector<8x1xf32>
    %164 = vector.broadcast %163 : vector<8x1xf32> to vector<8x8xf32>
    %165 = arith.mulf %160, %164 : vector<8x8xf32>
    %cst_60 = arith.constant dense<0.000000e+00> : vector<8x8xf32>
    %166 = tpu.matmul %165, %154, %cst_60 {dimension_numbers = #tpu.dot_dimension_numbers<[1], [0], [0], [1], [0, 0, 1, 1], [], []>} : vector<8x8xf32>, vector<8x8xf32>, vector<8x8xf32> -> vector<8x8xf32>
    %167 = tpu.concatenate %115, %132, %149, %166 in 1 : vector<8x8xf32>, vector<8x8xf32>, vector<8x8xf32>, vector<8x8xf32> -> vector<8x32xf32>
    %168 = tpu.concatenate %95, %167 in 0 : vector<8x32xf32>, vector<8x32xf32> -> vector<16x32xf32>
    %cst_61 = arith.constant dense<0.000000e+00> : vector<16x32xf32>
    %169 = tpu.matmul %168, %21, %cst_61 {dimension_numbers = #tpu.dot_dimension_numbers<[1], [1], [0], [0], [0, 0, 1, 0], [], []>} : vector<16x32xf32>, vector<32x32xf32>, vector<16x32xf32> -> vector<16x32xf32>
    %170 = vector.broadcast %23 : vector<1x32xf32> to vector<16x32xf32>
    %171 = arith.addf %169, %170 : vector<16x32xf32>
    %172 = arith.addf %9, %171 : vector<16x32xf32>
    %c0_62 = arith.constant 0 : index
    %c0_63 = arith.constant 0 : index
    %c0_64 = arith.constant 0 : index
    %173 = vector.load %arg19[%c0_62, %c0_63, %c0_64] : memref<2x1x32xf32, #tpu.memory_space<vmem>>, vector<1x1x32xf32>
    %174 = vector.shape_cast %173 : vector<1x1x32xf32> to vector<1x32xf32>
    %c0_65 = arith.constant 0 : index
    %c0_66 = arith.constant 0 : index
    %c0_67 = arith.constant 0 : index
    %175 = vector.load %arg20[%c0_65, %c0_66, %c0_67] : memref<2x1x32xf32, #tpu.memory_space<vmem>>, vector<1x1x32xf32>
    %176 = vector.shape_cast %175 : vector<1x1x32xf32> to vector<1x32xf32>
    %cst_68 = arith.constant dense<0.000000e+00> : vector<16xf32>
    %177 = vector.multi_reduction <add>, %172, %cst_68 [1] : vector<16x32xf32> to vector<16xf32>
    %178 = vector.shape_cast %177 : vector<16xf32> to vector<16x1xf32>
    %cst_69 = arith.constant 3.200000e+01 : f32
    %179 = vector.broadcast %cst_69 : f32 to vector<16x1xf32>
    %180 = arith.divf %178, %179 : vector<16x1xf32>
    %181 = vector.broadcast %180 : vector<16x1xf32> to vector<16x32xf32>
    %182 = arith.subf %172, %181 : vector<16x32xf32>
    %183 = arith.mulf %182, %182 : vector<16x32xf32>
    %cst_70 = arith.constant dense<0.000000e+00> : vector<16xf32>
    %184 = vector.multi_reduction <add>, %183, %cst_70 [1] : vector<16x32xf32> to vector<16xf32>
    %185 = vector.shape_cast %184 : vector<16xf32> to vector<16x1xf32>
    %cst_71 = arith.constant 3.200000e+01 : f32
    %186 = vector.broadcast %cst_71 : f32 to vector<16x1xf32>
    %187 = arith.divf %185, %186 : vector<16x1xf32>
    %188 = vector.broadcast %180 : vector<16x1xf32> to vector<16x32xf32>
    %189 = arith.subf %172, %188 : vector<16x32xf32>
    %cst_72 = arith.constant 9.99999974E-6 : f32
    %190 = vector.broadcast %cst_72 : f32 to vector<16x1xf32>
    %191 = arith.addf %187, %190 : vector<16x1xf32>
    %192 = math.rsqrt %191 : vector<16x1xf32>
    %193 = vector.broadcast %192 : vector<16x1xf32> to vector<16x32xf32>
    %194 = arith.mulf %189, %193 : vector<16x32xf32>
    %195 = vector.broadcast %174 : vector<1x32xf32> to vector<16x32xf32>
    %196 = arith.mulf %194, %195 : vector<16x32xf32>
    %197 = vector.broadcast %176 : vector<1x32xf32> to vector<16x32xf32>
    %198 = arith.addf %196, %197 : vector<16x32xf32>
    %c0_73 = arith.constant 0 : index
    %c0_74 = arith.constant 0 : index
    %c0_75 = arith.constant 0 : index
    %199 = vector.load %arg15[%c0_73, %c0_74, %c0_75] : memref<2x64x32xf32, #tpu.memory_space<vmem>>, vector<1x64x32xf32>
    %200 = vector.shape_cast %199 : vector<1x64x32xf32> to vector<64x32xf32>
    %c0_76 = arith.constant 0 : index
    %c0_77 = arith.constant 0 : index
    %c0_78 = arith.constant 0 : index
    %201 = vector.load %arg16[%c0_76, %c0_77, %c0_78] : memref<2x1x64xf32, #tpu.memory_space<vmem>>, vector<1x1x64xf32>
    %202 = vector.shape_cast %201 : vector<1x1x64xf32> to vector<1x64xf32>
    %cst_79 = arith.constant dense<0.000000e+00> : vector<16x64xf32>
    %203 = tpu.matmul %198, %200, %cst_79 {dimension_numbers = #tpu.dot_dimension_numbers<[1], [1], [0], [0], [0, 0, 1, 0], [], []>} : vector<16x32xf32>, vector<64x32xf32>, vector<16x64xf32> -> vector<16x64xf32>
    %204 = vector.broadcast %202 : vector<1x64xf32> to vector<16x64xf32>
    %205 = arith.addf %203, %204 : vector<16x64xf32>
    %cst_80 = arith.constant 0.000000e+00 : f32
    %206 = vector.broadcast %cst_80 : f32 to vector<16x64xf32>
    %207 = arith.maximumf %205, %206 : vector<16x64xf32>
    %c0_81 = arith.constant 0 : index
    %c0_82 = arith.constant 0 : index
    %c0_83 = arith.constant 0 : index
    %208 = vector.load %arg17[%c0_81, %c0_82, %c0_83] : memref<2x32x64xf32, #tpu.memory_space<vmem>>, vector<1x32x64xf32>
    %209 = vector.shape_cast %208 : vector<1x32x64xf32> to vector<32x64xf32>
    %c0_84 = arith.constant 0 : index
    %c0_85 = arith.constant 0 : index
    %c0_86 = arith.constant 0 : index
    %210 = vector.load %arg18[%c0_84, %c0_85, %c0_86] : memref<2x1x32xf32, #tpu.memory_space<vmem>>, vector<1x1x32xf32>
    %211 = vector.shape_cast %210 : vector<1x1x32xf32> to vector<1x32xf32>
    %cst_87 = arith.constant dense<0.000000e+00> : vector<16x32xf32>
    %212 = tpu.matmul %207, %209, %cst_87 {dimension_numbers = #tpu.dot_dimension_numbers<[1], [1], [0], [0], [0, 0, 1, 0], [], []>} : vector<16x64xf32>, vector<32x64xf32>, vector<16x32xf32> -> vector<16x32xf32>
    %213 = vector.broadcast %211 : vector<1x32xf32> to vector<16x32xf32>
    %214 = arith.addf %212, %213 : vector<16x32xf32>
    %215 = arith.addf %198, %214 : vector<16x32xf32>
    %c0_88 = arith.constant 0 : index
    %c0_89 = arith.constant 0 : index
    %c0_90 = arith.constant 0 : index
    %216 = vector.load %arg21[%c0_88, %c0_89, %c0_90] : memref<2x1x32xf32, #tpu.memory_space<vmem>>, vector<1x1x32xf32>
    %217 = vector.shape_cast %216 : vector<1x1x32xf32> to vector<1x32xf32>
    %c0_91 = arith.constant 0 : index
    %c0_92 = arith.constant 0 : index
    %c0_93 = arith.constant 0 : index
    %218 = vector.load %arg22[%c0_91, %c0_92, %c0_93] : memref<2x1x32xf32, #tpu.memory_space<vmem>>, vector<1x1x32xf32>
    %219 = vector.shape_cast %218 : vector<1x1x32xf32> to vector<1x32xf32>
    %cst_94 = arith.constant dense<0.000000e+00> : vector<16xf32>
    %220 = vector.multi_reduction <add>, %215, %cst_94 [1] : vector<16x32xf32> to vector<16xf32>
    %221 = vector.shape_cast %220 : vector<16xf32> to vector<16x1xf32>
    %cst_95 = arith.constant 3.200000e+01 : f32
    %222 = vector.broadcast %cst_95 : f32 to vector<16x1xf32>
    %223 = arith.divf %221, %222 : vector<16x1xf32>
    %224 = vector.broadcast %223 : vector<16x1xf32> to vector<16x32xf32>
    %225 = arith.subf %215, %224 : vector<16x32xf32>
    %226 = arith.mulf %225, %225 : vector<16x32xf32>
    %cst_96 = arith.constant dense<0.000000e+00> : vector<16xf32>
    %227 = vector.multi_reduction <add>, %226, %cst_96 [1] : vector<16x32xf32> to vector<16xf32>
    %228 = vector.shape_cast %227 : vector<16xf32> to vector<16x1xf32>
    %cst_97 = arith.constant 3.200000e+01 : f32
    %229 = vector.broadcast %cst_97 : f32 to vector<16x1xf32>
    %230 = arith.divf %228, %229 : vector<16x1xf32>
    %231 = vector.broadcast %223 : vector<16x1xf32> to vector<16x32xf32>
    %232 = arith.subf %215, %231 : vector<16x32xf32>
    %cst_98 = arith.constant 9.99999974E-6 : f32
    %233 = vector.broadcast %cst_98 : f32 to vector<16x1xf32>
    %234 = arith.addf %230, %233 : vector<16x1xf32>
    %235 = math.rsqrt %234 : vector<16x1xf32>
    %236 = vector.broadcast %235 : vector<16x1xf32> to vector<16x32xf32>
    %237 = arith.mulf %232, %236 : vector<16x32xf32>
    %238 = vector.broadcast %217 : vector<1x32xf32> to vector<16x32xf32>
    %239 = arith.mulf %237, %238 : vector<16x32xf32>
    %240 = vector.broadcast %219 : vector<1x32xf32> to vector<16x32xf32>
    %241 = arith.addf %239, %240 : vector<16x32xf32>
    %c1 = arith.constant 1 : index
    %c0_99 = arith.constant 0 : index
    %c0_100 = arith.constant 0 : index
    %242 = vector.load %arg11[%c1, %c0_99, %c0_100] : memref<2x96x32xf32, #tpu.memory_space<vmem>>, vector<1x96x32xf32>
    %243 = vector.shape_cast %242 : vector<1x96x32xf32> to vector<96x32xf32>
    %c1_101 = arith.constant 1 : index
    %c0_102 = arith.constant 0 : index
    %c0_103 = arith.constant 0 : index
    %244 = vector.load %arg12[%c1_101, %c0_102, %c0_103] : memref<2x1x96xf32, #tpu.memory_space<vmem>>, vector<1x1x96xf32>
    %245 = vector.shape_cast %244 : vector<1x1x96xf32> to vector<1x96xf32>
    %cst_104 = arith.constant dense<0.000000e+00> : vector<16x96xf32>
    %246 = tpu.matmul %241, %243, %cst_104 {dimension_numbers = #tpu.dot_dimension_numbers<[1], [1], [0], [0], [0, 0, 1, 0], [], []>} : vector<16x32xf32>, vector<96x32xf32>, vector<16x96xf32> -> vector<16x96xf32>
    %247 = vector.broadcast %245 : vector<1x96xf32> to vector<16x96xf32>
    %248 = arith.addf %246, %247 : vector<16x96xf32>
    %249 = vector.extract_strided_slice %248 {offsets = [0, 0], sizes = [16, 32], strides = [1, 1]} : vector<16x96xf32> to vector<16x32xf32>
    %250 = vector.extract_strided_slice %248 {offsets = [0, 32], sizes = [16, 32], strides = [1, 1]} : vector<16x96xf32> to vector<16x32xf32>
    %251 = vector.extract_strided_slice %248 {offsets = [0, 64], sizes = [16, 32], strides = [1, 1]} : vector<16x96xf32> to vector<16x32xf32>
    %c1_105 = arith.constant 1 : index
    %c0_106 = arith.constant 0 : index
    %c0_107 = arith.constant 0 : index
    %252 = vector.load %arg13[%c1_105, %c0_106, %c0_107] : memref<2x32x32xf32, #tpu.memory_space<vmem>>, vector<1x32x32xf32>
    %253 = vector.shape_cast %252 : vector<1x32x32xf32> to vector<32x32xf32>
    %c1_108 = arith.constant 1 : index
    %c0_109 = arith.constant 0 : index
    %c0_110 = arith.constant 0 : index
    %254 = vector.load %arg14[%c1_108, %c0_109, %c0_110] : memref<2x1x32xf32, #tpu.memory_space<vmem>>, vector<1x1x32xf32>
    %255 = vector.shape_cast %254 : vector<1x1x32xf32> to vector<1x32xf32>
    %256 = vector.extract_strided_slice %249 {offsets = [0, 0], sizes = [8, 32], strides = [1, 1]} : vector<16x32xf32> to vector<8x32xf32>
    %257 = vector.extract_strided_slice %250 {offsets = [0, 0], sizes = [8, 32], strides = [1, 1]} : vector<16x32xf32> to vector<8x32xf32>
    %258 = vector.extract_strided_slice %251 {offsets = [0, 0], sizes = [8, 32], strides = [1, 1]} : vector<16x32xf32> to vector<8x32xf32>
    %259 = vector.extract_strided_slice %256 {offsets = [0, 0], sizes = [8, 8], strides = [1, 1]} : vector<8x32xf32> to vector<8x8xf32>
    %cst_111 = arith.constant 0.353553385 : f32
    %260 = vector.broadcast %cst_111 : f32 to vector<8x8xf32>
    %261 = arith.mulf %259, %260 : vector<8x8xf32>
    %262 = vector.extract_strided_slice %257 {offsets = [0, 0], sizes = [8, 8], strides = [1, 1]} : vector<8x32xf32> to vector<8x8xf32>
    %263 = vector.extract_strided_slice %258 {offsets = [0, 0], sizes = [8, 8], strides = [1, 1]} : vector<8x32xf32> to vector<8x8xf32>
    %cst_112 = arith.constant dense<0.000000e+00> : vector<8x8xf32>
    %264 = tpu.matmul %261, %262, %cst_112 {dimension_numbers = #tpu.dot_dimension_numbers<[1], [1], [0], [0], [0, 0, 1, 0], [], []>} : vector<8x8xf32>, vector<8x8xf32>, vector<8x8xf32> -> vector<8x8xf32>
    %cst_113 = arith.constant dense<0xFF800000> : vector<8xf32>
    %265 = vector.multi_reduction <maximumf>, %264, %cst_113 [1] : vector<8x8xf32> to vector<8xf32>
    %266 = vector.shape_cast %265 : vector<8xf32> to vector<8x1xf32>
    %267 = vector.broadcast %266 : vector<8x1xf32> to vector<8x8xf32>
    %268 = arith.subf %264, %267 : vector<8x8xf32>
    %269 = math.exp %268 : vector<8x8xf32>
    %cst_114 = arith.constant dense<0.000000e+00> : vector<8xf32>
    %270 = vector.multi_reduction <add>, %269, %cst_114 [1] : vector<8x8xf32> to vector<8xf32>
    %271 = vector.shape_cast %270 : vector<8xf32> to vector<8x1xf32>
    %272 = tpu.reciprocal %271 {approx = true} : vector<8x1xf32> -> vector<8x1xf32>
    %273 = vector.broadcast %272 : vector<8x1xf32> to vector<8x8xf32>
    %274 = arith.mulf %269, %273 : vector<8x8xf32>
    %cst_115 = arith.constant dense<0.000000e+00> : vector<8x8xf32>
    %275 = tpu.matmul %274, %263, %cst_115 {dimension_numbers = #tpu.dot_dimension_numbers<[1], [0], [0], [1], [0, 0, 1, 1], [], []>} : vector<8x8xf32>, vector<8x8xf32>, vector<8x8xf32> -> vector<8x8xf32>
    %276 = vector.extract_strided_slice %256 {offsets = [0, 8], sizes = [8, 8], strides = [1, 1]} : vector<8x32xf32> to vector<8x8xf32>
    %cst_116 = arith.constant 0.353553385 : f32
    %277 = vector.broadcast %cst_116 : f32 to vector<8x8xf32>
    %278 = arith.mulf %276, %277 : vector<8x8xf32>
    %279 = vector.extract_strided_slice %257 {offsets = [0, 8], sizes = [8, 8], strides = [1, 1]} : vector<8x32xf32> to vector<8x8xf32>
    %280 = vector.extract_strided_slice %258 {offsets = [0, 8], sizes = [8, 8], strides = [1, 1]} : vector<8x32xf32> to vector<8x8xf32>
    %cst_117 = arith.constant dense<0.000000e+00> : vector<8x8xf32>
    %281 = tpu.matmul %278, %279, %cst_117 {dimension_numbers = #tpu.dot_dimension_numbers<[1], [1], [0], [0], [0, 0, 1, 0], [], []>} : vector<8x8xf32>, vector<8x8xf32>, vector<8x8xf32> -> vector<8x8xf32>
    %cst_118 = arith.constant dense<0xFF800000> : vector<8xf32>
    %282 = vector.multi_reduction <maximumf>, %281, %cst_118 [1] : vector<8x8xf32> to vector<8xf32>
    %283 = vector.shape_cast %282 : vector<8xf32> to vector<8x1xf32>
    %284 = vector.broadcast %283 : vector<8x1xf32> to vector<8x8xf32>
    %285 = arith.subf %281, %284 : vector<8x8xf32>
    %286 = math.exp %285 : vector<8x8xf32>
    %cst_119 = arith.constant dense<0.000000e+00> : vector<8xf32>
    %287 = vector.multi_reduction <add>, %286, %cst_119 [1] : vector<8x8xf32> to vector<8xf32>
    %288 = vector.shape_cast %287 : vector<8xf32> to vector<8x1xf32>
    %289 = tpu.reciprocal %288 {approx = true} : vector<8x1xf32> -> vector<8x1xf32>
    %290 = vector.broadcast %289 : vector<8x1xf32> to vector<8x8xf32>
    %291 = arith.mulf %286, %290 : vector<8x8xf32>
    %cst_120 = arith.constant dense<0.000000e+00> : vector<8x8xf32>
    %292 = tpu.matmul %291, %280, %cst_120 {dimension_numbers = #tpu.dot_dimension_numbers<[1], [0], [0], [1], [0, 0, 1, 1], [], []>} : vector<8x8xf32>, vector<8x8xf32>, vector<8x8xf32> -> vector<8x8xf32>
    %293 = vector.extract_strided_slice %256 {offsets = [0, 16], sizes = [8, 8], strides = [1, 1]} : vector<8x32xf32> to vector<8x8xf32>
    %cst_121 = arith.constant 0.353553385 : f32
    %294 = vector.broadcast %cst_121 : f32 to vector<8x8xf32>
    %295 = arith.mulf %293, %294 : vector<8x8xf32>
    %296 = vector.extract_strided_slice %257 {offsets = [0, 16], sizes = [8, 8], strides = [1, 1]} : vector<8x32xf32> to vector<8x8xf32>
    %297 = vector.extract_strided_slice %258 {offsets = [0, 16], sizes = [8, 8], strides = [1, 1]} : vector<8x32xf32> to vector<8x8xf32>
    %cst_122 = arith.constant dense<0.000000e+00> : vector<8x8xf32>
    %298 = tpu.matmul %295, %296, %cst_122 {dimension_numbers = #tpu.dot_dimension_numbers<[1], [1], [0], [0], [0, 0, 1, 0], [], []>} : vector<8x8xf32>, vector<8x8xf32>, vector<8x8xf32> -> vector<8x8xf32>
    %cst_123 = arith.constant dense<0xFF800000> : vector<8xf32>
    %299 = vector.multi_reduction <maximumf>, %298, %cst_123 [1] : vector<8x8xf32> to vector<8xf32>
    %300 = vector.shape_cast %299 : vector<8xf32> to vector<8x1xf32>
    %301 = vector.broadcast %300 : vector<8x1xf32> to vector<8x8xf32>
    %302 = arith.subf %298, %301 : vector<8x8xf32>
    %303 = math.exp %302 : vector<8x8xf32>
    %cst_124 = arith.constant dense<0.000000e+00> : vector<8xf32>
    %304 = vector.multi_reduction <add>, %303, %cst_124 [1] : vector<8x8xf32> to vector<8xf32>
    %305 = vector.shape_cast %304 : vector<8xf32> to vector<8x1xf32>
    %306 = tpu.reciprocal %305 {approx = true} : vector<8x1xf32> -> vector<8x1xf32>
    %307 = vector.broadcast %306 : vector<8x1xf32> to vector<8x8xf32>
    %308 = arith.mulf %303, %307 : vector<8x8xf32>
    %cst_125 = arith.constant dense<0.000000e+00> : vector<8x8xf32>
    %309 = tpu.matmul %308, %297, %cst_125 {dimension_numbers = #tpu.dot_dimension_numbers<[1], [0], [0], [1], [0, 0, 1, 1], [], []>} : vector<8x8xf32>, vector<8x8xf32>, vector<8x8xf32> -> vector<8x8xf32>
    %310 = vector.extract_strided_slice %256 {offsets = [0, 24], sizes = [8, 8], strides = [1, 1]} : vector<8x32xf32> to vector<8x8xf32>
    %cst_126 = arith.constant 0.353553385 : f32
    %311 = vector.broadcast %cst_126 : f32 to vector<8x8xf32>
    %312 = arith.mulf %310, %311 : vector<8x8xf32>
    %313 = vector.extract_strided_slice %257 {offsets = [0, 24], sizes = [8, 8], strides = [1, 1]} : vector<8x32xf32> to vector<8x8xf32>
    %314 = vector.extract_strided_slice %258 {offsets = [0, 24], sizes = [8, 8], strides = [1, 1]} : vector<8x32xf32> to vector<8x8xf32>
    %cst_127 = arith.constant dense<0.000000e+00> : vector<8x8xf32>
    %315 = tpu.matmul %312, %313, %cst_127 {dimension_numbers = #tpu.dot_dimension_numbers<[1], [1], [0], [0], [0, 0, 1, 0], [], []>} : vector<8x8xf32>, vector<8x8xf32>, vector<8x8xf32> -> vector<8x8xf32>
    %cst_128 = arith.constant dense<0xFF800000> : vector<8xf32>
    %316 = vector.multi_reduction <maximumf>, %315, %cst_128 [1] : vector<8x8xf32> to vector<8xf32>
    %317 = vector.shape_cast %316 : vector<8xf32> to vector<8x1xf32>
    %318 = vector.broadcast %317 : vector<8x1xf32> to vector<8x8xf32>
    %319 = arith.subf %315, %318 : vector<8x8xf32>
    %320 = math.exp %319 : vector<8x8xf32>
    %cst_129 = arith.constant dense<0.000000e+00> : vector<8xf32>
    %321 = vector.multi_reduction <add>, %320, %cst_129 [1] : vector<8x8xf32> to vector<8xf32>
    %322 = vector.shape_cast %321 : vector<8xf32> to vector<8x1xf32>
    %323 = tpu.reciprocal %322 {approx = true} : vector<8x1xf32> -> vector<8x1xf32>
    %324 = vector.broadcast %323 : vector<8x1xf32> to vector<8x8xf32>
    %325 = arith.mulf %320, %324 : vector<8x8xf32>
    %cst_130 = arith.constant dense<0.000000e+00> : vector<8x8xf32>
    %326 = tpu.matmul %325, %314, %cst_130 {dimension_numbers = #tpu.dot_dimension_numbers<[1], [0], [0], [1], [0, 0, 1, 1], [], []>} : vector<8x8xf32>, vector<8x8xf32>, vector<8x8xf32> -> vector<8x8xf32>
    %327 = tpu.concatenate %275, %292, %309, %326 in 1 : vector<8x8xf32>, vector<8x8xf32>, vector<8x8xf32>, vector<8x8xf32> -> vector<8x32xf32>
    %328 = vector.extract_strided_slice %249 {offsets = [8, 0], sizes = [8, 32], strides = [1, 1]} : vector<16x32xf32> to vector<8x32xf32>
    %329 = vector.extract_strided_slice %250 {offsets = [8, 0], sizes = [8, 32], strides = [1, 1]} : vector<16x32xf32> to vector<8x32xf32>
    %330 = vector.extract_strided_slice %251 {offsets = [8, 0], sizes = [8, 32], strides = [1, 1]} : vector<16x32xf32> to vector<8x32xf32>
    %331 = vector.extract_strided_slice %328 {offsets = [0, 0], sizes = [8, 8], strides = [1, 1]} : vector<8x32xf32> to vector<8x8xf32>
    %cst_131 = arith.constant 0.353553385 : f32
    %332 = vector.broadcast %cst_131 : f32 to vector<8x8xf32>
    %333 = arith.mulf %331, %332 : vector<8x8xf32>
    %334 = vector.extract_strided_slice %329 {offsets = [0, 0], sizes = [8, 8], strides = [1, 1]} : vector<8x32xf32> to vector<8x8xf32>
    %335 = vector.extract_strided_slice %330 {offsets = [0, 0], sizes = [8, 8], strides = [1, 1]} : vector<8x32xf32> to vector<8x8xf32>
    %cst_132 = arith.constant dense<0.000000e+00> : vector<8x8xf32>
    %336 = tpu.matmul %333, %334, %cst_132 {dimension_numbers = #tpu.dot_dimension_numbers<[1], [1], [0], [0], [0, 0, 1, 0], [], []>} : vector<8x8xf32>, vector<8x8xf32>, vector<8x8xf32> -> vector<8x8xf32>
    %cst_133 = arith.constant dense<0xFF800000> : vector<8xf32>
    %337 = vector.multi_reduction <maximumf>, %336, %cst_133 [1] : vector<8x8xf32> to vector<8xf32>
    %338 = vector.shape_cast %337 : vector<8xf32> to vector<8x1xf32>
    %339 = vector.broadcast %338 : vector<8x1xf32> to vector<8x8xf32>
    %340 = arith.subf %336, %339 : vector<8x8xf32>
    %341 = math.exp %340 : vector<8x8xf32>
    %cst_134 = arith.constant dense<0.000000e+00> : vector<8xf32>
    %342 = vector.multi_reduction <add>, %341, %cst_134 [1] : vector<8x8xf32> to vector<8xf32>
    %343 = vector.shape_cast %342 : vector<8xf32> to vector<8x1xf32>
    %344 = tpu.reciprocal %343 {approx = true} : vector<8x1xf32> -> vector<8x1xf32>
    %345 = vector.broadcast %344 : vector<8x1xf32> to vector<8x8xf32>
    %346 = arith.mulf %341, %345 : vector<8x8xf32>
    %cst_135 = arith.constant dense<0.000000e+00> : vector<8x8xf32>
    %347 = tpu.matmul %346, %335, %cst_135 {dimension_numbers = #tpu.dot_dimension_numbers<[1], [0], [0], [1], [0, 0, 1, 1], [], []>} : vector<8x8xf32>, vector<8x8xf32>, vector<8x8xf32> -> vector<8x8xf32>
    %348 = vector.extract_strided_slice %328 {offsets = [0, 8], sizes = [8, 8], strides = [1, 1]} : vector<8x32xf32> to vector<8x8xf32>
    %cst_136 = arith.constant 0.353553385 : f32
    %349 = vector.broadcast %cst_136 : f32 to vector<8x8xf32>
    %350 = arith.mulf %348, %349 : vector<8x8xf32>
    %351 = vector.extract_strided_slice %329 {offsets = [0, 8], sizes = [8, 8], strides = [1, 1]} : vector<8x32xf32> to vector<8x8xf32>
    %352 = vector.extract_strided_slice %330 {offsets = [0, 8], sizes = [8, 8], strides = [1, 1]} : vector<8x32xf32> to vector<8x8xf32>
    %cst_137 = arith.constant dense<0.000000e+00> : vector<8x8xf32>
    %353 = tpu.matmul %350, %351, %cst_137 {dimension_numbers = #tpu.dot_dimension_numbers<[1], [1], [0], [0], [0, 0, 1, 0], [], []>} : vector<8x8xf32>, vector<8x8xf32>, vector<8x8xf32> -> vector<8x8xf32>
    %cst_138 = arith.constant dense<0xFF800000> : vector<8xf32>
    %354 = vector.multi_reduction <maximumf>, %353, %cst_138 [1] : vector<8x8xf32> to vector<8xf32>
    %355 = vector.shape_cast %354 : vector<8xf32> to vector<8x1xf32>
    %356 = vector.broadcast %355 : vector<8x1xf32> to vector<8x8xf32>
    %357 = arith.subf %353, %356 : vector<8x8xf32>
    %358 = math.exp %357 : vector<8x8xf32>
    %cst_139 = arith.constant dense<0.000000e+00> : vector<8xf32>
    %359 = vector.multi_reduction <add>, %358, %cst_139 [1] : vector<8x8xf32> to vector<8xf32>
    %360 = vector.shape_cast %359 : vector<8xf32> to vector<8x1xf32>
    %361 = tpu.reciprocal %360 {approx = true} : vector<8x1xf32> -> vector<8x1xf32>
    %362 = vector.broadcast %361 : vector<8x1xf32> to vector<8x8xf32>
    %363 = arith.mulf %358, %362 : vector<8x8xf32>
    %cst_140 = arith.constant dense<0.000000e+00> : vector<8x8xf32>
    %364 = tpu.matmul %363, %352, %cst_140 {dimension_numbers = #tpu.dot_dimension_numbers<[1], [0], [0], [1], [0, 0, 1, 1], [], []>} : vector<8x8xf32>, vector<8x8xf32>, vector<8x8xf32> -> vector<8x8xf32>
    %365 = vector.extract_strided_slice %328 {offsets = [0, 16], sizes = [8, 8], strides = [1, 1]} : vector<8x32xf32> to vector<8x8xf32>
    %cst_141 = arith.constant 0.353553385 : f32
    %366 = vector.broadcast %cst_141 : f32 to vector<8x8xf32>
    %367 = arith.mulf %365, %366 : vector<8x8xf32>
    %368 = vector.extract_strided_slice %329 {offsets = [0, 16], sizes = [8, 8], strides = [1, 1]} : vector<8x32xf32> to vector<8x8xf32>
    %369 = vector.extract_strided_slice %330 {offsets = [0, 16], sizes = [8, 8], strides = [1, 1]} : vector<8x32xf32> to vector<8x8xf32>
    %cst_142 = arith.constant dense<0.000000e+00> : vector<8x8xf32>
    %370 = tpu.matmul %367, %368, %cst_142 {dimension_numbers = #tpu.dot_dimension_numbers<[1], [1], [0], [0], [0, 0, 1, 0], [], []>} : vector<8x8xf32>, vector<8x8xf32>, vector<8x8xf32> -> vector<8x8xf32>
    %cst_143 = arith.constant dense<0xFF800000> : vector<8xf32>
    %371 = vector.multi_reduction <maximumf>, %370, %cst_143 [1] : vector<8x8xf32> to vector<8xf32>
    %372 = vector.shape_cast %371 : vector<8xf32> to vector<8x1xf32>
    %373 = vector.broadcast %372 : vector<8x1xf32> to vector<8x8xf32>
    %374 = arith.subf %370, %373 : vector<8x8xf32>
    %375 = math.exp %374 : vector<8x8xf32>
    %cst_144 = arith.constant dense<0.000000e+00> : vector<8xf32>
    %376 = vector.multi_reduction <add>, %375, %cst_144 [1] : vector<8x8xf32> to vector<8xf32>
    %377 = vector.shape_cast %376 : vector<8xf32> to vector<8x1xf32>
    %378 = tpu.reciprocal %377 {approx = true} : vector<8x1xf32> -> vector<8x1xf32>
    %379 = vector.broadcast %378 : vector<8x1xf32> to vector<8x8xf32>
    %380 = arith.mulf %375, %379 : vector<8x8xf32>
    %cst_145 = arith.constant dense<0.000000e+00> : vector<8x8xf32>
    %381 = tpu.matmul %380, %369, %cst_145 {dimension_numbers = #tpu.dot_dimension_numbers<[1], [0], [0], [1], [0, 0, 1, 1], [], []>} : vector<8x8xf32>, vector<8x8xf32>, vector<8x8xf32> -> vector<8x8xf32>
    %382 = vector.extract_strided_slice %328 {offsets = [0, 24], sizes = [8, 8], strides = [1, 1]} : vector<8x32xf32> to vector<8x8xf32>
    %cst_146 = arith.constant 0.353553385 : f32
    %383 = vector.broadcast %cst_146 : f32 to vector<8x8xf32>
    %384 = arith.mulf %382, %383 : vector<8x8xf32>
    %385 = vector.extract_strided_slice %329 {offsets = [0, 24], sizes = [8, 8], strides = [1, 1]} : vector<8x32xf32> to vector<8x8xf32>
    %386 = vector.extract_strided_slice %330 {offsets = [0, 24], sizes = [8, 8], strides = [1, 1]} : vector<8x32xf32> to vector<8x8xf32>
    %cst_147 = arith.constant dense<0.000000e+00> : vector<8x8xf32>
    %387 = tpu.matmul %384, %385, %cst_147 {dimension_numbers = #tpu.dot_dimension_numbers<[1], [1], [0], [0], [0, 0, 1, 0], [], []>} : vector<8x8xf32>, vector<8x8xf32>, vector<8x8xf32> -> vector<8x8xf32>
    %cst_148 = arith.constant dense<0xFF800000> : vector<8xf32>
    %388 = vector.multi_reduction <maximumf>, %387, %cst_148 [1] : vector<8x8xf32> to vector<8xf32>
    %389 = vector.shape_cast %388 : vector<8xf32> to vector<8x1xf32>
    %390 = vector.broadcast %389 : vector<8x1xf32> to vector<8x8xf32>
    %391 = arith.subf %387, %390 : vector<8x8xf32>
    %392 = math.exp %391 : vector<8x8xf32>
    %cst_149 = arith.constant dense<0.000000e+00> : vector<8xf32>
    %393 = vector.multi_reduction <add>, %392, %cst_149 [1] : vector<8x8xf32> to vector<8xf32>
    %394 = vector.shape_cast %393 : vector<8xf32> to vector<8x1xf32>
    %395 = tpu.reciprocal %394 {approx = true} : vector<8x1xf32> -> vector<8x1xf32>
    %396 = vector.broadcast %395 : vector<8x1xf32> to vector<8x8xf32>
    %397 = arith.mulf %392, %396 : vector<8x8xf32>
    %cst_150 = arith.constant dense<0.000000e+00> : vector<8x8xf32>
    %398 = tpu.matmul %397, %386, %cst_150 {dimension_numbers = #tpu.dot_dimension_numbers<[1], [0], [0], [1], [0, 0, 1, 1], [], []>} : vector<8x8xf32>, vector<8x8xf32>, vector<8x8xf32> -> vector<8x8xf32>
    %399 = tpu.concatenate %347, %364, %381, %398 in 1 : vector<8x8xf32>, vector<8x8xf32>, vector<8x8xf32>, vector<8x8xf32> -> vector<8x32xf32>
    %400 = tpu.concatenate %327, %399 in 0 : vector<8x32xf32>, vector<8x32xf32> -> vector<16x32xf32>
    %cst_151 = arith.constant dense<0.000000e+00> : vector<16x32xf32>
    %401 = tpu.matmul %400, %253, %cst_151 {dimension_numbers = #tpu.dot_dimension_numbers<[1], [1], [0], [0], [0, 0, 1, 0], [], []>} : vector<16x32xf32>, vector<32x32xf32>, vector<16x32xf32> -> vector<16x32xf32>
    %402 = vector.broadcast %255 : vector<1x32xf32> to vector<16x32xf32>
    %403 = arith.addf %401, %402 : vector<16x32xf32>
    %404 = arith.addf %241, %403 : vector<16x32xf32>
    %c1_152 = arith.constant 1 : index
    %c0_153 = arith.constant 0 : index
    %c0_154 = arith.constant 0 : index
    %405 = vector.load %arg19[%c1_152, %c0_153, %c0_154] : memref<2x1x32xf32, #tpu.memory_space<vmem>>, vector<1x1x32xf32>
    %406 = vector.shape_cast %405 : vector<1x1x32xf32> to vector<1x32xf32>
    %c1_155 = arith.constant 1 : index
    %c0_156 = arith.constant 0 : index
    %c0_157 = arith.constant 0 : index
    %407 = vector.load %arg20[%c1_155, %c0_156, %c0_157] : memref<2x1x32xf32, #tpu.memory_space<vmem>>, vector<1x1x32xf32>
    %408 = vector.shape_cast %407 : vector<1x1x32xf32> to vector<1x32xf32>
    %cst_158 = arith.constant dense<0.000000e+00> : vector<16xf32>
    %409 = vector.multi_reduction <add>, %404, %cst_158 [1] : vector<16x32xf32> to vector<16xf32>
    %410 = vector.shape_cast %409 : vector<16xf32> to vector<16x1xf32>
    %cst_159 = arith.constant 3.200000e+01 : f32
    %411 = vector.broadcast %cst_159 : f32 to vector<16x1xf32>
    %412 = arith.divf %410, %411 : vector<16x1xf32>
    %413 = vector.broadcast %412 : vector<16x1xf32> to vector<16x32xf32>
    %414 = arith.subf %404, %413 : vector<16x32xf32>
    %415 = arith.mulf %414, %414 : vector<16x32xf32>
    %cst_160 = arith.constant dense<0.000000e+00> : vector<16xf32>
    %416 = vector.multi_reduction <add>, %415, %cst_160 [1] : vector<16x32xf32> to vector<16xf32>
    %417 = vector.shape_cast %416 : vector<16xf32> to vector<16x1xf32>
    %cst_161 = arith.constant 3.200000e+01 : f32
    %418 = vector.broadcast %cst_161 : f32 to vector<16x1xf32>
    %419 = arith.divf %417, %418 : vector<16x1xf32>
    %420 = vector.broadcast %412 : vector<16x1xf32> to vector<16x32xf32>
    %421 = arith.subf %404, %420 : vector<16x32xf32>
    %cst_162 = arith.constant 9.99999974E-6 : f32
    %422 = vector.broadcast %cst_162 : f32 to vector<16x1xf32>
    %423 = arith.addf %419, %422 : vector<16x1xf32>
    %424 = math.rsqrt %423 : vector<16x1xf32>
    %425 = vector.broadcast %424 : vector<16x1xf32> to vector<16x32xf32>
    %426 = arith.mulf %421, %425 : vector<16x32xf32>
    %427 = vector.broadcast %406 : vector<1x32xf32> to vector<16x32xf32>
    %428 = arith.mulf %426, %427 : vector<16x32xf32>
    %429 = vector.broadcast %408 : vector<1x32xf32> to vector<16x32xf32>
    %430 = arith.addf %428, %429 : vector<16x32xf32>
    %c1_163 = arith.constant 1 : index
    %c0_164 = arith.constant 0 : index
    %c0_165 = arith.constant 0 : index
    %431 = vector.load %arg15[%c1_163, %c0_164, %c0_165] : memref<2x64x32xf32, #tpu.memory_space<vmem>>, vector<1x64x32xf32>
    %432 = vector.shape_cast %431 : vector<1x64x32xf32> to vector<64x32xf32>
    %c1_166 = arith.constant 1 : index
    %c0_167 = arith.constant 0 : index
    %c0_168 = arith.constant 0 : index
    %433 = vector.load %arg16[%c1_166, %c0_167, %c0_168] : memref<2x1x64xf32, #tpu.memory_space<vmem>>, vector<1x1x64xf32>
    %434 = vector.shape_cast %433 : vector<1x1x64xf32> to vector<1x64xf32>
    %cst_169 = arith.constant dense<0.000000e+00> : vector<16x64xf32>
    %435 = tpu.matmul %430, %432, %cst_169 {dimension_numbers = #tpu.dot_dimension_numbers<[1], [1], [0], [0], [0, 0, 1, 0], [], []>} : vector<16x32xf32>, vector<64x32xf32>, vector<16x64xf32> -> vector<16x64xf32>
    %436 = vector.broadcast %434 : vector<1x64xf32> to vector<16x64xf32>
    %437 = arith.addf %435, %436 : vector<16x64xf32>
    %cst_170 = arith.constant 0.000000e+00 : f32
    %438 = vector.broadcast %cst_170 : f32 to vector<16x64xf32>
    %439 = arith.maximumf %437, %438 : vector<16x64xf32>
    %c1_171 = arith.constant 1 : index
    %c0_172 = arith.constant 0 : index
    %c0_173 = arith.constant 0 : index
    %440 = vector.load %arg17[%c1_171, %c0_172, %c0_173] : memref<2x32x64xf32, #tpu.memory_space<vmem>>, vector<1x32x64xf32>
    %441 = vector.shape_cast %440 : vector<1x32x64xf32> to vector<32x64xf32>
    %c1_174 = arith.constant 1 : index
    %c0_175 = arith.constant 0 : index
    %c0_176 = arith.constant 0 : index
    %442 = vector.load %arg18[%c1_174, %c0_175, %c0_176] : memref<2x1x32xf32, #tpu.memory_space<vmem>>, vector<1x1x32xf32>
    %443 = vector.shape_cast %442 : vector<1x1x32xf32> to vector<1x32xf32>
    %cst_177 = arith.constant dense<0.000000e+00> : vector<16x32xf32>
    %444 = tpu.matmul %439, %441, %cst_177 {dimension_numbers = #tpu.dot_dimension_numbers<[1], [1], [0], [0], [0, 0, 1, 0], [], []>} : vector<16x64xf32>, vector<32x64xf32>, vector<16x32xf32> -> vector<16x32xf32>
    %445 = vector.broadcast %443 : vector<1x32xf32> to vector<16x32xf32>
    %446 = arith.addf %444, %445 : vector<16x32xf32>
    %447 = arith.addf %430, %446 : vector<16x32xf32>
    %c1_178 = arith.constant 1 : index
    %c0_179 = arith.constant 0 : index
    %c0_180 = arith.constant 0 : index
    %448 = vector.load %arg21[%c1_178, %c0_179, %c0_180] : memref<2x1x32xf32, #tpu.memory_space<vmem>>, vector<1x1x32xf32>
    %449 = vector.shape_cast %448 : vector<1x1x32xf32> to vector<1x32xf32>
    %c1_181 = arith.constant 1 : index
    %c0_182 = arith.constant 0 : index
    %c0_183 = arith.constant 0 : index
    %450 = vector.load %arg22[%c1_181, %c0_182, %c0_183] : memref<2x1x32xf32, #tpu.memory_space<vmem>>, vector<1x1x32xf32>
    %451 = vector.shape_cast %450 : vector<1x1x32xf32> to vector<1x32xf32>
    %cst_184 = arith.constant dense<0.000000e+00> : vector<16xf32>
    %452 = vector.multi_reduction <add>, %447, %cst_184 [1] : vector<16x32xf32> to vector<16xf32>
    %453 = vector.shape_cast %452 : vector<16xf32> to vector<16x1xf32>
    %cst_185 = arith.constant 3.200000e+01 : f32
    %454 = vector.broadcast %cst_185 : f32 to vector<16x1xf32>
    %455 = arith.divf %453, %454 : vector<16x1xf32>
    %456 = vector.broadcast %455 : vector<16x1xf32> to vector<16x32xf32>
    %457 = arith.subf %447, %456 : vector<16x32xf32>
    %458 = arith.mulf %457, %457 : vector<16x32xf32>
    %cst_186 = arith.constant dense<0.000000e+00> : vector<16xf32>
    %459 = vector.multi_reduction <add>, %458, %cst_186 [1] : vector<16x32xf32> to vector<16xf32>
    %460 = vector.shape_cast %459 : vector<16xf32> to vector<16x1xf32>
    %cst_187 = arith.constant 3.200000e+01 : f32
    %461 = vector.broadcast %cst_187 : f32 to vector<16x1xf32>
    %462 = arith.divf %460, %461 : vector<16x1xf32>
    %463 = vector.broadcast %455 : vector<16x1xf32> to vector<16x32xf32>
    %464 = arith.subf %447, %463 : vector<16x32xf32>
    %cst_188 = arith.constant 9.99999974E-6 : f32
    %465 = vector.broadcast %cst_188 : f32 to vector<16x1xf32>
    %466 = arith.addf %462, %465 : vector<16x1xf32>
    %467 = math.rsqrt %466 : vector<16x1xf32>
    %468 = vector.broadcast %467 : vector<16x1xf32> to vector<16x32xf32>
    %469 = arith.mulf %464, %468 : vector<16x32xf32>
    %470 = vector.broadcast %449 : vector<1x32xf32> to vector<16x32xf32>
    %471 = arith.mulf %469, %470 : vector<16x32xf32>
    %472 = vector.broadcast %451 : vector<1x32xf32> to vector<16x32xf32>
    %473 = arith.addf %471, %472 : vector<16x32xf32>
    %c0_189 = arith.constant 0 : index
    %c0_190 = arith.constant 0 : index
    %474 = vector.load %arg1[%c0_189, %c0_190] : memref<8x1xf32, #tpu.memory_space<vmem>>, vector<8x1xf32>
    %c0_191 = arith.constant 0 : index
    %c0_192 = arith.constant 0 : index
    %475 = vector.load %arg7[%c0_191, %c0_192] : memref<1x32xf32, #tpu.memory_space<vmem>>, vector<1x32xf32>
    %476 = vector.broadcast %474 : vector<8x1xf32> to vector<8x32xf32>
    %477 = vector.broadcast %475 : vector<1x32xf32> to vector<8x32xf32>
    %478 = arith.mulf %476, %477 : vector<8x32xf32>
    %c0_193 = arith.constant 0 : index
    %c0_194 = arith.constant 0 : index
    %479 = vector.load %arg8[%c0_193, %c0_194] : memref<1x32xf32, #tpu.memory_space<vmem>>, vector<1x32xf32>
    %480 = vector.broadcast %479 : vector<1x32xf32> to vector<8x32xf32>
    %481 = arith.addf %478, %480 : vector<8x32xf32>
    %cst_195 = arith.constant 5.65685415 : f32
    %482 = vector.broadcast %cst_195 : f32 to vector<8x32xf32>
    %483 = arith.mulf %481, %482 : vector<8x32xf32>
    %c0_196 = arith.constant 0 : index
    %c0_197 = arith.constant 0 : index
    %484 = vector.load %arg4[%c0_196, %c0_197] : memref<8x32xf32, #tpu.memory_space<vmem>>, vector<8x32xf32>
    %485 = arith.addf %483, %484 : vector<8x32xf32>
    %c0_198 = arith.constant 0 : index
    %c0_199 = arith.constant 0 : index
    %486 = vector.load %arg2[%c0_198, %c0_199] : memref<4x4xf32, #tpu.memory_space<vmem>>, vector<4x4xf32>
    %c0_200 = arith.constant 0 : index
    %c0_201 = arith.constant 0 : index
    %c0_202 = arith.constant 0 : index
    %487 = vector.load %arg23[%c0_200, %c0_201, %c0_202] : memref<2x96x32xf32, #tpu.memory_space<vmem>>, vector<1x96x32xf32>
    %488 = vector.shape_cast %487 : vector<1x96x32xf32> to vector<96x32xf32>
    %c0_203 = arith.constant 0 : index
    %c0_204 = arith.constant 0 : index
    %c0_205 = arith.constant 0 : index
    %489 = vector.load %arg24[%c0_203, %c0_204, %c0_205] : memref<2x1x96xf32, #tpu.memory_space<vmem>>, vector<1x1x96xf32>
    %490 = vector.shape_cast %489 : vector<1x1x96xf32> to vector<1x96xf32>
    %cst_206 = arith.constant dense<0.000000e+00> : vector<8x96xf32>
    %491 = tpu.matmul %485, %488, %cst_206 {dimension_numbers = #tpu.dot_dimension_numbers<[1], [1], [0], [0], [0, 0, 1, 0], [], []>} : vector<8x32xf32>, vector<96x32xf32>, vector<8x96xf32> -> vector<8x96xf32>
    %492 = vector.broadcast %490 : vector<1x96xf32> to vector<8x96xf32>
    %493 = arith.addf %491, %492 : vector<8x96xf32>
    %494 = vector.extract_strided_slice %493 {offsets = [0, 0], sizes = [8, 32], strides = [1, 1]} : vector<8x96xf32> to vector<8x32xf32>
    %495 = vector.extract_strided_slice %493 {offsets = [0, 32], sizes = [8, 32], strides = [1, 1]} : vector<8x96xf32> to vector<8x32xf32>
    %496 = vector.extract_strided_slice %493 {offsets = [0, 64], sizes = [8, 32], strides = [1, 1]} : vector<8x96xf32> to vector<8x32xf32>
    %c0_207 = arith.constant 0 : index
    %c0_208 = arith.constant 0 : index
    %c0_209 = arith.constant 0 : index
    %497 = vector.load %arg25[%c0_207, %c0_208, %c0_209] : memref<2x32x32xf32, #tpu.memory_space<vmem>>, vector<1x32x32xf32>
    %498 = vector.shape_cast %497 : vector<1x32x32xf32> to vector<32x32xf32>
    %c0_210 = arith.constant 0 : index
    %c0_211 = arith.constant 0 : index
    %c0_212 = arith.constant 0 : index
    %499 = vector.load %arg26[%c0_210, %c0_211, %c0_212] : memref<2x1x32xf32, #tpu.memory_space<vmem>>, vector<1x1x32xf32>
    %500 = vector.shape_cast %499 : vector<1x1x32xf32> to vector<1x32xf32>
    %501 = vector.extract_strided_slice %494 {offsets = [0, 0], sizes = [4, 32], strides = [1, 1]} : vector<8x32xf32> to vector<4x32xf32>
    %502 = vector.extract_strided_slice %495 {offsets = [0, 0], sizes = [4, 32], strides = [1, 1]} : vector<8x32xf32> to vector<4x32xf32>
    %503 = vector.extract_strided_slice %496 {offsets = [0, 0], sizes = [4, 32], strides = [1, 1]} : vector<8x32xf32> to vector<4x32xf32>
    %504 = vector.extract_strided_slice %501 {offsets = [0, 0], sizes = [4, 8], strides = [1, 1]} : vector<4x32xf32> to vector<4x8xf32>
    %cst_213 = arith.constant 0.353553385 : f32
    %505 = vector.broadcast %cst_213 : f32 to vector<4x8xf32>
    %506 = arith.mulf %504, %505 : vector<4x8xf32>
    %507 = vector.extract_strided_slice %502 {offsets = [0, 0], sizes = [4, 8], strides = [1, 1]} : vector<4x32xf32> to vector<4x8xf32>
    %508 = vector.extract_strided_slice %503 {offsets = [0, 0], sizes = [4, 8], strides = [1, 1]} : vector<4x32xf32> to vector<4x8xf32>
    %cst_214 = arith.constant dense<0.000000e+00> : vector<4x4xf32>
    %509 = tpu.matmul %506, %507, %cst_214 {dimension_numbers = #tpu.dot_dimension_numbers<[1], [1], [0], [0], [0, 0, 1, 0], [], []>} : vector<4x8xf32>, vector<4x8xf32>, vector<4x4xf32> -> vector<4x4xf32>
    %510 = arith.addf %509, %486 : vector<4x4xf32>
    %cst_215 = arith.constant dense<0xFF800000> : vector<4xf32>
    %511 = vector.multi_reduction <maximumf>, %510, %cst_215 [1] : vector<4x4xf32> to vector<4xf32>
    %512 = vector.shape_cast %511 : vector<4xf32> to vector<4x1xf32>
    %513 = vector.broadcast %512 : vector<4x1xf32> to vector<4x4xf32>
    %514 = arith.subf %510, %513 : vector<4x4xf32>
    %515 = math.exp %514 : vector<4x4xf32>
    %cst_216 = arith.constant dense<0.000000e+00> : vector<4xf32>
    %516 = vector.multi_reduction <add>, %515, %cst_216 [1] : vector<4x4xf32> to vector<4xf32>
    %517 = vector.shape_cast %516 : vector<4xf32> to vector<4x1xf32>
    %518 = tpu.reciprocal %517 {approx = true} : vector<4x1xf32> -> vector<4x1xf32>
    %519 = vector.broadcast %518 : vector<4x1xf32> to vector<4x4xf32>
    %520 = arith.mulf %515, %519 : vector<4x4xf32>
    %cst_217 = arith.constant dense<0.000000e+00> : vector<4x8xf32>
    %521 = tpu.matmul %520, %508, %cst_217 {dimension_numbers = #tpu.dot_dimension_numbers<[1], [0], [0], [1], [0, 0, 1, 1], [], []>} : vector<4x4xf32>, vector<4x8xf32>, vector<4x8xf32> -> vector<4x8xf32>
    %522 = vector.extract_strided_slice %501 {offsets = [0, 8], sizes = [4, 8], strides = [1, 1]} : vector<4x32xf32> to vector<4x8xf32>
    %cst_218 = arith.constant 0.353553385 : f32
    %523 = vector.broadcast %cst_218 : f32 to vector<4x8xf32>
    %524 = arith.mulf %522, %523 : vector<4x8xf32>
    %525 = vector.extract_strided_slice %502 {offsets = [0, 8], sizes = [4, 8], strides = [1, 1]} : vector<4x32xf32> to vector<4x8xf32>
    %526 = vector.extract_strided_slice %503 {offsets = [0, 8], sizes = [4, 8], strides = [1, 1]} : vector<4x32xf32> to vector<4x8xf32>
    %cst_219 = arith.constant dense<0.000000e+00> : vector<4x4xf32>
    %527 = tpu.matmul %524, %525, %cst_219 {dimension_numbers = #tpu.dot_dimension_numbers<[1], [1], [0], [0], [0, 0, 1, 0], [], []>} : vector<4x8xf32>, vector<4x8xf32>, vector<4x4xf32> -> vector<4x4xf32>
    %528 = arith.addf %527, %486 : vector<4x4xf32>
    %cst_220 = arith.constant dense<0xFF800000> : vector<4xf32>
    %529 = vector.multi_reduction <maximumf>, %528, %cst_220 [1] : vector<4x4xf32> to vector<4xf32>
    %530 = vector.shape_cast %529 : vector<4xf32> to vector<4x1xf32>
    %531 = vector.broadcast %530 : vector<4x1xf32> to vector<4x4xf32>
    %532 = arith.subf %528, %531 : vector<4x4xf32>
    %533 = math.exp %532 : vector<4x4xf32>
    %cst_221 = arith.constant dense<0.000000e+00> : vector<4xf32>
    %534 = vector.multi_reduction <add>, %533, %cst_221 [1] : vector<4x4xf32> to vector<4xf32>
    %535 = vector.shape_cast %534 : vector<4xf32> to vector<4x1xf32>
    %536 = tpu.reciprocal %535 {approx = true} : vector<4x1xf32> -> vector<4x1xf32>
    %537 = vector.broadcast %536 : vector<4x1xf32> to vector<4x4xf32>
    %538 = arith.mulf %533, %537 : vector<4x4xf32>
    %cst_222 = arith.constant dense<0.000000e+00> : vector<4x8xf32>
    %539 = tpu.matmul %538, %526, %cst_222 {dimension_numbers = #tpu.dot_dimension_numbers<[1], [0], [0], [1], [0, 0, 1, 1], [], []>} : vector<4x4xf32>, vector<4x8xf32>, vector<4x8xf32> -> vector<4x8xf32>
    %540 = vector.extract_strided_slice %501 {offsets = [0, 16], sizes = [4, 8], strides = [1, 1]} : vector<4x32xf32> to vector<4x8xf32>
    %cst_223 = arith.constant 0.353553385 : f32
    %541 = vector.broadcast %cst_223 : f32 to vector<4x8xf32>
    %542 = arith.mulf %540, %541 : vector<4x8xf32>
    %543 = vector.extract_strided_slice %502 {offsets = [0, 16], sizes = [4, 8], strides = [1, 1]} : vector<4x32xf32> to vector<4x8xf32>
    %544 = vector.extract_strided_slice %503 {offsets = [0, 16], sizes = [4, 8], strides = [1, 1]} : vector<4x32xf32> to vector<4x8xf32>
    %cst_224 = arith.constant dense<0.000000e+00> : vector<4x4xf32>
    %545 = tpu.matmul %542, %543, %cst_224 {dimension_numbers = #tpu.dot_dimension_numbers<[1], [1], [0], [0], [0, 0, 1, 0], [], []>} : vector<4x8xf32>, vector<4x8xf32>, vector<4x4xf32> -> vector<4x4xf32>
    %546 = arith.addf %545, %486 : vector<4x4xf32>
    %cst_225 = arith.constant dense<0xFF800000> : vector<4xf32>
    %547 = vector.multi_reduction <maximumf>, %546, %cst_225 [1] : vector<4x4xf32> to vector<4xf32>
    %548 = vector.shape_cast %547 : vector<4xf32> to vector<4x1xf32>
    %549 = vector.broadcast %548 : vector<4x1xf32> to vector<4x4xf32>
    %550 = arith.subf %546, %549 : vector<4x4xf32>
    %551 = math.exp %550 : vector<4x4xf32>
    %cst_226 = arith.constant dense<0.000000e+00> : vector<4xf32>
    %552 = vector.multi_reduction <add>, %551, %cst_226 [1] : vector<4x4xf32> to vector<4xf32>
    %553 = vector.shape_cast %552 : vector<4xf32> to vector<4x1xf32>
    %554 = tpu.reciprocal %553 {approx = true} : vector<4x1xf32> -> vector<4x1xf32>
    %555 = vector.broadcast %554 : vector<4x1xf32> to vector<4x4xf32>
    %556 = arith.mulf %551, %555 : vector<4x4xf32>
    %cst_227 = arith.constant dense<0.000000e+00> : vector<4x8xf32>
    %557 = tpu.matmul %556, %544, %cst_227 {dimension_numbers = #tpu.dot_dimension_numbers<[1], [0], [0], [1], [0, 0, 1, 1], [], []>} : vector<4x4xf32>, vector<4x8xf32>, vector<4x8xf32> -> vector<4x8xf32>
    %558 = vector.extract_strided_slice %501 {offsets = [0, 24], sizes = [4, 8], strides = [1, 1]} : vector<4x32xf32> to vector<4x8xf32>
    %cst_228 = arith.constant 0.353553385 : f32
    %559 = vector.broadcast %cst_228 : f32 to vector<4x8xf32>
    %560 = arith.mulf %558, %559 : vector<4x8xf32>
    %561 = vector.extract_strided_slice %502 {offsets = [0, 24], sizes = [4, 8], strides = [1, 1]} : vector<4x32xf32> to vector<4x8xf32>
    %562 = vector.extract_strided_slice %503 {offsets = [0, 24], sizes = [4, 8], strides = [1, 1]} : vector<4x32xf32> to vector<4x8xf32>
    %cst_229 = arith.constant dense<0.000000e+00> : vector<4x4xf32>
    %563 = tpu.matmul %560, %561, %cst_229 {dimension_numbers = #tpu.dot_dimension_numbers<[1], [1], [0], [0], [0, 0, 1, 0], [], []>} : vector<4x8xf32>, vector<4x8xf32>, vector<4x4xf32> -> vector<4x4xf32>
    %564 = arith.addf %563, %486 : vector<4x4xf32>
    %cst_230 = arith.constant dense<0xFF800000> : vector<4xf32>
    %565 = vector.multi_reduction <maximumf>, %564, %cst_230 [1] : vector<4x4xf32> to vector<4xf32>
    %566 = vector.shape_cast %565 : vector<4xf32> to vector<4x1xf32>
    %567 = vector.broadcast %566 : vector<4x1xf32> to vector<4x4xf32>
    %568 = arith.subf %564, %567 : vector<4x4xf32>
    %569 = math.exp %568 : vector<4x4xf32>
    %cst_231 = arith.constant dense<0.000000e+00> : vector<4xf32>
    %570 = vector.multi_reduction <add>, %569, %cst_231 [1] : vector<4x4xf32> to vector<4xf32>
    %571 = vector.shape_cast %570 : vector<4xf32> to vector<4x1xf32>
    %572 = tpu.reciprocal %571 {approx = true} : vector<4x1xf32> -> vector<4x1xf32>
    %573 = vector.broadcast %572 : vector<4x1xf32> to vector<4x4xf32>
    %574 = arith.mulf %569, %573 : vector<4x4xf32>
    %cst_232 = arith.constant dense<0.000000e+00> : vector<4x8xf32>
    %575 = tpu.matmul %574, %562, %cst_232 {dimension_numbers = #tpu.dot_dimension_numbers<[1], [0], [0], [1], [0, 0, 1, 1], [], []>} : vector<4x4xf32>, vector<4x8xf32>, vector<4x8xf32> -> vector<4x8xf32>
    %576 = tpu.concatenate %521, %539, %557, %575 in 1 : vector<4x8xf32>, vector<4x8xf32>, vector<4x8xf32>, vector<4x8xf32> -> vector<4x32xf32>
    %577 = vector.extract_strided_slice %494 {offsets = [4, 0], sizes = [4, 32], strides = [1, 1]} : vector<8x32xf32> to vector<4x32xf32>
    %578 = vector.extract_strided_slice %495 {offsets = [4, 0], sizes = [4, 32], strides = [1, 1]} : vector<8x32xf32> to vector<4x32xf32>
    %579 = vector.extract_strided_slice %496 {offsets = [4, 0], sizes = [4, 32], strides = [1, 1]} : vector<8x32xf32> to vector<4x32xf32>
    %580 = vector.extract_strided_slice %577 {offsets = [0, 0], sizes = [4, 8], strides = [1, 1]} : vector<4x32xf32> to vector<4x8xf32>
    %cst_233 = arith.constant 0.353553385 : f32
    %581 = vector.broadcast %cst_233 : f32 to vector<4x8xf32>
    %582 = arith.mulf %580, %581 : vector<4x8xf32>
    %583 = vector.extract_strided_slice %578 {offsets = [0, 0], sizes = [4, 8], strides = [1, 1]} : vector<4x32xf32> to vector<4x8xf32>
    %584 = vector.extract_strided_slice %579 {offsets = [0, 0], sizes = [4, 8], strides = [1, 1]} : vector<4x32xf32> to vector<4x8xf32>
    %cst_234 = arith.constant dense<0.000000e+00> : vector<4x4xf32>
    %585 = tpu.matmul %582, %583, %cst_234 {dimension_numbers = #tpu.dot_dimension_numbers<[1], [1], [0], [0], [0, 0, 1, 0], [], []>} : vector<4x8xf32>, vector<4x8xf32>, vector<4x4xf32> -> vector<4x4xf32>
    %586 = arith.addf %585, %486 : vector<4x4xf32>
    %cst_235 = arith.constant dense<0xFF800000> : vector<4xf32>
    %587 = vector.multi_reduction <maximumf>, %586, %cst_235 [1] : vector<4x4xf32> to vector<4xf32>
    %588 = vector.shape_cast %587 : vector<4xf32> to vector<4x1xf32>
    %589 = vector.broadcast %588 : vector<4x1xf32> to vector<4x4xf32>
    %590 = arith.subf %586, %589 : vector<4x4xf32>
    %591 = math.exp %590 : vector<4x4xf32>
    %cst_236 = arith.constant dense<0.000000e+00> : vector<4xf32>
    %592 = vector.multi_reduction <add>, %591, %cst_236 [1] : vector<4x4xf32> to vector<4xf32>
    %593 = vector.shape_cast %592 : vector<4xf32> to vector<4x1xf32>
    %594 = tpu.reciprocal %593 {approx = true} : vector<4x1xf32> -> vector<4x1xf32>
    %595 = vector.broadcast %594 : vector<4x1xf32> to vector<4x4xf32>
    %596 = arith.mulf %591, %595 : vector<4x4xf32>
    %cst_237 = arith.constant dense<0.000000e+00> : vector<4x8xf32>
    %597 = tpu.matmul %596, %584, %cst_237 {dimension_numbers = #tpu.dot_dimension_numbers<[1], [0], [0], [1], [0, 0, 1, 1], [], []>} : vector<4x4xf32>, vector<4x8xf32>, vector<4x8xf32> -> vector<4x8xf32>
    %598 = vector.extract_strided_slice %577 {offsets = [0, 8], sizes = [4, 8], strides = [1, 1]} : vector<4x32xf32> to vector<4x8xf32>
    %cst_238 = arith.constant 0.353553385 : f32
    %599 = vector.broadcast %cst_238 : f32 to vector<4x8xf32>
    %600 = arith.mulf %598, %599 : vector<4x8xf32>
    %601 = vector.extract_strided_slice %578 {offsets = [0, 8], sizes = [4, 8], strides = [1, 1]} : vector<4x32xf32> to vector<4x8xf32>
    %602 = vector.extract_strided_slice %579 {offsets = [0, 8], sizes = [4, 8], strides = [1, 1]} : vector<4x32xf32> to vector<4x8xf32>
    %cst_239 = arith.constant dense<0.000000e+00> : vector<4x4xf32>
    %603 = tpu.matmul %600, %601, %cst_239 {dimension_numbers = #tpu.dot_dimension_numbers<[1], [1], [0], [0], [0, 0, 1, 0], [], []>} : vector<4x8xf32>, vector<4x8xf32>, vector<4x4xf32> -> vector<4x4xf32>
    %604 = arith.addf %603, %486 : vector<4x4xf32>
    %cst_240 = arith.constant dense<0xFF800000> : vector<4xf32>
    %605 = vector.multi_reduction <maximumf>, %604, %cst_240 [1] : vector<4x4xf32> to vector<4xf32>
    %606 = vector.shape_cast %605 : vector<4xf32> to vector<4x1xf32>
    %607 = vector.broadcast %606 : vector<4x1xf32> to vector<4x4xf32>
    %608 = arith.subf %604, %607 : vector<4x4xf32>
    %609 = math.exp %608 : vector<4x4xf32>
    %cst_241 = arith.constant dense<0.000000e+00> : vector<4xf32>
    %610 = vector.multi_reduction <add>, %609, %cst_241 [1] : vector<4x4xf32> to vector<4xf32>
    %611 = vector.shape_cast %610 : vector<4xf32> to vector<4x1xf32>
    %612 = tpu.reciprocal %611 {approx = true} : vector<4x1xf32> -> vector<4x1xf32>
    %613 = vector.broadcast %612 : vector<4x1xf32> to vector<4x4xf32>
    %614 = arith.mulf %609, %613 : vector<4x4xf32>
    %cst_242 = arith.constant dense<0.000000e+00> : vector<4x8xf32>
    %615 = tpu.matmul %614, %602, %cst_242 {dimension_numbers = #tpu.dot_dimension_numbers<[1], [0], [0], [1], [0, 0, 1, 1], [], []>} : vector<4x4xf32>, vector<4x8xf32>, vector<4x8xf32> -> vector<4x8xf32>
    %616 = vector.extract_strided_slice %577 {offsets = [0, 16], sizes = [4, 8], strides = [1, 1]} : vector<4x32xf32> to vector<4x8xf32>
    %cst_243 = arith.constant 0.353553385 : f32
    %617 = vector.broadcast %cst_243 : f32 to vector<4x8xf32>
    %618 = arith.mulf %616, %617 : vector<4x8xf32>
    %619 = vector.extract_strided_slice %578 {offsets = [0, 16], sizes = [4, 8], strides = [1, 1]} : vector<4x32xf32> to vector<4x8xf32>
    %620 = vector.extract_strided_slice %579 {offsets = [0, 16], sizes = [4, 8], strides = [1, 1]} : vector<4x32xf32> to vector<4x8xf32>
    %cst_244 = arith.constant dense<0.000000e+00> : vector<4x4xf32>
    %621 = tpu.matmul %618, %619, %cst_244 {dimension_numbers = #tpu.dot_dimension_numbers<[1], [1], [0], [0], [0, 0, 1, 0], [], []>} : vector<4x8xf32>, vector<4x8xf32>, vector<4x4xf32> -> vector<4x4xf32>
    %622 = arith.addf %621, %486 : vector<4x4xf32>
    %cst_245 = arith.constant dense<0xFF800000> : vector<4xf32>
    %623 = vector.multi_reduction <maximumf>, %622, %cst_245 [1] : vector<4x4xf32> to vector<4xf32>
    %624 = vector.shape_cast %623 : vector<4xf32> to vector<4x1xf32>
    %625 = vector.broadcast %624 : vector<4x1xf32> to vector<4x4xf32>
    %626 = arith.subf %622, %625 : vector<4x4xf32>
    %627 = math.exp %626 : vector<4x4xf32>
    %cst_246 = arith.constant dense<0.000000e+00> : vector<4xf32>
    %628 = vector.multi_reduction <add>, %627, %cst_246 [1] : vector<4x4xf32> to vector<4xf32>
    %629 = vector.shape_cast %628 : vector<4xf32> to vector<4x1xf32>
    %630 = tpu.reciprocal %629 {approx = true} : vector<4x1xf32> -> vector<4x1xf32>
    %631 = vector.broadcast %630 : vector<4x1xf32> to vector<4x4xf32>
    %632 = arith.mulf %627, %631 : vector<4x4xf32>
    %cst_247 = arith.constant dense<0.000000e+00> : vector<4x8xf32>
    %633 = tpu.matmul %632, %620, %cst_247 {dimension_numbers = #tpu.dot_dimension_numbers<[1], [0], [0], [1], [0, 0, 1, 1], [], []>} : vector<4x4xf32>, vector<4x8xf32>, vector<4x8xf32> -> vector<4x8xf32>
    %634 = vector.extract_strided_slice %577 {offsets = [0, 24], sizes = [4, 8], strides = [1, 1]} : vector<4x32xf32> to vector<4x8xf32>
    %cst_248 = arith.constant 0.353553385 : f32
    %635 = vector.broadcast %cst_248 : f32 to vector<4x8xf32>
    %636 = arith.mulf %634, %635 : vector<4x8xf32>
    %637 = vector.extract_strided_slice %578 {offsets = [0, 24], sizes = [4, 8], strides = [1, 1]} : vector<4x32xf32> to vector<4x8xf32>
    %638 = vector.extract_strided_slice %579 {offsets = [0, 24], sizes = [4, 8], strides = [1, 1]} : vector<4x32xf32> to vector<4x8xf32>
    %cst_249 = arith.constant dense<0.000000e+00> : vector<4x4xf32>
    %639 = tpu.matmul %636, %637, %cst_249 {dimension_numbers = #tpu.dot_dimension_numbers<[1], [1], [0], [0], [0, 0, 1, 0], [], []>} : vector<4x8xf32>, vector<4x8xf32>, vector<4x4xf32> -> vector<4x4xf32>
    %640 = arith.addf %639, %486 : vector<4x4xf32>
    %cst_250 = arith.constant dense<0xFF800000> : vector<4xf32>
    %641 = vector.multi_reduction <maximumf>, %640, %cst_250 [1] : vector<4x4xf32> to vector<4xf32>
    %642 = vector.shape_cast %641 : vector<4xf32> to vector<4x1xf32>
    %643 = vector.broadcast %642 : vector<4x1xf32> to vector<4x4xf32>
    %644 = arith.subf %640, %643 : vector<4x4xf32>
    %645 = math.exp %644 : vector<4x4xf32>
    %cst_251 = arith.constant dense<0.000000e+00> : vector<4xf32>
    %646 = vector.multi_reduction <add>, %645, %cst_251 [1] : vector<4x4xf32> to vector<4xf32>
    %647 = vector.shape_cast %646 : vector<4xf32> to vector<4x1xf32>
    %648 = tpu.reciprocal %647 {approx = true} : vector<4x1xf32> -> vector<4x1xf32>
    %649 = vector.broadcast %648 : vector<4x1xf32> to vector<4x4xf32>
    %650 = arith.mulf %645, %649 : vector<4x4xf32>
    %cst_252 = arith.constant dense<0.000000e+00> : vector<4x8xf32>
    %651 = tpu.matmul %650, %638, %cst_252 {dimension_numbers = #tpu.dot_dimension_numbers<[1], [0], [0], [1], [0, 0, 1, 1], [], []>} : vector<4x4xf32>, vector<4x8xf32>, vector<4x8xf32> -> vector<4x8xf32>
    %652 = tpu.concatenate %597, %615, %633, %651 in 1 : vector<4x8xf32>, vector<4x8xf32>, vector<4x8xf32>, vector<4x8xf32> -> vector<4x32xf32>
    %653 = tpu.concatenate %576, %652 in 0 : vector<4x32xf32>, vector<4x32xf32> -> vector<8x32xf32>
    %cst_253 = arith.constant dense<0.000000e+00> : vector<8x32xf32>
    %654 = tpu.matmul %653, %498, %cst_253 {dimension_numbers = #tpu.dot_dimension_numbers<[1], [1], [0], [0], [0, 0, 1, 0], [], []>} : vector<8x32xf32>, vector<32x32xf32>, vector<8x32xf32> -> vector<8x32xf32>
    %655 = vector.broadcast %500 : vector<1x32xf32> to vector<8x32xf32>
    %656 = arith.addf %654, %655 : vector<8x32xf32>
    %657 = arith.addf %485, %656 : vector<8x32xf32>
    %c0_254 = arith.constant 0 : index
    %c0_255 = arith.constant 0 : index
    %c0_256 = arith.constant 0 : index
    %658 = vector.load %arg37[%c0_254, %c0_255, %c0_256] : memref<2x1x32xf32, #tpu.memory_space<vmem>>, vector<1x1x32xf32>
    %659 = vector.shape_cast %658 : vector<1x1x32xf32> to vector<1x32xf32>
    %c0_257 = arith.constant 0 : index
    %c0_258 = arith.constant 0 : index
    %c0_259 = arith.constant 0 : index
    %660 = vector.load %arg38[%c0_257, %c0_258, %c0_259] : memref<2x1x32xf32, #tpu.memory_space<vmem>>, vector<1x1x32xf32>
    %661 = vector.shape_cast %660 : vector<1x1x32xf32> to vector<1x32xf32>
    %cst_260 = arith.constant dense<0.000000e+00> : vector<8xf32>
    %662 = vector.multi_reduction <add>, %657, %cst_260 [1] : vector<8x32xf32> to vector<8xf32>
    %663 = vector.shape_cast %662 : vector<8xf32> to vector<8x1xf32>
    %cst_261 = arith.constant 3.200000e+01 : f32
    %664 = vector.broadcast %cst_261 : f32 to vector<8x1xf32>
    %665 = arith.divf %663, %664 : vector<8x1xf32>
    %666 = vector.broadcast %665 : vector<8x1xf32> to vector<8x32xf32>
    %667 = arith.subf %657, %666 : vector<8x32xf32>
    %668 = arith.mulf %667, %667 : vector<8x32xf32>
    %cst_262 = arith.constant dense<0.000000e+00> : vector<8xf32>
    %669 = vector.multi_reduction <add>, %668, %cst_262 [1] : vector<8x32xf32> to vector<8xf32>
    %670 = vector.shape_cast %669 : vector<8xf32> to vector<8x1xf32>
    %cst_263 = arith.constant 3.200000e+01 : f32
    %671 = vector.broadcast %cst_263 : f32 to vector<8x1xf32>
    %672 = arith.divf %670, %671 : vector<8x1xf32>
    %673 = vector.broadcast %665 : vector<8x1xf32> to vector<8x32xf32>
    %674 = arith.subf %657, %673 : vector<8x32xf32>
    %cst_264 = arith.constant 9.99999974E-6 : f32
    %675 = vector.broadcast %cst_264 : f32 to vector<8x1xf32>
    %676 = arith.addf %672, %675 : vector<8x1xf32>
    %677 = math.rsqrt %676 : vector<8x1xf32>
    %678 = vector.broadcast %677 : vector<8x1xf32> to vector<8x32xf32>
    %679 = arith.mulf %674, %678 : vector<8x32xf32>
    %680 = vector.broadcast %659 : vector<1x32xf32> to vector<8x32xf32>
    %681 = arith.mulf %679, %680 : vector<8x32xf32>
    %682 = vector.broadcast %661 : vector<1x32xf32> to vector<8x32xf32>
    %683 = arith.addf %681, %682 : vector<8x32xf32>
    %c0_265 = arith.constant 0 : index
    %c0_266 = arith.constant 0 : index
    %c0_267 = arith.constant 0 : index
    %684 = vector.load %arg27[%c0_265, %c0_266, %c0_267] : memref<2x32x32xf32, #tpu.memory_space<vmem>>, vector<1x32x32xf32>
    %685 = vector.shape_cast %684 : vector<1x32x32xf32> to vector<32x32xf32>
    %c0_268 = arith.constant 0 : index
    %c0_269 = arith.constant 0 : index
    %c0_270 = arith.constant 0 : index
    %686 = vector.load %arg28[%c0_268, %c0_269, %c0_270] : memref<2x1x32xf32, #tpu.memory_space<vmem>>, vector<1x1x32xf32>
    %687 = vector.shape_cast %686 : vector<1x1x32xf32> to vector<1x32xf32>
    %cst_271 = arith.constant dense<0.000000e+00> : vector<8x32xf32>
    %688 = tpu.matmul %683, %685, %cst_271 {dimension_numbers = #tpu.dot_dimension_numbers<[1], [1], [0], [0], [0, 0, 1, 0], [], []>} : vector<8x32xf32>, vector<32x32xf32>, vector<8x32xf32> -> vector<8x32xf32>
    %689 = vector.broadcast %687 : vector<1x32xf32> to vector<8x32xf32>
    %690 = arith.addf %688, %689 : vector<8x32xf32>
    %c0_272 = arith.constant 0 : index
    %c0_273 = arith.constant 0 : index
    %c0_274 = arith.constant 0 : index
    %691 = vector.load %arg29[%c0_272, %c0_273, %c0_274] : memref<2x64x32xf32, #tpu.memory_space<vmem>>, vector<1x64x32xf32>
    %692 = vector.shape_cast %691 : vector<1x64x32xf32> to vector<64x32xf32>
    %c0_275 = arith.constant 0 : index
    %c0_276 = arith.constant 0 : index
    %c0_277 = arith.constant 0 : index
    %693 = vector.load %arg30[%c0_275, %c0_276, %c0_277] : memref<2x1x64xf32, #tpu.memory_space<vmem>>, vector<1x1x64xf32>
    %694 = vector.shape_cast %693 : vector<1x1x64xf32> to vector<1x64xf32>
    %cst_278 = arith.constant dense<0.000000e+00> : vector<16x64xf32>
    %695 = tpu.matmul %473, %692, %cst_278 {dimension_numbers = #tpu.dot_dimension_numbers<[1], [1], [0], [0], [0, 0, 1, 0], [], []>} : vector<16x32xf32>, vector<64x32xf32>, vector<16x64xf32> -> vector<16x64xf32>
    %696 = vector.broadcast %694 : vector<1x64xf32> to vector<16x64xf32>
    %697 = arith.addf %695, %696 : vector<16x64xf32>
    %698 = vector.extract_strided_slice %697 {offsets = [0, 0], sizes = [16, 32], strides = [1, 1]} : vector<16x64xf32> to vector<16x32xf32>
    %699 = vector.extract_strided_slice %697 {offsets = [0, 32], sizes = [16, 32], strides = [1, 1]} : vector<16x64xf32> to vector<16x32xf32>
    %c0_279 = arith.constant 0 : index
    %c0_280 = arith.constant 0 : index
    %c0_281 = arith.constant 0 : index
    %700 = vector.load %arg31[%c0_279, %c0_280, %c0_281] : memref<2x32x32xf32, #tpu.memory_space<vmem>>, vector<1x32x32xf32>
    %701 = vector.shape_cast %700 : vector<1x32x32xf32> to vector<32x32xf32>
    %c0_282 = arith.constant 0 : index
    %c0_283 = arith.constant 0 : index
    %c0_284 = arith.constant 0 : index
    %702 = vector.load %arg32[%c0_282, %c0_283, %c0_284] : memref<2x1x32xf32, #tpu.memory_space<vmem>>, vector<1x1x32xf32>
    %703 = vector.shape_cast %702 : vector<1x1x32xf32> to vector<1x32xf32>
    %704 = vector.extract_strided_slice %690 {offsets = [0, 0], sizes = [4, 32], strides = [1, 1]} : vector<8x32xf32> to vector<4x32xf32>
    %705 = vector.extract_strided_slice %698 {offsets = [0, 0], sizes = [8, 32], strides = [1, 1]} : vector<16x32xf32> to vector<8x32xf32>
    %706 = vector.extract_strided_slice %699 {offsets = [0, 0], sizes = [8, 32], strides = [1, 1]} : vector<16x32xf32> to vector<8x32xf32>
    %707 = vector.extract_strided_slice %704 {offsets = [0, 0], sizes = [4, 8], strides = [1, 1]} : vector<4x32xf32> to vector<4x8xf32>
    %cst_285 = arith.constant 0.353553385 : f32
    %708 = vector.broadcast %cst_285 : f32 to vector<4x8xf32>
    %709 = arith.mulf %707, %708 : vector<4x8xf32>
    %710 = vector.extract_strided_slice %705 {offsets = [0, 0], sizes = [8, 8], strides = [1, 1]} : vector<8x32xf32> to vector<8x8xf32>
    %711 = vector.extract_strided_slice %706 {offsets = [0, 0], sizes = [8, 8], strides = [1, 1]} : vector<8x32xf32> to vector<8x8xf32>
    %cst_286 = arith.constant dense<0.000000e+00> : vector<4x8xf32>
    %712 = tpu.matmul %709, %710, %cst_286 {dimension_numbers = #tpu.dot_dimension_numbers<[1], [1], [0], [0], [0, 0, 1, 0], [], []>} : vector<4x8xf32>, vector<8x8xf32>, vector<4x8xf32> -> vector<4x8xf32>
    %cst_287 = arith.constant dense<0xFF800000> : vector<4xf32>
    %713 = vector.multi_reduction <maximumf>, %712, %cst_287 [1] : vector<4x8xf32> to vector<4xf32>
    %714 = vector.shape_cast %713 : vector<4xf32> to vector<4x1xf32>
    %715 = vector.broadcast %714 : vector<4x1xf32> to vector<4x8xf32>
    %716 = arith.subf %712, %715 : vector<4x8xf32>
    %717 = math.exp %716 : vector<4x8xf32>
    %cst_288 = arith.constant dense<0.000000e+00> : vector<4xf32>
    %718 = vector.multi_reduction <add>, %717, %cst_288 [1] : vector<4x8xf32> to vector<4xf32>
    %719 = vector.shape_cast %718 : vector<4xf32> to vector<4x1xf32>
    %720 = tpu.reciprocal %719 {approx = true} : vector<4x1xf32> -> vector<4x1xf32>
    %721 = vector.broadcast %720 : vector<4x1xf32> to vector<4x8xf32>
    %722 = arith.mulf %717, %721 : vector<4x8xf32>
    %cst_289 = arith.constant dense<0.000000e+00> : vector<4x8xf32>
    %723 = tpu.matmul %722, %711, %cst_289 {dimension_numbers = #tpu.dot_dimension_numbers<[1], [0], [0], [1], [0, 0, 1, 1], [], []>} : vector<4x8xf32>, vector<8x8xf32>, vector<4x8xf32> -> vector<4x8xf32>
    %724 = vector.extract_strided_slice %704 {offsets = [0, 8], sizes = [4, 8], strides = [1, 1]} : vector<4x32xf32> to vector<4x8xf32>
    %cst_290 = arith.constant 0.353553385 : f32
    %725 = vector.broadcast %cst_290 : f32 to vector<4x8xf32>
    %726 = arith.mulf %724, %725 : vector<4x8xf32>
    %727 = vector.extract_strided_slice %705 {offsets = [0, 8], sizes = [8, 8], strides = [1, 1]} : vector<8x32xf32> to vector<8x8xf32>
    %728 = vector.extract_strided_slice %706 {offsets = [0, 8], sizes = [8, 8], strides = [1, 1]} : vector<8x32xf32> to vector<8x8xf32>
    %cst_291 = arith.constant dense<0.000000e+00> : vector<4x8xf32>
    %729 = tpu.matmul %726, %727, %cst_291 {dimension_numbers = #tpu.dot_dimension_numbers<[1], [1], [0], [0], [0, 0, 1, 0], [], []>} : vector<4x8xf32>, vector<8x8xf32>, vector<4x8xf32> -> vector<4x8xf32>
    %cst_292 = arith.constant dense<0xFF800000> : vector<4xf32>
    %730 = vector.multi_reduction <maximumf>, %729, %cst_292 [1] : vector<4x8xf32> to vector<4xf32>
    %731 = vector.shape_cast %730 : vector<4xf32> to vector<4x1xf32>
    %732 = vector.broadcast %731 : vector<4x1xf32> to vector<4x8xf32>
    %733 = arith.subf %729, %732 : vector<4x8xf32>
    %734 = math.exp %733 : vector<4x8xf32>
    %cst_293 = arith.constant dense<0.000000e+00> : vector<4xf32>
    %735 = vector.multi_reduction <add>, %734, %cst_293 [1] : vector<4x8xf32> to vector<4xf32>
    %736 = vector.shape_cast %735 : vector<4xf32> to vector<4x1xf32>
    %737 = tpu.reciprocal %736 {approx = true} : vector<4x1xf32> -> vector<4x1xf32>
    %738 = vector.broadcast %737 : vector<4x1xf32> to vector<4x8xf32>
    %739 = arith.mulf %734, %738 : vector<4x8xf32>
    %cst_294 = arith.constant dense<0.000000e+00> : vector<4x8xf32>
    %740 = tpu.matmul %739, %728, %cst_294 {dimension_numbers = #tpu.dot_dimension_numbers<[1], [0], [0], [1], [0, 0, 1, 1], [], []>} : vector<4x8xf32>, vector<8x8xf32>, vector<4x8xf32> -> vector<4x8xf32>
    %741 = vector.extract_strided_slice %704 {offsets = [0, 16], sizes = [4, 8], strides = [1, 1]} : vector<4x32xf32> to vector<4x8xf32>
    %cst_295 = arith.constant 0.353553385 : f32
    %742 = vector.broadcast %cst_295 : f32 to vector<4x8xf32>
    %743 = arith.mulf %741, %742 : vector<4x8xf32>
    %744 = vector.extract_strided_slice %705 {offsets = [0, 16], sizes = [8, 8], strides = [1, 1]} : vector<8x32xf32> to vector<8x8xf32>
    %745 = vector.extract_strided_slice %706 {offsets = [0, 16], sizes = [8, 8], strides = [1, 1]} : vector<8x32xf32> to vector<8x8xf32>
    %cst_296 = arith.constant dense<0.000000e+00> : vector<4x8xf32>
    %746 = tpu.matmul %743, %744, %cst_296 {dimension_numbers = #tpu.dot_dimension_numbers<[1], [1], [0], [0], [0, 0, 1, 0], [], []>} : vector<4x8xf32>, vector<8x8xf32>, vector<4x8xf32> -> vector<4x8xf32>
    %cst_297 = arith.constant dense<0xFF800000> : vector<4xf32>
    %747 = vector.multi_reduction <maximumf>, %746, %cst_297 [1] : vector<4x8xf32> to vector<4xf32>
    %748 = vector.shape_cast %747 : vector<4xf32> to vector<4x1xf32>
    %749 = vector.broadcast %748 : vector<4x1xf32> to vector<4x8xf32>
    %750 = arith.subf %746, %749 : vector<4x8xf32>
    %751 = math.exp %750 : vector<4x8xf32>
    %cst_298 = arith.constant dense<0.000000e+00> : vector<4xf32>
    %752 = vector.multi_reduction <add>, %751, %cst_298 [1] : vector<4x8xf32> to vector<4xf32>
    %753 = vector.shape_cast %752 : vector<4xf32> to vector<4x1xf32>
    %754 = tpu.reciprocal %753 {approx = true} : vector<4x1xf32> -> vector<4x1xf32>
    %755 = vector.broadcast %754 : vector<4x1xf32> to vector<4x8xf32>
    %756 = arith.mulf %751, %755 : vector<4x8xf32>
    %cst_299 = arith.constant dense<0.000000e+00> : vector<4x8xf32>
    %757 = tpu.matmul %756, %745, %cst_299 {dimension_numbers = #tpu.dot_dimension_numbers<[1], [0], [0], [1], [0, 0, 1, 1], [], []>} : vector<4x8xf32>, vector<8x8xf32>, vector<4x8xf32> -> vector<4x8xf32>
    %758 = vector.extract_strided_slice %704 {offsets = [0, 24], sizes = [4, 8], strides = [1, 1]} : vector<4x32xf32> to vector<4x8xf32>
    %cst_300 = arith.constant 0.353553385 : f32
    %759 = vector.broadcast %cst_300 : f32 to vector<4x8xf32>
    %760 = arith.mulf %758, %759 : vector<4x8xf32>
    %761 = vector.extract_strided_slice %705 {offsets = [0, 24], sizes = [8, 8], strides = [1, 1]} : vector<8x32xf32> to vector<8x8xf32>
    %762 = vector.extract_strided_slice %706 {offsets = [0, 24], sizes = [8, 8], strides = [1, 1]} : vector<8x32xf32> to vector<8x8xf32>
    %cst_301 = arith.constant dense<0.000000e+00> : vector<4x8xf32>
    %763 = tpu.matmul %760, %761, %cst_301 {dimension_numbers = #tpu.dot_dimension_numbers<[1], [1], [0], [0], [0, 0, 1, 0], [], []>} : vector<4x8xf32>, vector<8x8xf32>, vector<4x8xf32> -> vector<4x8xf32>
    %cst_302 = arith.constant dense<0xFF800000> : vector<4xf32>
    %764 = vector.multi_reduction <maximumf>, %763, %cst_302 [1] : vector<4x8xf32> to vector<4xf32>
    %765 = vector.shape_cast %764 : vector<4xf32> to vector<4x1xf32>
    %766 = vector.broadcast %765 : vector<4x1xf32> to vector<4x8xf32>
    %767 = arith.subf %763, %766 : vector<4x8xf32>
    %768 = math.exp %767 : vector<4x8xf32>
    %cst_303 = arith.constant dense<0.000000e+00> : vector<4xf32>
    %769 = vector.multi_reduction <add>, %768, %cst_303 [1] : vector<4x8xf32> to vector<4xf32>
    %770 = vector.shape_cast %769 : vector<4xf32> to vector<4x1xf32>
    %771 = tpu.reciprocal %770 {approx = true} : vector<4x1xf32> -> vector<4x1xf32>
    %772 = vector.broadcast %771 : vector<4x1xf32> to vector<4x8xf32>
    %773 = arith.mulf %768, %772 : vector<4x8xf32>
    %cst_304 = arith.constant dense<0.000000e+00> : vector<4x8xf32>
    %774 = tpu.matmul %773, %762, %cst_304 {dimension_numbers = #tpu.dot_dimension_numbers<[1], [0], [0], [1], [0, 0, 1, 1], [], []>} : vector<4x8xf32>, vector<8x8xf32>, vector<4x8xf32> -> vector<4x8xf32>
    %775 = tpu.concatenate %723, %740, %757, %774 in 1 : vector<4x8xf32>, vector<4x8xf32>, vector<4x8xf32>, vector<4x8xf32> -> vector<4x32xf32>
    %776 = vector.extract_strided_slice %690 {offsets = [4, 0], sizes = [4, 32], strides = [1, 1]} : vector<8x32xf32> to vector<4x32xf32>
    %777 = vector.extract_strided_slice %698 {offsets = [8, 0], sizes = [8, 32], strides = [1, 1]} : vector<16x32xf32> to vector<8x32xf32>
    %778 = vector.extract_strided_slice %699 {offsets = [8, 0], sizes = [8, 32], strides = [1, 1]} : vector<16x32xf32> to vector<8x32xf32>
    %779 = vector.extract_strided_slice %776 {offsets = [0, 0], sizes = [4, 8], strides = [1, 1]} : vector<4x32xf32> to vector<4x8xf32>
    %cst_305 = arith.constant 0.353553385 : f32
    %780 = vector.broadcast %cst_305 : f32 to vector<4x8xf32>
    %781 = arith.mulf %779, %780 : vector<4x8xf32>
    %782 = vector.extract_strided_slice %777 {offsets = [0, 0], sizes = [8, 8], strides = [1, 1]} : vector<8x32xf32> to vector<8x8xf32>
    %783 = vector.extract_strided_slice %778 {offsets = [0, 0], sizes = [8, 8], strides = [1, 1]} : vector<8x32xf32> to vector<8x8xf32>
    %cst_306 = arith.constant dense<0.000000e+00> : vector<4x8xf32>
    %784 = tpu.matmul %781, %782, %cst_306 {dimension_numbers = #tpu.dot_dimension_numbers<[1], [1], [0], [0], [0, 0, 1, 0], [], []>} : vector<4x8xf32>, vector<8x8xf32>, vector<4x8xf32> -> vector<4x8xf32>
    %cst_307 = arith.constant dense<0xFF800000> : vector<4xf32>
    %785 = vector.multi_reduction <maximumf>, %784, %cst_307 [1] : vector<4x8xf32> to vector<4xf32>
    %786 = vector.shape_cast %785 : vector<4xf32> to vector<4x1xf32>
    %787 = vector.broadcast %786 : vector<4x1xf32> to vector<4x8xf32>
    %788 = arith.subf %784, %787 : vector<4x8xf32>
    %789 = math.exp %788 : vector<4x8xf32>
    %cst_308 = arith.constant dense<0.000000e+00> : vector<4xf32>
    %790 = vector.multi_reduction <add>, %789, %cst_308 [1] : vector<4x8xf32> to vector<4xf32>
    %791 = vector.shape_cast %790 : vector<4xf32> to vector<4x1xf32>
    %792 = tpu.reciprocal %791 {approx = true} : vector<4x1xf32> -> vector<4x1xf32>
    %793 = vector.broadcast %792 : vector<4x1xf32> to vector<4x8xf32>
    %794 = arith.mulf %789, %793 : vector<4x8xf32>
    %cst_309 = arith.constant dense<0.000000e+00> : vector<4x8xf32>
    %795 = tpu.matmul %794, %783, %cst_309 {dimension_numbers = #tpu.dot_dimension_numbers<[1], [0], [0], [1], [0, 0, 1, 1], [], []>} : vector<4x8xf32>, vector<8x8xf32>, vector<4x8xf32> -> vector<4x8xf32>
    %796 = vector.extract_strided_slice %776 {offsets = [0, 8], sizes = [4, 8], strides = [1, 1]} : vector<4x32xf32> to vector<4x8xf32>
    %cst_310 = arith.constant 0.353553385 : f32
    %797 = vector.broadcast %cst_310 : f32 to vector<4x8xf32>
    %798 = arith.mulf %796, %797 : vector<4x8xf32>
    %799 = vector.extract_strided_slice %777 {offsets = [0, 8], sizes = [8, 8], strides = [1, 1]} : vector<8x32xf32> to vector<8x8xf32>
    %800 = vector.extract_strided_slice %778 {offsets = [0, 8], sizes = [8, 8], strides = [1, 1]} : vector<8x32xf32> to vector<8x8xf32>
    %cst_311 = arith.constant dense<0.000000e+00> : vector<4x8xf32>
    %801 = tpu.matmul %798, %799, %cst_311 {dimension_numbers = #tpu.dot_dimension_numbers<[1], [1], [0], [0], [0, 0, 1, 0], [], []>} : vector<4x8xf32>, vector<8x8xf32>, vector<4x8xf32> -> vector<4x8xf32>
    %cst_312 = arith.constant dense<0xFF800000> : vector<4xf32>
    %802 = vector.multi_reduction <maximumf>, %801, %cst_312 [1] : vector<4x8xf32> to vector<4xf32>
    %803 = vector.shape_cast %802 : vector<4xf32> to vector<4x1xf32>
    %804 = vector.broadcast %803 : vector<4x1xf32> to vector<4x8xf32>
    %805 = arith.subf %801, %804 : vector<4x8xf32>
    %806 = math.exp %805 : vector<4x8xf32>
    %cst_313 = arith.constant dense<0.000000e+00> : vector<4xf32>
    %807 = vector.multi_reduction <add>, %806, %cst_313 [1] : vector<4x8xf32> to vector<4xf32>
    %808 = vector.shape_cast %807 : vector<4xf32> to vector<4x1xf32>
    %809 = tpu.reciprocal %808 {approx = true} : vector<4x1xf32> -> vector<4x1xf32>
    %810 = vector.broadcast %809 : vector<4x1xf32> to vector<4x8xf32>
    %811 = arith.mulf %806, %810 : vector<4x8xf32>
    %cst_314 = arith.constant dense<0.000000e+00> : vector<4x8xf32>
    %812 = tpu.matmul %811, %800, %cst_314 {dimension_numbers = #tpu.dot_dimension_numbers<[1], [0], [0], [1], [0, 0, 1, 1], [], []>} : vector<4x8xf32>, vector<8x8xf32>, vector<4x8xf32> -> vector<4x8xf32>
    %813 = vector.extract_strided_slice %776 {offsets = [0, 16], sizes = [4, 8], strides = [1, 1]} : vector<4x32xf32> to vector<4x8xf32>
    %cst_315 = arith.constant 0.353553385 : f32
    %814 = vector.broadcast %cst_315 : f32 to vector<4x8xf32>
    %815 = arith.mulf %813, %814 : vector<4x8xf32>
    %816 = vector.extract_strided_slice %777 {offsets = [0, 16], sizes = [8, 8], strides = [1, 1]} : vector<8x32xf32> to vector<8x8xf32>
    %817 = vector.extract_strided_slice %778 {offsets = [0, 16], sizes = [8, 8], strides = [1, 1]} : vector<8x32xf32> to vector<8x8xf32>
    %cst_316 = arith.constant dense<0.000000e+00> : vector<4x8xf32>
    %818 = tpu.matmul %815, %816, %cst_316 {dimension_numbers = #tpu.dot_dimension_numbers<[1], [1], [0], [0], [0, 0, 1, 0], [], []>} : vector<4x8xf32>, vector<8x8xf32>, vector<4x8xf32> -> vector<4x8xf32>
    %cst_317 = arith.constant dense<0xFF800000> : vector<4xf32>
    %819 = vector.multi_reduction <maximumf>, %818, %cst_317 [1] : vector<4x8xf32> to vector<4xf32>
    %820 = vector.shape_cast %819 : vector<4xf32> to vector<4x1xf32>
    %821 = vector.broadcast %820 : vector<4x1xf32> to vector<4x8xf32>
    %822 = arith.subf %818, %821 : vector<4x8xf32>
    %823 = math.exp %822 : vector<4x8xf32>
    %cst_318 = arith.constant dense<0.000000e+00> : vector<4xf32>
    %824 = vector.multi_reduction <add>, %823, %cst_318 [1] : vector<4x8xf32> to vector<4xf32>
    %825 = vector.shape_cast %824 : vector<4xf32> to vector<4x1xf32>
    %826 = tpu.reciprocal %825 {approx = true} : vector<4x1xf32> -> vector<4x1xf32>
    %827 = vector.broadcast %826 : vector<4x1xf32> to vector<4x8xf32>
    %828 = arith.mulf %823, %827 : vector<4x8xf32>
    %cst_319 = arith.constant dense<0.000000e+00> : vector<4x8xf32>
    %829 = tpu.matmul %828, %817, %cst_319 {dimension_numbers = #tpu.dot_dimension_numbers<[1], [0], [0], [1], [0, 0, 1, 1], [], []>} : vector<4x8xf32>, vector<8x8xf32>, vector<4x8xf32> -> vector<4x8xf32>
    %830 = vector.extract_strided_slice %776 {offsets = [0, 24], sizes = [4, 8], strides = [1, 1]} : vector<4x32xf32> to vector<4x8xf32>
    %cst_320 = arith.constant 0.353553385 : f32
    %831 = vector.broadcast %cst_320 : f32 to vector<4x8xf32>
    %832 = arith.mulf %830, %831 : vector<4x8xf32>
    %833 = vector.extract_strided_slice %777 {offsets = [0, 24], sizes = [8, 8], strides = [1, 1]} : vector<8x32xf32> to vector<8x8xf32>
    %834 = vector.extract_strided_slice %778 {offsets = [0, 24], sizes = [8, 8], strides = [1, 1]} : vector<8x32xf32> to vector<8x8xf32>
    %cst_321 = arith.constant dense<0.000000e+00> : vector<4x8xf32>
    %835 = tpu.matmul %832, %833, %cst_321 {dimension_numbers = #tpu.dot_dimension_numbers<[1], [1], [0], [0], [0, 0, 1, 0], [], []>} : vector<4x8xf32>, vector<8x8xf32>, vector<4x8xf32> -> vector<4x8xf32>
    %cst_322 = arith.constant dense<0xFF800000> : vector<4xf32>
    %836 = vector.multi_reduction <maximumf>, %835, %cst_322 [1] : vector<4x8xf32> to vector<4xf32>
    %837 = vector.shape_cast %836 : vector<4xf32> to vector<4x1xf32>
    %838 = vector.broadcast %837 : vector<4x1xf32> to vector<4x8xf32>
    %839 = arith.subf %835, %838 : vector<4x8xf32>
    %840 = math.exp %839 : vector<4x8xf32>
    %cst_323 = arith.constant dense<0.000000e+00> : vector<4xf32>
    %841 = vector.multi_reduction <add>, %840, %cst_323 [1] : vector<4x8xf32> to vector<4xf32>
    %842 = vector.shape_cast %841 : vector<4xf32> to vector<4x1xf32>
    %843 = tpu.reciprocal %842 {approx = true} : vector<4x1xf32> -> vector<4x1xf32>
    %844 = vector.broadcast %843 : vector<4x1xf32> to vector<4x8xf32>
    %845 = arith.mulf %840, %844 : vector<4x8xf32>
    %cst_324 = arith.constant dense<0.000000e+00> : vector<4x8xf32>
    %846 = tpu.matmul %845, %834, %cst_324 {dimension_numbers = #tpu.dot_dimension_numbers<[1], [0], [0], [1], [0, 0, 1, 1], [], []>} : vector<4x8xf32>, vector<8x8xf32>, vector<4x8xf32> -> vector<4x8xf32>
    %847 = tpu.concatenate %795, %812, %829, %846 in 1 : vector<4x8xf32>, vector<4x8xf32>, vector<4x8xf32>, vector<4x8xf32> -> vector<4x32xf32>
    %848 = tpu.concatenate %775, %847 in 0 : vector<4x32xf32>, vector<4x32xf32> -> vector<8x32xf32>
    %cst_325 = arith.constant dense<0.000000e+00> : vector<8x32xf32>
    %849 = tpu.matmul %848, %701, %cst_325 {dimension_numbers = #tpu.dot_dimension_numbers<[1], [1], [0], [0], [0, 0, 1, 0], [], []>} : vector<8x32xf32>, vector<32x32xf32>, vector<8x32xf32> -> vector<8x32xf32>
    %850 = vector.broadcast %703 : vector<1x32xf32> to vector<8x32xf32>
    %851 = arith.addf %849, %850 : vector<8x32xf32>
    %852 = arith.addf %683, %851 : vector<8x32xf32>
    %c0_326 = arith.constant 0 : index
    %c0_327 = arith.constant 0 : index
    %c0_328 = arith.constant 0 : index
    %853 = vector.load %arg39[%c0_326, %c0_327, %c0_328] : memref<2x1x32xf32, #tpu.memory_space<vmem>>, vector<1x1x32xf32>
    %854 = vector.shape_cast %853 : vector<1x1x32xf32> to vector<1x32xf32>
    %c0_329 = arith.constant 0 : index
    %c0_330 = arith.constant 0 : index
    %c0_331 = arith.constant 0 : index
    %855 = vector.load %arg40[%c0_329, %c0_330, %c0_331] : memref<2x1x32xf32, #tpu.memory_space<vmem>>, vector<1x1x32xf32>
    %856 = vector.shape_cast %855 : vector<1x1x32xf32> to vector<1x32xf32>
    %cst_332 = arith.constant dense<0.000000e+00> : vector<8xf32>
    %857 = vector.multi_reduction <add>, %852, %cst_332 [1] : vector<8x32xf32> to vector<8xf32>
    %858 = vector.shape_cast %857 : vector<8xf32> to vector<8x1xf32>
    %cst_333 = arith.constant 3.200000e+01 : f32
    %859 = vector.broadcast %cst_333 : f32 to vector<8x1xf32>
    %860 = arith.divf %858, %859 : vector<8x1xf32>
    %861 = vector.broadcast %860 : vector<8x1xf32> to vector<8x32xf32>
    %862 = arith.subf %852, %861 : vector<8x32xf32>
    %863 = arith.mulf %862, %862 : vector<8x32xf32>
    %cst_334 = arith.constant dense<0.000000e+00> : vector<8xf32>
    %864 = vector.multi_reduction <add>, %863, %cst_334 [1] : vector<8x32xf32> to vector<8xf32>
    %865 = vector.shape_cast %864 : vector<8xf32> to vector<8x1xf32>
    %cst_335 = arith.constant 3.200000e+01 : f32
    %866 = vector.broadcast %cst_335 : f32 to vector<8x1xf32>
    %867 = arith.divf %865, %866 : vector<8x1xf32>
    %868 = vector.broadcast %860 : vector<8x1xf32> to vector<8x32xf32>
    %869 = arith.subf %852, %868 : vector<8x32xf32>
    %cst_336 = arith.constant 9.99999974E-6 : f32
    %870 = vector.broadcast %cst_336 : f32 to vector<8x1xf32>
    %871 = arith.addf %867, %870 : vector<8x1xf32>
    %872 = math.rsqrt %871 : vector<8x1xf32>
    %873 = vector.broadcast %872 : vector<8x1xf32> to vector<8x32xf32>
    %874 = arith.mulf %869, %873 : vector<8x32xf32>
    %875 = vector.broadcast %854 : vector<1x32xf32> to vector<8x32xf32>
    %876 = arith.mulf %874, %875 : vector<8x32xf32>
    %877 = vector.broadcast %856 : vector<1x32xf32> to vector<8x32xf32>
    %878 = arith.addf %876, %877 : vector<8x32xf32>
    %c0_337 = arith.constant 0 : index
    %c0_338 = arith.constant 0 : index
    %c0_339 = arith.constant 0 : index
    %879 = vector.load %arg33[%c0_337, %c0_338, %c0_339] : memref<2x64x32xf32, #tpu.memory_space<vmem>>, vector<1x64x32xf32>
    %880 = vector.shape_cast %879 : vector<1x64x32xf32> to vector<64x32xf32>
    %c0_340 = arith.constant 0 : index
    %c0_341 = arith.constant 0 : index
    %c0_342 = arith.constant 0 : index
    %881 = vector.load %arg34[%c0_340, %c0_341, %c0_342] : memref<2x1x64xf32, #tpu.memory_space<vmem>>, vector<1x1x64xf32>
    %882 = vector.shape_cast %881 : vector<1x1x64xf32> to vector<1x64xf32>
    %cst_343 = arith.constant dense<0.000000e+00> : vector<8x64xf32>
    %883 = tpu.matmul %878, %880, %cst_343 {dimension_numbers = #tpu.dot_dimension_numbers<[1], [1], [0], [0], [0, 0, 1, 0], [], []>} : vector<8x32xf32>, vector<64x32xf32>, vector<8x64xf32> -> vector<8x64xf32>
    %884 = vector.broadcast %882 : vector<1x64xf32> to vector<8x64xf32>
    %885 = arith.addf %883, %884 : vector<8x64xf32>
    %cst_344 = arith.constant 0.000000e+00 : f32
    %886 = vector.broadcast %cst_344 : f32 to vector<8x64xf32>
    %887 = arith.maximumf %885, %886 : vector<8x64xf32>
    %c0_345 = arith.constant 0 : index
    %c0_346 = arith.constant 0 : index
    %c0_347 = arith.constant 0 : index
    %888 = vector.load %arg35[%c0_345, %c0_346, %c0_347] : memref<2x32x64xf32, #tpu.memory_space<vmem>>, vector<1x32x64xf32>
    %889 = vector.shape_cast %888 : vector<1x32x64xf32> to vector<32x64xf32>
    %c0_348 = arith.constant 0 : index
    %c0_349 = arith.constant 0 : index
    %c0_350 = arith.constant 0 : index
    %890 = vector.load %arg36[%c0_348, %c0_349, %c0_350] : memref<2x1x32xf32, #tpu.memory_space<vmem>>, vector<1x1x32xf32>
    %891 = vector.shape_cast %890 : vector<1x1x32xf32> to vector<1x32xf32>
    %cst_351 = arith.constant dense<0.000000e+00> : vector<8x32xf32>
    %892 = tpu.matmul %887, %889, %cst_351 {dimension_numbers = #tpu.dot_dimension_numbers<[1], [1], [0], [0], [0, 0, 1, 0], [], []>} : vector<8x64xf32>, vector<32x64xf32>, vector<8x32xf32> -> vector<8x32xf32>
    %893 = vector.broadcast %891 : vector<1x32xf32> to vector<8x32xf32>
    %894 = arith.addf %892, %893 : vector<8x32xf32>
    %895 = arith.addf %878, %894 : vector<8x32xf32>
    %c0_352 = arith.constant 0 : index
    %c0_353 = arith.constant 0 : index
    %c0_354 = arith.constant 0 : index
    %896 = vector.load %arg41[%c0_352, %c0_353, %c0_354] : memref<2x1x32xf32, #tpu.memory_space<vmem>>, vector<1x1x32xf32>
    %897 = vector.shape_cast %896 : vector<1x1x32xf32> to vector<1x32xf32>
    %c0_355 = arith.constant 0 : index
    %c0_356 = arith.constant 0 : index
    %c0_357 = arith.constant 0 : index
    %898 = vector.load %arg42[%c0_355, %c0_356, %c0_357] : memref<2x1x32xf32, #tpu.memory_space<vmem>>, vector<1x1x32xf32>
    %899 = vector.shape_cast %898 : vector<1x1x32xf32> to vector<1x32xf32>
    %cst_358 = arith.constant dense<0.000000e+00> : vector<8xf32>
    %900 = vector.multi_reduction <add>, %895, %cst_358 [1] : vector<8x32xf32> to vector<8xf32>
    %901 = vector.shape_cast %900 : vector<8xf32> to vector<8x1xf32>
    %cst_359 = arith.constant 3.200000e+01 : f32
    %902 = vector.broadcast %cst_359 : f32 to vector<8x1xf32>
    %903 = arith.divf %901, %902 : vector<8x1xf32>
    %904 = vector.broadcast %903 : vector<8x1xf32> to vector<8x32xf32>
    %905 = arith.subf %895, %904 : vector<8x32xf32>
    %906 = arith.mulf %905, %905 : vector<8x32xf32>
    %cst_360 = arith.constant dense<0.000000e+00> : vector<8xf32>
    %907 = vector.multi_reduction <add>, %906, %cst_360 [1] : vector<8x32xf32> to vector<8xf32>
    %908 = vector.shape_cast %907 : vector<8xf32> to vector<8x1xf32>
    %cst_361 = arith.constant 3.200000e+01 : f32
    %909 = vector.broadcast %cst_361 : f32 to vector<8x1xf32>
    %910 = arith.divf %908, %909 : vector<8x1xf32>
    %911 = vector.broadcast %903 : vector<8x1xf32> to vector<8x32xf32>
    %912 = arith.subf %895, %911 : vector<8x32xf32>
    %cst_362 = arith.constant 9.99999974E-6 : f32
    %913 = vector.broadcast %cst_362 : f32 to vector<8x1xf32>
    %914 = arith.addf %910, %913 : vector<8x1xf32>
    %915 = math.rsqrt %914 : vector<8x1xf32>
    %916 = vector.broadcast %915 : vector<8x1xf32> to vector<8x32xf32>
    %917 = arith.mulf %912, %916 : vector<8x32xf32>
    %918 = vector.broadcast %897 : vector<1x32xf32> to vector<8x32xf32>
    %919 = arith.mulf %917, %918 : vector<8x32xf32>
    %920 = vector.broadcast %899 : vector<1x32xf32> to vector<8x32xf32>
    %921 = arith.addf %919, %920 : vector<8x32xf32>
    %c1_363 = arith.constant 1 : index
    %c0_364 = arith.constant 0 : index
    %c0_365 = arith.constant 0 : index
    %922 = vector.load %arg23[%c1_363, %c0_364, %c0_365] : memref<2x96x32xf32, #tpu.memory_space<vmem>>, vector<1x96x32xf32>
    %923 = vector.shape_cast %922 : vector<1x96x32xf32> to vector<96x32xf32>
    %c1_366 = arith.constant 1 : index
    %c0_367 = arith.constant 0 : index
    %c0_368 = arith.constant 0 : index
    %924 = vector.load %arg24[%c1_366, %c0_367, %c0_368] : memref<2x1x96xf32, #tpu.memory_space<vmem>>, vector<1x1x96xf32>
    %925 = vector.shape_cast %924 : vector<1x1x96xf32> to vector<1x96xf32>
    %cst_369 = arith.constant dense<0.000000e+00> : vector<8x96xf32>
    %926 = tpu.matmul %921, %923, %cst_369 {dimension_numbers = #tpu.dot_dimension_numbers<[1], [1], [0], [0], [0, 0, 1, 0], [], []>} : vector<8x32xf32>, vector<96x32xf32>, vector<8x96xf32> -> vector<8x96xf32>
    %927 = vector.broadcast %925 : vector<1x96xf32> to vector<8x96xf32>
    %928 = arith.addf %926, %927 : vector<8x96xf32>
    %929 = vector.extract_strided_slice %928 {offsets = [0, 0], sizes = [8, 32], strides = [1, 1]} : vector<8x96xf32> to vector<8x32xf32>
    %930 = vector.extract_strided_slice %928 {offsets = [0, 32], sizes = [8, 32], strides = [1, 1]} : vector<8x96xf32> to vector<8x32xf32>
    %931 = vector.extract_strided_slice %928 {offsets = [0, 64], sizes = [8, 32], strides = [1, 1]} : vector<8x96xf32> to vector<8x32xf32>
    %c1_370 = arith.constant 1 : index
    %c0_371 = arith.constant 0 : index
    %c0_372 = arith.constant 0 : index
    %932 = vector.load %arg25[%c1_370, %c0_371, %c0_372] : memref<2x32x32xf32, #tpu.memory_space<vmem>>, vector<1x32x32xf32>
    %933 = vector.shape_cast %932 : vector<1x32x32xf32> to vector<32x32xf32>
    %c1_373 = arith.constant 1 : index
    %c0_374 = arith.constant 0 : index
    %c0_375 = arith.constant 0 : index
    %934 = vector.load %arg26[%c1_373, %c0_374, %c0_375] : memref<2x1x32xf32, #tpu.memory_space<vmem>>, vector<1x1x32xf32>
    %935 = vector.shape_cast %934 : vector<1x1x32xf32> to vector<1x32xf32>
    %936 = vector.extract_strided_slice %929 {offsets = [0, 0], sizes = [4, 32], strides = [1, 1]} : vector<8x32xf32> to vector<4x32xf32>
    %937 = vector.extract_strided_slice %930 {offsets = [0, 0], sizes = [4, 32], strides = [1, 1]} : vector<8x32xf32> to vector<4x32xf32>
    %938 = vector.extract_strided_slice %931 {offsets = [0, 0], sizes = [4, 32], strides = [1, 1]} : vector<8x32xf32> to vector<4x32xf32>
    %939 = vector.extract_strided_slice %936 {offsets = [0, 0], sizes = [4, 8], strides = [1, 1]} : vector<4x32xf32> to vector<4x8xf32>
    %cst_376 = arith.constant 0.353553385 : f32
    %940 = vector.broadcast %cst_376 : f32 to vector<4x8xf32>
    %941 = arith.mulf %939, %940 : vector<4x8xf32>
    %942 = vector.extract_strided_slice %937 {offsets = [0, 0], sizes = [4, 8], strides = [1, 1]} : vector<4x32xf32> to vector<4x8xf32>
    %943 = vector.extract_strided_slice %938 {offsets = [0, 0], sizes = [4, 8], strides = [1, 1]} : vector<4x32xf32> to vector<4x8xf32>
    %cst_377 = arith.constant dense<0.000000e+00> : vector<4x4xf32>
    %944 = tpu.matmul %941, %942, %cst_377 {dimension_numbers = #tpu.dot_dimension_numbers<[1], [1], [0], [0], [0, 0, 1, 0], [], []>} : vector<4x8xf32>, vector<4x8xf32>, vector<4x4xf32> -> vector<4x4xf32>
    %945 = arith.addf %944, %486 : vector<4x4xf32>
    %cst_378 = arith.constant dense<0xFF800000> : vector<4xf32>
    %946 = vector.multi_reduction <maximumf>, %945, %cst_378 [1] : vector<4x4xf32> to vector<4xf32>
    %947 = vector.shape_cast %946 : vector<4xf32> to vector<4x1xf32>
    %948 = vector.broadcast %947 : vector<4x1xf32> to vector<4x4xf32>
    %949 = arith.subf %945, %948 : vector<4x4xf32>
    %950 = math.exp %949 : vector<4x4xf32>
    %cst_379 = arith.constant dense<0.000000e+00> : vector<4xf32>
    %951 = vector.multi_reduction <add>, %950, %cst_379 [1] : vector<4x4xf32> to vector<4xf32>
    %952 = vector.shape_cast %951 : vector<4xf32> to vector<4x1xf32>
    %953 = tpu.reciprocal %952 {approx = true} : vector<4x1xf32> -> vector<4x1xf32>
    %954 = vector.broadcast %953 : vector<4x1xf32> to vector<4x4xf32>
    %955 = arith.mulf %950, %954 : vector<4x4xf32>
    %cst_380 = arith.constant dense<0.000000e+00> : vector<4x8xf32>
    %956 = tpu.matmul %955, %943, %cst_380 {dimension_numbers = #tpu.dot_dimension_numbers<[1], [0], [0], [1], [0, 0, 1, 1], [], []>} : vector<4x4xf32>, vector<4x8xf32>, vector<4x8xf32> -> vector<4x8xf32>
    %957 = vector.extract_strided_slice %936 {offsets = [0, 8], sizes = [4, 8], strides = [1, 1]} : vector<4x32xf32> to vector<4x8xf32>
    %cst_381 = arith.constant 0.353553385 : f32
    %958 = vector.broadcast %cst_381 : f32 to vector<4x8xf32>
    %959 = arith.mulf %957, %958 : vector<4x8xf32>
    %960 = vector.extract_strided_slice %937 {offsets = [0, 8], sizes = [4, 8], strides = [1, 1]} : vector<4x32xf32> to vector<4x8xf32>
    %961 = vector.extract_strided_slice %938 {offsets = [0, 8], sizes = [4, 8], strides = [1, 1]} : vector<4x32xf32> to vector<4x8xf32>
    %cst_382 = arith.constant dense<0.000000e+00> : vector<4x4xf32>
    %962 = tpu.matmul %959, %960, %cst_382 {dimension_numbers = #tpu.dot_dimension_numbers<[1], [1], [0], [0], [0, 0, 1, 0], [], []>} : vector<4x8xf32>, vector<4x8xf32>, vector<4x4xf32> -> vector<4x4xf32>
    %963 = arith.addf %962, %486 : vector<4x4xf32>
    %cst_383 = arith.constant dense<0xFF800000> : vector<4xf32>
    %964 = vector.multi_reduction <maximumf>, %963, %cst_383 [1] : vector<4x4xf32> to vector<4xf32>
    %965 = vector.shape_cast %964 : vector<4xf32> to vector<4x1xf32>
    %966 = vector.broadcast %965 : vector<4x1xf32> to vector<4x4xf32>
    %967 = arith.subf %963, %966 : vector<4x4xf32>
    %968 = math.exp %967 : vector<4x4xf32>
    %cst_384 = arith.constant dense<0.000000e+00> : vector<4xf32>
    %969 = vector.multi_reduction <add>, %968, %cst_384 [1] : vector<4x4xf32> to vector<4xf32>
    %970 = vector.shape_cast %969 : vector<4xf32> to vector<4x1xf32>
    %971 = tpu.reciprocal %970 {approx = true} : vector<4x1xf32> -> vector<4x1xf32>
    %972 = vector.broadcast %971 : vector<4x1xf32> to vector<4x4xf32>
    %973 = arith.mulf %968, %972 : vector<4x4xf32>
    %cst_385 = arith.constant dense<0.000000e+00> : vector<4x8xf32>
    %974 = tpu.matmul %973, %961, %cst_385 {dimension_numbers = #tpu.dot_dimension_numbers<[1], [0], [0], [1], [0, 0, 1, 1], [], []>} : vector<4x4xf32>, vector<4x8xf32>, vector<4x8xf32> -> vector<4x8xf32>
    %975 = vector.extract_strided_slice %936 {offsets = [0, 16], sizes = [4, 8], strides = [1, 1]} : vector<4x32xf32> to vector<4x8xf32>
    %cst_386 = arith.constant 0.353553385 : f32
    %976 = vector.broadcast %cst_386 : f32 to vector<4x8xf32>
    %977 = arith.mulf %975, %976 : vector<4x8xf32>
    %978 = vector.extract_strided_slice %937 {offsets = [0, 16], sizes = [4, 8], strides = [1, 1]} : vector<4x32xf32> to vector<4x8xf32>
    %979 = vector.extract_strided_slice %938 {offsets = [0, 16], sizes = [4, 8], strides = [1, 1]} : vector<4x32xf32> to vector<4x8xf32>
    %cst_387 = arith.constant dense<0.000000e+00> : vector<4x4xf32>
    %980 = tpu.matmul %977, %978, %cst_387 {dimension_numbers = #tpu.dot_dimension_numbers<[1], [1], [0], [0], [0, 0, 1, 0], [], []>} : vector<4x8xf32>, vector<4x8xf32>, vector<4x4xf32> -> vector<4x4xf32>
    %981 = arith.addf %980, %486 : vector<4x4xf32>
    %cst_388 = arith.constant dense<0xFF800000> : vector<4xf32>
    %982 = vector.multi_reduction <maximumf>, %981, %cst_388 [1] : vector<4x4xf32> to vector<4xf32>
    %983 = vector.shape_cast %982 : vector<4xf32> to vector<4x1xf32>
    %984 = vector.broadcast %983 : vector<4x1xf32> to vector<4x4xf32>
    %985 = arith.subf %981, %984 : vector<4x4xf32>
    %986 = math.exp %985 : vector<4x4xf32>
    %cst_389 = arith.constant dense<0.000000e+00> : vector<4xf32>
    %987 = vector.multi_reduction <add>, %986, %cst_389 [1] : vector<4x4xf32> to vector<4xf32>
    %988 = vector.shape_cast %987 : vector<4xf32> to vector<4x1xf32>
    %989 = tpu.reciprocal %988 {approx = true} : vector<4x1xf32> -> vector<4x1xf32>
    %990 = vector.broadcast %989 : vector<4x1xf32> to vector<4x4xf32>
    %991 = arith.mulf %986, %990 : vector<4x4xf32>
    %cst_390 = arith.constant dense<0.000000e+00> : vector<4x8xf32>
    %992 = tpu.matmul %991, %979, %cst_390 {dimension_numbers = #tpu.dot_dimension_numbers<[1], [0], [0], [1], [0, 0, 1, 1], [], []>} : vector<4x4xf32>, vector<4x8xf32>, vector<4x8xf32> -> vector<4x8xf32>
    %993 = vector.extract_strided_slice %936 {offsets = [0, 24], sizes = [4, 8], strides = [1, 1]} : vector<4x32xf32> to vector<4x8xf32>
    %cst_391 = arith.constant 0.353553385 : f32
    %994 = vector.broadcast %cst_391 : f32 to vector<4x8xf32>
    %995 = arith.mulf %993, %994 : vector<4x8xf32>
    %996 = vector.extract_strided_slice %937 {offsets = [0, 24], sizes = [4, 8], strides = [1, 1]} : vector<4x32xf32> to vector<4x8xf32>
    %997 = vector.extract_strided_slice %938 {offsets = [0, 24], sizes = [4, 8], strides = [1, 1]} : vector<4x32xf32> to vector<4x8xf32>
    %cst_392 = arith.constant dense<0.000000e+00> : vector<4x4xf32>
    %998 = tpu.matmul %995, %996, %cst_392 {dimension_numbers = #tpu.dot_dimension_numbers<[1], [1], [0], [0], [0, 0, 1, 0], [], []>} : vector<4x8xf32>, vector<4x8xf32>, vector<4x4xf32> -> vector<4x4xf32>
    %999 = arith.addf %998, %486 : vector<4x4xf32>
    %cst_393 = arith.constant dense<0xFF800000> : vector<4xf32>
    %1000 = vector.multi_reduction <maximumf>, %999, %cst_393 [1] : vector<4x4xf32> to vector<4xf32>
    %1001 = vector.shape_cast %1000 : vector<4xf32> to vector<4x1xf32>
    %1002 = vector.broadcast %1001 : vector<4x1xf32> to vector<4x4xf32>
    %1003 = arith.subf %999, %1002 : vector<4x4xf32>
    %1004 = math.exp %1003 : vector<4x4xf32>
    %cst_394 = arith.constant dense<0.000000e+00> : vector<4xf32>
    %1005 = vector.multi_reduction <add>, %1004, %cst_394 [1] : vector<4x4xf32> to vector<4xf32>
    %1006 = vector.shape_cast %1005 : vector<4xf32> to vector<4x1xf32>
    %1007 = tpu.reciprocal %1006 {approx = true} : vector<4x1xf32> -> vector<4x1xf32>
    %1008 = vector.broadcast %1007 : vector<4x1xf32> to vector<4x4xf32>
    %1009 = arith.mulf %1004, %1008 : vector<4x4xf32>
    %cst_395 = arith.constant dense<0.000000e+00> : vector<4x8xf32>
    %1010 = tpu.matmul %1009, %997, %cst_395 {dimension_numbers = #tpu.dot_dimension_numbers<[1], [0], [0], [1], [0, 0, 1, 1], [], []>} : vector<4x4xf32>, vector<4x8xf32>, vector<4x8xf32> -> vector<4x8xf32>
    %1011 = tpu.concatenate %956, %974, %992, %1010 in 1 : vector<4x8xf32>, vector<4x8xf32>, vector<4x8xf32>, vector<4x8xf32> -> vector<4x32xf32>
    %1012 = vector.extract_strided_slice %929 {offsets = [4, 0], sizes = [4, 32], strides = [1, 1]} : vector<8x32xf32> to vector<4x32xf32>
    %1013 = vector.extract_strided_slice %930 {offsets = [4, 0], sizes = [4, 32], strides = [1, 1]} : vector<8x32xf32> to vector<4x32xf32>
    %1014 = vector.extract_strided_slice %931 {offsets = [4, 0], sizes = [4, 32], strides = [1, 1]} : vector<8x32xf32> to vector<4x32xf32>
    %1015 = vector.extract_strided_slice %1012 {offsets = [0, 0], sizes = [4, 8], strides = [1, 1]} : vector<4x32xf32> to vector<4x8xf32>
    %cst_396 = arith.constant 0.353553385 : f32
    %1016 = vector.broadcast %cst_396 : f32 to vector<4x8xf32>
    %1017 = arith.mulf %1015, %1016 : vector<4x8xf32>
    %1018 = vector.extract_strided_slice %1013 {offsets = [0, 0], sizes = [4, 8], strides = [1, 1]} : vector<4x32xf32> to vector<4x8xf32>
    %1019 = vector.extract_strided_slice %1014 {offsets = [0, 0], sizes = [4, 8], strides = [1, 1]} : vector<4x32xf32> to vector<4x8xf32>
    %cst_397 = arith.constant dense<0.000000e+00> : vector<4x4xf32>
    %1020 = tpu.matmul %1017, %1018, %cst_397 {dimension_numbers = #tpu.dot_dimension_numbers<[1], [1], [0], [0], [0, 0, 1, 0], [], []>} : vector<4x8xf32>, vector<4x8xf32>, vector<4x4xf32> -> vector<4x4xf32>
    %1021 = arith.addf %1020, %486 : vector<4x4xf32>
    %cst_398 = arith.constant dense<0xFF800000> : vector<4xf32>
    %1022 = vector.multi_reduction <maximumf>, %1021, %cst_398 [1] : vector<4x4xf32> to vector<4xf32>
    %1023 = vector.shape_cast %1022 : vector<4xf32> to vector<4x1xf32>
    %1024 = vector.broadcast %1023 : vector<4x1xf32> to vector<4x4xf32>
    %1025 = arith.subf %1021, %1024 : vector<4x4xf32>
    %1026 = math.exp %1025 : vector<4x4xf32>
    %cst_399 = arith.constant dense<0.000000e+00> : vector<4xf32>
    %1027 = vector.multi_reduction <add>, %1026, %cst_399 [1] : vector<4x4xf32> to vector<4xf32>
    %1028 = vector.shape_cast %1027 : vector<4xf32> to vector<4x1xf32>
    %1029 = tpu.reciprocal %1028 {approx = true} : vector<4x1xf32> -> vector<4x1xf32>
    %1030 = vector.broadcast %1029 : vector<4x1xf32> to vector<4x4xf32>
    %1031 = arith.mulf %1026, %1030 : vector<4x4xf32>
    %cst_400 = arith.constant dense<0.000000e+00> : vector<4x8xf32>
    %1032 = tpu.matmul %1031, %1019, %cst_400 {dimension_numbers = #tpu.dot_dimension_numbers<[1], [0], [0], [1], [0, 0, 1, 1], [], []>} : vector<4x4xf32>, vector<4x8xf32>, vector<4x8xf32> -> vector<4x8xf32>
    %1033 = vector.extract_strided_slice %1012 {offsets = [0, 8], sizes = [4, 8], strides = [1, 1]} : vector<4x32xf32> to vector<4x8xf32>
    %cst_401 = arith.constant 0.353553385 : f32
    %1034 = vector.broadcast %cst_401 : f32 to vector<4x8xf32>
    %1035 = arith.mulf %1033, %1034 : vector<4x8xf32>
    %1036 = vector.extract_strided_slice %1013 {offsets = [0, 8], sizes = [4, 8], strides = [1, 1]} : vector<4x32xf32> to vector<4x8xf32>
    %1037 = vector.extract_strided_slice %1014 {offsets = [0, 8], sizes = [4, 8], strides = [1, 1]} : vector<4x32xf32> to vector<4x8xf32>
    %cst_402 = arith.constant dense<0.000000e+00> : vector<4x4xf32>
    %1038 = tpu.matmul %1035, %1036, %cst_402 {dimension_numbers = #tpu.dot_dimension_numbers<[1], [1], [0], [0], [0, 0, 1, 0], [], []>} : vector<4x8xf32>, vector<4x8xf32>, vector<4x4xf32> -> vector<4x4xf32>
    %1039 = arith.addf %1038, %486 : vector<4x4xf32>
    %cst_403 = arith.constant dense<0xFF800000> : vector<4xf32>
    %1040 = vector.multi_reduction <maximumf>, %1039, %cst_403 [1] : vector<4x4xf32> to vector<4xf32>
    %1041 = vector.shape_cast %1040 : vector<4xf32> to vector<4x1xf32>
    %1042 = vector.broadcast %1041 : vector<4x1xf32> to vector<4x4xf32>
    %1043 = arith.subf %1039, %1042 : vector<4x4xf32>
    %1044 = math.exp %1043 : vector<4x4xf32>
    %cst_404 = arith.constant dense<0.000000e+00> : vector<4xf32>
    %1045 = vector.multi_reduction <add>, %1044, %cst_404 [1] : vector<4x4xf32> to vector<4xf32>
    %1046 = vector.shape_cast %1045 : vector<4xf32> to vector<4x1xf32>
    %1047 = tpu.reciprocal %1046 {approx = true} : vector<4x1xf32> -> vector<4x1xf32>
    %1048 = vector.broadcast %1047 : vector<4x1xf32> to vector<4x4xf32>
    %1049 = arith.mulf %1044, %1048 : vector<4x4xf32>
    %cst_405 = arith.constant dense<0.000000e+00> : vector<4x8xf32>
    %1050 = tpu.matmul %1049, %1037, %cst_405 {dimension_numbers = #tpu.dot_dimension_numbers<[1], [0], [0], [1], [0, 0, 1, 1], [], []>} : vector<4x4xf32>, vector<4x8xf32>, vector<4x8xf32> -> vector<4x8xf32>
    %1051 = vector.extract_strided_slice %1012 {offsets = [0, 16], sizes = [4, 8], strides = [1, 1]} : vector<4x32xf32> to vector<4x8xf32>
    %cst_406 = arith.constant 0.353553385 : f32
    %1052 = vector.broadcast %cst_406 : f32 to vector<4x8xf32>
    %1053 = arith.mulf %1051, %1052 : vector<4x8xf32>
    %1054 = vector.extract_strided_slice %1013 {offsets = [0, 16], sizes = [4, 8], strides = [1, 1]} : vector<4x32xf32> to vector<4x8xf32>
    %1055 = vector.extract_strided_slice %1014 {offsets = [0, 16], sizes = [4, 8], strides = [1, 1]} : vector<4x32xf32> to vector<4x8xf32>
    %cst_407 = arith.constant dense<0.000000e+00> : vector<4x4xf32>
    %1056 = tpu.matmul %1053, %1054, %cst_407 {dimension_numbers = #tpu.dot_dimension_numbers<[1], [1], [0], [0], [0, 0, 1, 0], [], []>} : vector<4x8xf32>, vector<4x8xf32>, vector<4x4xf32> -> vector<4x4xf32>
    %1057 = arith.addf %1056, %486 : vector<4x4xf32>
    %cst_408 = arith.constant dense<0xFF800000> : vector<4xf32>
    %1058 = vector.multi_reduction <maximumf>, %1057, %cst_408 [1] : vector<4x4xf32> to vector<4xf32>
    %1059 = vector.shape_cast %1058 : vector<4xf32> to vector<4x1xf32>
    %1060 = vector.broadcast %1059 : vector<4x1xf32> to vector<4x4xf32>
    %1061 = arith.subf %1057, %1060 : vector<4x4xf32>
    %1062 = math.exp %1061 : vector<4x4xf32>
    %cst_409 = arith.constant dense<0.000000e+00> : vector<4xf32>
    %1063 = vector.multi_reduction <add>, %1062, %cst_409 [1] : vector<4x4xf32> to vector<4xf32>
    %1064 = vector.shape_cast %1063 : vector<4xf32> to vector<4x1xf32>
    %1065 = tpu.reciprocal %1064 {approx = true} : vector<4x1xf32> -> vector<4x1xf32>
    %1066 = vector.broadcast %1065 : vector<4x1xf32> to vector<4x4xf32>
    %1067 = arith.mulf %1062, %1066 : vector<4x4xf32>
    %cst_410 = arith.constant dense<0.000000e+00> : vector<4x8xf32>
    %1068 = tpu.matmul %1067, %1055, %cst_410 {dimension_numbers = #tpu.dot_dimension_numbers<[1], [0], [0], [1], [0, 0, 1, 1], [], []>} : vector<4x4xf32>, vector<4x8xf32>, vector<4x8xf32> -> vector<4x8xf32>
    %1069 = vector.extract_strided_slice %1012 {offsets = [0, 24], sizes = [4, 8], strides = [1, 1]} : vector<4x32xf32> to vector<4x8xf32>
    %cst_411 = arith.constant 0.353553385 : f32
    %1070 = vector.broadcast %cst_411 : f32 to vector<4x8xf32>
    %1071 = arith.mulf %1069, %1070 : vector<4x8xf32>
    %1072 = vector.extract_strided_slice %1013 {offsets = [0, 24], sizes = [4, 8], strides = [1, 1]} : vector<4x32xf32> to vector<4x8xf32>
    %1073 = vector.extract_strided_slice %1014 {offsets = [0, 24], sizes = [4, 8], strides = [1, 1]} : vector<4x32xf32> to vector<4x8xf32>
    %cst_412 = arith.constant dense<0.000000e+00> : vector<4x4xf32>
    %1074 = tpu.matmul %1071, %1072, %cst_412 {dimension_numbers = #tpu.dot_dimension_numbers<[1], [1], [0], [0], [0, 0, 1, 0], [], []>} : vector<4x8xf32>, vector<4x8xf32>, vector<4x4xf32> -> vector<4x4xf32>
    %1075 = arith.addf %1074, %486 : vector<4x4xf32>
    %cst_413 = arith.constant dense<0xFF800000> : vector<4xf32>
    %1076 = vector.multi_reduction <maximumf>, %1075, %cst_413 [1] : vector<4x4xf32> to vector<4xf32>
    %1077 = vector.shape_cast %1076 : vector<4xf32> to vector<4x1xf32>
    %1078 = vector.broadcast %1077 : vector<4x1xf32> to vector<4x4xf32>
    %1079 = arith.subf %1075, %1078 : vector<4x4xf32>
    %1080 = math.exp %1079 : vector<4x4xf32>
    %cst_414 = arith.constant dense<0.000000e+00> : vector<4xf32>
    %1081 = vector.multi_reduction <add>, %1080, %cst_414 [1] : vector<4x4xf32> to vector<4xf32>
    %1082 = vector.shape_cast %1081 : vector<4xf32> to vector<4x1xf32>
    %1083 = tpu.reciprocal %1082 {approx = true} : vector<4x1xf32> -> vector<4x1xf32>
    %1084 = vector.broadcast %1083 : vector<4x1xf32> to vector<4x4xf32>
    %1085 = arith.mulf %1080, %1084 : vector<4x4xf32>
    %cst_415 = arith.constant dense<0.000000e+00> : vector<4x8xf32>
    %1086 = tpu.matmul %1085, %1073, %cst_415 {dimension_numbers = #tpu.dot_dimension_numbers<[1], [0], [0], [1], [0, 0, 1, 1], [], []>} : vector<4x4xf32>, vector<4x8xf32>, vector<4x8xf32> -> vector<4x8xf32>
    %1087 = tpu.concatenate %1032, %1050, %1068, %1086 in 1 : vector<4x8xf32>, vector<4x8xf32>, vector<4x8xf32>, vector<4x8xf32> -> vector<4x32xf32>
    %1088 = tpu.concatenate %1011, %1087 in 0 : vector<4x32xf32>, vector<4x32xf32> -> vector<8x32xf32>
    %cst_416 = arith.constant dense<0.000000e+00> : vector<8x32xf32>
    %1089 = tpu.matmul %1088, %933, %cst_416 {dimension_numbers = #tpu.dot_dimension_numbers<[1], [1], [0], [0], [0, 0, 1, 0], [], []>} : vector<8x32xf32>, vector<32x32xf32>, vector<8x32xf32> -> vector<8x32xf32>
    %1090 = vector.broadcast %935 : vector<1x32xf32> to vector<8x32xf32>
    %1091 = arith.addf %1089, %1090 : vector<8x32xf32>
    %1092 = arith.addf %921, %1091 : vector<8x32xf32>
    %c1_417 = arith.constant 1 : index
    %c0_418 = arith.constant 0 : index
    %c0_419 = arith.constant 0 : index
    %1093 = vector.load %arg37[%c1_417, %c0_418, %c0_419] : memref<2x1x32xf32, #tpu.memory_space<vmem>>, vector<1x1x32xf32>
    %1094 = vector.shape_cast %1093 : vector<1x1x32xf32> to vector<1x32xf32>
    %c1_420 = arith.constant 1 : index
    %c0_421 = arith.constant 0 : index
    %c0_422 = arith.constant 0 : index
    %1095 = vector.load %arg38[%c1_420, %c0_421, %c0_422] : memref<2x1x32xf32, #tpu.memory_space<vmem>>, vector<1x1x32xf32>
    %1096 = vector.shape_cast %1095 : vector<1x1x32xf32> to vector<1x32xf32>
    %cst_423 = arith.constant dense<0.000000e+00> : vector<8xf32>
    %1097 = vector.multi_reduction <add>, %1092, %cst_423 [1] : vector<8x32xf32> to vector<8xf32>
    %1098 = vector.shape_cast %1097 : vector<8xf32> to vector<8x1xf32>
    %cst_424 = arith.constant 3.200000e+01 : f32
    %1099 = vector.broadcast %cst_424 : f32 to vector<8x1xf32>
    %1100 = arith.divf %1098, %1099 : vector<8x1xf32>
    %1101 = vector.broadcast %1100 : vector<8x1xf32> to vector<8x32xf32>
    %1102 = arith.subf %1092, %1101 : vector<8x32xf32>
    %1103 = arith.mulf %1102, %1102 : vector<8x32xf32>
    %cst_425 = arith.constant dense<0.000000e+00> : vector<8xf32>
    %1104 = vector.multi_reduction <add>, %1103, %cst_425 [1] : vector<8x32xf32> to vector<8xf32>
    %1105 = vector.shape_cast %1104 : vector<8xf32> to vector<8x1xf32>
    %cst_426 = arith.constant 3.200000e+01 : f32
    %1106 = vector.broadcast %cst_426 : f32 to vector<8x1xf32>
    %1107 = arith.divf %1105, %1106 : vector<8x1xf32>
    %1108 = vector.broadcast %1100 : vector<8x1xf32> to vector<8x32xf32>
    %1109 = arith.subf %1092, %1108 : vector<8x32xf32>
    %cst_427 = arith.constant 9.99999974E-6 : f32
    %1110 = vector.broadcast %cst_427 : f32 to vector<8x1xf32>
    %1111 = arith.addf %1107, %1110 : vector<8x1xf32>
    %1112 = math.rsqrt %1111 : vector<8x1xf32>
    %1113 = vector.broadcast %1112 : vector<8x1xf32> to vector<8x32xf32>
    %1114 = arith.mulf %1109, %1113 : vector<8x32xf32>
    %1115 = vector.broadcast %1094 : vector<1x32xf32> to vector<8x32xf32>
    %1116 = arith.mulf %1114, %1115 : vector<8x32xf32>
    %1117 = vector.broadcast %1096 : vector<1x32xf32> to vector<8x32xf32>
    %1118 = arith.addf %1116, %1117 : vector<8x32xf32>
    %c1_428 = arith.constant 1 : index
    %c0_429 = arith.constant 0 : index
    %c0_430 = arith.constant 0 : index
    %1119 = vector.load %arg27[%c1_428, %c0_429, %c0_430] : memref<2x32x32xf32, #tpu.memory_space<vmem>>, vector<1x32x32xf32>
    %1120 = vector.shape_cast %1119 : vector<1x32x32xf32> to vector<32x32xf32>
    %c1_431 = arith.constant 1 : index
    %c0_432 = arith.constant 0 : index
    %c0_433 = arith.constant 0 : index
    %1121 = vector.load %arg28[%c1_431, %c0_432, %c0_433] : memref<2x1x32xf32, #tpu.memory_space<vmem>>, vector<1x1x32xf32>
    %1122 = vector.shape_cast %1121 : vector<1x1x32xf32> to vector<1x32xf32>
    %cst_434 = arith.constant dense<0.000000e+00> : vector<8x32xf32>
    %1123 = tpu.matmul %1118, %1120, %cst_434 {dimension_numbers = #tpu.dot_dimension_numbers<[1], [1], [0], [0], [0, 0, 1, 0], [], []>} : vector<8x32xf32>, vector<32x32xf32>, vector<8x32xf32> -> vector<8x32xf32>
    %1124 = vector.broadcast %1122 : vector<1x32xf32> to vector<8x32xf32>
    %1125 = arith.addf %1123, %1124 : vector<8x32xf32>
    %c1_435 = arith.constant 1 : index
    %c0_436 = arith.constant 0 : index
    %c0_437 = arith.constant 0 : index
    %1126 = vector.load %arg29[%c1_435, %c0_436, %c0_437] : memref<2x64x32xf32, #tpu.memory_space<vmem>>, vector<1x64x32xf32>
    %1127 = vector.shape_cast %1126 : vector<1x64x32xf32> to vector<64x32xf32>
    %c1_438 = arith.constant 1 : index
    %c0_439 = arith.constant 0 : index
    %c0_440 = arith.constant 0 : index
    %1128 = vector.load %arg30[%c1_438, %c0_439, %c0_440] : memref<2x1x64xf32, #tpu.memory_space<vmem>>, vector<1x1x64xf32>
    %1129 = vector.shape_cast %1128 : vector<1x1x64xf32> to vector<1x64xf32>
    %cst_441 = arith.constant dense<0.000000e+00> : vector<16x64xf32>
    %1130 = tpu.matmul %473, %1127, %cst_441 {dimension_numbers = #tpu.dot_dimension_numbers<[1], [1], [0], [0], [0, 0, 1, 0], [], []>} : vector<16x32xf32>, vector<64x32xf32>, vector<16x64xf32> -> vector<16x64xf32>
    %1131 = vector.broadcast %1129 : vector<1x64xf32> to vector<16x64xf32>
    %1132 = arith.addf %1130, %1131 : vector<16x64xf32>
    %1133 = vector.extract_strided_slice %1132 {offsets = [0, 0], sizes = [16, 32], strides = [1, 1]} : vector<16x64xf32> to vector<16x32xf32>
    %1134 = vector.extract_strided_slice %1132 {offsets = [0, 32], sizes = [16, 32], strides = [1, 1]} : vector<16x64xf32> to vector<16x32xf32>
    %c1_442 = arith.constant 1 : index
    %c0_443 = arith.constant 0 : index
    %c0_444 = arith.constant 0 : index
    %1135 = vector.load %arg31[%c1_442, %c0_443, %c0_444] : memref<2x32x32xf32, #tpu.memory_space<vmem>>, vector<1x32x32xf32>
    %1136 = vector.shape_cast %1135 : vector<1x32x32xf32> to vector<32x32xf32>
    %c1_445 = arith.constant 1 : index
    %c0_446 = arith.constant 0 : index
    %c0_447 = arith.constant 0 : index
    %1137 = vector.load %arg32[%c1_445, %c0_446, %c0_447] : memref<2x1x32xf32, #tpu.memory_space<vmem>>, vector<1x1x32xf32>
    %1138 = vector.shape_cast %1137 : vector<1x1x32xf32> to vector<1x32xf32>
    %1139 = vector.extract_strided_slice %1125 {offsets = [0, 0], sizes = [4, 32], strides = [1, 1]} : vector<8x32xf32> to vector<4x32xf32>
    %1140 = vector.extract_strided_slice %1133 {offsets = [0, 0], sizes = [8, 32], strides = [1, 1]} : vector<16x32xf32> to vector<8x32xf32>
    %1141 = vector.extract_strided_slice %1134 {offsets = [0, 0], sizes = [8, 32], strides = [1, 1]} : vector<16x32xf32> to vector<8x32xf32>
    %1142 = vector.extract_strided_slice %1139 {offsets = [0, 0], sizes = [4, 8], strides = [1, 1]} : vector<4x32xf32> to vector<4x8xf32>
    %cst_448 = arith.constant 0.353553385 : f32
    %1143 = vector.broadcast %cst_448 : f32 to vector<4x8xf32>
    %1144 = arith.mulf %1142, %1143 : vector<4x8xf32>
    %1145 = vector.extract_strided_slice %1140 {offsets = [0, 0], sizes = [8, 8], strides = [1, 1]} : vector<8x32xf32> to vector<8x8xf32>
    %1146 = vector.extract_strided_slice %1141 {offsets = [0, 0], sizes = [8, 8], strides = [1, 1]} : vector<8x32xf32> to vector<8x8xf32>
    %cst_449 = arith.constant dense<0.000000e+00> : vector<4x8xf32>
    %1147 = tpu.matmul %1144, %1145, %cst_449 {dimension_numbers = #tpu.dot_dimension_numbers<[1], [1], [0], [0], [0, 0, 1, 0], [], []>} : vector<4x8xf32>, vector<8x8xf32>, vector<4x8xf32> -> vector<4x8xf32>
    %cst_450 = arith.constant dense<0xFF800000> : vector<4xf32>
    %1148 = vector.multi_reduction <maximumf>, %1147, %cst_450 [1] : vector<4x8xf32> to vector<4xf32>
    %1149 = vector.shape_cast %1148 : vector<4xf32> to vector<4x1xf32>
    %1150 = vector.broadcast %1149 : vector<4x1xf32> to vector<4x8xf32>
    %1151 = arith.subf %1147, %1150 : vector<4x8xf32>
    %1152 = math.exp %1151 : vector<4x8xf32>
    %cst_451 = arith.constant dense<0.000000e+00> : vector<4xf32>
    %1153 = vector.multi_reduction <add>, %1152, %cst_451 [1] : vector<4x8xf32> to vector<4xf32>
    %1154 = vector.shape_cast %1153 : vector<4xf32> to vector<4x1xf32>
    %1155 = tpu.reciprocal %1154 {approx = true} : vector<4x1xf32> -> vector<4x1xf32>
    %1156 = vector.broadcast %1155 : vector<4x1xf32> to vector<4x8xf32>
    %1157 = arith.mulf %1152, %1156 : vector<4x8xf32>
    %cst_452 = arith.constant dense<0.000000e+00> : vector<4x8xf32>
    %1158 = tpu.matmul %1157, %1146, %cst_452 {dimension_numbers = #tpu.dot_dimension_numbers<[1], [0], [0], [1], [0, 0, 1, 1], [], []>} : vector<4x8xf32>, vector<8x8xf32>, vector<4x8xf32> -> vector<4x8xf32>
    %1159 = vector.extract_strided_slice %1139 {offsets = [0, 8], sizes = [4, 8], strides = [1, 1]} : vector<4x32xf32> to vector<4x8xf32>
    %cst_453 = arith.constant 0.353553385 : f32
    %1160 = vector.broadcast %cst_453 : f32 to vector<4x8xf32>
    %1161 = arith.mulf %1159, %1160 : vector<4x8xf32>
    %1162 = vector.extract_strided_slice %1140 {offsets = [0, 8], sizes = [8, 8], strides = [1, 1]} : vector<8x32xf32> to vector<8x8xf32>
    %1163 = vector.extract_strided_slice %1141 {offsets = [0, 8], sizes = [8, 8], strides = [1, 1]} : vector<8x32xf32> to vector<8x8xf32>
    %cst_454 = arith.constant dense<0.000000e+00> : vector<4x8xf32>
    %1164 = tpu.matmul %1161, %1162, %cst_454 {dimension_numbers = #tpu.dot_dimension_numbers<[1], [1], [0], [0], [0, 0, 1, 0], [], []>} : vector<4x8xf32>, vector<8x8xf32>, vector<4x8xf32> -> vector<4x8xf32>
    %cst_455 = arith.constant dense<0xFF800000> : vector<4xf32>
    %1165 = vector.multi_reduction <maximumf>, %1164, %cst_455 [1] : vector<4x8xf32> to vector<4xf32>
    %1166 = vector.shape_cast %1165 : vector<4xf32> to vector<4x1xf32>
    %1167 = vector.broadcast %1166 : vector<4x1xf32> to vector<4x8xf32>
    %1168 = arith.subf %1164, %1167 : vector<4x8xf32>
    %1169 = math.exp %1168 : vector<4x8xf32>
    %cst_456 = arith.constant dense<0.000000e+00> : vector<4xf32>
    %1170 = vector.multi_reduction <add>, %1169, %cst_456 [1] : vector<4x8xf32> to vector<4xf32>
    %1171 = vector.shape_cast %1170 : vector<4xf32> to vector<4x1xf32>
    %1172 = tpu.reciprocal %1171 {approx = true} : vector<4x1xf32> -> vector<4x1xf32>
    %1173 = vector.broadcast %1172 : vector<4x1xf32> to vector<4x8xf32>
    %1174 = arith.mulf %1169, %1173 : vector<4x8xf32>
    %cst_457 = arith.constant dense<0.000000e+00> : vector<4x8xf32>
    %1175 = tpu.matmul %1174, %1163, %cst_457 {dimension_numbers = #tpu.dot_dimension_numbers<[1], [0], [0], [1], [0, 0, 1, 1], [], []>} : vector<4x8xf32>, vector<8x8xf32>, vector<4x8xf32> -> vector<4x8xf32>
    %1176 = vector.extract_strided_slice %1139 {offsets = [0, 16], sizes = [4, 8], strides = [1, 1]} : vector<4x32xf32> to vector<4x8xf32>
    %cst_458 = arith.constant 0.353553385 : f32
    %1177 = vector.broadcast %cst_458 : f32 to vector<4x8xf32>
    %1178 = arith.mulf %1176, %1177 : vector<4x8xf32>
    %1179 = vector.extract_strided_slice %1140 {offsets = [0, 16], sizes = [8, 8], strides = [1, 1]} : vector<8x32xf32> to vector<8x8xf32>
    %1180 = vector.extract_strided_slice %1141 {offsets = [0, 16], sizes = [8, 8], strides = [1, 1]} : vector<8x32xf32> to vector<8x8xf32>
    %cst_459 = arith.constant dense<0.000000e+00> : vector<4x8xf32>
    %1181 = tpu.matmul %1178, %1179, %cst_459 {dimension_numbers = #tpu.dot_dimension_numbers<[1], [1], [0], [0], [0, 0, 1, 0], [], []>} : vector<4x8xf32>, vector<8x8xf32>, vector<4x8xf32> -> vector<4x8xf32>
    %cst_460 = arith.constant dense<0xFF800000> : vector<4xf32>
    %1182 = vector.multi_reduction <maximumf>, %1181, %cst_460 [1] : vector<4x8xf32> to vector<4xf32>
    %1183 = vector.shape_cast %1182 : vector<4xf32> to vector<4x1xf32>
    %1184 = vector.broadcast %1183 : vector<4x1xf32> to vector<4x8xf32>
    %1185 = arith.subf %1181, %1184 : vector<4x8xf32>
    %1186 = math.exp %1185 : vector<4x8xf32>
    %cst_461 = arith.constant dense<0.000000e+00> : vector<4xf32>
    %1187 = vector.multi_reduction <add>, %1186, %cst_461 [1] : vector<4x8xf32> to vector<4xf32>
    %1188 = vector.shape_cast %1187 : vector<4xf32> to vector<4x1xf32>
    %1189 = tpu.reciprocal %1188 {approx = true} : vector<4x1xf32> -> vector<4x1xf32>
    %1190 = vector.broadcast %1189 : vector<4x1xf32> to vector<4x8xf32>
    %1191 = arith.mulf %1186, %1190 : vector<4x8xf32>
    %cst_462 = arith.constant dense<0.000000e+00> : vector<4x8xf32>
    %1192 = tpu.matmul %1191, %1180, %cst_462 {dimension_numbers = #tpu.dot_dimension_numbers<[1], [0], [0], [1], [0, 0, 1, 1], [], []>} : vector<4x8xf32>, vector<8x8xf32>, vector<4x8xf32> -> vector<4x8xf32>
    %1193 = vector.extract_strided_slice %1139 {offsets = [0, 24], sizes = [4, 8], strides = [1, 1]} : vector<4x32xf32> to vector<4x8xf32>
    %cst_463 = arith.constant 0.353553385 : f32
    %1194 = vector.broadcast %cst_463 : f32 to vector<4x8xf32>
    %1195 = arith.mulf %1193, %1194 : vector<4x8xf32>
    %1196 = vector.extract_strided_slice %1140 {offsets = [0, 24], sizes = [8, 8], strides = [1, 1]} : vector<8x32xf32> to vector<8x8xf32>
    %1197 = vector.extract_strided_slice %1141 {offsets = [0, 24], sizes = [8, 8], strides = [1, 1]} : vector<8x32xf32> to vector<8x8xf32>
    %cst_464 = arith.constant dense<0.000000e+00> : vector<4x8xf32>
    %1198 = tpu.matmul %1195, %1196, %cst_464 {dimension_numbers = #tpu.dot_dimension_numbers<[1], [1], [0], [0], [0, 0, 1, 0], [], []>} : vector<4x8xf32>, vector<8x8xf32>, vector<4x8xf32> -> vector<4x8xf32>
    %cst_465 = arith.constant dense<0xFF800000> : vector<4xf32>
    %1199 = vector.multi_reduction <maximumf>, %1198, %cst_465 [1] : vector<4x8xf32> to vector<4xf32>
    %1200 = vector.shape_cast %1199 : vector<4xf32> to vector<4x1xf32>
    %1201 = vector.broadcast %1200 : vector<4x1xf32> to vector<4x8xf32>
    %1202 = arith.subf %1198, %1201 : vector<4x8xf32>
    %1203 = math.exp %1202 : vector<4x8xf32>
    %cst_466 = arith.constant dense<0.000000e+00> : vector<4xf32>
    %1204 = vector.multi_reduction <add>, %1203, %cst_466 [1] : vector<4x8xf32> to vector<4xf32>
    %1205 = vector.shape_cast %1204 : vector<4xf32> to vector<4x1xf32>
    %1206 = tpu.reciprocal %1205 {approx = true} : vector<4x1xf32> -> vector<4x1xf32>
    %1207 = vector.broadcast %1206 : vector<4x1xf32> to vector<4x8xf32>
    %1208 = arith.mulf %1203, %1207 : vector<4x8xf32>
    %cst_467 = arith.constant dense<0.000000e+00> : vector<4x8xf32>
    %1209 = tpu.matmul %1208, %1197, %cst_467 {dimension_numbers = #tpu.dot_dimension_numbers<[1], [0], [0], [1], [0, 0, 1, 1], [], []>} : vector<4x8xf32>, vector<8x8xf32>, vector<4x8xf32> -> vector<4x8xf32>
    %1210 = tpu.concatenate %1158, %1175, %1192, %1209 in 1 : vector<4x8xf32>, vector<4x8xf32>, vector<4x8xf32>, vector<4x8xf32> -> vector<4x32xf32>
    %1211 = vector.extract_strided_slice %1125 {offsets = [4, 0], sizes = [4, 32], strides = [1, 1]} : vector<8x32xf32> to vector<4x32xf32>
    %1212 = vector.extract_strided_slice %1133 {offsets = [8, 0], sizes = [8, 32], strides = [1, 1]} : vector<16x32xf32> to vector<8x32xf32>
    %1213 = vector.extract_strided_slice %1134 {offsets = [8, 0], sizes = [8, 32], strides = [1, 1]} : vector<16x32xf32> to vector<8x32xf32>
    %1214 = vector.extract_strided_slice %1211 {offsets = [0, 0], sizes = [4, 8], strides = [1, 1]} : vector<4x32xf32> to vector<4x8xf32>
    %cst_468 = arith.constant 0.353553385 : f32
    %1215 = vector.broadcast %cst_468 : f32 to vector<4x8xf32>
    %1216 = arith.mulf %1214, %1215 : vector<4x8xf32>
    %1217 = vector.extract_strided_slice %1212 {offsets = [0, 0], sizes = [8, 8], strides = [1, 1]} : vector<8x32xf32> to vector<8x8xf32>
    %1218 = vector.extract_strided_slice %1213 {offsets = [0, 0], sizes = [8, 8], strides = [1, 1]} : vector<8x32xf32> to vector<8x8xf32>
    %cst_469 = arith.constant dense<0.000000e+00> : vector<4x8xf32>
    %1219 = tpu.matmul %1216, %1217, %cst_469 {dimension_numbers = #tpu.dot_dimension_numbers<[1], [1], [0], [0], [0, 0, 1, 0], [], []>} : vector<4x8xf32>, vector<8x8xf32>, vector<4x8xf32> -> vector<4x8xf32>
    %cst_470 = arith.constant dense<0xFF800000> : vector<4xf32>
    %1220 = vector.multi_reduction <maximumf>, %1219, %cst_470 [1] : vector<4x8xf32> to vector<4xf32>
    %1221 = vector.shape_cast %1220 : vector<4xf32> to vector<4x1xf32>
    %1222 = vector.broadcast %1221 : vector<4x1xf32> to vector<4x8xf32>
    %1223 = arith.subf %1219, %1222 : vector<4x8xf32>
    %1224 = math.exp %1223 : vector<4x8xf32>
    %cst_471 = arith.constant dense<0.000000e+00> : vector<4xf32>
    %1225 = vector.multi_reduction <add>, %1224, %cst_471 [1] : vector<4x8xf32> to vector<4xf32>
    %1226 = vector.shape_cast %1225 : vector<4xf32> to vector<4x1xf32>
    %1227 = tpu.reciprocal %1226 {approx = true} : vector<4x1xf32> -> vector<4x1xf32>
    %1228 = vector.broadcast %1227 : vector<4x1xf32> to vector<4x8xf32>
    %1229 = arith.mulf %1224, %1228 : vector<4x8xf32>
    %cst_472 = arith.constant dense<0.000000e+00> : vector<4x8xf32>
    %1230 = tpu.matmul %1229, %1218, %cst_472 {dimension_numbers = #tpu.dot_dimension_numbers<[1], [0], [0], [1], [0, 0, 1, 1], [], []>} : vector<4x8xf32>, vector<8x8xf32>, vector<4x8xf32> -> vector<4x8xf32>
    %1231 = vector.extract_strided_slice %1211 {offsets = [0, 8], sizes = [4, 8], strides = [1, 1]} : vector<4x32xf32> to vector<4x8xf32>
    %cst_473 = arith.constant 0.353553385 : f32
    %1232 = vector.broadcast %cst_473 : f32 to vector<4x8xf32>
    %1233 = arith.mulf %1231, %1232 : vector<4x8xf32>
    %1234 = vector.extract_strided_slice %1212 {offsets = [0, 8], sizes = [8, 8], strides = [1, 1]} : vector<8x32xf32> to vector<8x8xf32>
    %1235 = vector.extract_strided_slice %1213 {offsets = [0, 8], sizes = [8, 8], strides = [1, 1]} : vector<8x32xf32> to vector<8x8xf32>
    %cst_474 = arith.constant dense<0.000000e+00> : vector<4x8xf32>
    %1236 = tpu.matmul %1233, %1234, %cst_474 {dimension_numbers = #tpu.dot_dimension_numbers<[1], [1], [0], [0], [0, 0, 1, 0], [], []>} : vector<4x8xf32>, vector<8x8xf32>, vector<4x8xf32> -> vector<4x8xf32>
    %cst_475 = arith.constant dense<0xFF800000> : vector<4xf32>
    %1237 = vector.multi_reduction <maximumf>, %1236, %cst_475 [1] : vector<4x8xf32> to vector<4xf32>
    %1238 = vector.shape_cast %1237 : vector<4xf32> to vector<4x1xf32>
    %1239 = vector.broadcast %1238 : vector<4x1xf32> to vector<4x8xf32>
    %1240 = arith.subf %1236, %1239 : vector<4x8xf32>
    %1241 = math.exp %1240 : vector<4x8xf32>
    %cst_476 = arith.constant dense<0.000000e+00> : vector<4xf32>
    %1242 = vector.multi_reduction <add>, %1241, %cst_476 [1] : vector<4x8xf32> to vector<4xf32>
    %1243 = vector.shape_cast %1242 : vector<4xf32> to vector<4x1xf32>
    %1244 = tpu.reciprocal %1243 {approx = true} : vector<4x1xf32> -> vector<4x1xf32>
    %1245 = vector.broadcast %1244 : vector<4x1xf32> to vector<4x8xf32>
    %1246 = arith.mulf %1241, %1245 : vector<4x8xf32>
    %cst_477 = arith.constant dense<0.000000e+00> : vector<4x8xf32>
    %1247 = tpu.matmul %1246, %1235, %cst_477 {dimension_numbers = #tpu.dot_dimension_numbers<[1], [0], [0], [1], [0, 0, 1, 1], [], []>} : vector<4x8xf32>, vector<8x8xf32>, vector<4x8xf32> -> vector<4x8xf32>
    %1248 = vector.extract_strided_slice %1211 {offsets = [0, 16], sizes = [4, 8], strides = [1, 1]} : vector<4x32xf32> to vector<4x8xf32>
    %cst_478 = arith.constant 0.353553385 : f32
    %1249 = vector.broadcast %cst_478 : f32 to vector<4x8xf32>
    %1250 = arith.mulf %1248, %1249 : vector<4x8xf32>
    %1251 = vector.extract_strided_slice %1212 {offsets = [0, 16], sizes = [8, 8], strides = [1, 1]} : vector<8x32xf32> to vector<8x8xf32>
    %1252 = vector.extract_strided_slice %1213 {offsets = [0, 16], sizes = [8, 8], strides = [1, 1]} : vector<8x32xf32> to vector<8x8xf32>
    %cst_479 = arith.constant dense<0.000000e+00> : vector<4x8xf32>
    %1253 = tpu.matmul %1250, %1251, %cst_479 {dimension_numbers = #tpu.dot_dimension_numbers<[1], [1], [0], [0], [0, 0, 1, 0], [], []>} : vector<4x8xf32>, vector<8x8xf32>, vector<4x8xf32> -> vector<4x8xf32>
    %cst_480 = arith.constant dense<0xFF800000> : vector<4xf32>
    %1254 = vector.multi_reduction <maximumf>, %1253, %cst_480 [1] : vector<4x8xf32> to vector<4xf32>
    %1255 = vector.shape_cast %1254 : vector<4xf32> to vector<4x1xf32>
    %1256 = vector.broadcast %1255 : vector<4x1xf32> to vector<4x8xf32>
    %1257 = arith.subf %1253, %1256 : vector<4x8xf32>
    %1258 = math.exp %1257 : vector<4x8xf32>
    %cst_481 = arith.constant dense<0.000000e+00> : vector<4xf32>
    %1259 = vector.multi_reduction <add>, %1258, %cst_481 [1] : vector<4x8xf32> to vector<4xf32>
    %1260 = vector.shape_cast %1259 : vector<4xf32> to vector<4x1xf32>
    %1261 = tpu.reciprocal %1260 {approx = true} : vector<4x1xf32> -> vector<4x1xf32>
    %1262 = vector.broadcast %1261 : vector<4x1xf32> to vector<4x8xf32>
    %1263 = arith.mulf %1258, %1262 : vector<4x8xf32>
    %cst_482 = arith.constant dense<0.000000e+00> : vector<4x8xf32>
    %1264 = tpu.matmul %1263, %1252, %cst_482 {dimension_numbers = #tpu.dot_dimension_numbers<[1], [0], [0], [1], [0, 0, 1, 1], [], []>} : vector<4x8xf32>, vector<8x8xf32>, vector<4x8xf32> -> vector<4x8xf32>
    %1265 = vector.extract_strided_slice %1211 {offsets = [0, 24], sizes = [4, 8], strides = [1, 1]} : vector<4x32xf32> to vector<4x8xf32>
    %cst_483 = arith.constant 0.353553385 : f32
    %1266 = vector.broadcast %cst_483 : f32 to vector<4x8xf32>
    %1267 = arith.mulf %1265, %1266 : vector<4x8xf32>
    %1268 = vector.extract_strided_slice %1212 {offsets = [0, 24], sizes = [8, 8], strides = [1, 1]} : vector<8x32xf32> to vector<8x8xf32>
    %1269 = vector.extract_strided_slice %1213 {offsets = [0, 24], sizes = [8, 8], strides = [1, 1]} : vector<8x32xf32> to vector<8x8xf32>
    %cst_484 = arith.constant dense<0.000000e+00> : vector<4x8xf32>
    %1270 = tpu.matmul %1267, %1268, %cst_484 {dimension_numbers = #tpu.dot_dimension_numbers<[1], [1], [0], [0], [0, 0, 1, 0], [], []>} : vector<4x8xf32>, vector<8x8xf32>, vector<4x8xf32> -> vector<4x8xf32>
    %cst_485 = arith.constant dense<0xFF800000> : vector<4xf32>
    %1271 = vector.multi_reduction <maximumf>, %1270, %cst_485 [1] : vector<4x8xf32> to vector<4xf32>
    %1272 = vector.shape_cast %1271 : vector<4xf32> to vector<4x1xf32>
    %1273 = vector.broadcast %1272 : vector<4x1xf32> to vector<4x8xf32>
    %1274 = arith.subf %1270, %1273 : vector<4x8xf32>
    %1275 = math.exp %1274 : vector<4x8xf32>
    %cst_486 = arith.constant dense<0.000000e+00> : vector<4xf32>
    %1276 = vector.multi_reduction <add>, %1275, %cst_486 [1] : vector<4x8xf32> to vector<4xf32>
    %1277 = vector.shape_cast %1276 : vector<4xf32> to vector<4x1xf32>
    %1278 = tpu.reciprocal %1277 {approx = true} : vector<4x1xf32> -> vector<4x1xf32>
    %1279 = vector.broadcast %1278 : vector<4x1xf32> to vector<4x8xf32>
    %1280 = arith.mulf %1275, %1279 : vector<4x8xf32>
    %cst_487 = arith.constant dense<0.000000e+00> : vector<4x8xf32>
    %1281 = tpu.matmul %1280, %1269, %cst_487 {dimension_numbers = #tpu.dot_dimension_numbers<[1], [0], [0], [1], [0, 0, 1, 1], [], []>} : vector<4x8xf32>, vector<8x8xf32>, vector<4x8xf32> -> vector<4x8xf32>
    %1282 = tpu.concatenate %1230, %1247, %1264, %1281 in 1 : vector<4x8xf32>, vector<4x8xf32>, vector<4x8xf32>, vector<4x8xf32> -> vector<4x32xf32>
    %1283 = tpu.concatenate %1210, %1282 in 0 : vector<4x32xf32>, vector<4x32xf32> -> vector<8x32xf32>
    %cst_488 = arith.constant dense<0.000000e+00> : vector<8x32xf32>
    %1284 = tpu.matmul %1283, %1136, %cst_488 {dimension_numbers = #tpu.dot_dimension_numbers<[1], [1], [0], [0], [0, 0, 1, 0], [], []>} : vector<8x32xf32>, vector<32x32xf32>, vector<8x32xf32> -> vector<8x32xf32>
    %1285 = vector.broadcast %1138 : vector<1x32xf32> to vector<8x32xf32>
    %1286 = arith.addf %1284, %1285 : vector<8x32xf32>
    %1287 = arith.addf %1118, %1286 : vector<8x32xf32>
    %c1_489 = arith.constant 1 : index
    %c0_490 = arith.constant 0 : index
    %c0_491 = arith.constant 0 : index
    %1288 = vector.load %arg39[%c1_489, %c0_490, %c0_491] : memref<2x1x32xf32, #tpu.memory_space<vmem>>, vector<1x1x32xf32>
    %1289 = vector.shape_cast %1288 : vector<1x1x32xf32> to vector<1x32xf32>
    %c1_492 = arith.constant 1 : index
    %c0_493 = arith.constant 0 : index
    %c0_494 = arith.constant 0 : index
    %1290 = vector.load %arg40[%c1_492, %c0_493, %c0_494] : memref<2x1x32xf32, #tpu.memory_space<vmem>>, vector<1x1x32xf32>
    %1291 = vector.shape_cast %1290 : vector<1x1x32xf32> to vector<1x32xf32>
    %cst_495 = arith.constant dense<0.000000e+00> : vector<8xf32>
    %1292 = vector.multi_reduction <add>, %1287, %cst_495 [1] : vector<8x32xf32> to vector<8xf32>
    %1293 = vector.shape_cast %1292 : vector<8xf32> to vector<8x1xf32>
    %cst_496 = arith.constant 3.200000e+01 : f32
    %1294 = vector.broadcast %cst_496 : f32 to vector<8x1xf32>
    %1295 = arith.divf %1293, %1294 : vector<8x1xf32>
    %1296 = vector.broadcast %1295 : vector<8x1xf32> to vector<8x32xf32>
    %1297 = arith.subf %1287, %1296 : vector<8x32xf32>
    %1298 = arith.mulf %1297, %1297 : vector<8x32xf32>
    %cst_497 = arith.constant dense<0.000000e+00> : vector<8xf32>
    %1299 = vector.multi_reduction <add>, %1298, %cst_497 [1] : vector<8x32xf32> to vector<8xf32>
    %1300 = vector.shape_cast %1299 : vector<8xf32> to vector<8x1xf32>
    %cst_498 = arith.constant 3.200000e+01 : f32
    %1301 = vector.broadcast %cst_498 : f32 to vector<8x1xf32>
    %1302 = arith.divf %1300, %1301 : vector<8x1xf32>
    %1303 = vector.broadcast %1295 : vector<8x1xf32> to vector<8x32xf32>
    %1304 = arith.subf %1287, %1303 : vector<8x32xf32>
    %cst_499 = arith.constant 9.99999974E-6 : f32
    %1305 = vector.broadcast %cst_499 : f32 to vector<8x1xf32>
    %1306 = arith.addf %1302, %1305 : vector<8x1xf32>
    %1307 = math.rsqrt %1306 : vector<8x1xf32>
    %1308 = vector.broadcast %1307 : vector<8x1xf32> to vector<8x32xf32>
    %1309 = arith.mulf %1304, %1308 : vector<8x32xf32>
    %1310 = vector.broadcast %1289 : vector<1x32xf32> to vector<8x32xf32>
    %1311 = arith.mulf %1309, %1310 : vector<8x32xf32>
    %1312 = vector.broadcast %1291 : vector<1x32xf32> to vector<8x32xf32>
    %1313 = arith.addf %1311, %1312 : vector<8x32xf32>
    %c1_500 = arith.constant 1 : index
    %c0_501 = arith.constant 0 : index
    %c0_502 = arith.constant 0 : index
    %1314 = vector.load %arg33[%c1_500, %c0_501, %c0_502] : memref<2x64x32xf32, #tpu.memory_space<vmem>>, vector<1x64x32xf32>
    %1315 = vector.shape_cast %1314 : vector<1x64x32xf32> to vector<64x32xf32>
    %c1_503 = arith.constant 1 : index
    %c0_504 = arith.constant 0 : index
    %c0_505 = arith.constant 0 : index
    %1316 = vector.load %arg34[%c1_503, %c0_504, %c0_505] : memref<2x1x64xf32, #tpu.memory_space<vmem>>, vector<1x1x64xf32>
    %1317 = vector.shape_cast %1316 : vector<1x1x64xf32> to vector<1x64xf32>
    %cst_506 = arith.constant dense<0.000000e+00> : vector<8x64xf32>
    %1318 = tpu.matmul %1313, %1315, %cst_506 {dimension_numbers = #tpu.dot_dimension_numbers<[1], [1], [0], [0], [0, 0, 1, 0], [], []>} : vector<8x32xf32>, vector<64x32xf32>, vector<8x64xf32> -> vector<8x64xf32>
    %1319 = vector.broadcast %1317 : vector<1x64xf32> to vector<8x64xf32>
    %1320 = arith.addf %1318, %1319 : vector<8x64xf32>
    %cst_507 = arith.constant 0.000000e+00 : f32
    %1321 = vector.broadcast %cst_507 : f32 to vector<8x64xf32>
    %1322 = arith.maximumf %1320, %1321 : vector<8x64xf32>
    %c1_508 = arith.constant 1 : index
    %c0_509 = arith.constant 0 : index
    %c0_510 = arith.constant 0 : index
    %1323 = vector.load %arg35[%c1_508, %c0_509, %c0_510] : memref<2x32x64xf32, #tpu.memory_space<vmem>>, vector<1x32x64xf32>
    %1324 = vector.shape_cast %1323 : vector<1x32x64xf32> to vector<32x64xf32>
    %c1_511 = arith.constant 1 : index
    %c0_512 = arith.constant 0 : index
    %c0_513 = arith.constant 0 : index
    %1325 = vector.load %arg36[%c1_511, %c0_512, %c0_513] : memref<2x1x32xf32, #tpu.memory_space<vmem>>, vector<1x1x32xf32>
    %1326 = vector.shape_cast %1325 : vector<1x1x32xf32> to vector<1x32xf32>
    %cst_514 = arith.constant dense<0.000000e+00> : vector<8x32xf32>
    %1327 = tpu.matmul %1322, %1324, %cst_514 {dimension_numbers = #tpu.dot_dimension_numbers<[1], [1], [0], [0], [0, 0, 1, 0], [], []>} : vector<8x64xf32>, vector<32x64xf32>, vector<8x32xf32> -> vector<8x32xf32>
    %1328 = vector.broadcast %1326 : vector<1x32xf32> to vector<8x32xf32>
    %1329 = arith.addf %1327, %1328 : vector<8x32xf32>
    %1330 = arith.addf %1313, %1329 : vector<8x32xf32>
    %c1_515 = arith.constant 1 : index
    %c0_516 = arith.constant 0 : index
    %c0_517 = arith.constant 0 : index
    %1331 = vector.load %arg41[%c1_515, %c0_516, %c0_517] : memref<2x1x32xf32, #tpu.memory_space<vmem>>, vector<1x1x32xf32>
    %1332 = vector.shape_cast %1331 : vector<1x1x32xf32> to vector<1x32xf32>
    %c1_518 = arith.constant 1 : index
    %c0_519 = arith.constant 0 : index
    %c0_520 = arith.constant 0 : index
    %1333 = vector.load %arg42[%c1_518, %c0_519, %c0_520] : memref<2x1x32xf32, #tpu.memory_space<vmem>>, vector<1x1x32xf32>
    %1334 = vector.shape_cast %1333 : vector<1x1x32xf32> to vector<1x32xf32>
    %cst_521 = arith.constant dense<0.000000e+00> : vector<8xf32>
    %1335 = vector.multi_reduction <add>, %1330, %cst_521 [1] : vector<8x32xf32> to vector<8xf32>
    %1336 = vector.shape_cast %1335 : vector<8xf32> to vector<8x1xf32>
    %cst_522 = arith.constant 3.200000e+01 : f32
    %1337 = vector.broadcast %cst_522 : f32 to vector<8x1xf32>
    %1338 = arith.divf %1336, %1337 : vector<8x1xf32>
    %1339 = vector.broadcast %1338 : vector<8x1xf32> to vector<8x32xf32>
    %1340 = arith.subf %1330, %1339 : vector<8x32xf32>
    %1341 = arith.mulf %1340, %1340 : vector<8x32xf32>
    %cst_523 = arith.constant dense<0.000000e+00> : vector<8xf32>
    %1342 = vector.multi_reduction <add>, %1341, %cst_523 [1] : vector<8x32xf32> to vector<8xf32>
    %1343 = vector.shape_cast %1342 : vector<8xf32> to vector<8x1xf32>
    %cst_524 = arith.constant 3.200000e+01 : f32
    %1344 = vector.broadcast %cst_524 : f32 to vector<8x1xf32>
    %1345 = arith.divf %1343, %1344 : vector<8x1xf32>
    %1346 = vector.broadcast %1338 : vector<8x1xf32> to vector<8x32xf32>
    %1347 = arith.subf %1330, %1346 : vector<8x32xf32>
    %cst_525 = arith.constant 9.99999974E-6 : f32
    %1348 = vector.broadcast %cst_525 : f32 to vector<8x1xf32>
    %1349 = arith.addf %1345, %1348 : vector<8x1xf32>
    %1350 = math.rsqrt %1349 : vector<8x1xf32>
    %1351 = vector.broadcast %1350 : vector<8x1xf32> to vector<8x32xf32>
    %1352 = arith.mulf %1347, %1351 : vector<8x32xf32>
    %1353 = vector.broadcast %1332 : vector<1x32xf32> to vector<8x32xf32>
    %1354 = arith.mulf %1352, %1353 : vector<8x32xf32>
    %1355 = vector.broadcast %1334 : vector<1x32xf32> to vector<8x32xf32>
    %1356 = arith.addf %1354, %1355 : vector<8x32xf32>
    %c0_526 = arith.constant 0 : index
    %c0_527 = arith.constant 0 : index
    %1357 = vector.load %arg9[%c0_526, %c0_527] : memref<1x32xf32, #tpu.memory_space<vmem>>, vector<1x32xf32>
    %1358 = vector.broadcast %1357 : vector<1x32xf32> to vector<8x32xf32>
    %1359 = arith.mulf %1356, %1358 : vector<8x32xf32>
    %cst_528 = arith.constant dense<0.000000e+00> : vector<8xf32>
    %1360 = vector.multi_reduction <add>, %1359, %cst_528 [1] : vector<8x32xf32> to vector<8xf32>
    %1361 = vector.shape_cast %1360 : vector<8xf32> to vector<8x1xf32>
    %c0_529 = arith.constant 0 : index
    %c0_530 = arith.constant 0 : index
    %1362 = vector.load %arg10[%c0_529, %c0_530] : memref<1x1xf32, #tpu.memory_space<vmem>>, vector<1x1xf32>
    %1363 = vector.broadcast %1362 : vector<1x1xf32> to vector<8x1xf32>
    %1364 = arith.addf %1361, %1363 : vector<8x1xf32>
    %c0_531 = arith.constant 0 : index
    %c0_532 = arith.constant 0 : index
    %1365 = vector.load %arg43[%c0_531, %c0_532] : memref<8x1xf32, #tpu.memory_space<vmem>>, vector<8x1xf32>
    tpu.vector_store %arg43[%c0_531, %c0_532], %1364 {strides = array<i32>} : memref<8x1xf32, #tpu.memory_space<vmem>>, vector<8x1xf32>,
    return
  }
}

</mosaic_0001>

<llo_original>
// kernel: my_transformer_forward.1
$region0: #{my_transformer_forward.1}
  #allocation0 [shape = 'u32[]', space=smem, size = 0x4, offset = 0x4, fixed_abs, tag = 'smem constant byte address 0x4 - core index']
  #allocation1 [shape = 'u32[72,128]{1,0:T(1,128)}', space=vmem, size = 0x9000, scoped, tag = 'internal scratch']
  #allocation2 [shape = 'f32[1,1]{1,0:T(1,128)S(1)}', space=vmem, size = 0x200, scoped, tag = 'scoped memory for my_transformer_forward.1']
  %s0 = inlined_call_operand.smem [shape: u32[44], index: -1, kind: input, shape index: {}]
  %s1 = sld [smem:[%s0]]
  %s2 = scalar_lea.smem %s0, 1
  %s3 = sld [smem:[%s2]]
  %s4 = scalar_lea.smem %s0, 2
  %s5 = sld [smem:[%s4]]
  %s6 = scalar_lea.smem %s0, 3
  %s7 = sld [smem:[%s6]]
  %s8 = scalar_lea.smem %s0, 4
  %s9 = sld [smem:[%s8]]
  %s10 = scalar_lea.smem %s0, 5
  %s11 = sld [smem:[%s10]]
  %s12 = scalar_lea.smem %s0, 6
  %s13 = sld [smem:[%s12]]
  %s14 = scalar_lea.smem %s0, 7
  %s15 = sld [smem:[%s14]]
  %s16 = scalar_lea.smem %s0, 8
  %s17 = sld [smem:[%s16]]
  %s18 = scalar_lea.smem %s0, 9
  %s19 = sld [smem:[%s18]]
  %s20 = scalar_lea.smem %s0, 10
  %s21 = sld [smem:[%s20]]
  %s22 = scalar_lea.smem %s0, 11
  %s23 = sld [smem:[%s22]]
  %s24 = scalar_lea.smem %s0, 12
  %s25 = sld [smem:[%s24]]
  %s26 = scalar_lea.smem %s0, 13
  %s27 = sld [smem:[%s26]]
  %s28 = scalar_lea.smem %s0, 14
  %s29 = sld [smem:[%s28]]
  %s30 = scalar_lea.smem %s0, 15
  %s31 = sld [smem:[%s30]]
  %s32 = scalar_lea.smem %s0, 16
  %s33 = sld [smem:[%s32]]
  %s34 = scalar_lea.smem %s0, 17
  %s35 = sld [smem:[%s34]]
  %s36 = scalar_lea.smem %s0, 18
  %s37 = sld [smem:[%s36]]
  %s38 = scalar_lea.smem %s0, 19
  %s39 = sld [smem:[%s38]]
  %s40 = scalar_lea.smem %s0, 20
  %s41 = sld [smem:[%s40]]
  %s42 = scalar_lea.smem %s0, 21
  %s43 = sld [smem:[%s42]]
  %s44 = scalar_lea.smem %s0, 22
  %s45 = sld [smem:[%s44]]
  %s46 = scalar_lea.smem %s0, 23
  %s47 = sld [smem:[%s46]]
  %s48 = scalar_lea.smem %s0, 24
  %s49 = sld [smem:[%s48]]
  %s50 = scalar_lea.smem %s0, 25
  %s51 = sld [smem:[%s50]]
  %s52 = scalar_lea.smem %s0, 26
  %s53 = sld [smem:[%s52]]
  %s54 = scalar_lea.smem %s0, 27
  %s55 = sld [smem:[%s54]]
  %s56 = scalar_lea.smem %s0, 28
  %s57 = sld [smem:[%s56]]
  %s58 = scalar_lea.smem %s0, 29
  %s59 = sld [smem:[%s58]]
  %s60 = scalar_lea.smem %s0, 30
  %s61 = sld [smem:[%s60]]
  %s62 = scalar_lea.smem %s0, 31
  %s63 = sld [smem:[%s62]]
  %s64 = scalar_lea.smem %s0, 32
  %s65 = sld [smem:[%s64]]
  %s66 = scalar_lea.smem %s0, 33
  %s67 = sld [smem:[%s66]]
  %s68 = scalar_lea.smem %s0, 34
  %s69 = sld [smem:[%s68]]
  %s70 = scalar_lea.smem %s0, 35
  %s71 = sld [smem:[%s70]]
  %s72 = scalar_lea.smem %s0, 36
  %s73 = sld [smem:[%s72]]
  %s74 = scalar_lea.smem %s0, 37
  %s75 = sld [smem:[%s74]]
  %s76 = scalar_lea.smem %s0, 38
  %s77 = sld [smem:[%s76]]
  %s78 = scalar_lea.smem %s0, 39
  %s79 = sld [smem:[%s78]]
  %s80 = scalar_lea.smem %s0, 40
  %s81 = sld [smem:[%s80]]
  %s82 = scalar_lea.smem %s0, 41
  %s83 = sld [smem:[%s82]]
  %s84 = scalar_lea.smem %s0, 42
  %s85 = sld [smem:[%s84]]
  %s86 = scalar_lea.smem %s0, 43
  %s87 = sld [smem:[%s86]]
  %s88 = sld [smem:[#allocation0]]
  $region226: #{my_transformer_forward.1} parent=0
    _
  %s90 = ssub.s32 1, %s88
  %s91 = scalar_select 0, %s90, %s88
  %v92 = vstv %s21
  %93 = vst [vmem:[#allocation2] sm:$0x1] %v92
  $region1: #{my_transformer_forward.1} parent=0
    #allocation3 [shape = 'u8[98304]{0}', space=vmem, size = 0x18000, scoped, tag = 'input window, operand 11, single buffered']
    #allocation4 [shape = 's32[1]{0}', space=sflag, size = 0x4, scoped, tag = 'scoped memory for my_transformer_forward.1']
    #allocation5 [shape = 'u8[32768]{0}', space=vmem, size = 0x8000, scoped, tag = 'input window, operand 13, single buffered']
    #allocation6 [shape = 's32[1]{0}', space=sflag, size = 0x4, scoped, tag = 'scoped memory for my_transformer_forward.1']
    #allocation7 [shape = 'u8[65536]{0}', space=vmem, size = 0x10000, scoped, tag = 'input window, operand 15, single buffered']
    #allocation8 [shape = 'u8[32768]{0}', space=vmem, size = 0x8000, scoped, tag = 'input window, operand 17, single buffered']
    #allocation9 [shape = 's32[1]{0}', space=sflag, size = 0x4, scoped, tag = 'scoped memory for my_transformer_forward.1']
    #allocation10 [shape = 'u8[98304]{0}', space=vmem, size = 0x18000, scoped, tag = 'input window, operand 23, single buffered']
    #allocation11 [shape = 'u8[32768]{0}', space=vmem, size = 0x8000, scoped, tag = 'input window, operand 25, single buffered']
    #allocation12 [shape = 's32[1]{0}', space=sflag, size = 0x4, scoped, tag = 'scoped memory for my_transformer_forward.1']
    #allocation13 [shape = 'u8[32768]{0}', space=vmem, size = 0x8000, scoped, tag = 'input window, operand 27, single buffered']
    #allocation14 [shape = 'u8[65536]{0}', space=vmem, size = 0x10000, scoped, tag = 'input window, operand 29, single buffered']
    #allocation15 [shape = 's32[1]{0}', space=sflag, size = 0x4, scoped, tag = 'scoped memory for my_transformer_forward.1']
    #allocation16 [shape = 'u8[32768]{0}', space=vmem, size = 0x8000, scoped, tag = 'input window, operand 31, single buffered']
    #allocation17 [shape = 'u8[65536]{0}', space=vmem, size = 0x10000, scoped, tag = 'input window, operand 33, single buffered']
    #allocation18 [shape = 's32[1]{0}', space=sflag, size = 0x4, scoped, tag = 'scoped memory for my_transformer_forward.1']
    #allocation19 [shape = 'u8[32768]{0}', space=vmem, size = 0x8000, scoped, tag = 'input window, operand 35, single buffered']
    %94 = vsyncpa [#allocation4], 0
    %95 = vsyncpa [#allocation6], 0
    %96 = vsyncpa [#allocation9], 0
    %97 = vsyncpa [#allocation12], 0
    %98 = vsyncpa [#allocation15], 0
    %99 = vsyncpa [#allocation18], 0
    // Predicated region
    $region2: #{my_transformer_forward.1} parent=1 // pred_check
      _
    $region3: #{my_transformer_forward.1} parent=1 // pred_check_branch
      %101 = sbr.rel (0) target = $region5
    $region4: #{my_transformer_forward.1} parent=1 // pred_region
      _
    $region5: #{my_transformer_forward.1} parent=1 // pred_fallthru
      _
    // Predicated region
    $region6: #{my_transformer_forward.1} parent=1 // pred_check
      _
    $region7: #{my_transformer_forward.1} parent=1 // pred_check_branch
      %103 = sbr.rel (0) target = $region9
    $region8: #{my_transformer_forward.1} parent=1 // pred_region
      _
    $region9: #{my_transformer_forward.1} parent=1 // pred_fallthru
      _
    // Predicated region
    $region10: #{my_transformer_forward.1} parent=1 // pred_check
      _
    $region11: #{my_transformer_forward.1} parent=1 // pred_check_branch
      %105 = sbr.rel (0) target = $region13
    $region12: #{my_transformer_forward.1} parent=1 // pred_region
      _
    $region13: #{my_transformer_forward.1} parent=1 // pred_fallthru
      _
    // Predicated region
    $region14: #{my_transformer_forward.1} parent=1 // pred_check
      _
    $region15: #{my_transformer_forward.1} parent=1 // pred_check_branch
      %107 = sbr.rel (0) target = $region17
    $region16: #{my_transformer_forward.1} parent=1 // pred_region
      _
    $region17: #{my_transformer_forward.1} parent=1 // pred_fallthru
      _
    // Predicated region
    $region18: #{my_transformer_forward.1} parent=1 // pred_check
      _
    $region19: #{my_transformer_forward.1} parent=1 // pred_check_branch
      %109 = sbr.rel (0) target = $region21
    $region20: #{my_transformer_forward.1} parent=1 // pred_region
      _
    $region21: #{my_transformer_forward.1} parent=1 // pred_fallthru
      _
    // Predicated region
    $region22: #{my_transformer_forward.1} parent=1 // pred_check
      _
    $region23: #{my_transformer_forward.1} parent=1 // pred_check_branch
      %111 = sbr.rel (0) target = $region25
    $region24: #{my_transformer_forward.1} parent=1 // pred_region
      _
    $region25: #{my_transformer_forward.1} parent=1 // pred_fallthru
      _
    // Predicated region
    $region26: #{my_transformer_forward.1} parent=1 // pred_check
      _
    $region27: #{my_transformer_forward.1} parent=1 // pred_check_branch
      %113 = sbr.rel (0) target = $region29
    $region28: #{my_transformer_forward.1} parent=1 // pred_region
      _
    $region29: #{my_transformer_forward.1} parent=1 // pred_fallthru
      _
    // Predicated region
    $region30: #{my_transformer_forward.1} parent=1 // pred_check
      _
    $region31: #{my_transformer_forward.1} parent=1 // pred_check_branch
      %115 = sbr.rel (0) target = $region33
    $region32: #{my_transformer_forward.1} parent=1 // pred_region
      _
    $region33: #{my_transformer_forward.1} parent=1 // pred_fallthru
      _
    // Predicated region
    $region34: #{my_transformer_forward.1} parent=1 // pred_check
      _
    $region35: #{my_transformer_forward.1} parent=1 // pred_check_branch
      %117 = sbr.rel (0) target = $region37
    $region36: #{my_transformer_forward.1} parent=1 // pred_region
      _
    $region37: #{my_transformer_forward.1} parent=1 // pred_fallthru
      _
    // Predicated region
    $region38: #{my_transformer_forward.1} parent=1 // pred_check
      _
    $region39: #{my_transformer_forward.1} parent=1 // pred_check_branch
      %119 = sbr.rel (0) target = $region41
    $region40: #{my_transformer_forward.1} parent=1 // pred_region
      _
    $region41: #{my_transformer_forward.1} parent=1 // pred_fallthru
      _
    // Predicated region
    $region42: #{my_transformer_forward.1} parent=1 // pred_check
      _
    $region43: #{my_transformer_forward.1} parent=1 // pred_check_branch
      %121 = sbr.rel (0) target = $region45
    $region44: #{my_transformer_forward.1} parent=1 // pred_region
      _
    $region45: #{my_transformer_forward.1} parent=1 // pred_fallthru
      _
    // Predicated region
    $region46: #{my_transformer_forward.1} parent=1 // pred_check
      _
    $region47: #{my_transformer_forward.1} parent=1 // pred_check_branch
      %123 = sbr.rel (0) target = $region49
    $region48: #{my_transformer_forward.1} parent=1 // pred_region
      %125 = vsyncadd [#allocation4], 0
      %s126 = sshll.u32 %s23, 4
      %s127 = int_to_ptr.hbm [resolvable:$true] %s126
      %s128 = sshll.u32 [#allocation3], 4
      %s129 = int_to_ptr.vmem [resolvable:$true] %s128
      %134 = dma.hbm_to_vmem [thread:$0]  %s127, 3072, %s129, [#allocation4], 128, 128, 8
    $region49: #{my_transformer_forward.1} parent=1 // pred_fallthru
      _
    // Predicated region
    $region50: #{my_transformer_forward.1} parent=1 // pred_check
      _
    $region51: #{my_transformer_forward.1} parent=1 // pred_check_branch
      %136 = sbr.rel (0) target = $region53
    $region52: #{my_transformer_forward.1} parent=1 // pred_region
      _
    $region53: #{my_transformer_forward.1} parent=1 // pred_fallthru
      _
    // Predicated region
    $region54: #{my_transformer_forward.1} parent=1 // pred_check
      _
    $region55: #{my_transformer_forward.1} parent=1 // pred_check_branch
      %138 = sbr.rel (0) target = $region57
    $region56: #{my_transformer_forward.1} parent=1 // pred_region
      %140 = vsyncadd [#allocation6], 0
      %s141 = sshll.u32 %s27, 4
      %s142 = int_to_ptr.hbm [resolvable:$true] %s141
      %s143 = sshll.u32 [#allocation5], 4
      %s144 = int_to_ptr.vmem [resolvable:$true] %s143
      %149 = dma.hbm_to_vmem [thread:$0]  %s142, 1024, %s144, [#allocation6], 128, 128, 8
    $region57: #{my_transformer_forward.1} parent=1 // pred_fallthru
      _
    // Predicated region
    $region58: #{my_transformer_forward.1} parent=1 // pred_check
      _
    $region59: #{my_transformer_forward.1} parent=1 // pred_check_branch
      %151 = sbr.rel (0) target = $region61
    $region60: #{my_transformer_forward.1} parent=1 // pred_region
      _
    $region61: #{my_transformer_forward.1} parent=1 // pred_fallthru
      _
    // Predicated region
    $region62: #{my_transformer_forward.1} parent=1 // pred_check
      _
    $region63: #{my_transformer_forward.1} parent=1 // pred_check_branch
      %153 = sbr.rel (0) target = $region65
    $region64: #{my_transformer_forward.1} parent=1 // pred_region
      %155 = vsyncadd [#allocation6], 0
      %s156 = sshll.u32 %s31, 4
      %s157 = int_to_ptr.hbm [resolvable:$true] %s156
      %s158 = sshll.u32 [#allocation7], 4
      %s159 = int_to_ptr.vmem [resolvable:$true] %s158
      %164 = dma.hbm_to_vmem [thread:$0]  %s157, 2048, %s159, [#allocation6], 128, 128, 8
    $region65: #{my_transformer_forward.1} parent=1 // pred_fallthru
      _
    // Predicated region
    $region66: #{my_transformer_forward.1} parent=1 // pred_check
      _
    $region67: #{my_transformer_forward.1} parent=1 // pred_check_branch
      %166 = sbr.rel (0) target = $region69
    $region68: #{my_transformer_forward.1} parent=1 // pred_region
      _
    $region69: #{my_transformer_forward.1} parent=1 // pred_fallthru
      _
    // Predicated region
    $region70: #{my_transformer_forward.1} parent=1 // pred_check
      _
    $region71: #{my_transformer_forward.1} parent=1 // pred_check_branch
      %168 = sbr.rel (0) target = $region73
    $region72: #{my_transformer_forward.1} parent=1 // pred_region
      %170 = vsyncadd [#allocation9], 0
      %s171 = sshll.u32 %s35, 4
      %s172 = int_to_ptr.hbm [resolvable:$true] %s171
      %s173 = sshll.u32 [#allocation8], 4
      %s174 = int_to_ptr.vmem [resolvable:$true] %s173
      %179 = dma.hbm_to_vmem [thread:$0]  %s172, 1024, %s174, [#allocation9], 128, 128, 8
    $region73: #{my_transformer_forward.1} parent=1 // pred_fallthru
      _
    // Predicated region
    $region74: #{my_transformer_forward.1} parent=1 // pred_check
      _
    $region75: #{my_transformer_forward.1} parent=1 // pred_check_branch
      %181 = sbr.rel (0) target = $region77
    $region76: #{my_transformer_forward.1} parent=1 // pred_region
      _
    $region77: #{my_transformer_forward.1} parent=1 // pred_fallthru
      _
    // Predicated region
    $region78: #{my_transformer_forward.1} parent=1 // pred_check
      _
    $region79: #{my_transformer_forward.1} parent=1 // pred_check_branch
      %183 = sbr.rel (0) target = $region81
    $region80: #{my_transformer_forward.1} parent=1 // pred_region
      _
    $region81: #{my_transformer_forward.1} parent=1 // pred_fallthru
      _
    // Predicated region
    $region82: #{my_transformer_forward.1} parent=1 // pred_check
      _
    $region83: #{my_transformer_forward.1} parent=1 // pred_check_branch
      %185 = sbr.rel (0) target = $region85
    $region84: #{my_transformer_forward.1} parent=1 // pred_region
      _
    $region85: #{my_transformer_forward.1} parent=1 // pred_fallthru
      _
    // Predicated region
    $region86: #{my_transformer_forward.1} parent=1 // pred_check
      _
    $region87: #{my_transformer_forward.1} parent=1 // pred_check_branch
      %187 = sbr.rel (0) target = $region89
    $region88: #{my_transformer_forward.1} parent=1 // pred_region
      _
    $region89: #{my_transformer_forward.1} parent=1 // pred_fallthru
      _
    // Predicated region
    $region90: #{my_transformer_forward.1} parent=1 // pred_check
      _
    $region91: #{my_transformer_forward.1} parent=1 // pred_check_branch
      %189 = sbr.rel (0) target = $region93
    $region92: #{my_transformer_forward.1} parent=1 // pred_region
      _
    $region93: #{my_transformer_forward.1} parent=1 // pred_fallthru
      _
    // Predicated region
    $region94: #{my_transformer_forward.1} parent=1 // pred_check
      _
    $region95: #{my_transformer_forward.1} parent=1 // pred_check_branch
      %191 = sbr.rel (0) target = $region97
    $region96: #{my_transformer_forward.1} parent=1 // pred_region
      %193 = vsyncadd [#allocation9], 0
      %s194 = sshll.u32 %s47, 4
      %s195 = int_to_ptr.hbm [resolvable:$true] %s194
      %s196 = sshll.u32 [#allocation10], 4
      %s197 = int_to_ptr.vmem [resolvable:$true] %s196
      %202 = dma.hbm_to_vmem [thread:$0]  %s195, 3072, %s197, [#allocation9], 128, 128, 8
    $region97: #{my_transformer_forward.1} parent=1 // pred_fallthru
      _
    // Predicated region
    $region98: #{my_transformer_forward.1} parent=1 // pred_check
      _
    $region99: #{my_transformer_forward.1} parent=1 // pred_check_branch
      %204 = sbr.rel (0) target = $region101
    $region100: #{my_transformer_forward.1} parent=1 // pred_region
      _
    $region101: #{my_transformer_forward.1} parent=1 // pred_fallthru
      _
    // Predicated region
    $region102: #{my_transformer_forward.1} parent=1 // pred_check
      _
    $region103: #{my_transformer_forward.1} parent=1 // pred_check_branch
      %206 = sbr.rel (0) target = $region105
    $region104: #{my_transformer_forward.1} parent=1 // pred_region
      %208 = vsyncadd [#allocation12], 0
      %s209 = sshll.u32 %s51, 4
      %s210 = int_to_ptr.hbm [resolvable:$true] %s209
      %s211 = sshll.u32 [#allocation11], 4
      %s212 = int_to_ptr.vmem [resolvable:$true] %s211
      %217 = dma.hbm_to_vmem [thread:$0]  %s210, 1024, %s212, [#allocation12], 128, 128, 8
    $region105: #{my_transformer_forward.1} parent=1 // pred_fallthru
      _
    // Predicated region
    $region106: #{my_transformer_forward.1} parent=1 // pred_check
      _
    $region107: #{my_transformer_forward.1} parent=1 // pred_check_branch
      %219 = sbr.rel (0) target = $region109
    $region108: #{my_transformer_forward.1} parent=1 // pred_region
      _
    $region109: #{my_transformer_forward.1} parent=1 // pred_fallthru
      _
    // Predicated region
    $region110: #{my_transformer_forward.1} parent=1 // pred_check
      _
    $region111: #{my_transformer_forward.1} parent=1 // pred_check_branch
      %221 = sbr.rel (0) target = $region113
    $region112: #{my_transformer_forward.1} parent=1 // pred_region
      %223 = vsyncadd [#allocation12], 0
      %s224 = sshll.u32 %s55, 4
      %s225 = int_to_ptr.hbm [resolvable:$true] %s224
      %s226 = sshll.u32 [#allocation13], 4
      %s227 = int_to_ptr.vmem [resolvable:$true] %s226
      %232 = dma.hbm_to_vmem [thread:$0]  %s225, 1024, %s227, [#allocation12], 128, 128, 8
    $region113: #{my_transformer_forward.1} parent=1 // pred_fallthru
      _
    // Predicated region
    $region114: #{my_transformer_forward.1} parent=1 // pred_check
      _
    $region115: #{my_transformer_forward.1} parent=1 // pred_check_branch
      %234 = sbr.rel (0) target = $region117
    $region116: #{my_transformer_forward.1} parent=1 // pred_region
      _
    $region117: #{my_transformer_forward.1} parent=1 // pred_fallthru
      _
    // Predicated region
    $region118: #{my_transformer_forward.1} parent=1 // pred_check
      _
    $region119: #{my_transformer_forward.1} parent=1 // pred_check_branch
      %236 = sbr.rel (0) target = $region121
    $region120: #{my_transformer_forward.1} parent=1 // pred_region
      %238 = vsyncadd [#allocation15], 0
      %s239 = sshll.u32 %s59, 4
      %s240 = int_to_ptr.hbm [resolvable:$true] %s239
      %s241 = sshll.u32 [#allocation14], 4
      %s242 = int_to_ptr.vmem [resolvable:$true] %s241
      %247 = dma.hbm_to_vmem [thread:$0]  %s240, 2048, %s242, [#allocation15], 128, 128, 8
    $region121: #{my_transformer_forward.1} parent=1 // pred_fallthru
      _
    // Predicated region
    $region122: #{my_transformer_forward.1} parent=1 // pred_check
      _
    $region123: #{my_transformer_forward.1} parent=1 // pred_check_branch
      %249 = sbr.rel (0) target = $region125
    $region124: #{my_transformer_forward.1} parent=1 // pred_region
      _
    $region125: #{my_transformer_forward.1} parent=1 // pred_fallthru
      _
    // Predicated region
    $region126: #{my_transformer_forward.1} parent=1 // pred_check
      _
    $region127: #{my_transformer_forward.1} parent=1 // pred_check_branch
      %251 = sbr.rel (0) target = $region129
    $region128: #{my_transformer_forward.1} parent=1 // pred_region
      %253 = vsyncadd [#allocation15], 0
      %s254 = sshll.u32 %s63, 4
      %s255 = int_to_ptr.hbm [resolvable:$true] %s254
      %s256 = sshll.u32 [#allocation16], 4
      %s257 = int_to_ptr.vmem [resolvable:$true] %s256
      %262 = dma.hbm_to_vmem [thread:$0]  %s255, 1024, %s257, [#allocation15], 128, 128, 8
    $region129: #{my_transformer_forward.1} parent=1 // pred_fallthru
      _
    // Predicated region
    $region130: #{my_transformer_forward.1} parent=1 // pred_check
      _
    $region131: #{my_transformer_forward.1} parent=1 // pred_check_branch
      %264 = sbr.rel (0) target = $region133
    $region132: #{my_transformer_forward.1} parent=1 // pred_region
      _
    $region133: #{my_transformer_forward.1} parent=1 // pred_fallthru
      _
    // Predicated region
    $region134: #{my_transformer_forward.1} parent=1 // pred_check
      _
    $region135: #{my_transformer_forward.1} parent=1 // pred_check_branch
      %266 = sbr.rel (0) target = $region137
    $region136: #{my_transformer_forward.1} parent=1 // pred_region
      %268 = vsyncadd [#allocation18], 0
      %s269 = sshll.u32 %s67, 4
      %s270 = int_to_ptr.hbm [resolvable:$true] %s269
      %s271 = sshll.u32 [#allocation17], 4
      %s272 = int_to_ptr.vmem [resolvable:$true] %s271
      %277 = dma.hbm_to_vmem [thread:$0]  %s270, 2048, %s272, [#allocation18], 128, 128, 8
    $region137: #{my_transformer_forward.1} parent=1 // pred_fallthru
      _
    // Predicated region
    $region138: #{my_transformer_forward.1} parent=1 // pred_check
      _
    $region139: #{my_transformer_forward.1} parent=1 // pred_check_branch
      %279 = sbr.rel (0) target = $region141
    $region140: #{my_transformer_forward.1} parent=1 // pred_region
      _
    $region141: #{my_transformer_forward.1} parent=1 // pred_fallthru
      _
    // Predicated region
    $region142: #{my_transformer_forward.1} parent=1 // pred_check
      _
    $region143: #{my_transformer_forward.1} parent=1 // pred_check_branch
      %281 = sbr.rel (0) target = $region145
    $region144: #{my_transformer_forward.1} parent=1 // pred_region
      %283 = vsyncadd [#allocation18], 0
      %s284 = sshll.u32 %s71, 4
      %s285 = int_to_ptr.hbm [resolvable:$true] %s284
      %s286 = sshll.u32 [#allocation19], 4
      %s287 = int_to_ptr.vmem [resolvable:$true] %s286
      %292 = dma.hbm_to_vmem [thread:$0]  %s285, 1024, %s287, [#allocation18], 128, 128, 8
    $region145: #{my_transformer_forward.1} parent=1 // pred_fallthru
      _
    // Predicated region
    $region146: #{my_transformer_forward.1} parent=1 // pred_check
      _
    $region147: #{my_transformer_forward.1} parent=1 // pred_check_branch
      %294 = sbr.rel (0) target = $region149
    $region148: #{my_transformer_forward.1} parent=1 // pred_region
      _
    $region149: #{my_transformer_forward.1} parent=1 // pred_fallthru
      _
    // Predicated region
    $region150: #{my_transformer_forward.1} parent=1 // pred_check
      _
    $region151: #{my_transformer_forward.1} parent=1 // pred_check_branch
      %296 = sbr.rel (0) target = $region153
    $region152: #{my_transformer_forward.1} parent=1 // pred_region
      _
    $region153: #{my_transformer_forward.1} parent=1 // pred_fallthru
      _
    // Predicated region
    $region154: #{my_transformer_forward.1} parent=1 // pred_check
      _
    $region155: #{my_transformer_forward.1} parent=1 // pred_check_branch
      %298 = sbr.rel (0) target = $region157
    $region156: #{my_transformer_forward.1} parent=1 // pred_region
      _
    $region157: #{my_transformer_forward.1} parent=1 // pred_fallthru
      _
    // Predicated region
    $region158: #{my_transformer_forward.1} parent=1 // pred_check
      _
    $region159: #{my_transformer_forward.1} parent=1 // pred_check_branch
      %300 = sbr.rel (0) target = $region161
    $region160: #{my_transformer_forward.1} parent=1 // pred_region
      _
    $region161: #{my_transformer_forward.1} parent=1 // pred_fallthru
      _
    // Predicated region
    $region162: #{my_transformer_forward.1} parent=1 // pred_check
      _
    $region163: #{my_transformer_forward.1} parent=1 // pred_check_branch
      %302 = sbr.rel (0) target = $region165
    $region164: #{my_transformer_forward.1} parent=1 // pred_region
      _
    $region165: #{my_transformer_forward.1} parent=1 // pred_fallthru
      _
    // Predicated region
    $region166: #{my_transformer_forward.1} parent=1 // pred_check
      _
    $region167: #{my_transformer_forward.1} parent=1 // pred_check_branch
      %304 = sbr.rel (0) target = $region169
    $region168: #{my_transformer_forward.1} parent=1 // pred_region
      _
    $region169: #{my_transformer_forward.1} parent=1 // pred_fallthru
      _
    // Predicated region
    $region170: #{my_transformer_forward.1} parent=1 // pred_check
      _
    $region171: #{my_transformer_forward.1} parent=1 // pred_check_branch
      %306 = sbr.rel (0) target = $region173
    $region172: #{my_transformer_forward.1} parent=1 // pred_region
      _
    $region173: #{my_transformer_forward.1} parent=1 // pred_fallthru
      _
    // Predicated region
    $region174: #{my_transformer_forward.1} parent=1 // pred_check
      _
    $region175: #{my_transformer_forward.1} parent=1 // pred_check_branch
      %308 = sbr.rel (0) target = $region177
    $region176: #{my_transformer_forward.1} parent=1 // pred_region
      %310 = dma.done [#allocation4], 3072
    $region177: #{my_transformer_forward.1} parent=1 // pred_fallthru
      _
    // Predicated region
    $region178: #{my_transformer_forward.1} parent=1 // pred_check
      _
    $region179: #{my_transformer_forward.1} parent=1 // pred_check_branch
      %312 = sbr.rel (0) target = $region181
    $region180: #{my_transformer_forward.1} parent=1 // pred_region
      %314 = dma.done [#allocation6], 1024
    $region181: #{my_transformer_forward.1} parent=1 // pred_fallthru
      _
    // Predicated region
    $region182: #{my_transformer_forward.1} parent=1 // pred_check
      _
    $region183: #{my_transformer_forward.1} parent=1 // pred_check_branch
      %316 = sbr.rel (0) target = $region185
    $region184: #{my_transformer_forward.1} parent=1 // pred_region
      %318 = dma.done [#allocation6], 2048
    $region185: #{my_transformer_forward.1} parent=1 // pred_fallthru
      _
    // Predicated region
    $region186: #{my_transformer_forward.1} parent=1 // pred_check
      _
    $region187: #{my_transformer_forward.1} parent=1 // pred_check_branch
      %320 = sbr.rel (0) target = $region189
    $region188: #{my_transformer_forward.1} parent=1 // pred_region
      %322 = dma.done [#allocation9], 1024
    $region189: #{my_transformer_forward.1} parent=1 // pred_fallthru
      _
    // Predicated region
    $region190: #{my_transformer_forward.1} parent=1 // pred_check
      _
    $region191: #{my_transformer_forward.1} parent=1 // pred_check_branch
      %324 = sbr.rel (0) target = $region193
    $region192: #{my_transformer_forward.1} parent=1 // pred_region
      %326 = dma.done [#allocation9], 3072
    $region193: #{my_transformer_forward.1} parent=1 // pred_fallthru
      _
    // Predicated region
    $region194: #{my_transformer_forward.1} parent=1 // pred_check
      _
    $region195: #{my_transformer_forward.1} parent=1 // pred_check_branch
      %328 = sbr.rel (0) target = $region197
    $region196: #{my_transformer_forward.1} parent=1 // pred_region
      %330 = dma.done [#allocation12], 1024
    $region197: #{my_transformer_forward.1} parent=1 // pred_fallthru
      _
    // Predicated region
    $region198: #{my_transformer_forward.1} parent=1 // pred_check
      _
    $region199: #{my_transformer_forward.1} parent=1 // pred_check_branch
      %332 = sbr.rel (0) target = $region201
    $region200: #{my_transformer_forward.1} parent=1 // pred_region
      %334 = dma.done [#allocation12], 1024
    $region201: #{my_transformer_forward.1} parent=1 // pred_fallthru
      _
    // Predicated region
    $region202: #{my_transformer_forward.1} parent=1 // pred_check
      _
    $region203: #{my_transformer_forward.1} parent=1 // pred_check_branch
      %336 = sbr.rel (0) target = $region205
    $region204: #{my_transformer_forward.1} parent=1 // pred_region
      %338 = dma.done [#allocation15], 2048
    $region205: #{my_transformer_forward.1} parent=1 // pred_fallthru
      _
    // Predicated region
    $region206: #{my_transformer_forward.1} parent=1 // pred_check
      _
    $region207: #{my_transformer_forward.1} parent=1 // pred_check_branch
      %340 = sbr.rel (0) target = $region209
    $region208: #{my_transformer_forward.1} parent=1 // pred_region
      %342 = dma.done [#allocation15], 1024
    $region209: #{my_transformer_forward.1} parent=1 // pred_fallthru
      _
    // Predicated region
    $region210: #{my_transformer_forward.1} parent=1 // pred_check
      _
    $region211: #{my_transformer_forward.1} parent=1 // pred_check_branch
      %344 = sbr.rel (0) target = $region213
    $region212: #{my_transformer_forward.1} parent=1 // pred_region
      %346 = dma.done [#allocation18], 2048
    $region213: #{my_transformer_forward.1} parent=1 // pred_fallthru
      _
    // Predicated region
    $region214: #{my_transformer_forward.1} parent=1 // pred_check
      _
    $region215: #{my_transformer_forward.1} parent=1 // pred_check_branch
      %348 = sbr.rel (0) target = $region217
    $region216: #{my_transformer_forward.1} parent=1 // pred_region
      %350 = dma.done [#allocation18], 1024
    $region217: #{my_transformer_forward.1} parent=1 // pred_fallthru
      _
    %v351 = vld [vmem:[%s1] sm:$0xff]
    %v352 = vld [vmem:[%s1 + $0x8] sm:$0xff]
    %v353 = vld [vmem:[%s11] sm:$0xff]
    %v354 = vld [vmem:[%s11 + $0x8] sm:$0xff]
    %v355 = vld [vmem:[%s11 + $0x10] sm:$0xff]
    %v356 = vld [vmem:[%s11 + $0x18] sm:$0xff]
    %v357 = vld [vmem:[%s13] sm:$0x1]
    %v359 = vperm.slane %v357, 0
    %vm361 = vcmask 48128
    %v363 = vsel %vm361, %v351, 0
    %v366 = vsel %vm361, %v352, 0
    %v369 = vsel %vm361, %v353, 0
    %v372 = vsel %vm361, %v354, 0
    %v375 = vsel %vm361, %v355, 0
    %v378 = vsel %vm361, %v356, 0
    %380 = vmatpush.xpose.msra.mxu0 0.0
    %381 = vmatpush.xpose.msra.mxu0 0.0
    %382 = vmatpush.xpose.msra.mxu0 0.0
    %383 = vmatpush.xpose.msra.mxu0 0.0
    %384 = vmatpush.xpose.msra.mxu0 0.0
    %385 = vmatpush.xpose.msra.mxu0 0.0
    %386 = vmatpush.xpose.msra.mxu0 0.0
    %387 = vmatpush.xpose.msra.mxu0 0.0
    %388 = vmatpush.xpose.msra.mxu0 0.0
    %389 = vmatpush.xpose.msra.mxu0 0.0
    %390 = vmatpush.xpose.msra.mxu0 0.0
    %391 = vmatpush.xpose.msra.mxu0 0.0
    %392 = vmatpush.xpose.msra.mxu0 %v378
    %393 = vmatpush.xpose.msra.mxu0 %v375
    %394 = vmatpush.xpose.msra.mxu0 %v372
    %395 = vmatpush.xpose.msra.mxu0 %v369
    %396 = vmatmul.f32.gmra.mxu0 %v363
    %v397 = vpop.f32.mrf.mxu0
    %v398 = vadd.f32 %v359, %v397
    %399 = vmatmul.f32.gmra.mxu0 %v366
    %v400 = vpop.f32.mrf.mxu0
    %v401 = vadd.f32 %v359, %v400
    %402 = vdwg.mxu0
    %v403 = vmul.f32 %v398, 5.656854
    %v404 = vmul.f32 %v401, 5.656854
    %v405 = vld [vmem:[%s7] sm:$0xff]
    %v406 = vld [vmem:[%s7 + $0x8] sm:$0xff]
    %v407 = vadd.f32 %v403, %v405
    %v408 = vadd.f32 %v404, %v406
    %v409 = vld [vmem:[#allocation3] sm:$0xff]
    %v410 = vld [vmem:[#allocation3 + $0x8] sm:$0xff]
    %v411 = vld [vmem:[#allocation3 + $0x10] sm:$0xff]
    %v412 = vld [vmem:[#allocation3 + $0x18] sm:$0xff]
    %v413 = vld [vmem:[#allocation3 + $0x20] sm:$0xff]
    %v414 = vld [vmem:[#allocation3 + $0x28] sm:$0xff]
    %v415 = vld [vmem:[#allocation3 + $0x30] sm:$0xff]
    %v416 = vld [vmem:[#allocation3 + $0x38] sm:$0xff]
    %v417 = vld [vmem:[#allocation3 + $0x40] sm:$0xff]
    %v418 = vld [vmem:[#allocation3 + $0x48] sm:$0xff]
    %v419 = vld [vmem:[#allocation3 + $0x50] sm:$0xff]
    %v420 = vld [vmem:[#allocation3 + $0x58] sm:$0xff]
    %v421 = vld [vmem:[%s25] sm:$0x1]
    %v423 = vperm.slane %v421, 0
    %vm425 = vcmask 261120
    %v427 = vsel %vm425, %v407, 0
    %v430 = vsel %vm425, %v408, 0
    %v433 = vsel %vm425, %v409, 0
    %v436 = vsel %vm425, %v410, 0
    %v439 = vsel %vm425, %v411, 0
    %v442 = vsel %vm425, %v412, 0
    %v445 = vsel %vm425, %v413, 0
    %v448 = vsel %vm425, %v414, 0
    %v451 = vsel %vm425, %v415, 0
    %v454 = vsel %vm425, %v416, 0
    %v457 = vsel %vm425, %v417, 0
    %v460 = vsel %vm425, %v418, 0
    %v463 = vsel %vm425, %v419, 0
    %v466 = vsel %vm425, %v420, 0
    %468 = vmatpush.xpose.msra.mxu0 0.0
    %469 = vmatpush.xpose.msra.mxu0 0.0
    %470 = vmatpush.xpose.msra.mxu0 0.0
    %471 = vmatpush.xpose.msra.mxu0 0.0
    %472 = vmatpush.xpose.msra.mxu0 %v466
    %473 = vmatpush.xpose.msra.mxu0 %v463
    %474 = vmatpush.xpose.msra.mxu0 %v460
    %475 = vmatpush.xpose.msra.mxu0 %v457
    %476 = vmatpush.xpose.msra.mxu0 %v454
    %477 = vmatpush.xpose.msra.mxu0 %v451
    %478 = vmatpush.xpose.msra.mxu0 %v448
    %479 = vmatpush.xpose.msra.mxu0 %v445
    %480 = vmatpush.xpose.msra.mxu0 %v442
    %481 = vmatpush.xpose.msra.mxu0 %v439
    %482 = vmatpush.xpose.msra.mxu0 %v436
    %483 = vmatpush.xpose.msra.mxu0 %v433
    %484 = vmatmul.f32.gmra.mxu0 %v427
    %v485 = vpop.f32.mrf.mxu0
    %v486 = vadd.f32 %v423, %v485
    %487 = vmatmul.f32.gmra.mxu0 %v430
    %v488 = vpop.f32.mrf.mxu0
    %v489 = vadd.f32 %v423, %v488
    %490 = vdwg.mxu0
    %v491 = vld [vmem:[#allocation5] sm:$0xff]
    %v492 = vld [vmem:[#allocation5 + $0x8] sm:$0xff]
    %v493 = vld [vmem:[#allocation5 + $0x10] sm:$0xff]
    %v494 = vld [vmem:[#allocation5 + $0x18] sm:$0xff]
    %v495 = vld [vmem:[%s29] sm:$0x1]
    %v496 = vmul.f32 %v486, 0.35355338
    %498 = vrot.lane.b32.xlu0 %v486, 96
    %v499 = vpop.permute.xlu0 %498
    %vm500 = vcmask 64512
    %v502 = vsel %vm500, %v496, 0
    %v504 = vsel %vm500, %v499, 0
    %506 = vmatpush.xpose.msra.mxu0 0.0
    %507 = vmatpush.xpose.msra.mxu0 0.0
    %508 = vmatpush.xpose.msra.mxu0 0.0
    %509 = vmatpush.xpose.msra.mxu0 0.0
    %510 = vmatpush.xpose.msra.mxu0 0.0
    %511 = vmatpush.xpose.msra.mxu0 0.0
    %512 = vmatpush.xpose.msra.mxu0 0.0
    %513 = vmatpush.xpose.msra.mxu0 0.0
    %514 = vmatpush.xpose.msra.mxu0 0.0
    %515 = vmatpush.xpose.msra.mxu0 0.0
    %516 = vmatpush.xpose.msra.mxu0 0.0
    %517 = vmatpush.xpose.msra.mxu0 0.0
    %518 = vmatpush.xpose.msra.mxu0 0.0
    %519 = vmatpush.xpose.msra.mxu0 0.0
    %520 = vmatpush.xpose.msra.mxu0 0.0
    %521 = vmatpush.xpose.msra.mxu0 %v504
    %522 = vmatmul.f32.gmra.mxu0 %v502
    %v523 = vpop.f32.mrf.mxu0
    %v524 = vadd.f32 0.0, %v523
    %525 = vdwg.mxu0
    %v526 = vsel %vm500, %v524, -inf
    %527 = vmax.xlane.f32.xlu0 %v526
    %v528 = vpop.xlane.xlu0 %527
    %v529 = vsub.f32 %v524, %v528
    %v530 = vmul.f32 %v529, 1.442695
    %v531 = vpow.pop %v530
    %v532 = vsel %vm500, %v531, 0.0
    %533 = vadd.xlane.f32.xlu0 %v532
    %v534 = vpop.xlane.xlu0 %533
    %v535 = vrcp.pop %v534
    %v536 = vmul.f32 %v531, %v535
    %537 = vrot.lane.b32.xlu0 %v486, 64
    %v538 = vpop.permute.xlu0 %537
    %v541 = vsel %vm500, %v536, 0
    %543 = vmatpush.msra.mxu0 0.0
    %544 = vmatpush.msra.mxu0 0.0
    %545 = vmatpush.msra.mxu0 0.0
    %546 = vmatpush.msra.mxu0 0.0
    %547 = vmatpush.msra.mxu0 0.0
    %548 = vmatpush.msra.mxu0 0.0
    %549 = vmatpush.msra.mxu0 0.0
    %550 = vmatpush.msra.mxu0 0.0
    %551 = vmatpush.msra.mxu0 0.0
    %552 = vmatpush.msra.mxu0 0.0
    %553 = vmatpush.msra.mxu0 0.0
    %554 = vmatpush.msra.mxu0 0.0
    %555 = vmatpush.msra.mxu0 0.0
    %556 = vmatpush.msra.mxu0 0.0
    %557 = vmatpush.msra.mxu0 0.0
    %558 = vmatpush.msra.mxu0 %v538
    %559 = vmatmul.f32.gmra.mxu0 %v541
    %v560 = vpop.f32.mrf.mxu0
    %v561 = vadd.f32 0.0, %v560
    %562 = vdwg.mxu0
    %563 = vrot.lane.b32.xlu0 %v496, 120
    %v564 = vpop.permute.xlu0 %563
    %565 = vrot.lane.b32.xlu0 %v486, 88
    %v566 = vpop.permute.xlu0 %565
    %v567 = vsel %vm500, %v564, 0
    %v569 = vsel %vm500, %v566, 0
    %571 = vmatpush.xpose.msra.mxu0 0.0
    %572 = vmatpush.xpose.msra.mxu0 0.0
    %573 = vmatpush.xpose.msra.mxu0 0.0
    %574 = vmatpush.xpose.msra.mxu0 0.0
    %575 = vmatpush.xpose.msra.mxu0 0.0
    %576 = vmatpush.xpose.msra.mxu0 0.0
    %577 = vmatpush.xpose.msra.mxu0 0.0
    %578 = vmatpush.xpose.msra.mxu0 0.0
    %579 = vmatpush.xpose.msra.mxu0 0.0
    %580 = vmatpush.xpose.msra.mxu0 0.0
    %581 = vmatpush.xpose.msra.mxu0 0.0
    %582 = vmatpush.xpose.msra.mxu0 0.0
    %583 = vmatpush.xpose.msra.mxu0 0.0
    %584 = vmatpush.xpose.msra.mxu0 0.0
    %585 = vmatpush.xpose.msra.mxu0 0.0
    %586 = vmatpush.xpose.msra.mxu0 %v569
    %587 = vmatmul.f32.gmra.mxu0 %v567
    %v588 = vpop.f32.mrf.mxu0
    %v589 = vadd.f32 0.0, %v588
    %590 = vdwg.mxu0
    %v591 = vsel %vm500, %v589, -inf
    %592 = vmax.xlane.f32.xlu0 %v591
    %v593 = vpop.xlane.xlu0 %592
    %v594 = vsub.f32 %v589, %v593
    %v595 = vmul.f32 %v594, 1.442695
    %v596 = vpow.pop %v595
    %v597 = vsel %vm500, %v596, 0.0
    %598 = vadd.xlane.f32.xlu0 %v597
    %v599 = vpop.xlane.xlu0 %598
    %v600 = vrcp.pop %v599
    %v601 = vmul.f32 %v596, %v600
    %602 = vrot.lane.b32.xlu0 %v486, 56
    %v603 = vpop.permute.xlu0 %602
    %v606 = vsel %vm500, %v601, 0
    %608 = vmatpush.msra.mxu0 0.0
    %609 = vmatpush.msra.mxu0 0.0
    %610 = vmatpush.msra.mxu0 0.0
    %611 = vmatpush.msra.mxu0 0.0
    %612 = vmatpush.msra.mxu0 0.0
    %613 = vmatpush.msra.mxu0 0.0
    %614 = vmatpush.msra.mxu0 0.0
    %615 = vmatpush.msra.mxu0 0.0
    %616 = vmatpush.msra.mxu0 0.0
    %617 = vmatpush.msra.mxu0 0.0
    %618 = vmatpush.msra.mxu0 0.0
    %619 = vmatpush.msra.mxu0 0.0
    %620 = vmatpush.msra.mxu0 0.0
    %621 = vmatpush.msra.mxu0 0.0
    %622 = vmatpush.msra.mxu0 0.0
    %623 = vmatpush.msra.mxu0 %v603
    %624 = vmatmul.f32.gmra.mxu0 %v606
    %v625 = vpop.f32.mrf.mxu0
    %v626 = vadd.f32 0.0, %v625
    %627 = vdwg.mxu0
    %628 = vrot.lane.b32.xlu0 %v496, 112
    %v629 = vpop.permute.xlu0 %628
    %630 = vrot.lane.b32.xlu0 %v486, 80
    %v631 = vpop.permute.xlu0 %630
    %v632 = vsel %vm500, %v629, 0
    %v634 = vsel %vm500, %v631, 0
    %636 = vmatpush.xpose.msra.mxu0 0.0
    %637 = vmatpush.xpose.msra.mxu0 0.0
    %638 = vmatpush.xpose.msra.mxu0 0.0
    %639 = vmatpush.xpose.msra.mxu0 0.0
    %640 = vmatpush.xpose.msra.mxu0 0.0
    %641 = vmatpush.xpose.msra.mxu0 0.0
    %642 = vmatpush.xpose.msra.mxu0 0.0
    %643 = vmatpush.xpose.msra.mxu0 0.0
    %644 = vmatpush.xpose.msra.mxu0 0.0
    %645 = vmatpush.xpose.msra.mxu0 0.0
    %646 = vmatpush.xpose.msra.mxu0 0.0
    %647 = vmatpush.xpose.msra.mxu0 0.0
    %648 = vmatpush.xpose.msra.mxu0 0.0
    %649 = vmatpush.xpose.msra.mxu0 0.0
    %650 = vmatpush.xpose.msra.mxu0 0.0
    %651 = vmatpush.xpose.msra.mxu0 %v634
    %652 = vmatmul.f32.gmra.mxu0 %v632
    %v653 = vpop.f32.mrf.mxu0
    %v654 = vadd.f32 0.0, %v653
    %655 = vdwg.mxu0
    %v656 = vsel %vm500, %v654, -inf
    %657 = vmax.xlane.f32.xlu0 %v656
    %v658 = vpop.xlane.xlu0 %657
    %v659 = vsub.f32 %v654, %v658
    %v660 = vmul.f32 %v659, 1.442695
    %v661 = vpow.pop %v660
    %v662 = vsel %vm500, %v661, 0.0
    %663 = vadd.xlane.f32.xlu0 %v662
    %v664 = vpop.xlane.xlu0 %663
    %v665 = vrcp.pop %v664
    %v666 = vmul.f32 %v661, %v665
    %667 = vrot.lane.b32.xlu0 %v486, 48
    %v668 = vpop.permute.xlu0 %667
    %v671 = vsel %vm500, %v666, 0
    %673 = vmatpush.msra.mxu0 0.0
    %674 = vmatpush.msra.mxu0 0.0
    %675 = vmatpush.msra.mxu0 0.0
    %676 = vmatpush.msra.mxu0 0.0
    %677 = vmatpush.msra.mxu0 0.0
    %678 = vmatpush.msra.mxu0 0.0
    %679 = vmatpush.msra.mxu0 0.0
    %680 = vmatpush.msra.mxu0 0.0
    %681 = vmatpush.msra.mxu0 0.0
    %682 = vmatpush.msra.mxu0 0.0
    %683 = vmatpush.msra.mxu0 0.0
    %684 = vmatpush.msra.mxu0 0.0
    %685 = vmatpush.msra.mxu0 0.0
    %686 = vmatpush.msra.mxu0 0.0
    %687 = vmatpush.msra.mxu0 0.0
    %688 = vmatpush.msra.mxu0 %v668
    %689 = vmatmul.f32.gmra.mxu0 %v671
    %v690 = vpop.f32.mrf.mxu0
    %v691 = vadd.f32 0.0, %v690
    %692 = vdwg.mxu0
    %693 = vrot.lane.b32.xlu0 %v496, 104
    %v694 = vpop.permute.xlu0 %693
    %695 = vrot.lane.b32.xlu0 %v486, 72
    %v696 = vpop.permute.xlu0 %695
    %v697 = vsel %vm500, %v694, 0
    %v699 = vsel %vm500, %v696, 0
    %701 = vmatpush.xpose.msra.mxu0 0.0
    %702 = vmatpush.xpose.msra.mxu0 0.0
    %703 = vmatpush.xpose.msra.mxu0 0.0
    %704 = vmatpush.xpose.msra.mxu0 0.0
    %705 = vmatpush.xpose.msra.mxu0 0.0
    %706 = vmatpush.xpose.msra.mxu0 0.0
    %707 = vmatpush.xpose.msra.mxu0 0.0
    %708 = vmatpush.xpose.msra.mxu0 0.0
    %709 = vmatpush.xpose.msra.mxu0 0.0
    %710 = vmatpush.xpose.msra.mxu0 0.0
    %711 = vmatpush.xpose.msra.mxu0 0.0
    %712 = vmatpush.xpose.msra.mxu0 0.0
    %713 = vmatpush.xpose.msra.mxu0 0.0
    %714 = vmatpush.xpose.msra.mxu0 0.0
    %715 = vmatpush.xpose.msra.mxu0 0.0
    %716 = vmatpush.xpose.msra.mxu0 %v699
    %717 = vmatmul.f32.gmra.mxu0 %v697
    %v718 = vpop.f32.mrf.mxu0
    %v719 = vadd.f32 0.0, %v718
    %720 = vdwg.mxu0
    %v721 = vsel %vm500, %v719, -inf
    %722 = vmax.xlane.f32.xlu0 %v721
    %v723 = vpop.xlane.xlu0 %722
    %v724 = vsub.f32 %v719, %v723
    %v725 = vmul.f32 %v724, 1.442695
    %v726 = vpow.pop %v725
    %v727 = vsel %vm500, %v726, 0.0
    %728 = vadd.xlane.f32.xlu0 %v727
    %v729 = vpop.xlane.xlu0 %728
    %v730 = vrcp.pop %v729
    %v731 = vmul.f32 %v726, %v730
    %732 = vrot.lane.b32.xlu0 %v486, 40
    %v733 = vpop.permute.xlu0 %732
    %v736 = vsel %vm500, %v731, 0
    %738 = vmatpush.msra.mxu0 0.0
    %739 = vmatpush.msra.mxu0 0.0
    %740 = vmatpush.msra.mxu0 0.0
    %741 = vmatpush.msra.mxu0 0.0
    %742 = vmatpush.msra.mxu0 0.0
    %743 = vmatpush.msra.mxu0 0.0
    %744 = vmatpush.msra.mxu0 0.0
    %745 = vmatpush.msra.mxu0 0.0
    %746 = vmatpush.msra.mxu0 0.0
    %747 = vmatpush.msra.mxu0 0.0
    %748 = vmatpush.msra.mxu0 0.0
    %749 = vmatpush.msra.mxu0 0.0
    %750 = vmatpush.msra.mxu0 0.0
    %751 = vmatpush.msra.mxu0 0.0
    %752 = vmatpush.msra.mxu0 0.0
    %753 = vmatpush.msra.mxu0 %v733
    %754 = vmatmul.f32.gmra.mxu0 %v736
    %v755 = vpop.f32.mrf.mxu0
    %v756 = vadd.f32 0.0, %v755
    %757 = vdwg.mxu0
    %759 = vrot.lane.b32.xlu0 %v626, 8
    %v760 = vpop.permute.xlu0 %759
    %763 = vrot.lane.b32.xlu0 %v691, 16
    %v764 = vpop.permute.xlu0 %763
    %767 = vrot.lane.b32.xlu0 %v756, 24
    %v768 = vpop.permute.xlu0 %767
    %v770 = vsel %vm500, %v561, %v760
    %vm771 = vcmask 130048
    %v772 = vsel %vm771, %v770, %v764
    %vm773 = vcmask 195584
    %v774 = vsel %vm773, %v772, %v768
    %v775 = vmul.f32 %v489, 0.35355338
    %777 = vrot.lane.b32.xlu0 %v489, 96
    %v778 = vpop.permute.xlu0 %777
    %v780 = vsel %vm500, %v775, 0
    %v782 = vsel %vm500, %v778, 0
    %784 = vmatpush.xpose.msra.mxu0 0.0
    %785 = vmatpush.xpose.msra.mxu0 0.0
    %786 = vmatpush.xpose.msra.mxu0 0.0
    %787 = vmatpush.xpose.msra.mxu0 0.0
    %788 = vmatpush.xpose.msra.mxu0 0.0
    %789 = vmatpush.xpose.msra.mxu0 0.0
    %790 = vmatpush.xpose.msra.mxu0 0.0
    %791 = vmatpush.xpose.msra.mxu0 0.0
    %792 = vmatpush.xpose.msra.mxu0 0.0
    %793 = vmatpush.xpose.msra.mxu0 0.0
    %794 = vmatpush.xpose.msra.mxu0 0.0
    %795 = vmatpush.xpose.msra.mxu0 0.0
    %796 = vmatpush.xpose.msra.mxu0 0.0
    %797 = vmatpush.xpose.msra.mxu0 0.0
    %798 = vmatpush.xpose.msra.mxu0 0.0
    %799 = vmatpush.xpose.msra.mxu0 %v782
    %800 = vmatmul.f32.gmra.mxu0 %v780
    %v801 = vpop.f32.mrf.mxu0
    %v802 = vadd.f32 0.0, %v801
    %803 = vdwg.mxu0
    %v804 = vsel %vm500, %v802, -inf
    %805 = vmax.xlane.f32.xlu0 %v804
    %v806 = vpop.xlane.xlu0 %805
    %v807 = vsub.f32 %v802, %v806
    %v808 = vmul.f32 %v807, 1.442695
    %v809 = vpow.pop %v808
    %v810 = vsel %vm500, %v809, 0.0
    %811 = vadd.xlane.f32.xlu0 %v810
    %v812 = vpop.xlane.xlu0 %811
    %v813 = vrcp.pop %v812
    %v814 = vmul.f32 %v809, %v813
    %815 = vrot.lane.b32.xlu0 %v489, 64
    %v816 = vpop.permute.xlu0 %815
    %v819 = vsel %vm500, %v814, 0
    %821 = vmatpush.msra.mxu0 0.0
    %822 = vmatpush.msra.mxu0 0.0
    %823 = vmatpush.msra.mxu0 0.0
    %824 = vmatpush.msra.mxu0 0.0
    %825 = vmatpush.msra.mxu0 0.0
    %826 = vmatpush.msra.mxu0 0.0
    %827 = vmatpush.msra.mxu0 0.0
    %828 = vmatpush.msra.mxu0 0.0
    %829 = vmatpush.msra.mxu0 0.0
    %830 = vmatpush.msra.mxu0 0.0
    %831 = vmatpush.msra.mxu0 0.0
    %832 = vmatpush.msra.mxu0 0.0
    %833 = vmatpush.msra.mxu0 0.0
    %834 = vmatpush.msra.mxu0 0.0
    %835 = vmatpush.msra.mxu0 0.0
    %836 = vmatpush.msra.mxu0 %v816
    %837 = vmatmul.f32.gmra.mxu0 %v819
    %v838 = vpop.f32.mrf.mxu0
    %v839 = vadd.f32 0.0, %v838
    %840 = vdwg.mxu0
    %841 = vrot.lane.b32.xlu0 %v775, 120
    %v842 = vpop.permute.xlu0 %841
    %843 = vrot.lane.b32.xlu0 %v489, 88
    %v844 = vpop.permute.xlu0 %843
    %v845 = vsel %vm500, %v842, 0
    %v847 = vsel %vm500, %v844, 0
    %849 = vmatpush.xpose.msra.mxu0 0.0
    %850 = vmatpush.xpose.msra.mxu0 0.0
    %851 = vmatpush.xpose.msra.mxu0 0.0
    %852 = vmatpush.xpose.msra.mxu0 0.0
    %853 = vmatpush.xpose.msra.mxu0 0.0
    %854 = vmatpush.xpose.msra.mxu0 0.0
    %855 = vmatpush.xpose.msra.mxu0 0.0
    %856 = vmatpush.xpose.msra.mxu0 0.0
    %857 = vmatpush.xpose.msra.mxu0 0.0
    %858 = vmatpush.xpose.msra.mxu0 0.0
    %859 = vmatpush.xpose.msra.mxu0 0.0
    %860 = vmatpush.xpose.msra.mxu0 0.0
    %861 = vmatpush.xpose.msra.mxu0 0.0
    %862 = vmatpush.xpose.msra.mxu0 0.0
    %863 = vmatpush.xpose.msra.mxu0 0.0
    %864 = vmatpush.xpose.msra.mxu0 %v847
    %865 = vmatmul.f32.gmra.mxu0 %v845
    %v866 = vpop.f32.mrf.mxu0
    %v867 = vadd.f32 0.0, %v866
    %868 = vdwg.mxu0
    %v869 = vsel %vm500, %v867, -inf
    %870 = vmax.xlane.f32.xlu0 %v869
    %v871 = vpop.xlane.xlu0 %870
    %v872 = vsub.f32 %v867, %v871
    %v873 = vmul.f32 %v872, 1.442695
    %v874 = vpow.pop %v873
    %v875 = vsel %vm500, %v874, 0.0
    %876 = vadd.xlane.f32.xlu0 %v875
    %v877 = vpop.xlane.xlu0 %876
    %v878 = vrcp.pop %v877
    %v879 = vmul.f32 %v874, %v878
    %880 = vrot.lane.b32.xlu0 %v489, 56
    %v881 = vpop.permute.xlu0 %880
    %v884 = vsel %vm500, %v879, 0
    %886 = vmatpush.msra.mxu0 0.0
    %887 = vmatpush.msra.mxu0 0.0
    %888 = vmatpush.msra.mxu0 0.0
    %889 = vmatpush.msra.mxu0 0.0
    %890 = vmatpush.msra.mxu0 0.0
    %891 = vmatpush.msra.mxu0 0.0
    %892 = vmatpush.msra.mxu0 0.0
    %893 = vmatpush.msra.mxu0 0.0
    %894 = vmatpush.msra.mxu0 0.0
    %895 = vmatpush.msra.mxu0 0.0
    %896 = vmatpush.msra.mxu0 0.0
    %897 = vmatpush.msra.mxu0 0.0
    %898 = vmatpush.msra.mxu0 0.0
    %899 = vmatpush.msra.mxu0 0.0
    %900 = vmatpush.msra.mxu0 0.0
    %901 = vmatpush.msra.mxu0 %v881
    %902 = vmatmul.f32.gmra.mxu0 %v884
    %v903 = vpop.f32.mrf.mxu0
    %v904 = vadd.f32 0.0, %v903
    %905 = vdwg.mxu0
    %906 = vrot.lane.b32.xlu0 %v775, 112
    %v907 = vpop.permute.xlu0 %906
    %908 = vrot.lane.b32.xlu0 %v489, 80
    %v909 = vpop.permute.xlu0 %908
    %v910 = vsel %vm500, %v907, 0
    %v912 = vsel %vm500, %v909, 0
    %914 = vmatpush.xpose.msra.mxu0 0.0
    %915 = vmatpush.xpose.msra.mxu0 0.0
    %916 = vmatpush.xpose.msra.mxu0 0.0
    %917 = vmatpush.xpose.msra.mxu0 0.0
    %918 = vmatpush.xpose.msra.mxu0 0.0
    %919 = vmatpush.xpose.msra.mxu0 0.0
    %920 = vmatpush.xpose.msra.mxu0 0.0
    %921 = vmatpush.xpose.msra.mxu0 0.0
    %922 = vmatpush.xpose.msra.mxu0 0.0
    %923 = vmatpush.xpose.msra.mxu0 0.0
    %924 = vmatpush.xpose.msra.mxu0 0.0
    %925 = vmatpush.xpose.msra.mxu0 0.0
    %926 = vmatpush.xpose.msra.mxu0 0.0
    %927 = vmatpush.xpose.msra.mxu0 0.0
    %928 = vmatpush.xpose.msra.mxu0 0.0
    %929 = vmatpush.xpose.msra.mxu0 %v912
    %930 = vmatmul.f32.gmra.mxu0 %v910
    %v931 = vpop.f32.mrf.mxu0
    %v932 = vadd.f32 0.0, %v931
    %933 = vdwg.mxu0
    %v934 = vsel %vm500, %v932, -inf
    %935 = vmax.xlane.f32.xlu0 %v934
    %v936 = vpop.xlane.xlu0 %935
    %v937 = vsub.f32 %v932, %v936
    %v938 = vmul.f32 %v937, 1.442695
    %v939 = vpow.pop %v938
    %v940 = vsel %vm500, %v939, 0.0
    %941 = vadd.xlane.f32.xlu0 %v940
    %v942 = vpop.xlane.xlu0 %941
    %v943 = vrcp.pop %v942
    %v944 = vmul.f32 %v939, %v943
    %945 = vrot.lane.b32.xlu0 %v489, 48
    %v946 = vpop.permute.xlu0 %945
    %v949 = vsel %vm500, %v944, 0
    %951 = vmatpush.msra.mxu0 0.0
    %952 = vmatpush.msra.mxu0 0.0
    %953 = vmatpush.msra.mxu0 0.0
    %954 = vmatpush.msra.mxu0 0.0
    %955 = vmatpush.msra.mxu0 0.0
    %956 = vmatpush.msra.mxu0 0.0
    %957 = vmatpush.msra.mxu0 0.0
    %958 = vmatpush.msra.mxu0 0.0
    %959 = vmatpush.msra.mxu0 0.0
    %960 = vmatpush.msra.mxu0 0.0
    %961 = vmatpush.msra.mxu0 0.0
    %962 = vmatpush.msra.mxu0 0.0
    %963 = vmatpush.msra.mxu0 0.0
    %964 = vmatpush.msra.mxu0 0.0
    %965 = vmatpush.msra.mxu0 0.0
    %966 = vmatpush.msra.mxu0 %v946
    %967 = vmatmul.f32.gmra.mxu0 %v949
    %v968 = vpop.f32.mrf.mxu0
    %v969 = vadd.f32 0.0, %v968
    %970 = vdwg.mxu0
    %971 = vrot.lane.b32.xlu0 %v775, 104
    %v972 = vpop.permute.xlu0 %971
    %973 = vrot.lane.b32.xlu0 %v489, 72
    %v974 = vpop.permute.xlu0 %973
    %v975 = vsel %vm500, %v972, 0
    %v977 = vsel %vm500, %v974, 0
    %979 = vmatpush.xpose.msra.mxu0 0.0
    %980 = vmatpush.xpose.msra.mxu0 0.0
    %981 = vmatpush.xpose.msra.mxu0 0.0
    %982 = vmatpush.xpose.msra.mxu0 0.0
    %983 = vmatpush.xpose.msra.mxu0 0.0
    %984 = vmatpush.xpose.msra.mxu0 0.0
    %985 = vmatpush.xpose.msra.mxu0 0.0
    %986 = vmatpush.xpose.msra.mxu0 0.0
    %987 = vmatpush.xpose.msra.mxu0 0.0
    %988 = vmatpush.xpose.msra.mxu0 0.0
    %989 = vmatpush.xpose.msra.mxu0 0.0
    %990 = vmatpush.xpose.msra.mxu0 0.0
    %991 = vmatpush.xpose.msra.mxu0 0.0
    %992 = vmatpush.xpose.msra.mxu0 0.0
    %993 = vmatpush.xpose.msra.mxu0 0.0
    %994 = vmatpush.xpose.msra.mxu0 %v977
    %995 = vmatmul.f32.gmra.mxu0 %v975
    %v996 = vpop.f32.mrf.mxu0
    %v997 = vadd.f32 0.0, %v996
    %998 = vdwg.mxu0
    %v999 = vsel %vm500, %v997, -inf
    %1000 = vmax.xlane.f32.xlu0 %v999
    %v1001 = vpop.xlane.xlu0 %1000
    %v1002 = vsub.f32 %v997, %v1001
    %v1003 = vmul.f32 %v1002, 1.442695
    %v1004 = vpow.pop %v1003
    %v1005 = vsel %vm500, %v1004, 0.0
    %1006 = vadd.xlane.f32.xlu0 %v1005
    %v1007 = vpop.xlane.xlu0 %1006
    %v1008 = vrcp.pop %v1007
    %v1009 = vmul.f32 %v1004, %v1008
    %1010 = vrot.lane.b32.xlu0 %v489, 40
    %v1011 = vpop.permute.xlu0 %1010
    %v1014 = vsel %vm500, %v1009, 0
    %1016 = vmatpush.msra.mxu0 0.0
    %1017 = vmatpush.msra.mxu0 0.0
    %1018 = vmatpush.msra.mxu0 0.0
    %1019 = vmatpush.msra.mxu0 0.0
    %1020 = vmatpush.msra.mxu0 0.0
    %1021 = vmatpush.msra.mxu0 0.0
    %1022 = vmatpush.msra.mxu0 0.0
    %1023 = vmatpush.msra.mxu0 0.0
    %1024 = vmatpush.msra.mxu0 0.0
    %1025 = vmatpush.msra.mxu0 0.0
    %1026 = vmatpush.msra.mxu0 0.0
    %1027 = vmatpush.msra.mxu0 0.0
    %1028 = vmatpush.msra.mxu0 0.0
    %1029 = vmatpush.msra.mxu0 0.0
    %1030 = vmatpush.msra.mxu0 0.0
    %1031 = vmatpush.msra.mxu0 %v1011
    %1032 = vmatmul.f32.gmra.mxu0 %v1014
    %v1033 = vpop.f32.mrf.mxu0
    %v1034 = vadd.f32 0.0, %v1033
    %1035 = vdwg.mxu0
    %1037 = vrot.lane.b32.xlu0 %v904, 8
    %v1038 = vpop.permute.xlu0 %1037
    %1041 = vrot.lane.b32.xlu0 %v969, 16
    %v1042 = vpop.permute.xlu0 %1041
    %1045 = vrot.lane.b32.xlu0 %v1034, 24
    %v1046 = vpop.permute.xlu0 %1045
    %v1048 = vsel %vm500, %v839, %v1038
    %v1049 = vsel %vm771, %v1048, %v1042
    %v1050 = vsel %vm773, %v1049, %v1046
    %v1052 = vperm.slane %v495, 0
    %v1055 = vsel %vm425, %v774, 0
    %v1058 = vsel %vm425, %v1050, 0
    %v1061 = vsel %vm425, %v491, 0
    %v1064 = vsel %vm425, %v492, 0
    %v1067 = vsel %vm425, %v493, 0
    %v1070 = vsel %vm425, %v494, 0
    %1072 = vmatpush.xpose.msra.mxu0 0.0
    %1073 = vmatpush.xpose.msra.mxu0 0.0
    %1074 = vmatpush.xpose.msra.mxu0 0.0
    %1075 = vmatpush.xpose.msra.mxu0 0.0
    %1076 = vmatpush.xpose.msra.mxu0 0.0
    %1077 = vmatpush.xpose.msra.mxu0 0.0
    %1078 = vmatpush.xpose.msra.mxu0 0.0
    %1079 = vmatpush.xpose.msra.mxu0 0.0
    %1080 = vmatpush.xpose.msra.mxu0 0.0
    %1081 = vmatpush.xpose.msra.mxu0 0.0
    %1082 = vmatpush.xpose.msra.mxu0 0.0
    %1083 = vmatpush.xpose.msra.mxu0 0.0
    %1084 = vmatpush.xpose.msra.mxu0 %v1070
    %1085 = vmatpush.xpose.msra.mxu0 %v1067
    %1086 = vmatpush.xpose.msra.mxu0 %v1064
    %1087 = vmatpush.xpose.msra.mxu0 %v1061
    %1088 = vmatmul.f32.gmra.mxu0 %v1055
    %v1089 = vpop.f32.mrf.mxu0
    %v1090 = vadd.f32 %v1052, %v1089
    %1091 = vmatmul.f32.gmra.mxu0 %v1058
    %v1092 = vpop.f32.mrf.mxu0
    %v1093 = vadd.f32 %v1052, %v1092
    %1094 = vdwg.mxu0
    %v1095 = vadd.f32 %v407, %v1090
    %v1096 = vadd.f32 %v408, %v1093
    %v1097 = vld [vmem:[%s39] sm:$0x1]
    %v1098 = vld [vmem:[%s41] sm:$0x1]
    %v1099 = vsel %vm425, %v1095, 0.0
    %1100 = vadd.xlane.f32.xlu0 %v1099
    %v1101 = vpop.xlane.xlu0 %1100
    %v1102 = vsel %vm425, %v1096, 0.0
    %1103 = vadd.xlane.f32.xlu0 %v1102
    %v1104 = vpop.xlane.xlu0 %1103
    %v1105 = vrcp.pop 32.0
    %v1106 = vmul.f32 32.0, %v1105
    %v1107 = vsub.f32 1.0, %v1106
    %v1108 = vmul.f32 %v1105, %v1107
    %v1109 = vadd.f32 %v1105, %v1108
    %vm1110 = vweird.f32 %v1105
    %v1111 = vsel %vm1110, %v1105, %v1109
    %v1112 = vmul.f32 %v1101, %v1111
    %v1113 = vmul.f32 %v1104, %v1111
    %v1114 = vsub.f32 %v1095, %v1112
    %v1115 = vsub.f32 %v1096, %v1113
    %v1116 = vmul.f32 %v1114, %v1114
    %v1117 = vmul.f32 %v1115, %v1115
    %v1118 = vsel %vm425, %v1116, 0.0
    %1119 = vadd.xlane.f32.xlu0 %v1118
    %v1120 = vpop.xlane.xlu0 %1119
    %v1121 = vsel %vm425, %v1117, 0.0
    %1122 = vadd.xlane.f32.xlu0 %v1121
    %v1123 = vpop.xlane.xlu0 %1122
    %v1124 = vmul.f32 %v1120, %v1111
    %v1125 = vmul.f32 %v1123, %v1111
    %v1126 = vadd.f32 %v1124, 1e-05
    %v1127 = vadd.f32 %v1125, 1e-05
    %v1128 = vrsqrt.pop %v1126
    %v1129 = vmul.f32 %v1128, %v1126
    %v1130 = vmul.f32 %v1129, %v1128
    %v1131 = vmul.f32 0.5, %v1130
    %v1132 = vsub.f32 1.5, %v1131
    %v1133 = vmul.f32 %v1128, %v1132
    %vm1134 = vweird.f32 %v1126
    %vm1135 = vweird.f32 %v1128
    %vm1136 = vmor %vm1134, %vm1135
    %v1137 = vsel %vm1136, %v1128, %v1133
    %v1138 = vrsqrt.pop %v1127
    %v1139 = vmul.f32 %v1138, %v1127
    %v1140 = vmul.f32 %v1139, %v1138
    %v1141 = vmul.f32 0.5, %v1140
    %v1142 = vsub.f32 1.5, %v1141
    %v1143 = vmul.f32 %v1138, %v1142
    %vm1144 = vweird.f32 %v1127
    %vm1145 = vweird.f32 %v1138
    %vm1146 = vmor %vm1144, %vm1145
    %v1147 = vsel %vm1146, %v1138, %v1143
    %v1148 = vmul.f32 %v1114, %v1137
    %v1149 = vmul.f32 %v1115, %v1147
    %v1151 = vperm.slane %v1097, 0
    %v1153 = vmul.f32 %v1148, %v1151
    %v1154 = vmul.f32 %v1149, %v1151
    %v1156 = vperm.slane %v1098, 0
    %v1158 = vadd.f32 %v1153, %v1156
    %v1159 = vadd.f32 %v1154, %v1156
    %v1160 = vld [vmem:[#allocation7] sm:$0xff]
    %v1161 = vld [vmem:[#allocation7 + $0x8] sm:$0xff]
    %v1162 = vld [vmem:[#allocation7 + $0x10] sm:$0xff]
    %v1163 = vld [vmem:[#allocation7 + $0x18] sm:$0xff]
    %v1164 = vld [vmem:[#allocation7 + $0x20] sm:$0xff]
    %v1165 = vld [vmem:[#allocation7 + $0x28] sm:$0xff]
    %v1166 = vld [vmem:[#allocation7 + $0x30] sm:$0xff]
    %v1167 = vld [vmem:[#allocation7 + $0x38] sm:$0xff]
    %v1168 = vld [vmem:[%s33] sm:$0x1]
    %v1170 = vperm.slane %v1168, 0
    %v1173 = vsel %vm425, %v1158, 0
    %v1176 = vsel %vm425, %v1159, 0
    %v1179 = vsel %vm425, %v1160, 0
    %v1182 = vsel %vm425, %v1161, 0
    %v1185 = vsel %vm425, %v1162, 0
    %v1188 = vsel %vm425, %v1163, 0
    %v1191 = vsel %vm425, %v1164, 0
    %v1194 = vsel %vm425, %v1165, 0
    %v1197 = vsel %vm425, %v1166, 0
    %v1200 = vsel %vm425, %v1167, 0
    %1202 = vmatpush.xpose.msra.mxu0 0.0
    %1203 = vmatpush.xpose.msra.mxu0 0.0
    %1204 = vmatpush.xpose.msra.mxu0 0.0
    %1205 = vmatpush.xpose.msra.mxu0 0.0
    %1206 = vmatpush.xpose.msra.mxu0 0.0
    %1207 = vmatpush.xpose.msra.mxu0 0.0
    %1208 = vmatpush.xpose.msra.mxu0 0.0
    %1209 = vmatpush.xpose.msra.mxu0 0.0
    %1210 = vmatpush.xpose.msra.mxu0 %v1200
    %1211 = vmatpush.xpose.msra.mxu0 %v1197
    %1212 = vmatpush.xpose.msra.mxu0 %v1194
    %1213 = vmatpush.xpose.msra.mxu0 %v1191
    %1214 = vmatpush.xpose.msra.mxu0 %v1188
    %1215 = vmatpush.xpose.msra.mxu0 %v1185
    %1216 = vmatpush.xpose.msra.mxu0 %v1182
    %1217 = vmatpush.xpose.msra.mxu0 %v1179
    %1218 = vmatmul.f32.gmra.mxu0 %v1173
    %v1219 = vpop.f32.mrf.mxu0
    %v1220 = vadd.f32 %v1170, %v1219
    %1221 = vmatmul.f32.gmra.mxu0 %v1176
    %v1222 = vpop.f32.mrf.mxu0
    %v1223 = vadd.f32 %v1170, %v1222
    %1224 = vdwg.mxu0
    %v1225 = vmax.f32 %v1220, 0.0
    %v1226 = vmax.f32 %v1223, 0.0
    %v1227 = vld [vmem:[#allocation8] sm:$0xff]
    %v1228 = vld [vmem:[#allocation8 + $0x8] sm:$0xff]
    %v1229 = vld [vmem:[#allocation8 + $0x10] sm:$0xff]
    %v1230 = vld [vmem:[#allocation8 + $0x18] sm:$0xff]
    %v1231 = vld [vmem:[%s37] sm:$0x1]
    %v1233 = vperm.slane %v1231, 0
    %vm1235 = vcmask 523264
    %v1237 = vsel %vm1235, %v1225, 0
    %v1240 = vsel %vm1235, %v1226, 0
    %v1243 = vsel %vm1235, %v1227, 0
    %v1246 = vsel %vm1235, %v1228, 0
    %v1249 = vsel %vm1235, %v1229, 0
    %v1252 = vsel %vm1235, %v1230, 0
    %1254 = vmatpush.xpose.msra.mxu0 0.0
    %1255 = vmatpush.xpose.msra.mxu0 0.0
    %1256 = vmatpush.xpose.msra.mxu0 0.0
    %1257 = vmatpush.xpose.msra.mxu0 0.0
    %1258 = vmatpush.xpose.msra.mxu0 0.0
    %1259 = vmatpush.xpose.msra.mxu0 0.0
    %1260 = vmatpush.xpose.msra.mxu0 0.0
    %1261 = vmatpush.xpose.msra.mxu0 0.0
    %1262 = vmatpush.xpose.msra.mxu0 0.0
    %1263 = vmatpush.xpose.msra.mxu0 0.0
    %1264 = vmatpush.xpose.msra.mxu0 0.0
    %1265 = vmatpush.xpose.msra.mxu0 0.0
    %1266 = vmatpush.xpose.msra.mxu0 %v1252
    %1267 = vmatpush.xpose.msra.mxu0 %v1249
    %1268 = vmatpush.xpose.msra.mxu0 %v1246
    %1269 = vmatpush.xpose.msra.mxu0 %v1243
    %1270 = vmatmul.f32.gmra.mxu0 %v1237
    %v1271 = vpop.f32.mrf.mxu0
    %v1272 = vadd.f32 %v1233, %v1271
    %1273 = vmatmul.f32.gmra.mxu0 %v1240
    %v1274 = vpop.f32.mrf.mxu0
    %v1275 = vadd.f32 %v1233, %v1274
    %1276 = vdwg.mxu0
    %v1277 = vadd.f32 %v1158, %v1272
    %v1278 = vadd.f32 %v1159, %v1275
    %v1279 = vld [vmem:[%s43] sm:$0x1]
    %v1280 = vld [vmem:[%s45] sm:$0x1]
    %v1281 = vsel %vm425, %v1277, 0.0
    %1282 = vadd.xlane.f32.xlu0 %v1281
    %v1283 = vpop.xlane.xlu0 %1282
    %v1284 = vsel %vm425, %v1278, 0.0
    %1285 = vadd.xlane.f32.xlu0 %v1284
    %v1286 = vpop.xlane.xlu0 %1285
    %v1287 = vmul.f32 %v1283, %v1111
    %v1288 = vmul.f32 %v1286, %v1111
    %v1289 = vsub.f32 %v1277, %v1287
    %v1290 = vsub.f32 %v1278, %v1288
    %v1291 = vmul.f32 %v1289, %v1289
    %v1292 = vmul.f32 %v1290, %v1290
    %v1293 = vsel %vm425, %v1291, 0.0
    %1294 = vadd.xlane.f32.xlu0 %v1293
    %v1295 = vpop.xlane.xlu0 %1294
    %v1296 = vsel %vm425, %v1292, 0.0
    %1297 = vadd.xlane.f32.xlu0 %v1296
    %v1298 = vpop.xlane.xlu0 %1297
    %v1299 = vmul.f32 %v1295, %v1111
    %v1300 = vmul.f32 %v1298, %v1111
    %v1301 = vadd.f32 %v1299, 1e-05
    %v1302 = vadd.f32 %v1300, 1e-05
    %v1303 = vrsqrt.pop %v1301
    %v1304 = vmul.f32 %v1303, %v1301
    %v1305 = vmul.f32 %v1304, %v1303
    %v1306 = vmul.f32 0.5, %v1305
    %v1307 = vsub.f32 1.5, %v1306
    %v1308 = vmul.f32 %v1303, %v1307
    %vm1309 = vweird.f32 %v1301
    %vm1310 = vweird.f32 %v1303
    %vm1311 = vmor %vm1309, %vm1310
    %v1312 = vsel %vm1311, %v1303, %v1308
    %v1313 = vrsqrt.pop %v1302
    %v1314 = vmul.f32 %v1313, %v1302
    %v1315 = vmul.f32 %v1314, %v1313
    %v1316 = vmul.f32 0.5, %v1315
    %v1317 = vsub.f32 1.5, %v1316
    %v1318 = vmul.f32 %v1313, %v1317
    %vm1319 = vweird.f32 %v1302
    %vm1320 = vweird.f32 %v1313
    %vm1321 = vmor %vm1319, %vm1320
    %v1322 = vsel %vm1321, %v1313, %v1318
    %v1323 = vmul.f32 %v1289, %v1312
    %v1324 = vmul.f32 %v1290, %v1322
    %v1326 = vperm.slane %v1279, 0
    %v1328 = vmul.f32 %v1323, %v1326
    %v1329 = vmul.f32 %v1324, %v1326
    %v1331 = vperm.slane %v1280, 0
    %v1333 = vadd.f32 %v1328, %v1331
    %v1334 = vadd.f32 %v1329, %v1331
    %s1335 = scalar_lea.vmem [#allocation3], 96
    %v1336 = vld [vmem:[%s1335] sm:$0xff]
    %v1337 = vld [vmem:[%s1335 + $0x8] sm:$0xff]
    %v1338 = vld [vmem:[%s1335 + $0x10] sm:$0xff]
    %v1339 = vld [vmem:[%s1335 + $0x18] sm:$0xff]
    %v1340 = vld [vmem:[%s1335 + $0x20] sm:$0xff]
    %v1341 = vld [vmem:[%s1335 + $0x28] sm:$0xff]
    %v1342 = vld [vmem:[%s1335 + $0x30] sm:$0xff]
    %v1343 = vld [vmem:[%s1335 + $0x38] sm:$0xff]
    %v1344 = vld [vmem:[%s1335 + $0x40] sm:$0xff]
    %v1345 = vld [vmem:[%s1335 + $0x48] sm:$0xff]
    %v1346 = vld [vmem:[%s1335 + $0x50] sm:$0xff]
    %v1347 = vld [vmem:[%s1335 + $0x58] sm:$0xff]
    %s1348 = scalar_lea.vmem %s25, 1
    %v1349 = vld [vmem:[%s1348] sm:$0x1]
    %v1351 = vperm.slane %v1349, 0
    %v1354 = vsel %vm425, %v1333, 0
    %v1357 = vsel %vm425, %v1334, 0
    %v1360 = vsel %vm425, %v1336, 0
    %v1363 = vsel %vm425, %v1337, 0
    %v1366 = vsel %vm425, %v1338, 0
    %v1369 = vsel %vm425, %v1339, 0
    %v1372 = vsel %vm425, %v1340, 0
    %v1375 = vsel %vm425, %v1341, 0
    %v1378 = vsel %vm425, %v1342, 0
    %v1381 = vsel %vm425, %v1343, 0
    %v1384 = vsel %vm425, %v1344, 0
    %v1387 = vsel %vm425, %v1345, 0
    %v1390 = vsel %vm425, %v1346, 0
    %v1393 = vsel %vm425, %v1347, 0
    %1395 = vmatpush.xpose.msra.mxu0 0.0
    %1396 = vmatpush.xpose.msra.mxu0 0.0
    %1397 = vmatpush.xpose.msra.mxu0 0.0
    %1398 = vmatpush.xpose.msra.mxu0 0.0
    %1399 = vmatpush.xpose.msra.mxu0 %v1393
    %1400 = vmatpush.xpose.msra.mxu0 %v1390
    %1401 = vmatpush.xpose.msra.mxu0 %v1387
    %1402 = vmatpush.xpose.msra.mxu0 %v1384
    %1403 = vmatpush.xpose.msra.mxu0 %v1381
    %1404 = vmatpush.xpose.msra.mxu0 %v1378
    %1405 = vmatpush.xpose.msra.mxu0 %v1375
    %1406 = vmatpush.xpose.msra.mxu0 %v1372
    %1407 = vmatpush.xpose.msra.mxu0 %v1369
    %1408 = vmatpush.xpose.msra.mxu0 %v1366
    %1409 = vmatpush.xpose.msra.mxu0 %v1363
    %1410 = vmatpush.xpose.msra.mxu0 %v1360
    %1411 = vmatmul.f32.gmra.mxu0 %v1354
    %v1412 = vpop.f32.mrf.mxu0
    %v1413 = vadd.f32 %v1351, %v1412
    %1414 = vmatmul.f32.gmra.mxu0 %v1357
    %v1415 = vpop.f32.mrf.mxu0
    %v1416 = vadd.f32 %v1351, %v1415
    %1417 = vdwg.mxu0
    %s1418 = scalar_lea.vmem [#allocation5], 32
    %v1419 = vld [vmem:[%s1418] sm:$0xff]
    %v1420 = vld [vmem:[%s1418 + $0x8] sm:$0xff]
    %v1421 = vld [vmem:[%s1418 + $0x10] sm:$0xff]
    %v1422 = vld [vmem:[%s1418 + $0x18] sm:$0xff]
    %s1423 = scalar_lea.vmem %s29, 1
    %v1424 = vld [vmem:[%s1423] sm:$0x1]
    %v1425 = vmul.f32 %v1413, 0.35355338
    %1427 = vrot.lane.b32.xlu0 %v1413, 96
    %v1428 = vpop.permute.xlu0 %1427
    %v1430 = vsel %vm500, %v1425, 0
    %v1432 = vsel %vm500, %v1428, 0
    %1434 = vmatpush.xpose.msra.mxu0 0.0
    %1435 = vmatpush.xpose.msra.mxu0 0.0
    %1436 = vmatpush.xpose.msra.mxu0 0.0
    %1437 = vmatpush.xpose.msra.mxu0 0.0
    %1438 = vmatpush.xpose.msra.mxu0 0.0
    %1439 = vmatpush.xpose.msra.mxu0 0.0
    %1440 = vmatpush.xpose.msra.mxu0 0.0
    %1441 = vmatpush.xpose.msra.mxu0 0.0
    %1442 = vmatpush.xpose.msra.mxu0 0.0
    %1443 = vmatpush.xpose.msra.mxu0 0.0
    %1444 = vmatpush.xpose.msra.mxu0 0.0
    %1445 = vmatpush.xpose.msra.mxu0 0.0
    %1446 = vmatpush.xpose.msra.mxu0 0.0
    %1447 = vmatpush.xpose.msra.mxu0 0.0
    %1448 = vmatpush.xpose.msra.mxu0 0.0
    %1449 = vmatpush.xpose.msra.mxu0 %v1432
    %1450 = vmatmul.f32.gmra.mxu0 %v1430
    %v1451 = vpop.f32.mrf.mxu0
    %v1452 = vadd.f32 0.0, %v1451
    %1453 = vdwg.mxu0
    %v1454 = vsel %vm500, %v1452, -inf
    %1455 = vmax.xlane.f32.xlu0 %v1454
    %v1456 = vpop.xlane.xlu0 %1455
    %v1457 = vsub.f32 %v1452, %v1456
    %v1458 = vmul.f32 %v1457, 1.442695
    %v1459 = vpow.pop %v1458
    %v1460 = vsel %vm500, %v1459, 0.0
    %1461 = vadd.xlane.f32.xlu0 %v1460
    %v1462 = vpop.xlane.xlu0 %1461
    %v1463 = vrcp.pop %v1462
    %v1464 = vmul.f32 %v1459, %v1463
    %1465 = vrot.lane.b32.xlu0 %v1413, 64
    %v1466 = vpop.permute.xlu0 %1465
    %v1469 = vsel %vm500, %v1464, 0
    %1471 = vmatpush.msra.mxu0 0.0
    %1472 = vmatpush.msra.mxu0 0.0
    %1473 = vmatpush.msra.mxu0 0.0
    %1474 = vmatpush.msra.mxu0 0.0
    %1475 = vmatpush.msra.mxu0 0.0
    %1476 = vmatpush.msra.mxu0 0.0
    %1477 = vmatpush.msra.mxu0 0.0
    %1478 = vmatpush.msra.mxu0 0.0
    %1479 = vmatpush.msra.mxu0 0.0
    %1480 = vmatpush.msra.mxu0 0.0
    %1481 = vmatpush.msra.mxu0 0.0
    %1482 = vmatpush.msra.mxu0 0.0
    %1483 = vmatpush.msra.mxu0 0.0
    %1484 = vmatpush.msra.mxu0 0.0
    %1485 = vmatpush.msra.mxu0 0.0
    %1486 = vmatpush.msra.mxu0 %v1466
    %1487 = vmatmul.f32.gmra.mxu0 %v1469
    %v1488 = vpop.f32.mrf.mxu0
    %v1489 = vadd.f32 0.0, %v1488
    %1490 = vdwg.mxu0
    %1491 = vrot.lane.b32.xlu0 %v1425, 120
    %v1492 = vpop.permute.xlu0 %1491
    %1493 = vrot.lane.b32.xlu0 %v1413, 88
    %v1494 = vpop.permute.xlu0 %1493
    %v1495 = vsel %vm500, %v1492, 0
    %v1497 = vsel %vm500, %v1494, 0
    %1499 = vmatpush.xpose.msra.mxu0 0.0
    %1500 = vmatpush.xpose.msra.mxu0 0.0
    %1501 = vmatpush.xpose.msra.mxu0 0.0
    %1502 = vmatpush.xpose.msra.mxu0 0.0
    %1503 = vmatpush.xpose.msra.mxu0 0.0
    %1504 = vmatpush.xpose.msra.mxu0 0.0
    %1505 = vmatpush.xpose.msra.mxu0 0.0
    %1506 = vmatpush.xpose.msra.mxu0 0.0
    %1507 = vmatpush.xpose.msra.mxu0 0.0
    %1508 = vmatpush.xpose.msra.mxu0 0.0
    %1509 = vmatpush.xpose.msra.mxu0 0.0
    %1510 = vmatpush.xpose.msra.mxu0 0.0
    %1511 = vmatpush.xpose.msra.mxu0 0.0
    %1512 = vmatpush.xpose.msra.mxu0 0.0
    %1513 = vmatpush.xpose.msra.mxu0 0.0
    %1514 = vmatpush.xpose.msra.mxu0 %v1497
    %1515 = vmatmul.f32.gmra.mxu0 %v1495
    %v1516 = vpop.f32.mrf.mxu0
    %v1517 = vadd.f32 0.0, %v1516
    %1518 = vdwg.mxu0
    %v1519 = vsel %vm500, %v1517, -inf
    %1520 = vmax.xlane.f32.xlu0 %v1519
    %v1521 = vpop.xlane.xlu0 %1520
    %v1522 = vsub.f32 %v1517, %v1521
    %v1523 = vmul.f32 %v1522, 1.442695
    %v1524 = vpow.pop %v1523
    %v1525 = vsel %vm500, %v1524, 0.0
    %1526 = vadd.xlane.f32.xlu0 %v1525
    %v1527 = vpop.xlane.xlu0 %1526
    %v1528 = vrcp.pop %v1527
    %v1529 = vmul.f32 %v1524, %v1528
    %1530 = vrot.lane.b32.xlu0 %v1413, 56
    %v1531 = vpop.permute.xlu0 %1530
    %v1534 = vsel %vm500, %v1529, 0
    %1536 = vmatpush.msra.mxu0 0.0
    %1537 = vmatpush.msra.mxu0 0.0
    %1538 = vmatpush.msra.mxu0 0.0
    %1539 = vmatpush.msra.mxu0 0.0
    %1540 = vmatpush.msra.mxu0 0.0
    %1541 = vmatpush.msra.mxu0 0.0
    %1542 = vmatpush.msra.mxu0 0.0
    %1543 = vmatpush.msra.mxu0 0.0
    %1544 = vmatpush.msra.mxu0 0.0
    %1545 = vmatpush.msra.mxu0 0.0
    %1546 = vmatpush.msra.mxu0 0.0
    %1547 = vmatpush.msra.mxu0 0.0
    %1548 = vmatpush.msra.mxu0 0.0
    %1549 = vmatpush.msra.mxu0 0.0
    %1550 = vmatpush.msra.mxu0 0.0
    %1551 = vmatpush.msra.mxu0 %v1531
    %1552 = vmatmul.f32.gmra.mxu0 %v1534
    %v1553 = vpop.f32.mrf.mxu0
    %v1554 = vadd.f32 0.0, %v1553
    %1555 = vdwg.mxu0
    %1556 = vrot.lane.b32.xlu0 %v1425, 112
    %v1557 = vpop.permute.xlu0 %1556
    %1558 = vrot.lane.b32.xlu0 %v1413, 80
    %v1559 = vpop.permute.xlu0 %1558
    %v1560 = vsel %vm500, %v1557, 0
    %v1562 = vsel %vm500, %v1559, 0
    %1564 = vmatpush.xpose.msra.mxu0 0.0
    %1565 = vmatpush.xpose.msra.mxu0 0.0
    %1566 = vmatpush.xpose.msra.mxu0 0.0
    %1567 = vmatpush.xpose.msra.mxu0 0.0
    %1568 = vmatpush.xpose.msra.mxu0 0.0
    %1569 = vmatpush.xpose.msra.mxu0 0.0
    %1570 = vmatpush.xpose.msra.mxu0 0.0
    %1571 = vmatpush.xpose.msra.mxu0 0.0
    %1572 = vmatpush.xpose.msra.mxu0 0.0
    %1573 = vmatpush.xpose.msra.mxu0 0.0
    %1574 = vmatpush.xpose.msra.mxu0 0.0
    %1575 = vmatpush.xpose.msra.mxu0 0.0
    %1576 = vmatpush.xpose.msra.mxu0 0.0
    %1577 = vmatpush.xpose.msra.mxu0 0.0
    %1578 = vmatpush.xpose.msra.mxu0 0.0
    %1579 = vmatpush.xpose.msra.mxu0 %v1562
    %1580 = vmatmul.f32.gmra.mxu0 %v1560
    %v1581 = vpop.f32.mrf.mxu0
    %v1582 = vadd.f32 0.0, %v1581
    %1583 = vdwg.mxu0
    %v1584 = vsel %vm500, %v1582, -inf
    %1585 = vmax.xlane.f32.xlu0 %v1584
    %v1586 = vpop.xlane.xlu0 %1585
    %v1587 = vsub.f32 %v1582, %v1586
    %v1588 = vmul.f32 %v1587, 1.442695
    %v1589 = vpow.pop %v1588
    %v1590 = vsel %vm500, %v1589, 0.0
    %1591 = vadd.xlane.f32.xlu0 %v1590
    %v1592 = vpop.xlane.xlu0 %1591
    %v1593 = vrcp.pop %v1592
    %v1594 = vmul.f32 %v1589, %v1593
    %1595 = vrot.lane.b32.xlu0 %v1413, 48
    %v1596 = vpop.permute.xlu0 %1595
    %v1599 = vsel %vm500, %v1594, 0
    %1601 = vmatpush.msra.mxu0 0.0
    %1602 = vmatpush.msra.mxu0 0.0
    %1603 = vmatpush.msra.mxu0 0.0
    %1604 = vmatpush.msra.mxu0 0.0
    %1605 = vmatpush.msra.mxu0 0.0
    %1606 = vmatpush.msra.mxu0 0.0
    %1607 = vmatpush.msra.mxu0 0.0
    %1608 = vmatpush.msra.mxu0 0.0
    %1609 = vmatpush.msra.mxu0 0.0
    %1610 = vmatpush.msra.mxu0 0.0
    %1611 = vmatpush.msra.mxu0 0.0
    %1612 = vmatpush.msra.mxu0 0.0
    %1613 = vmatpush.msra.mxu0 0.0
    %1614 = vmatpush.msra.mxu0 0.0
    %1615 = vmatpush.msra.mxu0 0.0
    %1616 = vmatpush.msra.mxu0 %v1596
    %1617 = vmatmul.f32.gmra.mxu0 %v1599
    %v1618 = vpop.f32.mrf.mxu0
    %v1619 = vadd.f32 0.0, %v1618
    %1620 = vdwg.mxu0
    %1621 = vrot.lane.b32.xlu0 %v1425, 104
    %v1622 = vpop.permute.xlu0 %1621
    %1623 = vrot.lane.b32.xlu0 %v1413, 72
    %v1624 = vpop.permute.xlu0 %1623
    %v1625 = vsel %vm500, %v1622, 0
    %v1627 = vsel %vm500, %v1624, 0
    %1629 = vmatpush.xpose.msra.mxu0 0.0
    %1630 = vmatpush.xpose.msra.mxu0 0.0
    %1631 = vmatpush.xpose.msra.mxu0 0.0
    %1632 = vmatpush.xpose.msra.mxu0 0.0
    %1633 = vmatpush.xpose.msra.mxu0 0.0
    %1634 = vmatpush.xpose.msra.mxu0 0.0
    %1635 = vmatpush.xpose.msra.mxu0 0.0
    %1636 = vmatpush.xpose.msra.mxu0 0.0
    %1637 = vmatpush.xpose.msra.mxu0 0.0
    %1638 = vmatpush.xpose.msra.mxu0 0.0
    %1639 = vmatpush.xpose.msra.mxu0 0.0
    %1640 = vmatpush.xpose.msra.mxu0 0.0
    %1641 = vmatpush.xpose.msra.mxu0 0.0
    %1642 = vmatpush.xpose.msra.mxu0 0.0
    %1643 = vmatpush.xpose.msra.mxu0 0.0
    %1644 = vmatpush.xpose.msra.mxu0 %v1627
    %1645 = vmatmul.f32.gmra.mxu0 %v1625
    %v1646 = vpop.f32.mrf.mxu0
    %v1647 = vadd.f32 0.0, %v1646
    %1648 = vdwg.mxu0
    %v1649 = vsel %vm500, %v1647, -inf
    %1650 = vmax.xlane.f32.xlu0 %v1649
    %v1651 = vpop.xlane.xlu0 %1650
    %v1652 = vsub.f32 %v1647, %v1651
    %v1653 = vmul.f32 %v1652, 1.442695
    %v1654 = vpow.pop %v1653
    %v1655 = vsel %vm500, %v1654, 0.0
    %1656 = vadd.xlane.f32.xlu0 %v1655
    %v1657 = vpop.xlane.xlu0 %1656
    %v1658 = vrcp.pop %v1657
    %v1659 = vmul.f32 %v1654, %v1658
    %1660 = vrot.lane.b32.xlu0 %v1413, 40
    %v1661 = vpop.permute.xlu0 %1660
    %v1664 = vsel %vm500, %v1659, 0
    %1666 = vmatpush.msra.mxu0 0.0
    %1667 = vmatpush.msra.mxu0 0.0
    %1668 = vmatpush.msra.mxu0 0.0
    %1669 = vmatpush.msra.mxu0 0.0
    %1670 = vmatpush.msra.mxu0 0.0
    %1671 = vmatpush.msra.mxu0 0.0
    %1672 = vmatpush.msra.mxu0 0.0
    %1673 = vmatpush.msra.mxu0 0.0
    %1674 = vmatpush.msra.mxu0 0.0
    %1675 = vmatpush.msra.mxu0 0.0
    %1676 = vmatpush.msra.mxu0 0.0
    %1677 = vmatpush.msra.mxu0 0.0
    %1678 = vmatpush.msra.mxu0 0.0
    %1679 = vmatpush.msra.mxu0 0.0
    %1680 = vmatpush.msra.mxu0 0.0
    %1681 = vmatpush.msra.mxu0 %v1661
    %1682 = vmatmul.f32.gmra.mxu0 %v1664
    %v1683 = vpop.f32.mrf.mxu0
    %v1684 = vadd.f32 0.0, %v1683
    %1685 = vdwg.mxu0
    %1687 = vrot.lane.b32.xlu0 %v1554, 8
    %v1688 = vpop.permute.xlu0 %1687
    %1691 = vrot.lane.b32.xlu0 %v1619, 16
    %v1692 = vpop.permute.xlu0 %1691
    %1695 = vrot.lane.b32.xlu0 %v1684, 24
    %v1696 = vpop.permute.xlu0 %1695
    %v1698 = vsel %vm500, %v1489, %v1688
    %v1699 = vsel %vm771, %v1698, %v1692
    %v1700 = vsel %vm773, %v1699, %v1696
    %v1701 = vmul.f32 %v1416, 0.35355338
    %1703 = vrot.lane.b32.xlu0 %v1416, 96
    %v1704 = vpop.permute.xlu0 %1703
    %v1706 = vsel %vm500, %v1701, 0
    %v1708 = vsel %vm500, %v1704, 0
    %1710 = vmatpush.xpose.msra.mxu0 0.0
    %1711 = vmatpush.xpose.msra.mxu0 0.0
    %1712 = vmatpush.xpose.msra.mxu0 0.0
    %1713 = vmatpush.xpose.msra.mxu0 0.0
    %1714 = vmatpush.xpose.msra.mxu0 0.0
    %1715 = vmatpush.xpose.msra.mxu0 0.0
    %1716 = vmatpush.xpose.msra.mxu0 0.0
    %1717 = vmatpush.xpose.msra.mxu0 0.0
    %1718 = vmatpush.xpose.msra.mxu0 0.0
    %1719 = vmatpush.xpose.msra.mxu0 0.0
    %1720 = vmatpush.xpose.msra.mxu0 0.0
    %1721 = vmatpush.xpose.msra.mxu0 0.0
    %1722 = vmatpush.xpose.msra.mxu0 0.0
    %1723 = vmatpush.xpose.msra.mxu0 0.0
    %1724 = vmatpush.xpose.msra.mxu0 0.0
    %1725 = vmatpush.xpose.msra.mxu0 %v1708
    %1726 = vmatmul.f32.gmra.mxu0 %v1706
    %v1727 = vpop.f32.mrf.mxu0
    %v1728 = vadd.f32 0.0, %v1727
    %1729 = vdwg.mxu0
    %v1730 = vsel %vm500, %v1728, -inf
    %1731 = vmax.xlane.f32.xlu0 %v1730
    %v1732 = vpop.xlane.xlu0 %1731
    %v1733 = vsub.f32 %v1728, %v1732
    %v1734 = vmul.f32 %v1733, 1.442695
    %v1735 = vpow.pop %v1734
    %v1736 = vsel %vm500, %v1735, 0.0
    %1737 = vadd.xlane.f32.xlu0 %v1736
    %v1738 = vpop.xlane.xlu0 %1737
    %v1739 = vrcp.pop %v1738
    %v1740 = vmul.f32 %v1735, %v1739
    %1741 = vrot.lane.b32.xlu0 %v1416, 64
    %v1742 = vpop.permute.xlu0 %1741
    %v1745 = vsel %vm500, %v1740, 0
    %1747 = vmatpush.msra.mxu0 0.0
    %1748 = vmatpush.msra.mxu0 0.0
    %1749 = vmatpush.msra.mxu0 0.0
    %1750 = vmatpush.msra.mxu0 0.0
    %1751 = vmatpush.msra.mxu0 0.0
    %1752 = vmatpush.msra.mxu0 0.0
    %1753 = vmatpush.msra.mxu0 0.0
    %1754 = vmatpush.msra.mxu0 0.0
    %1755 = vmatpush.msra.mxu0 0.0
    %1756 = vmatpush.msra.mxu0 0.0
    %1757 = vmatpush.msra.mxu0 0.0
    %1758 = vmatpush.msra.mxu0 0.0
    %1759 = vmatpush.msra.mxu0 0.0
    %1760 = vmatpush.msra.mxu0 0.0
    %1761 = vmatpush.msra.mxu0 0.0
    %1762 = vmatpush.msra.mxu0 %v1742
    %1763 = vmatmul.f32.gmra.mxu0 %v1745
    %v1764 = vpop.f32.mrf.mxu0
    %v1765 = vadd.f32 0.0, %v1764
    %1766 = vdwg.mxu0
    %1767 = vrot.lane.b32.xlu0 %v1701, 120
    %v1768 = vpop.permute.xlu0 %1767
    %1769 = vrot.lane.b32.xlu0 %v1416, 88
    %v1770 = vpop.permute.xlu0 %1769
    %v1771 = vsel %vm500, %v1768, 0
    %v1773 = vsel %vm500, %v1770, 0
    %1775 = vmatpush.xpose.msra.mxu0 0.0
    %1776 = vmatpush.xpose.msra.mxu0 0.0
    %1777 = vmatpush.xpose.msra.mxu0 0.0
    %1778 = vmatpush.xpose.msra.mxu0 0.0
    %1779 = vmatpush.xpose.msra.mxu0 0.0
    %1780 = vmatpush.xpose.msra.mxu0 0.0
    %1781 = vmatpush.xpose.msra.mxu0 0.0
    %1782 = vmatpush.xpose.msra.mxu0 0.0
    %1783 = vmatpush.xpose.msra.mxu0 0.0
    %1784 = vmatpush.xpose.msra.mxu0 0.0
    %1785 = vmatpush.xpose.msra.mxu0 0.0
    %1786 = vmatpush.xpose.msra.mxu0 0.0
    %1787 = vmatpush.xpose.msra.mxu0 0.0
    %1788 = vmatpush.xpose.msra.mxu0 0.0
    %1789 = vmatpush.xpose.msra.mxu0 0.0
    %1790 = vmatpush.xpose.msra.mxu0 %v1773
    %1791 = vmatmul.f32.gmra.mxu0 %v1771
    %v1792 = vpop.f32.mrf.mxu0
    %v1793 = vadd.f32 0.0, %v1792
    %1794 = vdwg.mxu0
    %v1795 = vsel %vm500, %v1793, -inf
    %1796 = vmax.xlane.f32.xlu0 %v1795
    %v1797 = vpop.xlane.xlu0 %1796
    %v1798 = vsub.f32 %v1793, %v1797
    %v1799 = vmul.f32 %v1798, 1.442695
    %v1800 = vpow.pop %v1799
    %v1801 = vsel %vm500, %v1800, 0.0
    %1802 = vadd.xlane.f32.xlu0 %v1801
    %v1803 = vpop.xlane.xlu0 %1802
    %v1804 = vrcp.pop %v1803
    %v1805 = vmul.f32 %v1800, %v1804
    %1806 = vrot.lane.b32.xlu0 %v1416, 56
    %v1807 = vpop.permute.xlu0 %1806
    %v1810 = vsel %vm500, %v1805, 0
    %1812 = vmatpush.msra.mxu0 0.0
    %1813 = vmatpush.msra.mxu0 0.0
    %1814 = vmatpush.msra.mxu0 0.0
    %1815 = vmatpush.msra.mxu0 0.0
    %1816 = vmatpush.msra.mxu0 0.0
    %1817 = vmatpush.msra.mxu0 0.0
    %1818 = vmatpush.msra.mxu0 0.0
    %1819 = vmatpush.msra.mxu0 0.0
    %1820 = vmatpush.msra.mxu0 0.0
    %1821 = vmatpush.msra.mxu0 0.0
    %1822 = vmatpush.msra.mxu0 0.0
    %1823 = vmatpush.msra.mxu0 0.0
    %1824 = vmatpush.msra.mxu0 0.0
    %1825 = vmatpush.msra.mxu0 0.0
    %1826 = vmatpush.msra.mxu0 0.0
    %1827 = vmatpush.msra.mxu0 %v1807
    %1828 = vmatmul.f32.gmra.mxu0 %v1810
    %v1829 = vpop.f32.mrf.mxu0
    %v1830 = vadd.f32 0.0, %v1829
    %1831 = vdwg.mxu0
    %1832 = vrot.lane.b32.xlu0 %v1701, 112
    %v1833 = vpop.permute.xlu0 %1832
    %1834 = vrot.lane.b32.xlu0 %v1416, 80
    %v1835 = vpop.permute.xlu0 %1834
    %v1836 = vsel %vm500, %v1833, 0
    %v1838 = vsel %vm500, %v1835, 0
    %1840 = vmatpush.xpose.msra.mxu0 0.0
    %1841 = vmatpush.xpose.msra.mxu0 0.0
    %1842 = vmatpush.xpose.msra.mxu0 0.0
    %1843 = vmatpush.xpose.msra.mxu0 0.0
    %1844 = vmatpush.xpose.msra.mxu0 0.0
    %1845 = vmatpush.xpose.msra.mxu0 0.0
    %1846 = vmatpush.xpose.msra.mxu0 0.0
    %1847 = vmatpush.xpose.msra.mxu0 0.0
    %1848 = vmatpush.xpose.msra.mxu0 0.0
    %1849 = vmatpush.xpose.msra.mxu0 0.0
    %1850 = vmatpush.xpose.msra.mxu0 0.0
    %1851 = vmatpush.xpose.msra.mxu0 0.0
    %1852 = vmatpush.xpose.msra.mxu0 0.0
    %1853 = vmatpush.xpose.msra.mxu0 0.0
    %1854 = vmatpush.xpose.msra.mxu0 0.0
    %1855 = vmatpush.xpose.msra.mxu0 %v1838
    %1856 = vmatmul.f32.gmra.mxu0 %v1836
    %v1857 = vpop.f32.mrf.mxu0
    %v1858 = vadd.f32 0.0, %v1857
    %1859 = vdwg.mxu0
    %v1860 = vsel %vm500, %v1858, -inf
    %1861 = vmax.xlane.f32.xlu0 %v1860
    %v1862 = vpop.xlane.xlu0 %1861
    %v1863 = vsub.f32 %v1858, %v1862
    %v1864 = vmul.f32 %v1863, 1.442695
    %v1865 = vpow.pop %v1864
    %v1866 = vsel %vm500, %v1865, 0.0
    %1867 = vadd.xlane.f32.xlu0 %v1866
    %v1868 = vpop.xlane.xlu0 %1867
    %v1869 = vrcp.pop %v1868
    %v1870 = vmul.f32 %v1865, %v1869
    %1871 = vrot.lane.b32.xlu0 %v1416, 48
    %v1872 = vpop.permute.xlu0 %1871
    %v1875 = vsel %vm500, %v1870, 0
    %1877 = vmatpush.msra.mxu0 0.0
    %1878 = vmatpush.msra.mxu0 0.0
    %1879 = vmatpush.msra.mxu0 0.0
    %1880 = vmatpush.msra.mxu0 0.0
    %1881 = vmatpush.msra.mxu0 0.0
    %1882 = vmatpush.msra.mxu0 0.0
    %1883 = vmatpush.msra.mxu0 0.0
    %1884 = vmatpush.msra.mxu0 0.0
    %1885 = vmatpush.msra.mxu0 0.0
    %1886 = vmatpush.msra.mxu0 0.0
    %1887 = vmatpush.msra.mxu0 0.0
    %1888 = vmatpush.msra.mxu0 0.0
    %1889 = vmatpush.msra.mxu0 0.0
    %1890 = vmatpush.msra.mxu0 0.0
    %1891 = vmatpush.msra.mxu0 0.0
    %1892 = vmatpush.msra.mxu0 %v1872
    %1893 = vmatmul.f32.gmra.mxu0 %v1875
    %v1894 = vpop.f32.mrf.mxu0
    %v1895 = vadd.f32 0.0, %v1894
    %1896 = vdwg.mxu0
    %1897 = vrot.lane.b32.xlu0 %v1701, 104
    %v1898 = vpop.permute.xlu0 %1897
    %1899 = vrot.lane.b32.xlu0 %v1416, 72
    %v1900 = vpop.permute.xlu0 %1899
    %v1901 = vsel %vm500, %v1898, 0
    %v1903 = vsel %vm500, %v1900, 0
    %1905 = vmatpush.xpose.msra.mxu0 0.0
    %1906 = vmatpush.xpose.msra.mxu0 0.0
    %1907 = vmatpush.xpose.msra.mxu0 0.0
    %1908 = vmatpush.xpose.msra.mxu0 0.0
    %1909 = vmatpush.xpose.msra.mxu0 0.0
    %1910 = vmatpush.xpose.msra.mxu0 0.0
    %1911 = vmatpush.xpose.msra.mxu0 0.0
    %1912 = vmatpush.xpose.msra.mxu0 0.0
    %1913 = vmatpush.xpose.msra.mxu0 0.0
    %1914 = vmatpush.xpose.msra.mxu0 0.0
    %1915 = vmatpush.xpose.msra.mxu0 0.0
    %1916 = vmatpush.xpose.msra.mxu0 0.0
    %1917 = vmatpush.xpose.msra.mxu0 0.0
    %1918 = vmatpush.xpose.msra.mxu0 0.0
    %1919 = vmatpush.xpose.msra.mxu0 0.0
    %1920 = vmatpush.xpose.msra.mxu0 %v1903
    %1921 = vmatmul.f32.gmra.mxu0 %v1901
    %v1922 = vpop.f32.mrf.mxu0
    %v1923 = vadd.f32 0.0, %v1922
    %1924 = vdwg.mxu0
    %v1925 = vsel %vm500, %v1923, -inf
    %1926 = vmax.xlane.f32.xlu0 %v1925
    %v1927 = vpop.xlane.xlu0 %1926
    %v1928 = vsub.f32 %v1923, %v1927
    %v1929 = vmul.f32 %v1928, 1.442695
    %v1930 = vpow.pop %v1929
    %v1931 = vsel %vm500, %v1930, 0.0
    %1932 = vadd.xlane.f32.xlu0 %v1931
    %v1933 = vpop.xlane.xlu0 %1932
    %v1934 = vrcp.pop %v1933
    %v1935 = vmul.f32 %v1930, %v1934
    %1936 = vrot.lane.b32.xlu0 %v1416, 40
    %v1937 = vpop.permute.xlu0 %1936
    %v1940 = vsel %vm500, %v1935, 0
    %1942 = vmatpush.msra.mxu0 0.0
    %1943 = vmatpush.msra.mxu0 0.0
    %1944 = vmatpush.msra.mxu0 0.0
    %1945 = vmatpush.msra.mxu0 0.0
    %1946 = vmatpush.msra.mxu0 0.0
    %1947 = vmatpush.msra.mxu0 0.0
    %1948 = vmatpush.msra.mxu0 0.0
    %1949 = vmatpush.msra.mxu0 0.0
    %1950 = vmatpush.msra.mxu0 0.0
    %1951 = vmatpush.msra.mxu0 0.0
    %1952 = vmatpush.msra.mxu0 0.0
    %1953 = vmatpush.msra.mxu0 0.0
    %1954 = vmatpush.msra.mxu0 0.0
    %1955 = vmatpush.msra.mxu0 0.0
    %1956 = vmatpush.msra.mxu0 0.0
    %1957 = vmatpush.msra.mxu0 %v1937
    %1958 = vmatmul.f32.gmra.mxu0 %v1940
    %v1959 = vpop.f32.mrf.mxu0
    %v1960 = vadd.f32 0.0, %v1959
    %1961 = vdwg.mxu0
    %1963 = vrot.lane.b32.xlu0 %v1830, 8
    %v1964 = vpop.permute.xlu0 %1963
    %1967 = vrot.lane.b32.xlu0 %v1895, 16
    %v1968 = vpop.permute.xlu0 %1967
    %1971 = vrot.lane.b32.xlu0 %v1960, 24
    %v1972 = vpop.permute.xlu0 %1971
    %v1974 = vsel %vm500, %v1765, %v1964
    %v1975 = vsel %vm771, %v1974, %v1968
    %v1976 = vsel %vm773, %v1975, %v1972
    %v1978 = vperm.slane %v1424, 0
    %v1981 = vsel %vm425, %v1700, 0
    %v1984 = vsel %vm425, %v1976, 0
    %v1987 = vsel %vm425, %v1419, 0
    %v1990 = vsel %vm425, %v1420, 0
    %v1993 = vsel %vm425, %v1421, 0
    %v1996 = vsel %vm425, %v1422, 0
    %1998 = vmatpush.xpose.msra.mxu0 0.0
    %1999 = vmatpush.xpose.msra.mxu0 0.0
    %2000 = vmatpush.xpose.msra.mxu0 0.0
    %2001 = vmatpush.xpose.msra.mxu0 0.0
    %2002 = vmatpush.xpose.msra.mxu0 0.0
    %2003 = vmatpush.xpose.msra.mxu0 0.0
    %2004 = vmatpush.xpose.msra.mxu0 0.0
    %2005 = vmatpush.xpose.msra.mxu0 0.0
    %2006 = vmatpush.xpose.msra.mxu0 0.0
    %2007 = vmatpush.xpose.msra.mxu0 0.0
    %2008 = vmatpush.xpose.msra.mxu0 0.0
    %2009 = vmatpush.xpose.msra.mxu0 0.0
    %2010 = vmatpush.xpose.msra.mxu0 %v1996
    %2011 = vmatpush.xpose.msra.mxu0 %v1993
    %2012 = vmatpush.xpose.msra.mxu0 %v1990
    %2013 = vmatpush.xpose.msra.mxu0 %v1987
    %2014 = vmatmul.f32.gmra.mxu0 %v1981
    %v2015 = vpop.f32.mrf.mxu0
    %v2016 = vadd.f32 %v1978, %v2015
    %2017 = vmatmul.f32.gmra.mxu0 %v1984
    %v2018 = vpop.f32.mrf.mxu0
    %v2019 = vadd.f32 %v1978, %v2018
    %2020 = vdwg.mxu0
    %v2021 = vadd.f32 %v1333, %v2016
    %v2022 = vadd.f32 %v1334, %v2019
    %s2023 = scalar_lea.vmem %s39, 1
    %v2024 = vld [vmem:[%s2023] sm:$0x1]
    %s2025 = scalar_lea.vmem %s41, 1
    %v2026 = vld [vmem:[%s2025] sm:$0x1]
    %v2027 = vsel %vm425, %v2021, 0.0
    %2028 = vadd.xlane.f32.xlu0 %v2027
    %v2029 = vpop.xlane.xlu0 %2028
    %v2030 = vsel %vm425, %v2022, 0.0
    %2031 = vadd.xlane.f32.xlu0 %v2030
    %v2032 = vpop.xlane.xlu0 %2031
    %v2033 = vmul.f32 %v2029, %v1111
    %v2034 = vmul.f32 %v2032, %v1111
    %v2035 = vsub.f32 %v2021, %v2033
    %v2036 = vsub.f32 %v2022, %v2034
    %v2037 = vmul.f32 %v2035, %v2035
    %v2038 = vmul.f32 %v2036, %v2036
    %v2039 = vsel %vm425, %v2037, 0.0
    %2040 = vadd.xlane.f32.xlu0 %v2039
    %v2041 = vpop.xlane.xlu0 %2040
    %v2042 = vsel %vm425, %v2038, 0.0
    %2043 = vadd.xlane.f32.xlu0 %v2042
    %v2044 = vpop.xlane.xlu0 %2043
    %v2045 = vmul.f32 %v2041, %v1111
    %v2046 = vmul.f32 %v2044, %v1111
    %v2047 = vadd.f32 %v2045, 1e-05
    %v2048 = vadd.f32 %v2046, 1e-05
    %v2049 = vrsqrt.pop %v2047
    %v2050 = vmul.f32 %v2049, %v2047
    %v2051 = vmul.f32 %v2050, %v2049
    %v2052 = vmul.f32 0.5, %v2051
    %v2053 = vsub.f32 1.5, %v2052
    %v2054 = vmul.f32 %v2049, %v2053
    %vm2055 = vweird.f32 %v2047
    %vm2056 = vweird.f32 %v2049
    %vm2057 = vmor %vm2055, %vm2056
    %v2058 = vsel %vm2057, %v2049, %v2054
    %v2059 = vrsqrt.pop %v2048
    %v2060 = vmul.f32 %v2059, %v2048
    %v2061 = vmul.f32 %v2060, %v2059
    %v2062 = vmul.f32 0.5, %v2061
    %v2063 = vsub.f32 1.5, %v2062
    %v2064 = vmul.f32 %v2059, %v2063
    %vm2065 = vweird.f32 %v2048
    %vm2066 = vweird.f32 %v2059
    %vm2067 = vmor %vm2065, %vm2066
    %v2068 = vsel %vm2067, %v2059, %v2064
    %v2069 = vmul.f32 %v2035, %v2058
    %v2070 = vmul.f32 %v2036, %v2068
    %v2072 = vperm.slane %v2024, 0
    %v2074 = vmul.f32 %v2069, %v2072
    %v2075 = vmul.f32 %v2070, %v2072
    %v2077 = vperm.slane %v2026, 0
    %v2079 = vadd.f32 %v2074, %v2077
    %v2080 = vadd.f32 %v2075, %v2077
    %s2081 = scalar_lea.vmem [#allocation7], 64
    %v2082 = vld [vmem:[%s2081] sm:$0xff]
    %v2083 = vld [vmem:[%s2081 + $0x8] sm:$0xff]
    %v2084 = vld [vmem:[%s2081 + $0x10] sm:$0xff]
    %v2085 = vld [vmem:[%s2081 + $0x18] sm:$0xff]
    %v2086 = vld [vmem:[%s2081 + $0x20] sm:$0xff]
    %v2087 = vld [vmem:[%s2081 + $0x28] sm:$0xff]
    %v2088 = vld [vmem:[%s2081 + $0x30] sm:$0xff]
    %v2089 = vld [vmem:[%s2081 + $0x38] sm:$0xff]
    %s2090 = scalar_lea.vmem %s33, 1
    %v2091 = vld [vmem:[%s2090] sm:$0x1]
    %v2093 = vperm.slane %v2091, 0
    %v2096 = vsel %vm425, %v2079, 0
    %v2099 = vsel %vm425, %v2080, 0
    %v2102 = vsel %vm425, %v2082, 0
    %v2105 = vsel %vm425, %v2083, 0
    %v2108 = vsel %vm425, %v2084, 0
    %v2111 = vsel %vm425, %v2085, 0
    %v2114 = vsel %vm425, %v2086, 0
    %v2117 = vsel %vm425, %v2087, 0
    %v2120 = vsel %vm425, %v2088, 0
    %v2123 = vsel %vm425, %v2089, 0
    %2125 = vmatpush.xpose.msra.mxu0 0.0
    %2126 = vmatpush.xpose.msra.mxu0 0.0
    %2127 = vmatpush.xpose.msra.mxu0 0.0
    %2128 = vmatpush.xpose.msra.mxu0 0.0
    %2129 = vmatpush.xpose.msra.mxu0 0.0
    %2130 = vmatpush.xpose.msra.mxu0 0.0
    %2131 = vmatpush.xpose.msra.mxu0 0.0
    %2132 = vmatpush.xpose.msra.mxu0 0.0
    %2133 = vmatpush.xpose.msra.mxu0 %v2123
    %2134 = vmatpush.xpose.msra.mxu0 %v2120
    %2135 = vmatpush.xpose.msra.mxu0 %v2117
    %2136 = vmatpush.xpose.msra.mxu0 %v2114
    %2137 = vmatpush.xpose.msra.mxu0 %v2111
    %2138 = vmatpush.xpose.msra.mxu0 %v2108
    %2139 = vmatpush.xpose.msra.mxu0 %v2105
    %2140 = vmatpush.xpose.msra.mxu0 %v2102
    %2141 = vmatmul.f32.gmra.mxu0 %v2096
    %v2142 = vpop.f32.mrf.mxu0
    %v2143 = vadd.f32 %v2093, %v2142
    %2144 = vmatmul.f32.gmra.mxu0 %v2099
    %v2145 = vpop.f32.mrf.mxu0
    %v2146 = vadd.f32 %v2093, %v2145
    %2147 = vdwg.mxu0
    %v2148 = vmax.f32 %v2143, 0.0
    %v2149 = vmax.f32 %v2146, 0.0
    %s2150 = scalar_lea.vmem [#allocation8], 32
    %v2151 = vld [vmem:[%s2150] sm:$0xff]
    %v2152 = vld [vmem:[%s2150 + $0x8] sm:$0xff]
    %v2153 = vld [vmem:[%s2150 + $0x10] sm:$0xff]
    %v2154 = vld [vmem:[%s2150 + $0x18] sm:$0xff]
    %s2155 = scalar_lea.vmem %s37, 1
    %v2156 = vld [vmem:[%s2155] sm:$0x1]
    %v2158 = vperm.slane %v2156, 0
    %v2161 = vsel %vm1235, %v2148, 0
    %v2164 = vsel %vm1235, %v2149, 0
    %v2167 = vsel %vm1235, %v2151, 0
    %v2170 = vsel %vm1235, %v2152, 0
    %v2173 = vsel %vm1235, %v2153, 0
    %v2176 = vsel %vm1235, %v2154, 0
    %2178 = vmatpush.xpose.msra.mxu0 0.0
    %2179 = vmatpush.xpose.msra.mxu0 0.0
    %2180 = vmatpush.xpose.msra.mxu0 0.0
    %2181 = vmatpush.xpose.msra.mxu0 0.0
    %2182 = vmatpush.xpose.msra.mxu0 0.0
    %2183 = vmatpush.xpose.msra.mxu0 0.0
    %2184 = vmatpush.xpose.msra.mxu0 0.0
    %2185 = vmatpush.xpose.msra.mxu0 0.0
    %2186 = vmatpush.xpose.msra.mxu0 0.0
    %2187 = vmatpush.xpose.msra.mxu0 0.0
    %2188 = vmatpush.xpose.msra.mxu0 0.0
    %2189 = vmatpush.xpose.msra.mxu0 0.0
    %2190 = vmatpush.xpose.msra.mxu0 %v2176
    %2191 = vmatpush.xpose.msra.mxu0 %v2173
    %2192 = vmatpush.xpose.msra.mxu0 %v2170
    %2193 = vmatpush.xpose.msra.mxu0 %v2167
    %2194 = vmatmul.f32.gmra.mxu0 %v2161
    %v2195 = vpop.f32.mrf.mxu0
    %v2196 = vadd.f32 %v2158, %v2195
    %2197 = vmatmul.f32.gmra.mxu0 %v2164
    %v2198 = vpop.f32.mrf.mxu0
    %v2199 = vadd.f32 %v2158, %v2198
    %2200 = vdwg.mxu0
    %v2201 = vadd.f32 %v2079, %v2196
    %v2202 = vadd.f32 %v2080, %v2199
    %s2203 = scalar_lea.vmem %s43, 1
    %v2204 = vld [vmem:[%s2203] sm:$0x1]
    %s2205 = scalar_lea.vmem %s45, 1
    %v2206 = vld [vmem:[%s2205] sm:$0x1]
    %v2207 = vsel %vm425, %v2201, 0.0
    %2208 = vadd.xlane.f32.xlu0 %v2207
    %v2209 = vpop.xlane.xlu0 %2208
    %v2210 = vsel %vm425, %v2202, 0.0
    %2211 = vadd.xlane.f32.xlu0 %v2210
    %v2212 = vpop.xlane.xlu0 %2211
    %v2213 = vmul.f32 %v2209, %v1111
    %v2214 = vmul.f32 %v2212, %v1111
    %v2215 = vsub.f32 %v2201, %v2213
    %v2216 = vsub.f32 %v2202, %v2214
    %v2217 = vmul.f32 %v2215, %v2215
    %v2218 = vmul.f32 %v2216, %v2216
    %v2219 = vsel %vm425, %v2217, 0.0
    %2220 = vadd.xlane.f32.xlu0 %v2219
    %v2221 = vpop.xlane.xlu0 %2220
    %v2222 = vsel %vm425, %v2218, 0.0
    %2223 = vadd.xlane.f32.xlu0 %v2222
    %v2224 = vpop.xlane.xlu0 %2223
    %v2225 = vmul.f32 %v2221, %v1111
    %v2226 = vmul.f32 %v2224, %v1111
    %v2227 = vadd.f32 %v2225, 1e-05
    %v2228 = vadd.f32 %v2226, 1e-05
    %v2229 = vrsqrt.pop %v2227
    %v2230 = vmul.f32 %v2229, %v2227
    %v2231 = vmul.f32 %v2230, %v2229
    %v2232 = vmul.f32 0.5, %v2231
    %v2233 = vsub.f32 1.5, %v2232
    %v2234 = vmul.f32 %v2229, %v2233
    %vm2235 = vweird.f32 %v2227
    %vm2236 = vweird.f32 %v2229
    %vm2237 = vmor %vm2235, %vm2236
    %v2238 = vsel %vm2237, %v2229, %v2234
    %v2239 = vrsqrt.pop %v2228
    %v2240 = vmul.f32 %v2239, %v2228
    %v2241 = vmul.f32 %v2240, %v2239
    %v2242 = vmul.f32 0.5, %v2241
    %v2243 = vsub.f32 1.5, %v2242
    %v2244 = vmul.f32 %v2239, %v2243
    %vm2245 = vweird.f32 %v2228
    %vm2246 = vweird.f32 %v2239
    %vm2247 = vmor %vm2245, %vm2246
    %v2248 = vsel %vm2247, %v2239, %v2244
    %v2249 = vmul.f32 %v2215, %v2238
    %v2250 = vmul.f32 %v2216, %v2248
    %v2252 = vperm.slane %v2204, 0
    %v2254 = vmul.f32 %v2249, %v2252
    %v2255 = vmul.f32 %v2250, %v2252
    %v2257 = vperm.slane %v2206, 0
    %v2259 = vadd.f32 %v2254, %v2257
    %v2260 = vadd.f32 %v2255, %v2257
    %v2261 = vld [vmem:[%s3] sm:$0xff]
    %v2262 = vld [vmem:[%s15] sm:$0x1]
    %2264 = vset.pattern.permute.xlu0 0
    %2265 = vperm.xlu0 %2264, %v2261
    %v2266 = vpop.permute.xlu0 %2265
    %v2269 = vperm.slane %v2262, 0
    %v2271 = vmul.f32 %v2266, %v2269
    %v2272 = vld [vmem:[%s17] sm:$0x1]
    %v2274 = vperm.slane %v2272, 0
    %v2276 = vadd.f32 %v2271, %v2274
    %v2277 = vmul.f32 %v2276, 5.656854
    %v2278 = vld [vmem:[%s9] sm:$0xff]
    %v2279 = vadd.f32 %v2277, %v2278
    %v2280 = vld [vmem:[%s5] sm:$0xf]
    %v2281 = vld [vmem:[#allocation10] sm:$0xff]
    %v2282 = vld [vmem:[#allocation10 + $0x8] sm:$0xff]
    %v2283 = vld [vmem:[#allocation10 + $0x10] sm:$0xff]
    %v2284 = vld [vmem:[#allocation10 + $0x18] sm:$0xff]
    %v2285 = vld [vmem:[#allocation10 + $0x20] sm:$0xff]
    %v2286 = vld [vmem:[#allocation10 + $0x28] sm:$0xff]
    %v2287 = vld [vmem:[#allocation10 + $0x30] sm:$0xff]
    %v2288 = vld [vmem:[#allocation10 + $0x38] sm:$0xff]
    %v2289 = vld [vmem:[#allocation10 + $0x40] sm:$0xff]
    %v2290 = vld [vmem:[#allocation10 + $0x48] sm:$0xff]
    %v2291 = vld [vmem:[#allocation10 + $0x50] sm:$0xff]
    %v2292 = vld [vmem:[#allocation10 + $0x58] sm:$0xff]
    %v2293 = vld [vmem:[%s49] sm:$0x1]
    %v2295 = vperm.slane %v2293, 0
    %v2298 = vsel %vm425, %v2279, 0
    %v2301 = vsel %vm425, %v2281, 0
    %v2304 = vsel %vm425, %v2282, 0
    %v2307 = vsel %vm425, %v2283, 0
    %v2310 = vsel %vm425, %v2284, 0
    %v2313 = vsel %vm425, %v2285, 0
    %v2316 = vsel %vm425, %v2286, 0
    %v2319 = vsel %vm425, %v2287, 0
    %v2322 = vsel %vm425, %v2288, 0
    %v2325 = vsel %vm425, %v2289, 0
    %v2328 = vsel %vm425, %v2290, 0
    %v2331 = vsel %vm425, %v2291, 0
    %v2334 = vsel %vm425, %v2292, 0
    %2336 = vmatpush.xpose.msra.mxu0 0.0
    %2337 = vmatpush.xpose.msra.mxu0 0.0
    %2338 = vmatpush.xpose.msra.mxu0 0.0
    %2339 = vmatpush.xpose.msra.mxu0 0.0
    %2340 = vmatpush.xpose.msra.mxu0 %v2334
    %2341 = vmatpush.xpose.msra.mxu0 %v2331
    %2342 = vmatpush.xpose.msra.mxu0 %v2328
    %2343 = vmatpush.xpose.msra.mxu0 %v2325
    %2344 = vmatpush.xpose.msra.mxu0 %v2322
    %2345 = vmatpush.xpose.msra.mxu0 %v2319
    %2346 = vmatpush.xpose.msra.mxu0 %v2316
    %2347 = vmatpush.xpose.msra.mxu0 %v2313
    %2348 = vmatpush.xpose.msra.mxu0 %v2310
    %2349 = vmatpush.xpose.msra.mxu0 %v2307
    %2350 = vmatpush.xpose.msra.mxu0 %v2304
    %2351 = vmatpush.xpose.msra.mxu0 %v2301
    %2352 = vmatmul.f32.gmra.mxu0 %v2298
    %v2353 = vpop.f32.mrf.mxu0
    %v2354 = vadd.f32 %v2295, %v2353
    %2355 = vdwg.mxu0
    %v2356 = vld [vmem:[#allocation11] sm:$0xff]
    %v2357 = vld [vmem:[#allocation11 + $0x8] sm:$0xff]
    %v2358 = vld [vmem:[#allocation11 + $0x10] sm:$0xff]
    %v2359 = vld [vmem:[#allocation11 + $0x18] sm:$0xff]
    %v2360 = vld [vmem:[%s53] sm:$0x1]
    %v2361 = vmul.f32 %v2354, 0.35355338
    %2363 = vrot.lane.b32.xlu0 %v2354, 96
    %v2364 = vpop.permute.xlu0 %2363
    %v2366 = vsel %vm500, %v2361, 0
    %v2368 = vsel %vm500, %v2364, 0
    %2370 = vmatpush.xpose.msra.mxu0 0.0
    %2371 = vmatpush.xpose.msra.mxu0 0.0
    %2372 = vmatpush.xpose.msra.mxu0 0.0
    %2373 = vmatpush.xpose.msra.mxu0 0.0
    %2374 = vmatpush.xpose.msra.mxu0 0.0
    %2375 = vmatpush.xpose.msra.mxu0 0.0
    %2376 = vmatpush.xpose.msra.mxu0 0.0
    %2377 = vmatpush.xpose.msra.mxu0 0.0
    %2378 = vmatpush.xpose.msra.mxu0 0.0
    %2379 = vmatpush.xpose.msra.mxu0 0.0
    %2380 = vmatpush.xpose.msra.mxu0 0.0
    %2381 = vmatpush.xpose.msra.mxu0 0.0
    %2382 = vmatpush.xpose.msra.mxu0 0.0
    %2383 = vmatpush.xpose.msra.mxu0 0.0
    %2384 = vmatpush.xpose.msra.mxu0 0.0
    %2385 = vmatpush.xpose.msra.mxu0 %v2368
    %2386 = vmatmul.f32.gmra.mxu0 %v2366
    %v2387 = vpop.f32.mrf.mxu0
    %v2388 = vadd.f32 %v2280, %v2387
    %2389 = vdwg.mxu0
    %vm2390 = vcmask 27648
    %v2391 = vsel %vm2390, %v2388, -inf
    %2392 = vmax.xlane.f32.xlu0 %v2391
    %v2393 = vpop.xlane.xlu0 %2392
    %v2394 = vsub.f32 %v2388, %v2393
    %v2395 = vmul.f32 %v2394, 1.442695
    %v2396 = vpow.pop %v2395
    %v2397 = vsel %vm2390, %v2396, 0.0
    %2398 = vadd.xlane.f32.xlu0 %v2397
    %v2399 = vpop.xlane.xlu0 %2398
    %v2400 = vrcp.pop %v2399
    %v2401 = vmul.f32 %v2396, %v2400
    %2402 = vrot.lane.b32.xlu0 %v2354, 64
    %v2403 = vpop.permute.xlu0 %2402
    %vm2404 = vcmask 31744
    %v2406 = vsel %vm2404, %v2401, 0
    %vm2408 = vcmask 1043456
    %v2409 = vsel %vm2408, %v2403, 0
    %2411 = vmatpush.msra.mxu0 0.0
    %2412 = vmatpush.msra.mxu0 0.0
    %2413 = vmatpush.msra.mxu0 0.0
    %2414 = vmatpush.msra.mxu0 0.0
    %2415 = vmatpush.msra.mxu0 0.0
    %2416 = vmatpush.msra.mxu0 0.0
    %2417 = vmatpush.msra.mxu0 0.0
    %2418 = vmatpush.msra.mxu0 0.0
    %2419 = vmatpush.msra.mxu0 0.0
    %2420 = vmatpush.msra.mxu0 0.0
    %2421 = vmatpush.msra.mxu0 0.0
    %2422 = vmatpush.msra.mxu0 0.0
    %2423 = vmatpush.msra.mxu0 0.0
    %2424 = vmatpush.msra.mxu0 0.0
    %2425 = vmatpush.msra.mxu0 0.0
    %2426 = vmatpush.msra.mxu0 %v2409
    %2427 = vmatmul.f32.gmra.mxu0 %v2406
    %v2428 = vpop.f32.mrf.mxu0
    %v2429 = vadd.f32 0.0, %v2428
    %2430 = vdwg.mxu0
    %2431 = vrot.lane.b32.xlu0 %v2361, 120
    %v2432 = vpop.permute.xlu0 %2431
    %2433 = vrot.lane.b32.xlu0 %v2354, 88
    %v2434 = vpop.permute.xlu0 %2433
    %v2435 = vsel %vm500, %v2432, 0
    %v2437 = vsel %vm500, %v2434, 0
    %2439 = vmatpush.xpose.msra.mxu0 0.0
    %2440 = vmatpush.xpose.msra.mxu0 0.0
    %2441 = vmatpush.xpose.msra.mxu0 0.0
    %2442 = vmatpush.xpose.msra.mxu0 0.0
    %2443 = vmatpush.xpose.msra.mxu0 0.0
    %2444 = vmatpush.xpose.msra.mxu0 0.0
    %2445 = vmatpush.xpose.msra.mxu0 0.0
    %2446 = vmatpush.xpose.msra.mxu0 0.0
    %2447 = vmatpush.xpose.msra.mxu0 0.0
    %2448 = vmatpush.xpose.msra.mxu0 0.0
    %2449 = vmatpush.xpose.msra.mxu0 0.0
    %2450 = vmatpush.xpose.msra.mxu0 0.0
    %2451 = vmatpush.xpose.msra.mxu0 0.0
    %2452 = vmatpush.xpose.msra.mxu0 0.0
    %2453 = vmatpush.xpose.msra.mxu0 0.0
    %2454 = vmatpush.xpose.msra.mxu0 %v2437
    %2455 = vmatmul.f32.gmra.mxu0 %v2435
    %v2456 = vpop.f32.mrf.mxu0
    %v2457 = vadd.f32 %v2280, %v2456
    %2458 = vdwg.mxu0
    %v2459 = vsel %vm2390, %v2457, -inf
    %2460 = vmax.xlane.f32.xlu0 %v2459
    %v2461 = vpop.xlane.xlu0 %2460
    %v2462 = vsub.f32 %v2457, %v2461
    %v2463 = vmul.f32 %v2462, 1.442695
    %v2464 = vpow.pop %v2463
    %v2465 = vsel %vm2390, %v2464, 0.0
    %2466 = vadd.xlane.f32.xlu0 %v2465
    %v2467 = vpop.xlane.xlu0 %2466
    %v2468 = vrcp.pop %v2467
    %v2469 = vmul.f32 %v2464, %v2468
    %2470 = vrot.lane.b32.xlu0 %v2354, 56
    %v2471 = vpop.permute.xlu0 %2470
    %v2473 = vsel %vm2404, %v2469, 0
    %v2475 = vsel %vm2408, %v2471, 0
    %2477 = vmatpush.msra.mxu0 0.0
    %2478 = vmatpush.msra.mxu0 0.0
    %2479 = vmatpush.msra.mxu0 0.0
    %2480 = vmatpush.msra.mxu0 0.0
    %2481 = vmatpush.msra.mxu0 0.0
    %2482 = vmatpush.msra.mxu0 0.0
    %2483 = vmatpush.msra.mxu0 0.0
    %2484 = vmatpush.msra.mxu0 0.0
    %2485 = vmatpush.msra.mxu0 0.0
    %2486 = vmatpush.msra.mxu0 0.0
    %2487 = vmatpush.msra.mxu0 0.0
    %2488 = vmatpush.msra.mxu0 0.0
    %2489 = vmatpush.msra.mxu0 0.0
    %2490 = vmatpush.msra.mxu0 0.0
    %2491 = vmatpush.msra.mxu0 0.0
    %2492 = vmatpush.msra.mxu0 %v2475
    %2493 = vmatmul.f32.gmra.mxu0 %v2473
    %v2494 = vpop.f32.mrf.mxu0
    %v2495 = vadd.f32 0.0, %v2494
    %2496 = vdwg.mxu0
    %2497 = vrot.lane.b32.xlu0 %v2361, 112
    %v2498 = vpop.permute.xlu0 %2497
    %2499 = vrot.lane.b32.xlu0 %v2354, 80
    %v2500 = vpop.permute.xlu0 %2499
    %v2501 = vsel %vm500, %v2498, 0
    %v2503 = vsel %vm500, %v2500, 0
    %2505 = vmatpush.xpose.msra.mxu0 0.0
    %2506 = vmatpush.xpose.msra.mxu0 0.0
    %2507 = vmatpush.xpose.msra.mxu0 0.0
    %2508 = vmatpush.xpose.msra.mxu0 0.0
    %2509 = vmatpush.xpose.msra.mxu0 0.0
    %2510 = vmatpush.xpose.msra.mxu0 0.0
    %2511 = vmatpush.xpose.msra.mxu0 0.0
    %2512 = vmatpush.xpose.msra.mxu0 0.0
    %2513 = vmatpush.xpose.msra.mxu0 0.0
    %2514 = vmatpush.xpose.msra.mxu0 0.0
    %2515 = vmatpush.xpose.msra.mxu0 0.0
    %2516 = vmatpush.xpose.msra.mxu0 0.0
    %2517 = vmatpush.xpose.msra.mxu0 0.0
    %2518 = vmatpush.xpose.msra.mxu0 0.0
    %2519 = vmatpush.xpose.msra.mxu0 0.0
    %2520 = vmatpush.xpose.msra.mxu0 %v2503
    %2521 = vmatmul.f32.gmra.mxu0 %v2501
    %v2522 = vpop.f32.mrf.mxu0
    %v2523 = vadd.f32 %v2280, %v2522
    %2524 = vdwg.mxu0
    %v2525 = vsel %vm2390, %v2523, -inf
    %2526 = vmax.xlane.f32.xlu0 %v2525
    %v2527 = vpop.xlane.xlu0 %2526
    %v2528 = vsub.f32 %v2523, %v2527
    %v2529 = vmul.f32 %v2528, 1.442695
    %v2530 = vpow.pop %v2529
    %v2531 = vsel %vm2390, %v2530, 0.0
    %2532 = vadd.xlane.f32.xlu0 %v2531
    %v2533 = vpop.xlane.xlu0 %2532
    %v2534 = vrcp.pop %v2533
    %v2535 = vmul.f32 %v2530, %v2534
    %2536 = vrot.lane.b32.xlu0 %v2354, 48
    %v2537 = vpop.permute.xlu0 %2536
    %v2539 = vsel %vm2404, %v2535, 0
    %v2541 = vsel %vm2408, %v2537, 0
    %2543 = vmatpush.msra.mxu0 0.0
    %2544 = vmatpush.msra.mxu0 0.0
    %2545 = vmatpush.msra.mxu0 0.0
    %2546 = vmatpush.msra.mxu0 0.0
    %2547 = vmatpush.msra.mxu0 0.0
    %2548 = vmatpush.msra.mxu0 0.0
    %2549 = vmatpush.msra.mxu0 0.0
    %2550 = vmatpush.msra.mxu0 0.0
    %2551 = vmatpush.msra.mxu0 0.0
    %2552 = vmatpush.msra.mxu0 0.0
    %2553 = vmatpush.msra.mxu0 0.0
    %2554 = vmatpush.msra.mxu0 0.0
    %2555 = vmatpush.msra.mxu0 0.0
    %2556 = vmatpush.msra.mxu0 0.0
    %2557 = vmatpush.msra.mxu0 0.0
    %2558 = vmatpush.msra.mxu0 %v2541
    %2559 = vmatmul.f32.gmra.mxu0 %v2539
    %v2560 = vpop.f32.mrf.mxu0
    %v2561 = vadd.f32 0.0, %v2560
    %2562 = vdwg.mxu0
    %2563 = vrot.lane.b32.xlu0 %v2361, 104
    %v2564 = vpop.permute.xlu0 %2563
    %2565 = vrot.lane.b32.xlu0 %v2354, 72
    %v2566 = vpop.permute.xlu0 %2565
    %v2567 = vsel %vm500, %v2564, 0
    %v2569 = vsel %vm500, %v2566, 0
    %2571 = vmatpush.xpose.msra.mxu0 0.0
    %2572 = vmatpush.xpose.msra.mxu0 0.0
    %2573 = vmatpush.xpose.msra.mxu0 0.0
    %2574 = vmatpush.xpose.msra.mxu0 0.0
    %2575 = vmatpush.xpose.msra.mxu0 0.0
    %2576 = vmatpush.xpose.msra.mxu0 0.0
    %2577 = vmatpush.xpose.msra.mxu0 0.0
    %2578 = vmatpush.xpose.msra.mxu0 0.0
    %2579 = vmatpush.xpose.msra.mxu0 0.0
    %2580 = vmatpush.xpose.msra.mxu0 0.0
    %2581 = vmatpush.xpose.msra.mxu0 0.0
    %2582 = vmatpush.xpose.msra.mxu0 0.0
    %2583 = vmatpush.xpose.msra.mxu0 0.0
    %2584 = vmatpush.xpose.msra.mxu0 0.0
    %2585 = vmatpush.xpose.msra.mxu0 0.0
    %2586 = vmatpush.xpose.msra.mxu0 %v2569
    %2587 = vmatmul.f32.gmra.mxu0 %v2567
    %v2588 = vpop.f32.mrf.mxu0
    %v2589 = vadd.f32 %v2280, %v2588
    %2590 = vdwg.mxu0
    %v2591 = vsel %vm2390, %v2589, -inf
    %2592 = vmax.xlane.f32.xlu0 %v2591
    %v2593 = vpop.xlane.xlu0 %2592
    %v2594 = vsub.f32 %v2589, %v2593
    %v2595 = vmul.f32 %v2594, 1.442695
    %v2596 = vpow.pop %v2595
    %v2597 = vsel %vm2390, %v2596, 0.0
    %2598 = vadd.xlane.f32.xlu0 %v2597
    %v2599 = vpop.xlane.xlu0 %2598
    %v2600 = vrcp.pop %v2599
    %v2601 = vmul.f32 %v2596, %v2600
    %2602 = vrot.lane.b32.xlu0 %v2354, 40
    %v2603 = vpop.permute.xlu0 %2602
    %v2605 = vsel %vm2404, %v2601, 0
    %v2607 = vsel %vm2408, %v2603, 0
    %2609 = vmatpush.msra.mxu0 0.0
    %2610 = vmatpush.msra.mxu0 0.0
    %2611 = vmatpush.msra.mxu0 0.0
    %2612 = vmatpush.msra.mxu0 0.0
    %2613 = vmatpush.msra.mxu0 0.0
    %2614 = vmatpush.msra.mxu0 0.0
    %2615 = vmatpush.msra.mxu0 0.0
    %2616 = vmatpush.msra.mxu0 0.0
    %2617 = vmatpush.msra.mxu0 0.0
    %2618 = vmatpush.msra.mxu0 0.0
    %2619 = vmatpush.msra.mxu0 0.0
    %2620 = vmatpush.msra.mxu0 0.0
    %2621 = vmatpush.msra.mxu0 0.0
    %2622 = vmatpush.msra.mxu0 0.0
    %2623 = vmatpush.msra.mxu0 0.0
    %2624 = vmatpush.msra.mxu0 %v2607
    %2625 = vmatmul.f32.gmra.mxu0 %v2605
    %v2626 = vpop.f32.mrf.mxu0
    %v2627 = vadd.f32 0.0, %v2626
    %2628 = vdwg.mxu0
    %2630 = vrot.lane.b32.xlu0 %v2495, 8
    %v2631 = vpop.permute.xlu0 %2630
    %2634 = vrot.lane.b32.xlu0 %v2561, 16
    %v2635 = vpop.permute.xlu0 %2634
    %2638 = vrot.lane.b32.xlu0 %v2627, 24
    %v2639 = vpop.permute.xlu0 %2638
    %v2641 = vsel %vm500, %v2429, %v2631
    %v2642 = vsel %vm771, %v2641, %v2635
    %v2643 = vsel %vm773, %v2642, %v2639
    %v2644 = vrot.slane %v2361, 4
    %v2645 = vrot.slane %v2354, 4
    %2646 = vrot.lane.b32.xlu0 %v2645, 96
    %v2647 = vpop.permute.xlu0 %2646
    %v2648 = vsel %vm500, %v2644, 0
    %v2650 = vsel %vm500, %v2647, 0
    %2652 = vmatpush.xpose.msra.mxu0 0.0
    %2653 = vmatpush.xpose.msra.mxu0 0.0
    %2654 = vmatpush.xpose.msra.mxu0 0.0
    %2655 = vmatpush.xpose.msra.mxu0 0.0
    %2656 = vmatpush.xpose.msra.mxu0 0.0
    %2657 = vmatpush.xpose.msra.mxu0 0.0
    %2658 = vmatpush.xpose.msra.mxu0 0.0
    %2659 = vmatpush.xpose.msra.mxu0 0.0
    %2660 = vmatpush.xpose.msra.mxu0 0.0
    %2661 = vmatpush.xpose.msra.mxu0 0.0
    %2662 = vmatpush.xpose.msra.mxu0 0.0
    %2663 = vmatpush.xpose.msra.mxu0 0.0
    %2664 = vmatpush.xpose.msra.mxu0 0.0
    %2665 = vmatpush.xpose.msra.mxu0 0.0
    %2666 = vmatpush.xpose.msra.mxu0 0.0
    %2667 = vmatpush.xpose.msra.mxu0 %v2650
    %2668 = vmatmul.f32.gmra.mxu0 %v2648
    %v2669 = vpop.f32.mrf.mxu0
    %v2670 = vadd.f32 %v2280, %v2669
    %2671 = vdwg.mxu0
    %v2672 = vsel %vm2390, %v2670, -inf
    %2673 = vmax.xlane.f32.xlu0 %v2672
    %v2674 = vpop.xlane.xlu0 %2673
    %v2675 = vsub.f32 %v2670, %v2674
    %v2676 = vmul.f32 %v2675, 1.442695
    %v2677 = vpow.pop %v2676
    %v2678 = vsel %vm2390, %v2677, 0.0
    %2679 = vadd.xlane.f32.xlu0 %v2678
    %v2680 = vpop.xlane.xlu0 %2679
    %v2681 = vrcp.pop %v2680
    %v2682 = vmul.f32 %v2677, %v2681
    %2683 = vrot.lane.b32.xlu0 %v2645, 64
    %v2684 = vpop.permute.xlu0 %2683
    %v2686 = vsel %vm2404, %v2682, 0
    %v2688 = vsel %vm2408, %v2684, 0
    %2690 = vmatpush.msra.mxu0 0.0
    %2691 = vmatpush.msra.mxu0 0.0
    %2692 = vmatpush.msra.mxu0 0.0
    %2693 = vmatpush.msra.mxu0 0.0
    %2694 = vmatpush.msra.mxu0 0.0
    %2695 = vmatpush.msra.mxu0 0.0
    %2696 = vmatpush.msra.mxu0 0.0
    %2697 = vmatpush.msra.mxu0 0.0
    %2698 = vmatpush.msra.mxu0 0.0
    %2699 = vmatpush.msra.mxu0 0.0
    %2700 = vmatpush.msra.mxu0 0.0
    %2701 = vmatpush.msra.mxu0 0.0
    %2702 = vmatpush.msra.mxu0 0.0
    %2703 = vmatpush.msra.mxu0 0.0
    %2704 = vmatpush.msra.mxu0 0.0
    %2705 = vmatpush.msra.mxu0 %v2688
    %2706 = vmatmul.f32.gmra.mxu0 %v2686
    %v2707 = vpop.f32.mrf.mxu0
    %v2708 = vadd.f32 0.0, %v2707
    %2709 = vdwg.mxu0
    %2710 = vrot.lane.b32.xlu0 %v2644, 120
    %v2711 = vpop.permute.xlu0 %2710
    %2712 = vrot.lane.b32.xlu0 %v2645, 88
    %v2713 = vpop.permute.xlu0 %2712
    %v2714 = vsel %vm500, %v2711, 0
    %v2716 = vsel %vm500, %v2713, 0
    %2718 = vmatpush.xpose.msra.mxu0 0.0
    %2719 = vmatpush.xpose.msra.mxu0 0.0
    %2720 = vmatpush.xpose.msra.mxu0 0.0
    %2721 = vmatpush.xpose.msra.mxu0 0.0
    %2722 = vmatpush.xpose.msra.mxu0 0.0
    %2723 = vmatpush.xpose.msra.mxu0 0.0
    %2724 = vmatpush.xpose.msra.mxu0 0.0
    %2725 = vmatpush.xpose.msra.mxu0 0.0
    %2726 = vmatpush.xpose.msra.mxu0 0.0
    %2727 = vmatpush.xpose.msra.mxu0 0.0
    %2728 = vmatpush.xpose.msra.mxu0 0.0
    %2729 = vmatpush.xpose.msra.mxu0 0.0
    %2730 = vmatpush.xpose.msra.mxu0 0.0
    %2731 = vmatpush.xpose.msra.mxu0 0.0
    %2732 = vmatpush.xpose.msra.mxu0 0.0
    %2733 = vmatpush.xpose.msra.mxu0 %v2716
    %2734 = vmatmul.f32.gmra.mxu0 %v2714
    %v2735 = vpop.f32.mrf.mxu0
    %v2736 = vadd.f32 %v2280, %v2735
    %2737 = vdwg.mxu0
    %v2738 = vsel %vm2390, %v2736, -inf
    %2739 = vmax.xlane.f32.xlu0 %v2738
    %v2740 = vpop.xlane.xlu0 %2739
    %v2741 = vsub.f32 %v2736, %v2740
    %v2742 = vmul.f32 %v2741, 1.442695
    %v2743 = vpow.pop %v2742
    %v2744 = vsel %vm2390, %v2743, 0.0
    %2745 = vadd.xlane.f32.xlu0 %v2744
    %v2746 = vpop.xlane.xlu0 %2745
    %v2747 = vrcp.pop %v2746
    %v2748 = vmul.f32 %v2743, %v2747
    %2749 = vrot.lane.b32.xlu0 %v2645, 56
    %v2750 = vpop.permute.xlu0 %2749
    %v2752 = vsel %vm2404, %v2748, 0
    %v2754 = vsel %vm2408, %v2750, 0
    %2756 = vmatpush.msra.mxu0 0.0
    %2757 = vmatpush.msra.mxu0 0.0
    %2758 = vmatpush.msra.mxu0 0.0
    %2759 = vmatpush.msra.mxu0 0.0
    %2760 = vmatpush.msra.mxu0 0.0
    %2761 = vmatpush.msra.mxu0 0.0
    %2762 = vmatpush.msra.mxu0 0.0
    %2763 = vmatpush.msra.mxu0 0.0
    %2764 = vmatpush.msra.mxu0 0.0
    %2765 = vmatpush.msra.mxu0 0.0
    %2766 = vmatpush.msra.mxu0 0.0
    %2767 = vmatpush.msra.mxu0 0.0
    %2768 = vmatpush.msra.mxu0 0.0
    %2769 = vmatpush.msra.mxu0 0.0
    %2770 = vmatpush.msra.mxu0 0.0
    %2771 = vmatpush.msra.mxu0 %v2754
    %2772 = vmatmul.f32.gmra.mxu0 %v2752
    %v2773 = vpop.f32.mrf.mxu0
    %v2774 = vadd.f32 0.0, %v2773
    %2775 = vdwg.mxu0
    %2776 = vrot.lane.b32.xlu0 %v2644, 112
    %v2777 = vpop.permute.xlu0 %2776
    %2778 = vrot.lane.b32.xlu0 %v2645, 80
    %v2779 = vpop.permute.xlu0 %2778
    %v2780 = vsel %vm500, %v2777, 0
    %v2782 = vsel %vm500, %v2779, 0
    %2784 = vmatpush.xpose.msra.mxu0 0.0
    %2785 = vmatpush.xpose.msra.mxu0 0.0
    %2786 = vmatpush.xpose.msra.mxu0 0.0
    %2787 = vmatpush.xpose.msra.mxu0 0.0
    %2788 = vmatpush.xpose.msra.mxu0 0.0
    %2789 = vmatpush.xpose.msra.mxu0 0.0
    %2790 = vmatpush.xpose.msra.mxu0 0.0
    %2791 = vmatpush.xpose.msra.mxu0 0.0
    %2792 = vmatpush.xpose.msra.mxu0 0.0
    %2793 = vmatpush.xpose.msra.mxu0 0.0
    %2794 = vmatpush.xpose.msra.mxu0 0.0
    %2795 = vmatpush.xpose.msra.mxu0 0.0
    %2796 = vmatpush.xpose.msra.mxu0 0.0
    %2797 = vmatpush.xpose.msra.mxu0 0.0
    %2798 = vmatpush.xpose.msra.mxu0 0.0
    %2799 = vmatpush.xpose.msra.mxu0 %v2782
    %2800 = vmatmul.f32.gmra.mxu0 %v2780
    %v2801 = vpop.f32.mrf.mxu0
    %v2802 = vadd.f32 %v2280, %v2801
    %2803 = vdwg.mxu0
    %v2804 = vsel %vm2390, %v2802, -inf
    %2805 = vmax.xlane.f32.xlu0 %v2804
    %v2806 = vpop.xlane.xlu0 %2805
    %v2807 = vsub.f32 %v2802, %v2806
    %v2808 = vmul.f32 %v2807, 1.442695
    %v2809 = vpow.pop %v2808
    %v2810 = vsel %vm2390, %v2809, 0.0
    %2811 = vadd.xlane.f32.xlu0 %v2810
    %v2812 = vpop.xlane.xlu0 %2811
    %v2813 = vrcp.pop %v2812
    %v2814 = vmul.f32 %v2809, %v2813
    %2815 = vrot.lane.b32.xlu0 %v2645, 48
    %v2816 = vpop.permute.xlu0 %2815
    %v2818 = vsel %vm2404, %v2814, 0
    %v2820 = vsel %vm2408, %v2816, 0
    %2822 = vmatpush.msra.mxu0 0.0
    %2823 = vmatpush.msra.mxu0 0.0
    %2824 = vmatpush.msra.mxu0 0.0
    %2825 = vmatpush.msra.mxu0 0.0
    %2826 = vmatpush.msra.mxu0 0.0
    %2827 = vmatpush.msra.mxu0 0.0
    %2828 = vmatpush.msra.mxu0 0.0
    %2829 = vmatpush.msra.mxu0 0.0
    %2830 = vmatpush.msra.mxu0 0.0
    %2831 = vmatpush.msra.mxu0 0.0
    %2832 = vmatpush.msra.mxu0 0.0
    %2833 = vmatpush.msra.mxu0 0.0
    %2834 = vmatpush.msra.mxu0 0.0
    %2835 = vmatpush.msra.mxu0 0.0
    %2836 = vmatpush.msra.mxu0 0.0
    %2837 = vmatpush.msra.mxu0 %v2820
    %2838 = vmatmul.f32.gmra.mxu0 %v2818
    %v2839 = vpop.f32.mrf.mxu0
    %v2840 = vadd.f32 0.0, %v2839
    %2841 = vdwg.mxu0
    %2842 = vrot.lane.b32.xlu0 %v2644, 104
    %v2843 = vpop.permute.xlu0 %2842
    %2844 = vrot.lane.b32.xlu0 %v2645, 72
    %v2845 = vpop.permute.xlu0 %2844
    %v2846 = vsel %vm500, %v2843, 0
    %v2848 = vsel %vm500, %v2845, 0
    %2850 = vmatpush.xpose.msra.mxu0 0.0
    %2851 = vmatpush.xpose.msra.mxu0 0.0
    %2852 = vmatpush.xpose.msra.mxu0 0.0
    %2853 = vmatpush.xpose.msra.mxu0 0.0
    %2854 = vmatpush.xpose.msra.mxu0 0.0
    %2855 = vmatpush.xpose.msra.mxu0 0.0
    %2856 = vmatpush.xpose.msra.mxu0 0.0
    %2857 = vmatpush.xpose.msra.mxu0 0.0
    %2858 = vmatpush.xpose.msra.mxu0 0.0
    %2859 = vmatpush.xpose.msra.mxu0 0.0
    %2860 = vmatpush.xpose.msra.mxu0 0.0
    %2861 = vmatpush.xpose.msra.mxu0 0.0
    %2862 = vmatpush.xpose.msra.mxu0 0.0
    %2863 = vmatpush.xpose.msra.mxu0 0.0
    %2864 = vmatpush.xpose.msra.mxu0 0.0
    %2865 = vmatpush.xpose.msra.mxu0 %v2848
    %2866 = vmatmul.f32.gmra.mxu0 %v2846
    %v2867 = vpop.f32.mrf.mxu0
    %v2868 = vadd.f32 %v2280, %v2867
    %2869 = vdwg.mxu0
    %v2870 = vsel %vm2390, %v2868, -inf
    %2871 = vmax.xlane.f32.xlu0 %v2870
    %v2872 = vpop.xlane.xlu0 %2871
    %v2873 = vsub.f32 %v2868, %v2872
    %v2874 = vmul.f32 %v2873, 1.442695
    %v2875 = vpow.pop %v2874
    %v2876 = vsel %vm2390, %v2875, 0.0
    %2877 = vadd.xlane.f32.xlu0 %v2876
    %v2878 = vpop.xlane.xlu0 %2877
    %v2879 = vrcp.pop %v2878
    %v2880 = vmul.f32 %v2875, %v2879
    %2881 = vrot.lane.b32.xlu0 %v2645, 40
    %v2882 = vpop.permute.xlu0 %2881
    %v2884 = vsel %vm2404, %v2880, 0
    %v2886 = vsel %vm2408, %v2882, 0
    %2888 = vmatpush.msra.mxu0 0.0
    %2889 = vmatpush.msra.mxu0 0.0
    %2890 = vmatpush.msra.mxu0 0.0
    %2891 = vmatpush.msra.mxu0 0.0
    %2892 = vmatpush.msra.mxu0 0.0
    %2893 = vmatpush.msra.mxu0 0.0
    %2894 = vmatpush.msra.mxu0 0.0
    %2895 = vmatpush.msra.mxu0 0.0
    %2896 = vmatpush.msra.mxu0 0.0
    %2897 = vmatpush.msra.mxu0 0.0
    %2898 = vmatpush.msra.mxu0 0.0
    %2899 = vmatpush.msra.mxu0 0.0
    %2900 = vmatpush.msra.mxu0 0.0
    %2901 = vmatpush.msra.mxu0 0.0
    %2902 = vmatpush.msra.mxu0 0.0
    %2903 = vmatpush.msra.mxu0 %v2886
    %2904 = vmatmul.f32.gmra.mxu0 %v2884
    %v2905 = vpop.f32.mrf.mxu0
    %v2906 = vadd.f32 0.0, %v2905
    %2907 = vdwg.mxu0
    %2909 = vrot.lane.b32.xlu0 %v2774, 8
    %v2910 = vpop.permute.xlu0 %2909
    %2913 = vrot.lane.b32.xlu0 %v2840, 16
    %v2914 = vpop.permute.xlu0 %2913
    %2917 = vrot.lane.b32.xlu0 %v2906, 24
    %v2918 = vpop.permute.xlu0 %2917
    %v2920 = vsel %vm500, %v2708, %v2910
    %v2921 = vsel %vm771, %v2920, %v2914
    %v2922 = vsel %vm773, %v2921, %v2918
    %v2924 = vrot.slane %v2922, 4
    %v2926 = vsel %vm2408, %v2643, %v2924
    %v2928 = vperm.slane %v2360, 0
    %v2931 = vsel %vm425, %v2926, 0
    %v2934 = vsel %vm425, %v2356, 0
    %v2937 = vsel %vm425, %v2357, 0
    %v2940 = vsel %vm425, %v2358, 0
    %v2943 = vsel %vm425, %v2359, 0
    %2945 = vmatpush.xpose.msra.mxu0 0.0
    %2946 = vmatpush.xpose.msra.mxu0 0.0
    %2947 = vmatpush.xpose.msra.mxu0 0.0
    %2948 = vmatpush.xpose.msra.mxu0 0.0
    %2949 = vmatpush.xpose.msra.mxu0 0.0
    %2950 = vmatpush.xpose.msra.mxu0 0.0
    %2951 = vmatpush.xpose.msra.mxu0 0.0
    %2952 = vmatpush.xpose.msra.mxu0 0.0
    %2953 = vmatpush.xpose.msra.mxu0 0.0
    %2954 = vmatpush.xpose.msra.mxu0 0.0
    %2955 = vmatpush.xpose.msra.mxu0 0.0
    %2956 = vmatpush.xpose.msra.mxu0 0.0
    %2957 = vmatpush.xpose.msra.mxu0 %v2943
    %2958 = vmatpush.xpose.msra.mxu0 %v2940
    %2959 = vmatpush.xpose.msra.mxu0 %v2937
    %2960 = vmatpush.xpose.msra.mxu0 %v2934
    %2961 = vmatmul.f32.gmra.mxu0 %v2931
    %v2962 = vpop.f32.mrf.mxu0
    %v2963 = vadd.f32 %v2928, %v2962
    %2964 = vdwg.mxu0
    %v2965 = vadd.f32 %v2279, %v2963
    %v2966 = vld [vmem:[%s75] sm:$0x1]
    %v2967 = vld [vmem:[%s77] sm:$0x1]
    %v2968 = vsel %vm425, %v2965, 0.0
    %2969 = vadd.xlane.f32.xlu0 %v2968
    %v2970 = vpop.xlane.xlu0 %2969
    %v2971 = vmul.f32 %v2970, %v1111
    %v2972 = vsub.f32 %v2965, %v2971
    %v2973 = vmul.f32 %v2972, %v2972
    %v2974 = vsel %vm425, %v2973, 0.0
    %2975 = vadd.xlane.f32.xlu0 %v2974
    %v2976 = vpop.xlane.xlu0 %2975
    %v2977 = vmul.f32 %v2976, %v1111
    %v2978 = vadd.f32 %v2977, 1e-05
    %v2979 = vrsqrt.pop %v2978
    %v2980 = vmul.f32 %v2979, %v2978
    %v2981 = vmul.f32 %v2980, %v2979
    %v2982 = vmul.f32 0.5, %v2981
    %v2983 = vsub.f32 1.5, %v2982
    %v2984 = vmul.f32 %v2979, %v2983
    %vm2985 = vweird.f32 %v2978
    %vm2986 = vweird.f32 %v2979
    %vm2987 = vmor %vm2985, %vm2986
    %v2988 = vsel %vm2987, %v2979, %v2984
    %v2989 = vmul.f32 %v2972, %v2988
    %v2991 = vperm.slane %v2966, 0
    %v2993 = vmul.f32 %v2989, %v2991
    %v2995 = vperm.slane %v2967, 0
    %v2997 = vadd.f32 %v2993, %v2995
    %v2998 = vld [vmem:[#allocation13] sm:$0xff]
    %v2999 = vld [vmem:[#allocation13 + $0x8] sm:$0xff]
    %v3000 = vld [vmem:[#allocation13 + $0x10] sm:$0xff]
    %v3001 = vld [vmem:[#allocation13 + $0x18] sm:$0xff]
    %v3002 = vld [vmem:[%s57] sm:$0x1]
    %v3004 = vperm.slane %v3002, 0
    %v3007 = vsel %vm425, %v2997, 0
    %v3010 = vsel %vm425, %v2998, 0
    %v3013 = vsel %vm425, %v2999, 0
    %v3016 = vsel %vm425, %v3000, 0
    %v3019 = vsel %vm425, %v3001, 0
    %3021 = vmatpush.xpose.msra.mxu0 0.0
    %3022 = vmatpush.xpose.msra.mxu0 0.0
    %3023 = vmatpush.xpose.msra.mxu0 0.0
    %3024 = vmatpush.xpose.msra.mxu0 0.0
    %3025 = vmatpush.xpose.msra.mxu0 0.0
    %3026 = vmatpush.xpose.msra.mxu0 0.0
    %3027 = vmatpush.xpose.msra.mxu0 0.0
    %3028 = vmatpush.xpose.msra.mxu0 0.0
    %3029 = vmatpush.xpose.msra.mxu0 0.0
    %3030 = vmatpush.xpose.msra.mxu0 0.0
    %3031 = vmatpush.xpose.msra.mxu0 0.0
    %3032 = vmatpush.xpose.msra.mxu0 0.0
    %3033 = vmatpush.xpose.msra.mxu0 %v3019
    %3034 = vmatpush.xpose.msra.mxu0 %v3016
    %3035 = vmatpush.xpose.msra.mxu0 %v3013
    %3036 = vmatpush.xpose.msra.mxu0 %v3010
    %3037 = vmatmul.f32.gmra.mxu0 %v3007
    %v3038 = vpop.f32.mrf.mxu0
    %v3039 = vadd.f32 %v3004, %v3038
    %3040 = vdwg.mxu0
    %v3041 = vld [vmem:[#allocation14] sm:$0xff]
    %v3042 = vld [vmem:[#allocation14 + $0x8] sm:$0xff]
    %v3043 = vld [vmem:[#allocation14 + $0x10] sm:$0xff]
    %v3044 = vld [vmem:[#allocation14 + $0x18] sm:$0xff]
    %v3045 = vld [vmem:[#allocation14 + $0x20] sm:$0xff]
    %v3046 = vld [vmem:[#allocation14 + $0x28] sm:$0xff]
    %v3047 = vld [vmem:[#allocation14 + $0x30] sm:$0xff]
    %v3048 = vld [vmem:[#allocation14 + $0x38] sm:$0xff]
    %v3049 = vld [vmem:[%s61] sm:$0x1]
    %v3051 = vperm.slane %v3049, 0
    %v3054 = vsel %vm425, %v2259, 0
    %v3057 = vsel %vm425, %v2260, 0
    %v3060 = vsel %vm425, %v3041, 0
    %v3063 = vsel %vm425, %v3042, 0
    %v3066 = vsel %vm425, %v3043, 0
    %v3069 = vsel %vm425, %v3044, 0
    %v3072 = vsel %vm425, %v3045, 0
    %v3075 = vsel %vm425, %v3046, 0
    %v3078 = vsel %vm425, %v3047, 0
    %v3081 = vsel %vm425, %v3048, 0
    %3083 = vmatpush.xpose.msra.mxu0 0.0
    %3084 = vmatpush.xpose.msra.mxu0 0.0
    %3085 = vmatpush.xpose.msra.mxu0 0.0
    %3086 = vmatpush.xpose.msra.mxu0 0.0
    %3087 = vmatpush.xpose.msra.mxu0 0.0
    %3088 = vmatpush.xpose.msra.mxu0 0.0
    %3089 = vmatpush.xpose.msra.mxu0 0.0
    %3090 = vmatpush.xpose.msra.mxu0 0.0
    %3091 = vmatpush.xpose.msra.mxu0 %v3081
    %3092 = vmatpush.xpose.msra.mxu0 %v3078
    %3093 = vmatpush.xpose.msra.mxu0 %v3075
    %3094 = vmatpush.xpose.msra.mxu0 %v3072
    %3095 = vmatpush.xpose.msra.mxu0 %v3069
    %3096 = vmatpush.xpose.msra.mxu0 %v3066
    %3097 = vmatpush.xpose.msra.mxu0 %v3063
    %3098 = vmatpush.xpose.msra.mxu0 %v3060
    %3099 = vmatmul.f32.gmra.mxu0 %v3054
    %v3100 = vpop.f32.mrf.mxu0
    %v3101 = vadd.f32 %v3051, %v3100
    %3102 = vmatmul.f32.gmra.mxu0 %v3057
    %v3103 = vpop.f32.mrf.mxu0
    %v3104 = vadd.f32 %v3051, %v3103
    %3105 = vdwg.mxu0
    %v3106 = vld [vmem:[#allocation16] sm:$0xff]
    %v3107 = vld [vmem:[#allocation16 + $0x8] sm:$0xff]
    %v3108 = vld [vmem:[#allocation16 + $0x10] sm:$0xff]
    %v3109 = vld [vmem:[#allocation16 + $0x18] sm:$0xff]
    %v3110 = vld [vmem:[%s65] sm:$0x1]
    %v3111 = vmul.f32 %v3039, 0.35355338
    %v3113 = vsel %vm500, %v3111, 0
    %v3116 = vsel %vm500, %v3101, 0
    %3118 = vmatpush.xpose.msra.mxu0 0.0
    %3119 = vmatpush.xpose.msra.mxu0 0.0
    %3120 = vmatpush.xpose.msra.mxu0 0.0
    %3121 = vmatpush.xpose.msra.mxu0 0.0
    %3122 = vmatpush.xpose.msra.mxu0 0.0
    %3123 = vmatpush.xpose.msra.mxu0 0.0
    %3124 = vmatpush.xpose.msra.mxu0 0.0
    %3125 = vmatpush.xpose.msra.mxu0 0.0
    %3126 = vmatpush.xpose.msra.mxu0 0.0
    %3127 = vmatpush.xpose.msra.mxu0 0.0
    %3128 = vmatpush.xpose.msra.mxu0 0.0
    %3129 = vmatpush.xpose.msra.mxu0 0.0
    %3130 = vmatpush.xpose.msra.mxu0 0.0
    %3131 = vmatpush.xpose.msra.mxu0 0.0
    %3132 = vmatpush.xpose.msra.mxu0 0.0
    %3133 = vmatpush.xpose.msra.mxu0 %v3116
    %3134 = vmatmul.f32.gmra.mxu0 %v3113
    %v3135 = vpop.f32.mrf.mxu0
    %v3136 = vadd.f32 0.0, %v3135
    %3137 = vdwg.mxu0
    %vm3138 = vcmask 60416
    %v3139 = vsel %vm3138, %v3136, -inf
    %3140 = vmax.xlane.f32.xlu0 %v3139
    %v3141 = vpop.xlane.xlu0 %3140
    %v3142 = vsub.f32 %v3136, %v3141
    %v3143 = vmul.f32 %v3142, 1.442695
    %v3144 = vpow.pop %v3143
    %v3145 = vsel %vm3138, %v3144, 0.0
    %3146 = vadd.xlane.f32.xlu0 %v3145
    %v3147 = vpop.xlane.xlu0 %3146
    %v3148 = vrcp.pop %v3147
    %v3149 = vmul.f32 %v3144, %v3148
    %3150 = vrot.lane.b32.xlu0 %v3101, 96
    %v3151 = vpop.permute.xlu0 %3150
    %v3154 = vsel %vm500, %v3149, 0
    %3156 = vmatpush.msra.mxu0 0.0
    %3157 = vmatpush.msra.mxu0 0.0
    %3158 = vmatpush.msra.mxu0 0.0
    %3159 = vmatpush.msra.mxu0 0.0
    %3160 = vmatpush.msra.mxu0 0.0
    %3161 = vmatpush.msra.mxu0 0.0
    %3162 = vmatpush.msra.mxu0 0.0
    %3163 = vmatpush.msra.mxu0 0.0
    %3164 = vmatpush.msra.mxu0 0.0
    %3165 = vmatpush.msra.mxu0 0.0
    %3166 = vmatpush.msra.mxu0 0.0
    %3167 = vmatpush.msra.mxu0 0.0
    %3168 = vmatpush.msra.mxu0 0.0
    %3169 = vmatpush.msra.mxu0 0.0
    %3170 = vmatpush.msra.mxu0 0.0
    %3171 = vmatpush.msra.mxu0 %v3151
    %3172 = vmatmul.f32.gmra.mxu0 %v3154
    %v3173 = vpop.f32.mrf.mxu0
    %v3174 = vadd.f32 0.0, %v3173
    %3175 = vdwg.mxu0
    %3176 = vrot.lane.b32.xlu0 %v3111, 120
    %v3177 = vpop.permute.xlu0 %3176
    %3178 = vrot.lane.b32.xlu0 %v3101, 120
    %v3179 = vpop.permute.xlu0 %3178
    %v3180 = vsel %vm500, %v3177, 0
    %v3182 = vsel %vm500, %v3179, 0
    %3184 = vmatpush.xpose.msra.mxu0 0.0
    %3185 = vmatpush.xpose.msra.mxu0 0.0
    %3186 = vmatpush.xpose.msra.mxu0 0.0
    %3187 = vmatpush.xpose.msra.mxu0 0.0
    %3188 = vmatpush.xpose.msra.mxu0 0.0
    %3189 = vmatpush.xpose.msra.mxu0 0.0
    %3190 = vmatpush.xpose.msra.mxu0 0.0
    %3191 = vmatpush.xpose.msra.mxu0 0.0
    %3192 = vmatpush.xpose.msra.mxu0 0.0
    %3193 = vmatpush.xpose.msra.mxu0 0.0
    %3194 = vmatpush.xpose.msra.mxu0 0.0
    %3195 = vmatpush.xpose.msra.mxu0 0.0
    %3196 = vmatpush.xpose.msra.mxu0 0.0
    %3197 = vmatpush.xpose.msra.mxu0 0.0
    %3198 = vmatpush.xpose.msra.mxu0 0.0
    %3199 = vmatpush.xpose.msra.mxu0 %v3182
    %3200 = vmatmul.f32.gmra.mxu0 %v3180
    %v3201 = vpop.f32.mrf.mxu0
    %v3202 = vadd.f32 0.0, %v3201
    %3203 = vdwg.mxu0
    %v3204 = vsel %vm3138, %v3202, -inf
    %3205 = vmax.xlane.f32.xlu0 %v3204
    %v3206 = vpop.xlane.xlu0 %3205
    %v3207 = vsub.f32 %v3202, %v3206
    %v3208 = vmul.f32 %v3207, 1.442695
    %v3209 = vpow.pop %v3208
    %v3210 = vsel %vm3138, %v3209, 0.0
    %3211 = vadd.xlane.f32.xlu0 %v3210
    %v3212 = vpop.xlane.xlu0 %3211
    %v3213 = vrcp.pop %v3212
    %v3214 = vmul.f32 %v3209, %v3213
    %3215 = vrot.lane.b32.xlu0 %v3101, 88
    %v3216 = vpop.permute.xlu0 %3215
    %v3219 = vsel %vm500, %v3214, 0
    %3221 = vmatpush.msra.mxu0 0.0
    %3222 = vmatpush.msra.mxu0 0.0
    %3223 = vmatpush.msra.mxu0 0.0
    %3224 = vmatpush.msra.mxu0 0.0
    %3225 = vmatpush.msra.mxu0 0.0
    %3226 = vmatpush.msra.mxu0 0.0
    %3227 = vmatpush.msra.mxu0 0.0
    %3228 = vmatpush.msra.mxu0 0.0
    %3229 = vmatpush.msra.mxu0 0.0
    %3230 = vmatpush.msra.mxu0 0.0
    %3231 = vmatpush.msra.mxu0 0.0
    %3232 = vmatpush.msra.mxu0 0.0
    %3233 = vmatpush.msra.mxu0 0.0
    %3234 = vmatpush.msra.mxu0 0.0
    %3235 = vmatpush.msra.mxu0 0.0
    %3236 = vmatpush.msra.mxu0 %v3216
    %3237 = vmatmul.f32.gmra.mxu0 %v3219
    %v3238 = vpop.f32.mrf.mxu0
    %v3239 = vadd.f32 0.0, %v3238
    %3240 = vdwg.mxu0
    %3241 = vrot.lane.b32.xlu0 %v3111, 112
    %v3242 = vpop.permute.xlu0 %3241
    %3243 = vrot.lane.b32.xlu0 %v3101, 112
    %v3244 = vpop.permute.xlu0 %3243
    %v3245 = vsel %vm500, %v3242, 0
    %v3247 = vsel %vm500, %v3244, 0
    %3249 = vmatpush.xpose.msra.mxu0 0.0
    %3250 = vmatpush.xpose.msra.mxu0 0.0
    %3251 = vmatpush.xpose.msra.mxu0 0.0
    %3252 = vmatpush.xpose.msra.mxu0 0.0
    %3253 = vmatpush.xpose.msra.mxu0 0.0
    %3254 = vmatpush.xpose.msra.mxu0 0.0
    %3255 = vmatpush.xpose.msra.mxu0 0.0
    %3256 = vmatpush.xpose.msra.mxu0 0.0
    %3257 = vmatpush.xpose.msra.mxu0 0.0
    %3258 = vmatpush.xpose.msra.mxu0 0.0
    %3259 = vmatpush.xpose.msra.mxu0 0.0
    %3260 = vmatpush.xpose.msra.mxu0 0.0
    %3261 = vmatpush.xpose.msra.mxu0 0.0
    %3262 = vmatpush.xpose.msra.mxu0 0.0
    %3263 = vmatpush.xpose.msra.mxu0 0.0
    %3264 = vmatpush.xpose.msra.mxu0 %v3247
    %3265 = vmatmul.f32.gmra.mxu0 %v3245
    %v3266 = vpop.f32.mrf.mxu0
    %v3267 = vadd.f32 0.0, %v3266
    %3268 = vdwg.mxu0
    %v3269 = vsel %vm3138, %v3267, -inf
    %3270 = vmax.xlane.f32.xlu0 %v3269
    %v3271 = vpop.xlane.xlu0 %3270
    %v3272 = vsub.f32 %v3267, %v3271
    %v3273 = vmul.f32 %v3272, 1.442695
    %v3274 = vpow.pop %v3273
    %v3275 = vsel %vm3138, %v3274, 0.0
    %3276 = vadd.xlane.f32.xlu0 %v3275
    %v3277 = vpop.xlane.xlu0 %3276
    %v3278 = vrcp.pop %v3277
    %v3279 = vmul.f32 %v3274, %v3278
    %3280 = vrot.lane.b32.xlu0 %v3101, 80
    %v3281 = vpop.permute.xlu0 %3280
    %v3284 = vsel %vm500, %v3279, 0
    %3286 = vmatpush.msra.mxu0 0.0
    %3287 = vmatpush.msra.mxu0 0.0
    %3288 = vmatpush.msra.mxu0 0.0
    %3289 = vmatpush.msra.mxu0 0.0
    %3290 = vmatpush.msra.mxu0 0.0
    %3291 = vmatpush.msra.mxu0 0.0
    %3292 = vmatpush.msra.mxu0 0.0
    %3293 = vmatpush.msra.mxu0 0.0
    %3294 = vmatpush.msra.mxu0 0.0
    %3295 = vmatpush.msra.mxu0 0.0
    %3296 = vmatpush.msra.mxu0 0.0
    %3297 = vmatpush.msra.mxu0 0.0
    %3298 = vmatpush.msra.mxu0 0.0
    %3299 = vmatpush.msra.mxu0 0.0
    %3300 = vmatpush.msra.mxu0 0.0
    %3301 = vmatpush.msra.mxu0 %v3281
    %3302 = vmatmul.f32.gmra.mxu0 %v3284
    %v3303 = vpop.f32.mrf.mxu0
    %v3304 = vadd.f32 0.0, %v3303
    %3305 = vdwg.mxu0
    %3306 = vrot.lane.b32.xlu0 %v3111, 104
    %v3307 = vpop.permute.xlu0 %3306
    %3308 = vrot.lane.b32.xlu0 %v3101, 104
    %v3309 = vpop.permute.xlu0 %3308
    %v3310 = vsel %vm500, %v3307, 0
    %v3312 = vsel %vm500, %v3309, 0
    %3314 = vmatpush.xpose.msra.mxu0 0.0
    %3315 = vmatpush.xpose.msra.mxu0 0.0
    %3316 = vmatpush.xpose.msra.mxu0 0.0
    %3317 = vmatpush.xpose.msra.mxu0 0.0
    %3318 = vmatpush.xpose.msra.mxu0 0.0
    %3319 = vmatpush.xpose.msra.mxu0 0.0
    %3320 = vmatpush.xpose.msra.mxu0 0.0
    %3321 = vmatpush.xpose.msra.mxu0 0.0
    %3322 = vmatpush.xpose.msra.mxu0 0.0
    %3323 = vmatpush.xpose.msra.mxu0 0.0
    %3324 = vmatpush.xpose.msra.mxu0 0.0
    %3325 = vmatpush.xpose.msra.mxu0 0.0
    %3326 = vmatpush.xpose.msra.mxu0 0.0
    %3327 = vmatpush.xpose.msra.mxu0 0.0
    %3328 = vmatpush.xpose.msra.mxu0 0.0
    %3329 = vmatpush.xpose.msra.mxu0 %v3312
    %3330 = vmatmul.f32.gmra.mxu0 %v3310
    %v3331 = vpop.f32.mrf.mxu0
    %v3332 = vadd.f32 0.0, %v3331
    %3333 = vdwg.mxu0
    %v3334 = vsel %vm3138, %v3332, -inf
    %3335 = vmax.xlane.f32.xlu0 %v3334
    %v3336 = vpop.xlane.xlu0 %3335
    %v3337 = vsub.f32 %v3332, %v3336
    %v3338 = vmul.f32 %v3337, 1.442695
    %v3339 = vpow.pop %v3338
    %v3340 = vsel %vm3138, %v3339, 0.0
    %3341 = vadd.xlane.f32.xlu0 %v3340
    %v3342 = vpop.xlane.xlu0 %3341
    %v3343 = vrcp.pop %v3342
    %v3344 = vmul.f32 %v3339, %v3343
    %3345 = vrot.lane.b32.xlu0 %v3101, 72
    %v3346 = vpop.permute.xlu0 %3345
    %v3349 = vsel %vm500, %v3344, 0
    %3351 = vmatpush.msra.mxu0 0.0
    %3352 = vmatpush.msra.mxu0 0.0
    %3353 = vmatpush.msra.mxu0 0.0
    %3354 = vmatpush.msra.mxu0 0.0
    %3355 = vmatpush.msra.mxu0 0.0
    %3356 = vmatpush.msra.mxu0 0.0
    %3357 = vmatpush.msra.mxu0 0.0
    %3358 = vmatpush.msra.mxu0 0.0
    %3359 = vmatpush.msra.mxu0 0.0
    %3360 = vmatpush.msra.mxu0 0.0
    %3361 = vmatpush.msra.mxu0 0.0
    %3362 = vmatpush.msra.mxu0 0.0
    %3363 = vmatpush.msra.mxu0 0.0
    %3364 = vmatpush.msra.mxu0 0.0
    %3365 = vmatpush.msra.mxu0 0.0
    %3366 = vmatpush.msra.mxu0 %v3346
    %3367 = vmatmul.f32.gmra.mxu0 %v3349
    %v3368 = vpop.f32.mrf.mxu0
    %v3369 = vadd.f32 0.0, %v3368
    %3370 = vdwg.mxu0
    %3372 = vrot.lane.b32.xlu0 %v3239, 8
    %v3373 = vpop.permute.xlu0 %3372
    %3376 = vrot.lane.b32.xlu0 %v3304, 16
    %v3377 = vpop.permute.xlu0 %3376
    %3380 = vrot.lane.b32.xlu0 %v3369, 24
    %v3381 = vpop.permute.xlu0 %3380
    %v3383 = vsel %vm500, %v3174, %v3373
    %v3384 = vsel %vm771, %v3383, %v3377
    %v3385 = vsel %vm773, %v3384, %v3381
    %v3386 = vrot.slane %v3111, 4
    %v3387 = vsel %vm500, %v3386, 0
    %v3390 = vsel %vm500, %v3104, 0
    %3392 = vmatpush.xpose.msra.mxu0 0.0
    %3393 = vmatpush.xpose.msra.mxu0 0.0
    %3394 = vmatpush.xpose.msra.mxu0 0.0
    %3395 = vmatpush.xpose.msra.mxu0 0.0
    %3396 = vmatpush.xpose.msra.mxu0 0.0
    %3397 = vmatpush.xpose.msra.mxu0 0.0
    %3398 = vmatpush.xpose.msra.mxu0 0.0
    %3399 = vmatpush.xpose.msra.mxu0 0.0
    %3400 = vmatpush.xpose.msra.mxu0 0.0
    %3401 = vmatpush.xpose.msra.mxu0 0.0
    %3402 = vmatpush.xpose.msra.mxu0 0.0
    %3403 = vmatpush.xpose.msra.mxu0 0.0
    %3404 = vmatpush.xpose.msra.mxu0 0.0
    %3405 = vmatpush.xpose.msra.mxu0 0.0
    %3406 = vmatpush.xpose.msra.mxu0 0.0
    %3407 = vmatpush.xpose.msra.mxu0 %v3390
    %3408 = vmatmul.f32.gmra.mxu0 %v3387
    %v3409 = vpop.f32.mrf.mxu0
    %v3410 = vadd.f32 0.0, %v3409
    %3411 = vdwg.mxu0
    %v3412 = vsel %vm3138, %v3410, -inf
    %3413 = vmax.xlane.f32.xlu0 %v3412
    %v3414 = vpop.xlane.xlu0 %3413
    %v3415 = vsub.f32 %v3410, %v3414
    %v3416 = vmul.f32 %v3415, 1.442695
    %v3417 = vpow.pop %v3416
    %v3418 = vsel %vm3138, %v3417, 0.0
    %3419 = vadd.xlane.f32.xlu0 %v3418
    %v3420 = vpop.xlane.xlu0 %3419
    %v3421 = vrcp.pop %v3420
    %v3422 = vmul.f32 %v3417, %v3421
    %3423 = vrot.lane.b32.xlu0 %v3104, 96
    %v3424 = vpop.permute.xlu0 %3423
    %v3427 = vsel %vm500, %v3422, 0
    %3429 = vmatpush.msra.mxu0 0.0
    %3430 = vmatpush.msra.mxu0 0.0
    %3431 = vmatpush.msra.mxu0 0.0
    %3432 = vmatpush.msra.mxu0 0.0
    %3433 = vmatpush.msra.mxu0 0.0
    %3434 = vmatpush.msra.mxu0 0.0
    %3435 = vmatpush.msra.mxu0 0.0
    %3436 = vmatpush.msra.mxu0 0.0
    %3437 = vmatpush.msra.mxu0 0.0
    %3438 = vmatpush.msra.mxu0 0.0
    %3439 = vmatpush.msra.mxu0 0.0
    %3440 = vmatpush.msra.mxu0 0.0
    %3441 = vmatpush.msra.mxu0 0.0
    %3442 = vmatpush.msra.mxu0 0.0
    %3443 = vmatpush.msra.mxu0 0.0
    %3444 = vmatpush.msra.mxu0 %v3424
    %3445 = vmatmul.f32.gmra.mxu0 %v3427
    %v3446 = vpop.f32.mrf.mxu0
    %v3447 = vadd.f32 0.0, %v3446
    %3448 = vdwg.mxu0
    %3449 = vrot.lane.b32.xlu0 %v3386, 120
    %v3450 = vpop.permute.xlu0 %3449
    %3451 = vrot.lane.b32.xlu0 %v3104, 120
    %v3452 = vpop.permute.xlu0 %3451
    %v3453 = vsel %vm500, %v3450, 0
    %v3455 = vsel %vm500, %v3452, 0
    %3457 = vmatpush.xpose.msra.mxu0 0.0
    %3458 = vmatpush.xpose.msra.mxu0 0.0
    %3459 = vmatpush.xpose.msra.mxu0 0.0
    %3460 = vmatpush.xpose.msra.mxu0 0.0
    %3461 = vmatpush.xpose.msra.mxu0 0.0
    %3462 = vmatpush.xpose.msra.mxu0 0.0
    %3463 = vmatpush.xpose.msra.mxu0 0.0
    %3464 = vmatpush.xpose.msra.mxu0 0.0
    %3465 = vmatpush.xpose.msra.mxu0 0.0
    %3466 = vmatpush.xpose.msra.mxu0 0.0
    %3467 = vmatpush.xpose.msra.mxu0 0.0
    %3468 = vmatpush.xpose.msra.mxu0 0.0
    %3469 = vmatpush.xpose.msra.mxu0 0.0
    %3470 = vmatpush.xpose.msra.mxu0 0.0
    %3471 = vmatpush.xpose.msra.mxu0 0.0
    %3472 = vmatpush.xpose.msra.mxu0 %v3455
    %3473 = vmatmul.f32.gmra.mxu0 %v3453
    %v3474 = vpop.f32.mrf.mxu0
    %v3475 = vadd.f32 0.0, %v3474
    %3476 = vdwg.mxu0
    %v3477 = vsel %vm3138, %v3475, -inf
    %3478 = vmax.xlane.f32.xlu0 %v3477
    %v3479 = vpop.xlane.xlu0 %3478
    %v3480 = vsub.f32 %v3475, %v3479
    %v3481 = vmul.f32 %v3480, 1.442695
    %v3482 = vpow.pop %v3481
    %v3483 = vsel %vm3138, %v3482, 0.0
    %3484 = vadd.xlane.f32.xlu0 %v3483
    %v3485 = vpop.xlane.xlu0 %3484
    %v3486 = vrcp.pop %v3485
    %v3487 = vmul.f32 %v3482, %v3486
    %3488 = vrot.lane.b32.xlu0 %v3104, 88
    %v3489 = vpop.permute.xlu0 %3488
    %v3492 = vsel %vm500, %v3487, 0
    %3494 = vmatpush.msra.mxu0 0.0
    %3495 = vmatpush.msra.mxu0 0.0
    %3496 = vmatpush.msra.mxu0 0.0
    %3497 = vmatpush.msra.mxu0 0.0
    %3498 = vmatpush.msra.mxu0 0.0
    %3499 = vmatpush.msra.mxu0 0.0
    %3500 = vmatpush.msra.mxu0 0.0
    %3501 = vmatpush.msra.mxu0 0.0
    %3502 = vmatpush.msra.mxu0 0.0
    %3503 = vmatpush.msra.mxu0 0.0
    %3504 = vmatpush.msra.mxu0 0.0
    %3505 = vmatpush.msra.mxu0 0.0
    %3506 = vmatpush.msra.mxu0 0.0
    %3507 = vmatpush.msra.mxu0 0.0
    %3508 = vmatpush.msra.mxu0 0.0
    %3509 = vmatpush.msra.mxu0 %v3489
    %3510 = vmatmul.f32.gmra.mxu0 %v3492
    %v3511 = vpop.f32.mrf.mxu0
    %v3512 = vadd.f32 0.0, %v3511
    %3513 = vdwg.mxu0
    %3514 = vrot.lane.b32.xlu0 %v3386, 112
    %v3515 = vpop.permute.xlu0 %3514
    %3516 = vrot.lane.b32.xlu0 %v3104, 112
    %v3517 = vpop.permute.xlu0 %3516
    %v3518 = vsel %vm500, %v3515, 0
    %v3520 = vsel %vm500, %v3517, 0
    %3522 = vmatpush.xpose.msra.mxu0 0.0
    %3523 = vmatpush.xpose.msra.mxu0 0.0
    %3524 = vmatpush.xpose.msra.mxu0 0.0
    %3525 = vmatpush.xpose.msra.mxu0 0.0
    %3526 = vmatpush.xpose.msra.mxu0 0.0
    %3527 = vmatpush.xpose.msra.mxu0 0.0
    %3528 = vmatpush.xpose.msra.mxu0 0.0
    %3529 = vmatpush.xpose.msra.mxu0 0.0
    %3530 = vmatpush.xpose.msra.mxu0 0.0
    %3531 = vmatpush.xpose.msra.mxu0 0.0
    %3532 = vmatpush.xpose.msra.mxu0 0.0
    %3533 = vmatpush.xpose.msra.mxu0 0.0
    %3534 = vmatpush.xpose.msra.mxu0 0.0
    %3535 = vmatpush.xpose.msra.mxu0 0.0
    %3536 = vmatpush.xpose.msra.mxu0 0.0
    %3537 = vmatpush.xpose.msra.mxu0 %v3520
    %3538 = vmatmul.f32.gmra.mxu0 %v3518
    %v3539 = vpop.f32.mrf.mxu0
    %v3540 = vadd.f32 0.0, %v3539
    %3541 = vdwg.mxu0
    %v3542 = vsel %vm3138, %v3540, -inf
    %3543 = vmax.xlane.f32.xlu0 %v3542
    %v3544 = vpop.xlane.xlu0 %3543
    %v3545 = vsub.f32 %v3540, %v3544
    %v3546 = vmul.f32 %v3545, 1.442695
    %v3547 = vpow.pop %v3546
    %v3548 = vsel %vm3138, %v3547, 0.0
    %3549 = vadd.xlane.f32.xlu0 %v3548
    %v3550 = vpop.xlane.xlu0 %3549
    %v3551 = vrcp.pop %v3550
    %v3552 = vmul.f32 %v3547, %v3551
    %3553 = vrot.lane.b32.xlu0 %v3104, 80
    %v3554 = vpop.permute.xlu0 %3553
    %v3557 = vsel %vm500, %v3552, 0
    %3559 = vmatpush.msra.mxu0 0.0
    %3560 = vmatpush.msra.mxu0 0.0
    %3561 = vmatpush.msra.mxu0 0.0
    %3562 = vmatpush.msra.mxu0 0.0
    %3563 = vmatpush.msra.mxu0 0.0
    %3564 = vmatpush.msra.mxu0 0.0
    %3565 = vmatpush.msra.mxu0 0.0
    %3566 = vmatpush.msra.mxu0 0.0
    %3567 = vmatpush.msra.mxu0 0.0
    %3568 = vmatpush.msra.mxu0 0.0
    %3569 = vmatpush.msra.mxu0 0.0
    %3570 = vmatpush.msra.mxu0 0.0
    %3571 = vmatpush.msra.mxu0 0.0
    %3572 = vmatpush.msra.mxu0 0.0
    %3573 = vmatpush.msra.mxu0 0.0
    %3574 = vmatpush.msra.mxu0 %v3554
    %3575 = vmatmul.f32.gmra.mxu0 %v3557
    %v3576 = vpop.f32.mrf.mxu0
    %v3577 = vadd.f32 0.0, %v3576
    %3578 = vdwg.mxu0
    %3579 = vrot.lane.b32.xlu0 %v3386, 104
    %v3580 = vpop.permute.xlu0 %3579
    %3581 = vrot.lane.b32.xlu0 %v3104, 104
    %v3582 = vpop.permute.xlu0 %3581
    %v3583 = vsel %vm500, %v3580, 0
    %v3585 = vsel %vm500, %v3582, 0
    %3587 = vmatpush.xpose.msra.mxu0 0.0
    %3588 = vmatpush.xpose.msra.mxu0 0.0
    %3589 = vmatpush.xpose.msra.mxu0 0.0
    %3590 = vmatpush.xpose.msra.mxu0 0.0
    %3591 = vmatpush.xpose.msra.mxu0 0.0
    %3592 = vmatpush.xpose.msra.mxu0 0.0
    %3593 = vmatpush.xpose.msra.mxu0 0.0
    %3594 = vmatpush.xpose.msra.mxu0 0.0
    %3595 = vmatpush.xpose.msra.mxu0 0.0
    %3596 = vmatpush.xpose.msra.mxu0 0.0
    %3597 = vmatpush.xpose.msra.mxu0 0.0
    %3598 = vmatpush.xpose.msra.mxu0 0.0
    %3599 = vmatpush.xpose.msra.mxu0 0.0
    %3600 = vmatpush.xpose.msra.mxu0 0.0
    %3601 = vmatpush.xpose.msra.mxu0 0.0
    %3602 = vmatpush.xpose.msra.mxu0 %v3585
    %3603 = vmatmul.f32.gmra.mxu0 %v3583
    %v3604 = vpop.f32.mrf.mxu0
    %v3605 = vadd.f32 0.0, %v3604
    %3606 = vdwg.mxu0
    %v3607 = vsel %vm3138, %v3605, -inf
    %3608 = vmax.xlane.f32.xlu0 %v3607
    %v3609 = vpop.xlane.xlu0 %3608
    %v3610 = vsub.f32 %v3605, %v3609
    %v3611 = vmul.f32 %v3610, 1.442695
    %v3612 = vpow.pop %v3611
    %v3613 = vsel %vm3138, %v3612, 0.0
    %3614 = vadd.xlane.f32.xlu0 %v3613
    %v3615 = vpop.xlane.xlu0 %3614
    %v3616 = vrcp.pop %v3615
    %v3617 = vmul.f32 %v3612, %v3616
    %3618 = vrot.lane.b32.xlu0 %v3104, 72
    %v3619 = vpop.permute.xlu0 %3618
    %v3622 = vsel %vm500, %v3617, 0
    %3624 = vmatpush.msra.mxu0 0.0
    %3625 = vmatpush.msra.mxu0 0.0
    %3626 = vmatpush.msra.mxu0 0.0
    %3627 = vmatpush.msra.mxu0 0.0
    %3628 = vmatpush.msra.mxu0 0.0
    %3629 = vmatpush.msra.mxu0 0.0
    %3630 = vmatpush.msra.mxu0 0.0
    %3631 = vmatpush.msra.mxu0 0.0
    %3632 = vmatpush.msra.mxu0 0.0
    %3633 = vmatpush.msra.mxu0 0.0
    %3634 = vmatpush.msra.mxu0 0.0
    %3635 = vmatpush.msra.mxu0 0.0
    %3636 = vmatpush.msra.mxu0 0.0
    %3637 = vmatpush.msra.mxu0 0.0
    %3638 = vmatpush.msra.mxu0 0.0
    %3639 = vmatpush.msra.mxu0 %v3619
    %3640 = vmatmul.f32.gmra.mxu0 %v3622
    %v3641 = vpop.f32.mrf.mxu0
    %v3642 = vadd.f32 0.0, %v3641
    %3643 = vdwg.mxu0
    %3645 = vrot.lane.b32.xlu0 %v3512, 8
    %v3646 = vpop.permute.xlu0 %3645
    %3649 = vrot.lane.b32.xlu0 %v3577, 16
    %v3650 = vpop.permute.xlu0 %3649
    %3653 = vrot.lane.b32.xlu0 %v3642, 24
    %v3654 = vpop.permute.xlu0 %3653
    %v3656 = vsel %vm500, %v3447, %v3646
    %v3657 = vsel %vm771, %v3656, %v3650
    %v3658 = vsel %vm773, %v3657, %v3654
    %v3660 = vrot.slane %v3658, 4
    %v3662 = vsel %vm2408, %v3385, %v3660
    %v3664 = vperm.slane %v3110, 0
    %v3667 = vsel %vm425, %v3662, 0
    %v3670 = vsel %vm425, %v3106, 0
    %v3673 = vsel %vm425, %v3107, 0
    %v3676 = vsel %vm425, %v3108, 0
    %v3679 = vsel %vm425, %v3109, 0
    %3681 = vmatpush.xpose.msra.mxu0 0.0
    %3682 = vmatpush.xpose.msra.mxu0 0.0
    %3683 = vmatpush.xpose.msra.mxu0 0.0
    %3684 = vmatpush.xpose.msra.mxu0 0.0
    %3685 = vmatpush.xpose.msra.mxu0 0.0
    %3686 = vmatpush.xpose.msra.mxu0 0.0
    %3687 = vmatpush.xpose.msra.mxu0 0.0
    %3688 = vmatpush.xpose.msra.mxu0 0.0
    %3689 = vmatpush.xpose.msra.mxu0 0.0
    %3690 = vmatpush.xpose.msra.mxu0 0.0
    %3691 = vmatpush.xpose.msra.mxu0 0.0
    %3692 = vmatpush.xpose.msra.mxu0 0.0
    %3693 = vmatpush.xpose.msra.mxu0 %v3679
    %3694 = vmatpush.xpose.msra.mxu0 %v3676
    %3695 = vmatpush.xpose.msra.mxu0 %v3673
    %3696 = vmatpush.xpose.msra.mxu0 %v3670
    %3697 = vmatmul.f32.gmra.mxu0 %v3667
    %v3698 = vpop.f32.mrf.mxu0
    %v3699 = vadd.f32 %v3664, %v3698
    %3700 = vdwg.mxu0
    %v3701 = vadd.f32 %v2997, %v3699
    %v3702 = vld [vmem:[%s79] sm:$0x1]
    %v3703 = vld [vmem:[%s81] sm:$0x1]
    %v3704 = vsel %vm425, %v3701, 0.0
    %3705 = vadd.xlane.f32.xlu0 %v3704
    %v3706 = vpop.xlane.xlu0 %3705
    %v3707 = vmul.f32 %v3706, %v1111
    %v3708 = vsub.f32 %v3701, %v3707
    %v3709 = vmul.f32 %v3708, %v3708
    %v3710 = vsel %vm425, %v3709, 0.0
    %3711 = vadd.xlane.f32.xlu0 %v3710
    %v3712 = vpop.xlane.xlu0 %3711
    %v3713 = vmul.f32 %v3712, %v1111
    %v3714 = vadd.f32 %v3713, 1e-05
    %v3715 = vrsqrt.pop %v3714
    %v3716 = vmul.f32 %v3715, %v3714
    %v3717 = vmul.f32 %v3716, %v3715
    %v3718 = vmul.f32 0.5, %v3717
    %v3719 = vsub.f32 1.5, %v3718
    %v3720 = vmul.f32 %v3715, %v3719
    %vm3721 = vweird.f32 %v3714
    %vm3722 = vweird.f32 %v3715
    %vm3723 = vmor %vm3721, %vm3722
    %v3724 = vsel %vm3723, %v3715, %v3720
    %v3725 = vmul.f32 %v3708, %v3724
    %v3727 = vperm.slane %v3702, 0
    %v3729 = vmul.f32 %v3725, %v3727
    %v3731 = vperm.slane %v3703, 0
    %v3733 = vadd.f32 %v3729, %v3731
    %v3734 = vld [vmem:[#allocation17] sm:$0xff]
    %v3735 = vld [vmem:[#allocation17 + $0x8] sm:$0xff]
    %v3736 = vld [vmem:[#allocation17 + $0x10] sm:$0xff]
    %v3737 = vld [vmem:[#allocation17 + $0x18] sm:$0xff]
    %v3738 = vld [vmem:[#allocation17 + $0x20] sm:$0xff]
    %v3739 = vld [vmem:[#allocation17 + $0x28] sm:$0xff]
    %v3740 = vld [vmem:[#allocation17 + $0x30] sm:$0xff]
    %v3741 = vld [vmem:[#allocation17 + $0x38] sm:$0xff]
    %v3742 = vld [vmem:[%s69] sm:$0x1]
    %v3744 = vperm.slane %v3742, 0
    %v3747 = vsel %vm425, %v3733, 0
    %v3750 = vsel %vm425, %v3734, 0
    %v3753 = vsel %vm425, %v3735, 0
    %v3756 = vsel %vm425, %v3736, 0
    %v3759 = vsel %vm425, %v3737, 0
    %v3762 = vsel %vm425, %v3738, 0
    %v3765 = vsel %vm425, %v3739, 0
    %v3768 = vsel %vm425, %v3740, 0
    %v3771 = vsel %vm425, %v3741, 0
    %3773 = vmatpush.xpose.msra.mxu0 0.0
    %3774 = vmatpush.xpose.msra.mxu0 0.0
    %3775 = vmatpush.xpose.msra.mxu0 0.0
    %3776 = vmatpush.xpose.msra.mxu0 0.0
    %3777 = vmatpush.xpose.msra.mxu0 0.0
    %3778 = vmatpush.xpose.msra.mxu0 0.0
    %3779 = vmatpush.xpose.msra.mxu0 0.0
    %3780 = vmatpush.xpose.msra.mxu0 0.0
    %3781 = vmatpush.xpose.msra.mxu0 %v3771
    %3782 = vmatpush.xpose.msra.mxu0 %v3768
    %3783 = vmatpush.xpose.msra.mxu0 %v3765
    %3784 = vmatpush.xpose.msra.mxu0 %v3762
    %3785 = vmatpush.xpose.msra.mxu0 %v3759
    %3786 = vmatpush.xpose.msra.mxu0 %v3756
    %3787 = vmatpush.xpose.msra.mxu0 %v3753
    %3788 = vmatpush.xpose.msra.mxu0 %v3750
    %3789 = vmatmul.f32.gmra.mxu0 %v3747
    %v3790 = vpop.f32.mrf.mxu0
    %v3791 = vadd.f32 %v3744, %v3790
    %3792 = vdwg.mxu0
    %v3793 = vmax.f32 %v3791, 0.0
    %v3794 = vld [vmem:[#allocation19] sm:$0xff]
    %v3795 = vld [vmem:[#allocation19 + $0x8] sm:$0xff]
    %v3796 = vld [vmem:[#allocation19 + $0x10] sm:$0xff]
    %v3797 = vld [vmem:[#allocation19 + $0x18] sm:$0xff]
    %v3798 = vld [vmem:[%s73] sm:$0x1]
    %v3800 = vperm.slane %v3798, 0
    %v3803 = vsel %vm1235, %v3793, 0
    %v3806 = vsel %vm1235, %v3794, 0
    %v3809 = vsel %vm1235, %v3795, 0
    %v3812 = vsel %vm1235, %v3796, 0
    %v3815 = vsel %vm1235, %v3797, 0
    %3817 = vmatpush.xpose.msra.mxu0 0.0
    %3818 = vmatpush.xpose.msra.mxu0 0.0
    %3819 = vmatpush.xpose.msra.mxu0 0.0
    %3820 = vmatpush.xpose.msra.mxu0 0.0
    %3821 = vmatpush.xpose.msra.mxu0 0.0
    %3822 = vmatpush.xpose.msra.mxu0 0.0
    %3823 = vmatpush.xpose.msra.mxu0 0.0
    %3824 = vmatpush.xpose.msra.mxu0 0.0
    %3825 = vmatpush.xpose.msra.mxu0 0.0
    %3826 = vmatpush.xpose.msra.mxu0 0.0
    %3827 = vmatpush.xpose.msra.mxu0 0.0
    %3828 = vmatpush.xpose.msra.mxu0 0.0
    %3829 = vmatpush.xpose.msra.mxu0 %v3815
    %3830 = vmatpush.xpose.msra.mxu0 %v3812
    %3831 = vmatpush.xpose.msra.mxu0 %v3809
    %3832 = vmatpush.xpose.msra.mxu0 %v3806
    %3833 = vmatmul.f32.gmra.mxu0 %v3803
    %v3834 = vpop.f32.mrf.mxu0
    %v3835 = vadd.f32 %v3800, %v3834
    %3836 = vdwg.mxu0
    %v3837 = vadd.f32 %v3733, %v3835
    %v3838 = vld [vmem:[%s83] sm:$0x1]
    %v3839 = vld [vmem:[%s85] sm:$0x1]
    %v3840 = vsel %vm425, %v3837, 0.0
    %3841 = vadd.xlane.f32.xlu0 %v3840
    %v3842 = vpop.xlane.xlu0 %3841
    %v3843 = vmul.f32 %v3842, %v1111
    %v3844 = vsub.f32 %v3837, %v3843
    %v3845 = vmul.f32 %v3844, %v3844
    %v3846 = vsel %vm425, %v3845, 0.0
    %3847 = vadd.xlane.f32.xlu0 %v3846
    %v3848 = vpop.xlane.xlu0 %3847
    %v3849 = vmul.f32 %v3848, %v1111
    %v3850 = vadd.f32 %v3849, 1e-05
    %v3851 = vrsqrt.pop %v3850
    %v3852 = vmul.f32 %v3851, %v3850
    %v3853 = vmul.f32 %v3852, %v3851
    %v3854 = vmul.f32 0.5, %v3853
    %v3855 = vsub.f32 1.5, %v3854
    %v3856 = vmul.f32 %v3851, %v3855
    %vm3857 = vweird.f32 %v3850
    %vm3858 = vweird.f32 %v3851
    %vm3859 = vmor %vm3857, %vm3858
    %v3860 = vsel %vm3859, %v3851, %v3856
    %v3861 = vmul.f32 %v3844, %v3860
    %v3863 = vperm.slane %v3838, 0
    %v3865 = vmul.f32 %v3861, %v3863
    %v3867 = vperm.slane %v3839, 0
    %v3869 = vadd.f32 %v3865, %v3867
    %s3870 = scalar_lea.vmem [#allocation10], 96
    %v3871 = vld [vmem:[%s3870] sm:$0xff]
    %v3872 = vld [vmem:[%s3870 + $0x8] sm:$0xff]
    %v3873 = vld [vmem:[%s3870 + $0x10] sm:$0xff]
    %v3874 = vld [vmem:[%s3870 + $0x18] sm:$0xff]
    %v3875 = vld [vmem:[%s3870 + $0x20] sm:$0xff]
    %v3876 = vld [vmem:[%s3870 + $0x28] sm:$0xff]
    %v3877 = vld [vmem:[%s3870 + $0x30] sm:$0xff]
    %v3878 = vld [vmem:[%s3870 + $0x38] sm:$0xff]
    %v3879 = vld [vmem:[%s3870 + $0x40] sm:$0xff]
    %v3880 = vld [vmem:[%s3870 + $0x48] sm:$0xff]
    %v3881 = vld [vmem:[%s3870 + $0x50] sm:$0xff]
    %v3882 = vld [vmem:[%s3870 + $0x58] sm:$0xff]
    %s3883 = scalar_lea.vmem %s49, 1
    %v3884 = vld [vmem:[%s3883] sm:$0x1]
    %v3886 = vperm.slane %v3884, 0
    %v3889 = vsel %vm425, %v3869, 0
    %v3892 = vsel %vm425, %v3871, 0
    %v3895 = vsel %vm425, %v3872, 0
    %v3898 = vsel %vm425, %v3873, 0
    %v3901 = vsel %vm425, %v3874, 0
    %v3904 = vsel %vm425, %v3875, 0
    %v3907 = vsel %vm425, %v3876, 0
    %v3910 = vsel %vm425, %v3877, 0
    %v3913 = vsel %vm425, %v3878, 0
    %v3916 = vsel %vm425, %v3879, 0
    %v3919 = vsel %vm425, %v3880, 0
    %v3922 = vsel %vm425, %v3881, 0
    %v3925 = vsel %vm425, %v3882, 0
    %3927 = vmatpush.xpose.msra.mxu0 0.0
    %3928 = vmatpush.xpose.msra.mxu0 0.0
    %3929 = vmatpush.xpose.msra.mxu0 0.0
    %3930 = vmatpush.xpose.msra.mxu0 0.0
    %3931 = vmatpush.xpose.msra.mxu0 %v3925
    %3932 = vmatpush.xpose.msra.mxu0 %v3922
    %3933 = vmatpush.xpose.msra.mxu0 %v3919
    %3934 = vmatpush.xpose.msra.mxu0 %v3916
    %3935 = vmatpush.xpose.msra.mxu0 %v3913
    %3936 = vmatpush.xpose.msra.mxu0 %v3910
    %3937 = vmatpush.xpose.msra.mxu0 %v3907
    %3938 = vmatpush.xpose.msra.mxu0 %v3904
    %3939 = vmatpush.xpose.msra.mxu0 %v3901
    %3940 = vmatpush.xpose.msra.mxu0 %v3898
    %3941 = vmatpush.xpose.msra.mxu0 %v3895
    %3942 = vmatpush.xpose.msra.mxu0 %v3892
    %3943 = vmatmul.f32.gmra.mxu0 %v3889
    %v3944 = vpop.f32.mrf.mxu0
    %v3945 = vadd.f32 %v3886, %v3944
    %3946 = vdwg.mxu0
    %s3947 = scalar_lea.vmem [#allocation11], 32
    %v3948 = vld [vmem:[%s3947] sm:$0xff]
    %v3949 = vld [vmem:[%s3947 + $0x8] sm:$0xff]
    %v3950 = vld [vmem:[%s3947 + $0x10] sm:$0xff]
    %v3951 = vld [vmem:[%s3947 + $0x18] sm:$0xff]
    %s3952 = scalar_lea.vmem %s53, 1
    %v3953 = vld [vmem:[%s3952] sm:$0x1]
    %v3954 = vmul.f32 %v3945, 0.35355338
    %3956 = vrot.lane.b32.xlu0 %v3945, 96
    %v3957 = vpop.permute.xlu0 %3956
    %v3959 = vsel %vm500, %v3954, 0
    %v3961 = vsel %vm500, %v3957, 0
    %3963 = vmatpush.xpose.msra.mxu0 0.0
    %3964 = vmatpush.xpose.msra.mxu0 0.0
    %3965 = vmatpush.xpose.msra.mxu0 0.0
    %3966 = vmatpush.xpose.msra.mxu0 0.0
    %3967 = vmatpush.xpose.msra.mxu0 0.0
    %3968 = vmatpush.xpose.msra.mxu0 0.0
    %3969 = vmatpush.xpose.msra.mxu0 0.0
    %3970 = vmatpush.xpose.msra.mxu0 0.0
    %3971 = vmatpush.xpose.msra.mxu0 0.0
    %3972 = vmatpush.xpose.msra.mxu0 0.0
    %3973 = vmatpush.xpose.msra.mxu0 0.0
    %3974 = vmatpush.xpose.msra.mxu0 0.0
    %3975 = vmatpush.xpose.msra.mxu0 0.0
    %3976 = vmatpush.xpose.msra.mxu0 0.0
    %3977 = vmatpush.xpose.msra.mxu0 0.0
    %3978 = vmatpush.xpose.msra.mxu0 %v3961
    %3979 = vmatmul.f32.gmra.mxu0 %v3959
    %v3980 = vpop.f32.mrf.mxu0
    %v3981 = vadd.f32 %v2280, %v3980
    %3982 = vdwg.mxu0
    %v3983 = vsel %vm2390, %v3981, -inf
    %3984 = vmax.xlane.f32.xlu0 %v3983
    %v3985 = vpop.xlane.xlu0 %3984
    %v3986 = vsub.f32 %v3981, %v3985
    %v3987 = vmul.f32 %v3986, 1.442695
    %v3988 = vpow.pop %v3987
    %v3989 = vsel %vm2390, %v3988, 0.0
    %3990 = vadd.xlane.f32.xlu0 %v3989
    %v3991 = vpop.xlane.xlu0 %3990
    %v3992 = vrcp.pop %v3991
    %v3993 = vmul.f32 %v3988, %v3992
    %3994 = vrot.lane.b32.xlu0 %v3945, 64
    %v3995 = vpop.permute.xlu0 %3994
    %v3997 = vsel %vm2404, %v3993, 0
    %v3999 = vsel %vm2408, %v3995, 0
    %4001 = vmatpush.msra.mxu0 0.0
    %4002 = vmatpush.msra.mxu0 0.0
    %4003 = vmatpush.msra.mxu0 0.0
    %4004 = vmatpush.msra.mxu0 0.0
    %4005 = vmatpush.msra.mxu0 0.0
    %4006 = vmatpush.msra.mxu0 0.0
    %4007 = vmatpush.msra.mxu0 0.0
    %4008 = vmatpush.msra.mxu0 0.0
    %4009 = vmatpush.msra.mxu0 0.0
    %4010 = vmatpush.msra.mxu0 0.0
    %4011 = vmatpush.msra.mxu0 0.0
    %4012 = vmatpush.msra.mxu0 0.0
    %4013 = vmatpush.msra.mxu0 0.0
    %4014 = vmatpush.msra.mxu0 0.0
    %4015 = vmatpush.msra.mxu0 0.0
    %4016 = vmatpush.msra.mxu0 %v3999
    %4017 = vmatmul.f32.gmra.mxu0 %v3997
    %v4018 = vpop.f32.mrf.mxu0
    %v4019 = vadd.f32 0.0, %v4018
    %4020 = vdwg.mxu0
    %4021 = vrot.lane.b32.xlu0 %v3954, 120
    %v4022 = vpop.permute.xlu0 %4021
    %4023 = vrot.lane.b32.xlu0 %v3945, 88
    %v4024 = vpop.permute.xlu0 %4023
    %v4025 = vsel %vm500, %v4022, 0
    %v4027 = vsel %vm500, %v4024, 0
    %4029 = vmatpush.xpose.msra.mxu0 0.0
    %4030 = vmatpush.xpose.msra.mxu0 0.0
    %4031 = vmatpush.xpose.msra.mxu0 0.0
    %4032 = vmatpush.xpose.msra.mxu0 0.0
    %4033 = vmatpush.xpose.msra.mxu0 0.0
    %4034 = vmatpush.xpose.msra.mxu0 0.0
    %4035 = vmatpush.xpose.msra.mxu0 0.0
    %4036 = vmatpush.xpose.msra.mxu0 0.0
    %4037 = vmatpush.xpose.msra.mxu0 0.0
    %4038 = vmatpush.xpose.msra.mxu0 0.0
    %4039 = vmatpush.xpose.msra.mxu0 0.0
    %4040 = vmatpush.xpose.msra.mxu0 0.0
    %4041 = vmatpush.xpose.msra.mxu0 0.0
    %4042 = vmatpush.xpose.msra.mxu0 0.0
    %4043 = vmatpush.xpose.msra.mxu0 0.0
    %4044 = vmatpush.xpose.msra.mxu0 %v4027
    %4045 = vmatmul.f32.gmra.mxu0 %v4025
    %v4046 = vpop.f32.mrf.mxu0
    %v4047 = vadd.f32 %v2280, %v4046
    %4048 = vdwg.mxu0
    %v4049 = vsel %vm2390, %v4047, -inf
    %4050 = vmax.xlane.f32.xlu0 %v4049
    %v4051 = vpop.xlane.xlu0 %4050
    %v4052 = vsub.f32 %v4047, %v4051
    %v4053 = vmul.f32 %v4052, 1.442695
    %v4054 = vpow.pop %v4053
    %v4055 = vsel %vm2390, %v4054, 0.0
    %4056 = vadd.xlane.f32.xlu0 %v4055
    %v4057 = vpop.xlane.xlu0 %4056
    %v4058 = vrcp.pop %v4057
    %v4059 = vmul.f32 %v4054, %v4058
    %4060 = vrot.lane.b32.xlu0 %v3945, 56
    %v4061 = vpop.permute.xlu0 %4060
    %v4063 = vsel %vm2404, %v4059, 0
    %v4065 = vsel %vm2408, %v4061, 0
    %4067 = vmatpush.msra.mxu0 0.0
    %4068 = vmatpush.msra.mxu0 0.0
    %4069 = vmatpush.msra.mxu0 0.0
    %4070 = vmatpush.msra.mxu0 0.0
    %4071 = vmatpush.msra.mxu0 0.0
    %4072 = vmatpush.msra.mxu0 0.0
    %4073 = vmatpush.msra.mxu0 0.0
    %4074 = vmatpush.msra.mxu0 0.0
    %4075 = vmatpush.msra.mxu0 0.0
    %4076 = vmatpush.msra.mxu0 0.0
    %4077 = vmatpush.msra.mxu0 0.0
    %4078 = vmatpush.msra.mxu0 0.0
    %4079 = vmatpush.msra.mxu0 0.0
    %4080 = vmatpush.msra.mxu0 0.0
    %4081 = vmatpush.msra.mxu0 0.0
    %4082 = vmatpush.msra.mxu0 %v4065
    %4083 = vmatmul.f32.gmra.mxu0 %v4063
    %v4084 = vpop.f32.mrf.mxu0
    %v4085 = vadd.f32 0.0, %v4084
    %4086 = vdwg.mxu0
    %4087 = vrot.lane.b32.xlu0 %v3954, 112
    %v4088 = vpop.permute.xlu0 %4087
    %4089 = vrot.lane.b32.xlu0 %v3945, 80
    %v4090 = vpop.permute.xlu0 %4089
    %v4091 = vsel %vm500, %v4088, 0
    %v4093 = vsel %vm500, %v4090, 0
    %4095 = vmatpush.xpose.msra.mxu0 0.0
    %4096 = vmatpush.xpose.msra.mxu0 0.0
    %4097 = vmatpush.xpose.msra.mxu0 0.0
    %4098 = vmatpush.xpose.msra.mxu0 0.0
    %4099 = vmatpush.xpose.msra.mxu0 0.0
    %4100 = vmatpush.xpose.msra.mxu0 0.0
    %4101 = vmatpush.xpose.msra.mxu0 0.0
    %4102 = vmatpush.xpose.msra.mxu0 0.0
    %4103 = vmatpush.xpose.msra.mxu0 0.0
    %4104 = vmatpush.xpose.msra.mxu0 0.0
    %4105 = vmatpush.xpose.msra.mxu0 0.0
    %4106 = vmatpush.xpose.msra.mxu0 0.0
    %4107 = vmatpush.xpose.msra.mxu0 0.0
    %4108 = vmatpush.xpose.msra.mxu0 0.0
    %4109 = vmatpush.xpose.msra.mxu0 0.0
    %4110 = vmatpush.xpose.msra.mxu0 %v4093
    %4111 = vmatmul.f32.gmra.mxu0 %v4091
    %v4112 = vpop.f32.mrf.mxu0
    %v4113 = vadd.f32 %v2280, %v4112
    %4114 = vdwg.mxu0
    %v4115 = vsel %vm2390, %v4113, -inf
    %4116 = vmax.xlane.f32.xlu0 %v4115
    %v4117 = vpop.xlane.xlu0 %4116
    %v4118 = vsub.f32 %v4113, %v4117
    %v4119 = vmul.f32 %v4118, 1.442695
    %v4120 = vpow.pop %v4119
    %v4121 = vsel %vm2390, %v4120, 0.0
    %4122 = vadd.xlane.f32.xlu0 %v4121
    %v4123 = vpop.xlane.xlu0 %4122
    %v4124 = vrcp.pop %v4123
    %v4125 = vmul.f32 %v4120, %v4124
    %4126 = vrot.lane.b32.xlu0 %v3945, 48
    %v4127 = vpop.permute.xlu0 %4126
    %v4129 = vsel %vm2404, %v4125, 0
    %v4131 = vsel %vm2408, %v4127, 0
    %4133 = vmatpush.msra.mxu0 0.0
    %4134 = vmatpush.msra.mxu0 0.0
    %4135 = vmatpush.msra.mxu0 0.0
    %4136 = vmatpush.msra.mxu0 0.0
    %4137 = vmatpush.msra.mxu0 0.0
    %4138 = vmatpush.msra.mxu0 0.0
    %4139 = vmatpush.msra.mxu0 0.0
    %4140 = vmatpush.msra.mxu0 0.0
    %4141 = vmatpush.msra.mxu0 0.0
    %4142 = vmatpush.msra.mxu0 0.0
    %4143 = vmatpush.msra.mxu0 0.0
    %4144 = vmatpush.msra.mxu0 0.0
    %4145 = vmatpush.msra.mxu0 0.0
    %4146 = vmatpush.msra.mxu0 0.0
    %4147 = vmatpush.msra.mxu0 0.0
    %4148 = vmatpush.msra.mxu0 %v4131
    %4149 = vmatmul.f32.gmra.mxu0 %v4129
    %v4150 = vpop.f32.mrf.mxu0
    %v4151 = vadd.f32 0.0, %v4150
    %4152 = vdwg.mxu0
    %4153 = vrot.lane.b32.xlu0 %v3954, 104
    %v4154 = vpop.permute.xlu0 %4153
    %4155 = vrot.lane.b32.xlu0 %v3945, 72
    %v4156 = vpop.permute.xlu0 %4155
    %v4157 = vsel %vm500, %v4154, 0
    %v4159 = vsel %vm500, %v4156, 0
    %4161 = vmatpush.xpose.msra.mxu0 0.0
    %4162 = vmatpush.xpose.msra.mxu0 0.0
    %4163 = vmatpush.xpose.msra.mxu0 0.0
    %4164 = vmatpush.xpose.msra.mxu0 0.0
    %4165 = vmatpush.xpose.msra.mxu0 0.0
    %4166 = vmatpush.xpose.msra.mxu0 0.0
    %4167 = vmatpush.xpose.msra.mxu0 0.0
    %4168 = vmatpush.xpose.msra.mxu0 0.0
    %4169 = vmatpush.xpose.msra.mxu0 0.0
    %4170 = vmatpush.xpose.msra.mxu0 0.0
    %4171 = vmatpush.xpose.msra.mxu0 0.0
    %4172 = vmatpush.xpose.msra.mxu0 0.0
    %4173 = vmatpush.xpose.msra.mxu0 0.0
    %4174 = vmatpush.xpose.msra.mxu0 0.0
    %4175 = vmatpush.xpose.msra.mxu0 0.0
    %4176 = vmatpush.xpose.msra.mxu0 %v4159
    %4177 = vmatmul.f32.gmra.mxu0 %v4157
    %v4178 = vpop.f32.mrf.mxu0
    %v4179 = vadd.f32 %v2280, %v4178
    %4180 = vdwg.mxu0
    %v4181 = vsel %vm2390, %v4179, -inf
    %4182 = vmax.xlane.f32.xlu0 %v4181
    %v4183 = vpop.xlane.xlu0 %4182
    %v4184 = vsub.f32 %v4179, %v4183
    %v4185 = vmul.f32 %v4184, 1.442695
    %v4186 = vpow.pop %v4185
    %v4187 = vsel %vm2390, %v4186, 0.0
    %4188 = vadd.xlane.f32.xlu0 %v4187
    %v4189 = vpop.xlane.xlu0 %4188
    %v4190 = vrcp.pop %v4189
    %v4191 = vmul.f32 %v4186, %v4190
    %4192 = vrot.lane.b32.xlu0 %v3945, 40
    %v4193 = vpop.permute.xlu0 %4192
    %v4195 = vsel %vm2404, %v4191, 0
    %v4197 = vsel %vm2408, %v4193, 0
    %4199 = vmatpush.msra.mxu0 0.0
    %4200 = vmatpush.msra.mxu0 0.0
    %4201 = vmatpush.msra.mxu0 0.0
    %4202 = vmatpush.msra.mxu0 0.0
    %4203 = vmatpush.msra.mxu0 0.0
    %4204 = vmatpush.msra.mxu0 0.0
    %4205 = vmatpush.msra.mxu0 0.0
    %4206 = vmatpush.msra.mxu0 0.0
    %4207 = vmatpush.msra.mxu0 0.0
    %4208 = vmatpush.msra.mxu0 0.0
    %4209 = vmatpush.msra.mxu0 0.0
    %4210 = vmatpush.msra.mxu0 0.0
    %4211 = vmatpush.msra.mxu0 0.0
    %4212 = vmatpush.msra.mxu0 0.0
    %4213 = vmatpush.msra.mxu0 0.0
    %4214 = vmatpush.msra.mxu0 %v4197
    %4215 = vmatmul.f32.gmra.mxu0 %v4195
    %v4216 = vpop.f32.mrf.mxu0
    %v4217 = vadd.f32 0.0, %v4216
    %4218 = vdwg.mxu0
    %4220 = vrot.lane.b32.xlu0 %v4085, 8
    %v4221 = vpop.permute.xlu0 %4220
    %4224 = vrot.lane.b32.xlu0 %v4151, 16
    %v4225 = vpop.permute.xlu0 %4224
    %4228 = vrot.lane.b32.xlu0 %v4217, 24
    %v4229 = vpop.permute.xlu0 %4228
    %v4231 = vsel %vm500, %v4019, %v4221
    %v4232 = vsel %vm771, %v4231, %v4225
    %v4233 = vsel %vm773, %v4232, %v4229
    %v4234 = vrot.slane %v3954, 4
    %v4235 = vrot.slane %v3945, 4
    %4236 = vrot.lane.b32.xlu0 %v4235, 96
    %v4237 = vpop.permute.xlu0 %4236
    %v4238 = vsel %vm500, %v4234, 0
    %v4240 = vsel %vm500, %v4237, 0
    %4242 = vmatpush.xpose.msra.mxu0 0.0
    %4243 = vmatpush.xpose.msra.mxu0 0.0
    %4244 = vmatpush.xpose.msra.mxu0 0.0
    %4245 = vmatpush.xpose.msra.mxu0 0.0
    %4246 = vmatpush.xpose.msra.mxu0 0.0
    %4247 = vmatpush.xpose.msra.mxu0 0.0
    %4248 = vmatpush.xpose.msra.mxu0 0.0
    %4249 = vmatpush.xpose.msra.mxu0 0.0
    %4250 = vmatpush.xpose.msra.mxu0 0.0
    %4251 = vmatpush.xpose.msra.mxu0 0.0
    %4252 = vmatpush.xpose.msra.mxu0 0.0
    %4253 = vmatpush.xpose.msra.mxu0 0.0
    %4254 = vmatpush.xpose.msra.mxu0 0.0
    %4255 = vmatpush.xpose.msra.mxu0 0.0
    %4256 = vmatpush.xpose.msra.mxu0 0.0
    %4257 = vmatpush.xpose.msra.mxu0 %v4240
    %4258 = vmatmul.f32.gmra.mxu0 %v4238
    %v4259 = vpop.f32.mrf.mxu0
    %v4260 = vadd.f32 %v2280, %v4259
    %4261 = vdwg.mxu0
    %v4262 = vsel %vm2390, %v4260, -inf
    %4263 = vmax.xlane.f32.xlu0 %v4262
    %v4264 = vpop.xlane.xlu0 %4263
    %v4265 = vsub.f32 %v4260, %v4264
    %v4266 = vmul.f32 %v4265, 1.442695
    %v4267 = vpow.pop %v4266
    %v4268 = vsel %vm2390, %v4267, 0.0
    %4269 = vadd.xlane.f32.xlu0 %v4268
    %v4270 = vpop.xlane.xlu0 %4269
    %v4271 = vrcp.pop %v4270
    %v4272 = vmul.f32 %v4267, %v4271
    %4273 = vrot.lane.b32.xlu0 %v4235, 64
    %v4274 = vpop.permute.xlu0 %4273
    %v4276 = vsel %vm2404, %v4272, 0
    %v4278 = vsel %vm2408, %v4274, 0
    %4280 = vmatpush.msra.mxu0 0.0
    %4281 = vmatpush.msra.mxu0 0.0
    %4282 = vmatpush.msra.mxu0 0.0
    %4283 = vmatpush.msra.mxu0 0.0
    %4284 = vmatpush.msra.mxu0 0.0
    %4285 = vmatpush.msra.mxu0 0.0
    %4286 = vmatpush.msra.mxu0 0.0
    %4287 = vmatpush.msra.mxu0 0.0
    %4288 = vmatpush.msra.mxu0 0.0
    %4289 = vmatpush.msra.mxu0 0.0
    %4290 = vmatpush.msra.mxu0 0.0
    %4291 = vmatpush.msra.mxu0 0.0
    %4292 = vmatpush.msra.mxu0 0.0
    %4293 = vmatpush.msra.mxu0 0.0
    %4294 = vmatpush.msra.mxu0 0.0
    %4295 = vmatpush.msra.mxu0 %v4278
    %4296 = vmatmul.f32.gmra.mxu0 %v4276
    %v4297 = vpop.f32.mrf.mxu0
    %v4298 = vadd.f32 0.0, %v4297
    %4299 = vdwg.mxu0
    %4300 = vrot.lane.b32.xlu0 %v4234, 120
    %v4301 = vpop.permute.xlu0 %4300
    %4302 = vrot.lane.b32.xlu0 %v4235, 88
    %v4303 = vpop.permute.xlu0 %4302
    %v4304 = vsel %vm500, %v4301, 0
    %v4306 = vsel %vm500, %v4303, 0
    %4308 = vmatpush.xpose.msra.mxu0 0.0
    %4309 = vmatpush.xpose.msra.mxu0 0.0
    %4310 = vmatpush.xpose.msra.mxu0 0.0
    %4311 = vmatpush.xpose.msra.mxu0 0.0
    %4312 = vmatpush.xpose.msra.mxu0 0.0
    %4313 = vmatpush.xpose.msra.mxu0 0.0
    %4314 = vmatpush.xpose.msra.mxu0 0.0
    %4315 = vmatpush.xpose.msra.mxu0 0.0
    %4316 = vmatpush.xpose.msra.mxu0 0.0
    %4317 = vmatpush.xpose.msra.mxu0 0.0
    %4318 = vmatpush.xpose.msra.mxu0 0.0
    %4319 = vmatpush.xpose.msra.mxu0 0.0
    %4320 = vmatpush.xpose.msra.mxu0 0.0
    %4321 = vmatpush.xpose.msra.mxu0 0.0
    %4322 = vmatpush.xpose.msra.mxu0 0.0
    %4323 = vmatpush.xpose.msra.mxu0 %v4306
    %4324 = vmatmul.f32.gmra.mxu0 %v4304
    %v4325 = vpop.f32.mrf.mxu0
    %v4326 = vadd.f32 %v2280, %v4325
    %4327 = vdwg.mxu0
    %v4328 = vsel %vm2390, %v4326, -inf
    %4329 = vmax.xlane.f32.xlu0 %v4328
    %v4330 = vpop.xlane.xlu0 %4329
    %v4331 = vsub.f32 %v4326, %v4330
    %v4332 = vmul.f32 %v4331, 1.442695
    %v4333 = vpow.pop %v4332
    %v4334 = vsel %vm2390, %v4333, 0.0
    %4335 = vadd.xlane.f32.xlu0 %v4334
    %v4336 = vpop.xlane.xlu0 %4335
    %v4337 = vrcp.pop %v4336
    %v4338 = vmul.f32 %v4333, %v4337
    %4339 = vrot.lane.b32.xlu0 %v4235, 56
    %v4340 = vpop.permute.xlu0 %4339
    %v4342 = vsel %vm2404, %v4338, 0
    %v4344 = vsel %vm2408, %v4340, 0
    %4346 = vmatpush.msra.mxu0 0.0
    %4347 = vmatpush.msra.mxu0 0.0
    %4348 = vmatpush.msra.mxu0 0.0
    %4349 = vmatpush.msra.mxu0 0.0
    %4350 = vmatpush.msra.mxu0 0.0
    %4351 = vmatpush.msra.mxu0 0.0
    %4352 = vmatpush.msra.mxu0 0.0
    %4353 = vmatpush.msra.mxu0 0.0
    %4354 = vmatpush.msra.mxu0 0.0
    %4355 = vmatpush.msra.mxu0 0.0
    %4356 = vmatpush.msra.mxu0 0.0
    %4357 = vmatpush.msra.mxu0 0.0
    %4358 = vmatpush.msra.mxu0 0.0
    %4359 = vmatpush.msra.mxu0 0.0
    %4360 = vmatpush.msra.mxu0 0.0
    %4361 = vmatpush.msra.mxu0 %v4344
    %4362 = vmatmul.f32.gmra.mxu0 %v4342
    %v4363 = vpop.f32.mrf.mxu0
    %v4364 = vadd.f32 0.0, %v4363
    %4365 = vdwg.mxu0
    %4366 = vrot.lane.b32.xlu0 %v4234, 112
    %v4367 = vpop.permute.xlu0 %4366
    %4368 = vrot.lane.b32.xlu0 %v4235, 80
    %v4369 = vpop.permute.xlu0 %4368
    %v4370 = vsel %vm500, %v4367, 0
    %v4372 = vsel %vm500, %v4369, 0
    %4374 = vmatpush.xpose.msra.mxu0 0.0
    %4375 = vmatpush.xpose.msra.mxu0 0.0
    %4376 = vmatpush.xpose.msra.mxu0 0.0
    %4377 = vmatpush.xpose.msra.mxu0 0.0
    %4378 = vmatpush.xpose.msra.mxu0 0.0
    %4379 = vmatpush.xpose.msra.mxu0 0.0
    %4380 = vmatpush.xpose.msra.mxu0 0.0
    %4381 = vmatpush.xpose.msra.mxu0 0.0
    %4382 = vmatpush.xpose.msra.mxu0 0.0
    %4383 = vmatpush.xpose.msra.mxu0 0.0
    %4384 = vmatpush.xpose.msra.mxu0 0.0
    %4385 = vmatpush.xpose.msra.mxu0 0.0
    %4386 = vmatpush.xpose.msra.mxu0 0.0
    %4387 = vmatpush.xpose.msra.mxu0 0.0
    %4388 = vmatpush.xpose.msra.mxu0 0.0
    %4389 = vmatpush.xpose.msra.mxu0 %v4372
    %4390 = vmatmul.f32.gmra.mxu0 %v4370
    %v4391 = vpop.f32.mrf.mxu0
    %v4392 = vadd.f32 %v2280, %v4391
    %4393 = vdwg.mxu0
    %v4394 = vsel %vm2390, %v4392, -inf
    %4395 = vmax.xlane.f32.xlu0 %v4394
    %v4396 = vpop.xlane.xlu0 %4395
    %v4397 = vsub.f32 %v4392, %v4396
    %v4398 = vmul.f32 %v4397, 1.442695
    %v4399 = vpow.pop %v4398
    %v4400 = vsel %vm2390, %v4399, 0.0
    %4401 = vadd.xlane.f32.xlu0 %v4400
    %v4402 = vpop.xlane.xlu0 %4401
    %v4403 = vrcp.pop %v4402
    %v4404 = vmul.f32 %v4399, %v4403
    %4405 = vrot.lane.b32.xlu0 %v4235, 48
    %v4406 = vpop.permute.xlu0 %4405
    %v4408 = vsel %vm2404, %v4404, 0
    %v4410 = vsel %vm2408, %v4406, 0
    %4412 = vmatpush.msra.mxu0 0.0
    %4413 = vmatpush.msra.mxu0 0.0
    %4414 = vmatpush.msra.mxu0 0.0
    %4415 = vmatpush.msra.mxu0 0.0
    %4416 = vmatpush.msra.mxu0 0.0
    %4417 = vmatpush.msra.mxu0 0.0
    %4418 = vmatpush.msra.mxu0 0.0
    %4419 = vmatpush.msra.mxu0 0.0
    %4420 = vmatpush.msra.mxu0 0.0
    %4421 = vmatpush.msra.mxu0 0.0
    %4422 = vmatpush.msra.mxu0 0.0
    %4423 = vmatpush.msra.mxu0 0.0
    %4424 = vmatpush.msra.mxu0 0.0
    %4425 = vmatpush.msra.mxu0 0.0
    %4426 = vmatpush.msra.mxu0 0.0
    %4427 = vmatpush.msra.mxu0 %v4410
    %4428 = vmatmul.f32.gmra.mxu0 %v4408
    %v4429 = vpop.f32.mrf.mxu0
    %v4430 = vadd.f32 0.0, %v4429
    %4431 = vdwg.mxu0
    %4432 = vrot.lane.b32.xlu0 %v4234, 104
    %v4433 = vpop.permute.xlu0 %4432
    %4434 = vrot.lane.b32.xlu0 %v4235, 72
    %v4435 = vpop.permute.xlu0 %4434
    %v4436 = vsel %vm500, %v4433, 0
    %v4438 = vsel %vm500, %v4435, 0
    %4440 = vmatpush.xpose.msra.mxu0 0.0
    %4441 = vmatpush.xpose.msra.mxu0 0.0
    %4442 = vmatpush.xpose.msra.mxu0 0.0
    %4443 = vmatpush.xpose.msra.mxu0 0.0
    %4444 = vmatpush.xpose.msra.mxu0 0.0
    %4445 = vmatpush.xpose.msra.mxu0 0.0
    %4446 = vmatpush.xpose.msra.mxu0 0.0
    %4447 = vmatpush.xpose.msra.mxu0 0.0
    %4448 = vmatpush.xpose.msra.mxu0 0.0
    %4449 = vmatpush.xpose.msra.mxu0 0.0
    %4450 = vmatpush.xpose.msra.mxu0 0.0
    %4451 = vmatpush.xpose.msra.mxu0 0.0
    %4452 = vmatpush.xpose.msra.mxu0 0.0
    %4453 = vmatpush.xpose.msra.mxu0 0.0
    %4454 = vmatpush.xpose.msra.mxu0 0.0
    %4455 = vmatpush.xpose.msra.mxu0 %v4438
    %4456 = vmatmul.f32.gmra.mxu0 %v4436
    %v4457 = vpop.f32.mrf.mxu0
    %v4458 = vadd.f32 %v2280, %v4457
    %4459 = vdwg.mxu0
    %v4460 = vsel %vm2390, %v4458, -inf
    %4461 = vmax.xlane.f32.xlu0 %v4460
    %v4462 = vpop.xlane.xlu0 %4461
    %v4463 = vsub.f32 %v4458, %v4462
    %v4464 = vmul.f32 %v4463, 1.442695
    %v4465 = vpow.pop %v4464
    %v4466 = vsel %vm2390, %v4465, 0.0
    %4467 = vadd.xlane.f32.xlu0 %v4466
    %v4468 = vpop.xlane.xlu0 %4467
    %v4469 = vrcp.pop %v4468
    %v4470 = vmul.f32 %v4465, %v4469
    %4471 = vrot.lane.b32.xlu0 %v4235, 40
    %v4472 = vpop.permute.xlu0 %4471
    %v4474 = vsel %vm2404, %v4470, 0
    %v4476 = vsel %vm2408, %v4472, 0
    %4478 = vmatpush.msra.mxu0 0.0
    %4479 = vmatpush.msra.mxu0 0.0
    %4480 = vmatpush.msra.mxu0 0.0
    %4481 = vmatpush.msra.mxu0 0.0
    %4482 = vmatpush.msra.mxu0 0.0
    %4483 = vmatpush.msra.mxu0 0.0
    %4484 = vmatpush.msra.mxu0 0.0
    %4485 = vmatpush.msra.mxu0 0.0
    %4486 = vmatpush.msra.mxu0 0.0
    %4487 = vmatpush.msra.mxu0 0.0
    %4488 = vmatpush.msra.mxu0 0.0
    %4489 = vmatpush.msra.mxu0 0.0
    %4490 = vmatpush.msra.mxu0 0.0
    %4491 = vmatpush.msra.mxu0 0.0
    %4492 = vmatpush.msra.mxu0 0.0
    %4493 = vmatpush.msra.mxu0 %v4476
    %4494 = vmatmul.f32.gmra.mxu0 %v4474
    %v4495 = vpop.f32.mrf.mxu0
    %v4496 = vadd.f32 0.0, %v4495
    %4497 = vdwg.mxu0
    %4499 = vrot.lane.b32.xlu0 %v4364, 8
    %v4500 = vpop.permute.xlu0 %4499
    %4503 = vrot.lane.b32.xlu0 %v4430, 16
    %v4504 = vpop.permute.xlu0 %4503
    %4507 = vrot.lane.b32.xlu0 %v4496, 24
    %v4508 = vpop.permute.xlu0 %4507
    %v4510 = vsel %vm500, %v4298, %v4500
    %v4511 = vsel %vm771, %v4510, %v4504
    %v4512 = vsel %vm773, %v4511, %v4508
    %v4514 = vrot.slane %v4512, 4
    %v4516 = vsel %vm2408, %v4233, %v4514
    %v4518 = vperm.slane %v3953, 0
    %v4521 = vsel %vm425, %v4516, 0
    %v4524 = vsel %vm425, %v3948, 0
    %v4527 = vsel %vm425, %v3949, 0
    %v4530 = vsel %vm425, %v3950, 0
    %v4533 = vsel %vm425, %v3951, 0
    %4535 = vmatpush.xpose.msra.mxu0 0.0
    %4536 = vmatpush.xpose.msra.mxu0 0.0
    %4537 = vmatpush.xpose.msra.mxu0 0.0
    %4538 = vmatpush.xpose.msra.mxu0 0.0
    %4539 = vmatpush.xpose.msra.mxu0 0.0
    %4540 = vmatpush.xpose.msra.mxu0 0.0
    %4541 = vmatpush.xpose.msra.mxu0 0.0
    %4542 = vmatpush.xpose.msra.mxu0 0.0
    %4543 = vmatpush.xpose.msra.mxu0 0.0
    %4544 = vmatpush.xpose.msra.mxu0 0.0
    %4545 = vmatpush.xpose.msra.mxu0 0.0
    %4546 = vmatpush.xpose.msra.mxu0 0.0
    %4547 = vmatpush.xpose.msra.mxu0 %v4533
    %4548 = vmatpush.xpose.msra.mxu0 %v4530
    %4549 = vmatpush.xpose.msra.mxu0 %v4527
    %4550 = vmatpush.xpose.msra.mxu0 %v4524
    %4551 = vmatmul.f32.gmra.mxu0 %v4521
    %v4552 = vpop.f32.mrf.mxu0
    %v4553 = vadd.f32 %v4518, %v4552
    %4554 = vdwg.mxu0
    %v4555 = vadd.f32 %v3869, %v4553
    %s4556 = scalar_lea.vmem %s75, 1
    %v4557 = vld [vmem:[%s4556] sm:$0x1]
    %s4558 = scalar_lea.vmem %s77, 1
    %v4559 = vld [vmem:[%s4558] sm:$0x1]
    %v4560 = vsel %vm425, %v4555, 0.0
    %4561 = vadd.xlane.f32.xlu0 %v4560
    %v4562 = vpop.xlane.xlu0 %4561
    %v4563 = vmul.f32 %v4562, %v1111
    %v4564 = vsub.f32 %v4555, %v4563
    %v4565 = vmul.f32 %v4564, %v4564
    %v4566 = vsel %vm425, %v4565, 0.0
    %4567 = vadd.xlane.f32.xlu0 %v4566
    %v4568 = vpop.xlane.xlu0 %4567
    %v4569 = vmul.f32 %v4568, %v1111
    %v4570 = vadd.f32 %v4569, 1e-05
    %v4571 = vrsqrt.pop %v4570
    %v4572 = vmul.f32 %v4571, %v4570
    %v4573 = vmul.f32 %v4572, %v4571
    %v4574 = vmul.f32 0.5, %v4573
    %v4575 = vsub.f32 1.5, %v4574
    %v4576 = vmul.f32 %v4571, %v4575
    %vm4577 = vweird.f32 %v4570
    %vm4578 = vweird.f32 %v4571
    %vm4579 = vmor %vm4577, %vm4578
    %v4580 = vsel %vm4579, %v4571, %v4576
    %v4581 = vmul.f32 %v4564, %v4580
    %v4583 = vperm.slane %v4557, 0
    %v4585 = vmul.f32 %v4581, %v4583
    %v4587 = vperm.slane %v4559, 0
    %v4589 = vadd.f32 %v4585, %v4587
    %s4590 = scalar_lea.vmem [#allocation13], 32
    %v4591 = vld [vmem:[%s4590] sm:$0xff]
    %v4592 = vld [vmem:[%s4590 + $0x8] sm:$0xff]
    %v4593 = vld [vmem:[%s4590 + $0x10] sm:$0xff]
    %v4594 = vld [vmem:[%s4590 + $0x18] sm:$0xff]
    %s4595 = scalar_lea.vmem %s57, 1
    %v4596 = vld [vmem:[%s4595] sm:$0x1]
    %v4598 = vperm.slane %v4596, 0
    %v4601 = vsel %vm425, %v4589, 0
    %v4604 = vsel %vm425, %v4591, 0
    %v4607 = vsel %vm425, %v4592, 0
    %v4610 = vsel %vm425, %v4593, 0
    %v4613 = vsel %vm425, %v4594, 0
    %4615 = vmatpush.xpose.msra.mxu0 0.0
    %4616 = vmatpush.xpose.msra.mxu0 0.0
    %4617 = vmatpush.xpose.msra.mxu0 0.0
    %4618 = vmatpush.xpose.msra.mxu0 0.0
    %4619 = vmatpush.xpose.msra.mxu0 0.0
    %4620 = vmatpush.xpose.msra.mxu0 0.0
    %4621 = vmatpush.xpose.msra.mxu0 0.0
    %4622 = vmatpush.xpose.msra.mxu0 0.0
    %4623 = vmatpush.xpose.msra.mxu0 0.0
    %4624 = vmatpush.xpose.msra.mxu0 0.0
    %4625 = vmatpush.xpose.msra.mxu0 0.0
    %4626 = vmatpush.xpose.msra.mxu0 0.0
    %4627 = vmatpush.xpose.msra.mxu0 %v4613
    %4628 = vmatpush.xpose.msra.mxu0 %v4610
    %4629 = vmatpush.xpose.msra.mxu0 %v4607
    %4630 = vmatpush.xpose.msra.mxu0 %v4604
    %4631 = vmatmul.f32.gmra.mxu0 %v4601
    %v4632 = vpop.f32.mrf.mxu0
    %v4633 = vadd.f32 %v4598, %v4632
    %4634 = vdwg.mxu0
    %s4635 = scalar_lea.vmem [#allocation14], 64
    %v4636 = vld [vmem:[%s4635] sm:$0xff]
    %v4637 = vld [vmem:[%s4635 + $0x8] sm:$0xff]
    %v4638 = vld [vmem:[%s4635 + $0x10] sm:$0xff]
    %v4639 = vld [vmem:[%s4635 + $0x18] sm:$0xff]
    %v4640 = vld [vmem:[%s4635 + $0x20] sm:$0xff]
    %v4641 = vld [vmem:[%s4635 + $0x28] sm:$0xff]
    %v4642 = vld [vmem:[%s4635 + $0x30] sm:$0xff]
    %v4643 = vld [vmem:[%s4635 + $0x38] sm:$0xff]
    %s4644 = scalar_lea.vmem %s61, 1
    %v4645 = vld [vmem:[%s4644] sm:$0x1]
    %v4647 = vperm.slane %v4645, 0
    %v4650 = vsel %vm425, %v4636, 0
    %v4653 = vsel %vm425, %v4637, 0
    %v4656 = vsel %vm425, %v4638, 0
    %v4659 = vsel %vm425, %v4639, 0
    %v4662 = vsel %vm425, %v4640, 0
    %v4665 = vsel %vm425, %v4641, 0
    %v4668 = vsel %vm425, %v4642, 0
    %v4671 = vsel %vm425, %v4643, 0
    %4673 = vmatpush.xpose.msra.mxu0 0.0
    %4674 = vmatpush.xpose.msra.mxu0 0.0
    %4675 = vmatpush.xpose.msra.mxu0 0.0
    %4676 = vmatpush.xpose.msra.mxu0 0.0
    %4677 = vmatpush.xpose.msra.mxu0 0.0
    %4678 = vmatpush.xpose.msra.mxu0 0.0
    %4679 = vmatpush.xpose.msra.mxu0 0.0
    %4680 = vmatpush.xpose.msra.mxu0 0.0
    %4681 = vmatpush.xpose.msra.mxu0 %v4671
    %4682 = vmatpush.xpose.msra.mxu0 %v4668
    %4683 = vmatpush.xpose.msra.mxu0 %v4665
    %4684 = vmatpush.xpose.msra.mxu0 %v4662
    %4685 = vmatpush.xpose.msra.mxu0 %v4659
    %4686 = vmatpush.xpose.msra.mxu0 %v4656
    %4687 = vmatpush.xpose.msra.mxu0 %v4653
    %4688 = vmatpush.xpose.msra.mxu0 %v4650
    %4689 = vmatmul.f32.gmra.mxu0 %v3054
    %v4690 = vpop.f32.mrf.mxu0
    %v4691 = vadd.f32 %v4647, %v4690
    %4692 = vmatmul.f32.gmra.mxu0 %v3057
    %v4693 = vpop.f32.mrf.mxu0
    %v4694 = vadd.f32 %v4647, %v4693
    %4695 = vdwg.mxu0
    %s4696 = scalar_lea.vmem [#allocation16], 32
    %v4697 = vld [vmem:[%s4696] sm:$0xff]
    %v4698 = vld [vmem:[%s4696 + $0x8] sm:$0xff]
    %v4699 = vld [vmem:[%s4696 + $0x10] sm:$0xff]
    %v4700 = vld [vmem:[%s4696 + $0x18] sm:$0xff]
    %s4701 = scalar_lea.vmem %s65, 1
    %v4702 = vld [vmem:[%s4701] sm:$0x1]
    %v4703 = vmul.f32 %v4633, 0.35355338
    %v4705 = vsel %vm500, %v4703, 0
    %v4708 = vsel %vm500, %v4691, 0
    %4710 = vmatpush.xpose.msra.mxu0 0.0
    %4711 = vmatpush.xpose.msra.mxu0 0.0
    %4712 = vmatpush.xpose.msra.mxu0 0.0
    %4713 = vmatpush.xpose.msra.mxu0 0.0
    %4714 = vmatpush.xpose.msra.mxu0 0.0
    %4715 = vmatpush.xpose.msra.mxu0 0.0
    %4716 = vmatpush.xpose.msra.mxu0 0.0
    %4717 = vmatpush.xpose.msra.mxu0 0.0
    %4718 = vmatpush.xpose.msra.mxu0 0.0
    %4719 = vmatpush.xpose.msra.mxu0 0.0
    %4720 = vmatpush.xpose.msra.mxu0 0.0
    %4721 = vmatpush.xpose.msra.mxu0 0.0
    %4722 = vmatpush.xpose.msra.mxu0 0.0
    %4723 = vmatpush.xpose.msra.mxu0 0.0
    %4724 = vmatpush.xpose.msra.mxu0 0.0
    %4725 = vmatpush.xpose.msra.mxu0 %v4708
    %4726 = vmatmul.f32.gmra.mxu0 %v4705
    %v4727 = vpop.f32.mrf.mxu0
    %v4728 = vadd.f32 0.0, %v4727
    %4729 = vdwg.mxu0
    %v4730 = vsel %vm3138, %v4728, -inf
    %4731 = vmax.xlane.f32.xlu0 %v4730
    %v4732 = vpop.xlane.xlu0 %4731
    %v4733 = vsub.f32 %v4728, %v4732
    %v4734 = vmul.f32 %v4733, 1.442695
    %v4735 = vpow.pop %v4734
    %v4736 = vsel %vm3138, %v4735, 0.0
    %4737 = vadd.xlane.f32.xlu0 %v4736
    %v4738 = vpop.xlane.xlu0 %4737
    %v4739 = vrcp.pop %v4738
    %v4740 = vmul.f32 %v4735, %v4739
    %4741 = vrot.lane.b32.xlu0 %v4691, 96
    %v4742 = vpop.permute.xlu0 %4741
    %v4745 = vsel %vm500, %v4740, 0
    %4747 = vmatpush.msra.mxu0 0.0
    %4748 = vmatpush.msra.mxu0 0.0
    %4749 = vmatpush.msra.mxu0 0.0
    %4750 = vmatpush.msra.mxu0 0.0
    %4751 = vmatpush.msra.mxu0 0.0
    %4752 = vmatpush.msra.mxu0 0.0
    %4753 = vmatpush.msra.mxu0 0.0
    %4754 = vmatpush.msra.mxu0 0.0
    %4755 = vmatpush.msra.mxu0 0.0
    %4756 = vmatpush.msra.mxu0 0.0
    %4757 = vmatpush.msra.mxu0 0.0
    %4758 = vmatpush.msra.mxu0 0.0
    %4759 = vmatpush.msra.mxu0 0.0
    %4760 = vmatpush.msra.mxu0 0.0
    %4761 = vmatpush.msra.mxu0 0.0
    %4762 = vmatpush.msra.mxu0 %v4742
    %4763 = vmatmul.f32.gmra.mxu0 %v4745
    %v4764 = vpop.f32.mrf.mxu0
    %v4765 = vadd.f32 0.0, %v4764
    %4766 = vdwg.mxu0
    %4767 = vrot.lane.b32.xlu0 %v4703, 120
    %v4768 = vpop.permute.xlu0 %4767
    %4769 = vrot.lane.b32.xlu0 %v4691, 120
    %v4770 = vpop.permute.xlu0 %4769
    %v4771 = vsel %vm500, %v4768, 0
    %v4773 = vsel %vm500, %v4770, 0
    %4775 = vmatpush.xpose.msra.mxu0 0.0
    %4776 = vmatpush.xpose.msra.mxu0 0.0
    %4777 = vmatpush.xpose.msra.mxu0 0.0
    %4778 = vmatpush.xpose.msra.mxu0 0.0
    %4779 = vmatpush.xpose.msra.mxu0 0.0
    %4780 = vmatpush.xpose.msra.mxu0 0.0
    %4781 = vmatpush.xpose.msra.mxu0 0.0
    %4782 = vmatpush.xpose.msra.mxu0 0.0
    %4783 = vmatpush.xpose.msra.mxu0 0.0
    %4784 = vmatpush.xpose.msra.mxu0 0.0
    %4785 = vmatpush.xpose.msra.mxu0 0.0
    %4786 = vmatpush.xpose.msra.mxu0 0.0
    %4787 = vmatpush.xpose.msra.mxu0 0.0
    %4788 = vmatpush.xpose.msra.mxu0 0.0
    %4789 = vmatpush.xpose.msra.mxu0 0.0
    %4790 = vmatpush.xpose.msra.mxu0 %v4773
    %4791 = vmatmul.f32.gmra.mxu0 %v4771
    %v4792 = vpop.f32.mrf.mxu0
    %v4793 = vadd.f32 0.0, %v4792
    %4794 = vdwg.mxu0
    %v4795 = vsel %vm3138, %v4793, -inf
    %4796 = vmax.xlane.f32.xlu0 %v4795
    %v4797 = vpop.xlane.xlu0 %4796
    %v4798 = vsub.f32 %v4793, %v4797
    %v4799 = vmul.f32 %v4798, 1.442695
    %v4800 = vpow.pop %v4799
    %v4801 = vsel %vm3138, %v4800, 0.0
    %4802 = vadd.xlane.f32.xlu0 %v4801
    %v4803 = vpop.xlane.xlu0 %4802
    %v4804 = vrcp.pop %v4803
    %v4805 = vmul.f32 %v4800, %v4804
    %4806 = vrot.lane.b32.xlu0 %v4691, 88
    %v4807 = vpop.permute.xlu0 %4806
    %v4810 = vsel %vm500, %v4805, 0
    %4812 = vmatpush.msra.mxu0 0.0
    %4813 = vmatpush.msra.mxu0 0.0
    %4814 = vmatpush.msra.mxu0 0.0
    %4815 = vmatpush.msra.mxu0 0.0
    %4816 = vmatpush.msra.mxu0 0.0
    %4817 = vmatpush.msra.mxu0 0.0
    %4818 = vmatpush.msra.mxu0 0.0
    %4819 = vmatpush.msra.mxu0 0.0
    %4820 = vmatpush.msra.mxu0 0.0
    %4821 = vmatpush.msra.mxu0 0.0
    %4822 = vmatpush.msra.mxu0 0.0
    %4823 = vmatpush.msra.mxu0 0.0
    %4824 = vmatpush.msra.mxu0 0.0
    %4825 = vmatpush.msra.mxu0 0.0
    %4826 = vmatpush.msra.mxu0 0.0
    %4827 = vmatpush.msra.mxu0 %v4807
    %4828 = vmatmul.f32.gmra.mxu0 %v4810
    %v4829 = vpop.f32.mrf.mxu0
    %v4830 = vadd.f32 0.0, %v4829
    %4831 = vdwg.mxu0
    %4832 = vrot.lane.b32.xlu0 %v4703, 112
    %v4833 = vpop.permute.xlu0 %4832
    %4834 = vrot.lane.b32.xlu0 %v4691, 112
    %v4835 = vpop.permute.xlu0 %4834
    %v4836 = vsel %vm500, %v4833, 0
    %v4838 = vsel %vm500, %v4835, 0
    %4840 = vmatpush.xpose.msra.mxu0 0.0
    %4841 = vmatpush.xpose.msra.mxu0 0.0
    %4842 = vmatpush.xpose.msra.mxu0 0.0
    %4843 = vmatpush.xpose.msra.mxu0 0.0
    %4844 = vmatpush.xpose.msra.mxu0 0.0
    %4845 = vmatpush.xpose.msra.mxu0 0.0
    %4846 = vmatpush.xpose.msra.mxu0 0.0
    %4847 = vmatpush.xpose.msra.mxu0 0.0
    %4848 = vmatpush.xpose.msra.mxu0 0.0
    %4849 = vmatpush.xpose.msra.mxu0 0.0
    %4850 = vmatpush.xpose.msra.mxu0 0.0
    %4851 = vmatpush.xpose.msra.mxu0 0.0
    %4852 = vmatpush.xpose.msra.mxu0 0.0
    %4853 = vmatpush.xpose.msra.mxu0 0.0
    %4854 = vmatpush.xpose.msra.mxu0 0.0
    %4855 = vmatpush.xpose.msra.mxu0 %v4838
    %4856 = vmatmul.f32.gmra.mxu0 %v4836
    %v4857 = vpop.f32.mrf.mxu0
    %v4858 = vadd.f32 0.0, %v4857
    %4859 = vdwg.mxu0
    %v4860 = vsel %vm3138, %v4858, -inf
    %4861 = vmax.xlane.f32.xlu0 %v4860
    %v4862 = vpop.xlane.xlu0 %4861
    %v4863 = vsub.f32 %v4858, %v4862
    %v4864 = vmul.f32 %v4863, 1.442695
    %v4865 = vpow.pop %v4864
    %v4866 = vsel %vm3138, %v4865, 0.0
    %4867 = vadd.xlane.f32.xlu0 %v4866
    %v4868 = vpop.xlane.xlu0 %4867
    %v4869 = vrcp.pop %v4868
    %v4870 = vmul.f32 %v4865, %v4869
    %4871 = vrot.lane.b32.xlu0 %v4691, 80
    %v4872 = vpop.permute.xlu0 %4871
    %v4875 = vsel %vm500, %v4870, 0
    %4877 = vmatpush.msra.mxu0 0.0
    %4878 = vmatpush.msra.mxu0 0.0
    %4879 = vmatpush.msra.mxu0 0.0
    %4880 = vmatpush.msra.mxu0 0.0
    %4881 = vmatpush.msra.mxu0 0.0
    %4882 = vmatpush.msra.mxu0 0.0
    %4883 = vmatpush.msra.mxu0 0.0
    %4884 = vmatpush.msra.mxu0 0.0
    %4885 = vmatpush.msra.mxu0 0.0
    %4886 = vmatpush.msra.mxu0 0.0
    %4887 = vmatpush.msra.mxu0 0.0
    %4888 = vmatpush.msra.mxu0 0.0
    %4889 = vmatpush.msra.mxu0 0.0
    %4890 = vmatpush.msra.mxu0 0.0
    %4891 = vmatpush.msra.mxu0 0.0
    %4892 = vmatpush.msra.mxu0 %v4872
    %4893 = vmatmul.f32.gmra.mxu0 %v4875
    %v4894 = vpop.f32.mrf.mxu0
    %v4895 = vadd.f32 0.0, %v4894
    %4896 = vdwg.mxu0
    %4897 = vrot.lane.b32.xlu0 %v4703, 104
    %v4898 = vpop.permute.xlu0 %4897
    %4899 = vrot.lane.b32.xlu0 %v4691, 104
    %v4900 = vpop.permute.xlu0 %4899
    %v4901 = vsel %vm500, %v4898, 0
    %v4903 = vsel %vm500, %v4900, 0
    %4905 = vmatpush.xpose.msra.mxu0 0.0
    %4906 = vmatpush.xpose.msra.mxu0 0.0
    %4907 = vmatpush.xpose.msra.mxu0 0.0
    %4908 = vmatpush.xpose.msra.mxu0 0.0
    %4909 = vmatpush.xpose.msra.mxu0 0.0
    %4910 = vmatpush.xpose.msra.mxu0 0.0
    %4911 = vmatpush.xpose.msra.mxu0 0.0
    %4912 = vmatpush.xpose.msra.mxu0 0.0
    %4913 = vmatpush.xpose.msra.mxu0 0.0
    %4914 = vmatpush.xpose.msra.mxu0 0.0
    %4915 = vmatpush.xpose.msra.mxu0 0.0
    %4916 = vmatpush.xpose.msra.mxu0 0.0
    %4917 = vmatpush.xpose.msra.mxu0 0.0
    %4918 = vmatpush.xpose.msra.mxu0 0.0
    %4919 = vmatpush.xpose.msra.mxu0 0.0
    %4920 = vmatpush.xpose.msra.mxu0 %v4903
    %4921 = vmatmul.f32.gmra.mxu0 %v4901
    %v4922 = vpop.f32.mrf.mxu0
    %v4923 = vadd.f32 0.0, %v4922
    %4924 = vdwg.mxu0
    %v4925 = vsel %vm3138, %v4923, -inf
    %4926 = vmax.xlane.f32.xlu0 %v4925
    %v4927 = vpop.xlane.xlu0 %4926
    %v4928 = vsub.f32 %v4923, %v4927
    %v4929 = vmul.f32 %v4928, 1.442695
    %v4930 = vpow.pop %v4929
    %v4931 = vsel %vm3138, %v4930, 0.0
    %4932 = vadd.xlane.f32.xlu0 %v4931
    %v4933 = vpop.xlane.xlu0 %4932
    %v4934 = vrcp.pop %v4933
    %v4935 = vmul.f32 %v4930, %v4934
    %4936 = vrot.lane.b32.xlu0 %v4691, 72
    %v4937 = vpop.permute.xlu0 %4936
    %v4940 = vsel %vm500, %v4935, 0
    %4942 = vmatpush.msra.mxu0 0.0
    %4943 = vmatpush.msra.mxu0 0.0
    %4944 = vmatpush.msra.mxu0 0.0
    %4945 = vmatpush.msra.mxu0 0.0
    %4946 = vmatpush.msra.mxu0 0.0
    %4947 = vmatpush.msra.mxu0 0.0
    %4948 = vmatpush.msra.mxu0 0.0
    %4949 = vmatpush.msra.mxu0 0.0
    %4950 = vmatpush.msra.mxu0 0.0
    %4951 = vmatpush.msra.mxu0 0.0
    %4952 = vmatpush.msra.mxu0 0.0
    %4953 = vmatpush.msra.mxu0 0.0
    %4954 = vmatpush.msra.mxu0 0.0
    %4955 = vmatpush.msra.mxu0 0.0
    %4956 = vmatpush.msra.mxu0 0.0
    %4957 = vmatpush.msra.mxu0 %v4937
    %4958 = vmatmul.f32.gmra.mxu0 %v4940
    %v4959 = vpop.f32.mrf.mxu0
    %v4960 = vadd.f32 0.0, %v4959
    %4961 = vdwg.mxu0
    %4963 = vrot.lane.b32.xlu0 %v4830, 8
    %v4964 = vpop.permute.xlu0 %4963
    %4967 = vrot.lane.b32.xlu0 %v4895, 16
    %v4968 = vpop.permute.xlu0 %4967
    %4971 = vrot.lane.b32.xlu0 %v4960, 24
    %v4972 = vpop.permute.xlu0 %4971
    %v4974 = vsel %vm500, %v4765, %v4964
    %v4975 = vsel %vm771, %v4974, %v4968
    %v4976 = vsel %vm773, %v4975, %v4972
    %v4977 = vrot.slane %v4703, 4
    %v4978 = vsel %vm500, %v4977, 0
    %v4981 = vsel %vm500, %v4694, 0
    %4983 = vmatpush.xpose.msra.mxu0 0.0
    %4984 = vmatpush.xpose.msra.mxu0 0.0
    %4985 = vmatpush.xpose.msra.mxu0 0.0
    %4986 = vmatpush.xpose.msra.mxu0 0.0
    %4987 = vmatpush.xpose.msra.mxu0 0.0
    %4988 = vmatpush.xpose.msra.mxu0 0.0
    %4989 = vmatpush.xpose.msra.mxu0 0.0
    %4990 = vmatpush.xpose.msra.mxu0 0.0
    %4991 = vmatpush.xpose.msra.mxu0 0.0
    %4992 = vmatpush.xpose.msra.mxu0 0.0
    %4993 = vmatpush.xpose.msra.mxu0 0.0
    %4994 = vmatpush.xpose.msra.mxu0 0.0
    %4995 = vmatpush.xpose.msra.mxu0 0.0
    %4996 = vmatpush.xpose.msra.mxu0 0.0
    %4997 = vmatpush.xpose.msra.mxu0 0.0
    %4998 = vmatpush.xpose.msra.mxu0 %v4981
    %4999 = vmatmul.f32.gmra.mxu0 %v4978
    %v5000 = vpop.f32.mrf.mxu0
    %v5001 = vadd.f32 0.0, %v5000
    %5002 = vdwg.mxu0
    %v5003 = vsel %vm3138, %v5001, -inf
    %5004 = vmax.xlane.f32.xlu0 %v5003
    %v5005 = vpop.xlane.xlu0 %5004
    %v5006 = vsub.f32 %v5001, %v5005
    %v5007 = vmul.f32 %v5006, 1.442695
    %v5008 = vpow.pop %v5007
    %v5009 = vsel %vm3138, %v5008, 0.0
    %5010 = vadd.xlane.f32.xlu0 %v5009
    %v5011 = vpop.xlane.xlu0 %5010
    %v5012 = vrcp.pop %v5011
    %v5013 = vmul.f32 %v5008, %v5012
    %5014 = vrot.lane.b32.xlu0 %v4694, 96
    %v5015 = vpop.permute.xlu0 %5014
    %v5018 = vsel %vm500, %v5013, 0
    %5020 = vmatpush.msra.mxu0 0.0
    %5021 = vmatpush.msra.mxu0 0.0
    %5022 = vmatpush.msra.mxu0 0.0
    %5023 = vmatpush.msra.mxu0 0.0
    %5024 = vmatpush.msra.mxu0 0.0
    %5025 = vmatpush.msra.mxu0 0.0
    %5026 = vmatpush.msra.mxu0 0.0
    %5027 = vmatpush.msra.mxu0 0.0
    %5028 = vmatpush.msra.mxu0 0.0
    %5029 = vmatpush.msra.mxu0 0.0
    %5030 = vmatpush.msra.mxu0 0.0
    %5031 = vmatpush.msra.mxu0 0.0
    %5032 = vmatpush.msra.mxu0 0.0
    %5033 = vmatpush.msra.mxu0 0.0
    %5034 = vmatpush.msra.mxu0 0.0
    %5035 = vmatpush.msra.mxu0 %v5015
    %5036 = vmatmul.f32.gmra.mxu0 %v5018
    %v5037 = vpop.f32.mrf.mxu0
    %v5038 = vadd.f32 0.0, %v5037
    %5039 = vdwg.mxu0
    %5040 = vrot.lane.b32.xlu0 %v4977, 120
    %v5041 = vpop.permute.xlu0 %5040
    %5042 = vrot.lane.b32.xlu0 %v4694, 120
    %v5043 = vpop.permute.xlu0 %5042
    %v5044 = vsel %vm500, %v5041, 0
    %v5046 = vsel %vm500, %v5043, 0
    %5048 = vmatpush.xpose.msra.mxu0 0.0
    %5049 = vmatpush.xpose.msra.mxu0 0.0
    %5050 = vmatpush.xpose.msra.mxu0 0.0
    %5051 = vmatpush.xpose.msra.mxu0 0.0
    %5052 = vmatpush.xpose.msra.mxu0 0.0
    %5053 = vmatpush.xpose.msra.mxu0 0.0
    %5054 = vmatpush.xpose.msra.mxu0 0.0
    %5055 = vmatpush.xpose.msra.mxu0 0.0
    %5056 = vmatpush.xpose.msra.mxu0 0.0
    %5057 = vmatpush.xpose.msra.mxu0 0.0
    %5058 = vmatpush.xpose.msra.mxu0 0.0
    %5059 = vmatpush.xpose.msra.mxu0 0.0
    %5060 = vmatpush.xpose.msra.mxu0 0.0
    %5061 = vmatpush.xpose.msra.mxu0 0.0
    %5062 = vmatpush.xpose.msra.mxu0 0.0
    %5063 = vmatpush.xpose.msra.mxu0 %v5046
    %5064 = vmatmul.f32.gmra.mxu0 %v5044
    %v5065 = vpop.f32.mrf.mxu0
    %v5066 = vadd.f32 0.0, %v5065
    %5067 = vdwg.mxu0
    %v5068 = vsel %vm3138, %v5066, -inf
    %5069 = vmax.xlane.f32.xlu0 %v5068
    %v5070 = vpop.xlane.xlu0 %5069
    %v5071 = vsub.f32 %v5066, %v5070
    %v5072 = vmul.f32 %v5071, 1.442695
    %v5073 = vpow.pop %v5072
    %v5074 = vsel %vm3138, %v5073, 0.0
    %5075 = vadd.xlane.f32.xlu0 %v5074
    %v5076 = vpop.xlane.xlu0 %5075
    %v5077 = vrcp.pop %v5076
    %v5078 = vmul.f32 %v5073, %v5077
    %5079 = vrot.lane.b32.xlu0 %v4694, 88
    %v5080 = vpop.permute.xlu0 %5079
    %v5083 = vsel %vm500, %v5078, 0
    %5085 = vmatpush.msra.mxu0 0.0
    %5086 = vmatpush.msra.mxu0 0.0
    %5087 = vmatpush.msra.mxu0 0.0
    %5088 = vmatpush.msra.mxu0 0.0
    %5089 = vmatpush.msra.mxu0 0.0
    %5090 = vmatpush.msra.mxu0 0.0
    %5091 = vmatpush.msra.mxu0 0.0
    %5092 = vmatpush.msra.mxu0 0.0
    %5093 = vmatpush.msra.mxu0 0.0
    %5094 = vmatpush.msra.mxu0 0.0
    %5095 = vmatpush.msra.mxu0 0.0
    %5096 = vmatpush.msra.mxu0 0.0
    %5097 = vmatpush.msra.mxu0 0.0
    %5098 = vmatpush.msra.mxu0 0.0
    %5099 = vmatpush.msra.mxu0 0.0
    %5100 = vmatpush.msra.mxu0 %v5080
    %5101 = vmatmul.f32.gmra.mxu0 %v5083
    %v5102 = vpop.f32.mrf.mxu0
    %v5103 = vadd.f32 0.0, %v5102
    %5104 = vdwg.mxu0
    %5105 = vrot.lane.b32.xlu0 %v4977, 112
    %v5106 = vpop.permute.xlu0 %5105
    %5107 = vrot.lane.b32.xlu0 %v4694, 112
    %v5108 = vpop.permute.xlu0 %5107
    %v5109 = vsel %vm500, %v5106, 0
    %v5111 = vsel %vm500, %v5108, 0
    %5113 = vmatpush.xpose.msra.mxu0 0.0
    %5114 = vmatpush.xpose.msra.mxu0 0.0
    %5115 = vmatpush.xpose.msra.mxu0 0.0
    %5116 = vmatpush.xpose.msra.mxu0 0.0
    %5117 = vmatpush.xpose.msra.mxu0 0.0
    %5118 = vmatpush.xpose.msra.mxu0 0.0
    %5119 = vmatpush.xpose.msra.mxu0 0.0
    %5120 = vmatpush.xpose.msra.mxu0 0.0
    %5121 = vmatpush.xpose.msra.mxu0 0.0
    %5122 = vmatpush.xpose.msra.mxu0 0.0
    %5123 = vmatpush.xpose.msra.mxu0 0.0
    %5124 = vmatpush.xpose.msra.mxu0 0.0
    %5125 = vmatpush.xpose.msra.mxu0 0.0
    %5126 = vmatpush.xpose.msra.mxu0 0.0
    %5127 = vmatpush.xpose.msra.mxu0 0.0
    %5128 = vmatpush.xpose.msra.mxu0 %v5111
    %5129 = vmatmul.f32.gmra.mxu0 %v5109
    %v5130 = vpop.f32.mrf.mxu0
    %v5131 = vadd.f32 0.0, %v5130
    %5132 = vdwg.mxu0
    %v5133 = vsel %vm3138, %v5131, -inf
    %5134 = vmax.xlane.f32.xlu0 %v5133
    %v5135 = vpop.xlane.xlu0 %5134
    %v5136 = vsub.f32 %v5131, %v5135
    %v5137 = vmul.f32 %v5136, 1.442695
    %v5138 = vpow.pop %v5137
    %v5139 = vsel %vm3138, %v5138, 0.0
    %5140 = vadd.xlane.f32.xlu0 %v5139
    %v5141 = vpop.xlane.xlu0 %5140
    %v5142 = vrcp.pop %v5141
    %v5143 = vmul.f32 %v5138, %v5142
    %5144 = vrot.lane.b32.xlu0 %v4694, 80
    %v5145 = vpop.permute.xlu0 %5144
    %v5148 = vsel %vm500, %v5143, 0
    %5150 = vmatpush.msra.mxu0 0.0
    %5151 = vmatpush.msra.mxu0 0.0
    %5152 = vmatpush.msra.mxu0 0.0
    %5153 = vmatpush.msra.mxu0 0.0
    %5154 = vmatpush.msra.mxu0 0.0
    %5155 = vmatpush.msra.mxu0 0.0
    %5156 = vmatpush.msra.mxu0 0.0
    %5157 = vmatpush.msra.mxu0 0.0
    %5158 = vmatpush.msra.mxu0 0.0
    %5159 = vmatpush.msra.mxu0 0.0
    %5160 = vmatpush.msra.mxu0 0.0
    %5161 = vmatpush.msra.mxu0 0.0
    %5162 = vmatpush.msra.mxu0 0.0
    %5163 = vmatpush.msra.mxu0 0.0
    %5164 = vmatpush.msra.mxu0 0.0
    %5165 = vmatpush.msra.mxu0 %v5145
    %5166 = vmatmul.f32.gmra.mxu0 %v5148
    %v5167 = vpop.f32.mrf.mxu0
    %v5168 = vadd.f32 0.0, %v5167
    %5169 = vdwg.mxu0
    %5170 = vrot.lane.b32.xlu0 %v4977, 104
    %v5171 = vpop.permute.xlu0 %5170
    %5172 = vrot.lane.b32.xlu0 %v4694, 104
    %v5173 = vpop.permute.xlu0 %5172
    %v5174 = vsel %vm500, %v5171, 0
    %v5176 = vsel %vm500, %v5173, 0
    %5178 = vmatpush.xpose.msra.mxu0 0.0
    %5179 = vmatpush.xpose.msra.mxu0 0.0
    %5180 = vmatpush.xpose.msra.mxu0 0.0
    %5181 = vmatpush.xpose.msra.mxu0 0.0
    %5182 = vmatpush.xpose.msra.mxu0 0.0
    %5183 = vmatpush.xpose.msra.mxu0 0.0
    %5184 = vmatpush.xpose.msra.mxu0 0.0
    %5185 = vmatpush.xpose.msra.mxu0 0.0
    %5186 = vmatpush.xpose.msra.mxu0 0.0
    %5187 = vmatpush.xpose.msra.mxu0 0.0
    %5188 = vmatpush.xpose.msra.mxu0 0.0
    %5189 = vmatpush.xpose.msra.mxu0 0.0
    %5190 = vmatpush.xpose.msra.mxu0 0.0
    %5191 = vmatpush.xpose.msra.mxu0 0.0
    %5192 = vmatpush.xpose.msra.mxu0 0.0
    %5193 = vmatpush.xpose.msra.mxu0 %v5176
    %5194 = vmatmul.f32.gmra.mxu0 %v5174
    %v5195 = vpop.f32.mrf.mxu0
    %v5196 = vadd.f32 0.0, %v5195
    %5197 = vdwg.mxu0
    %v5198 = vsel %vm3138, %v5196, -inf
    %5199 = vmax.xlane.f32.xlu0 %v5198
    %v5200 = vpop.xlane.xlu0 %5199
    %v5201 = vsub.f32 %v5196, %v5200
    %v5202 = vmul.f32 %v5201, 1.442695
    %v5203 = vpow.pop %v5202
    %v5204 = vsel %vm3138, %v5203, 0.0
    %5205 = vadd.xlane.f32.xlu0 %v5204
    %v5206 = vpop.xlane.xlu0 %5205
    %v5207 = vrcp.pop %v5206
    %v5208 = vmul.f32 %v5203, %v5207
    %5209 = vrot.lane.b32.xlu0 %v4694, 72
    %v5210 = vpop.permute.xlu0 %5209
    %v5213 = vsel %vm500, %v5208, 0
    %5215 = vmatpush.msra.mxu0 0.0
    %5216 = vmatpush.msra.mxu0 0.0
    %5217 = vmatpush.msra.mxu0 0.0
    %5218 = vmatpush.msra.mxu0 0.0
    %5219 = vmatpush.msra.mxu0 0.0
    %5220 = vmatpush.msra.mxu0 0.0
    %5221 = vmatpush.msra.mxu0 0.0
    %5222 = vmatpush.msra.mxu0 0.0
    %5223 = vmatpush.msra.mxu0 0.0
    %5224 = vmatpush.msra.mxu0 0.0
    %5225 = vmatpush.msra.mxu0 0.0
    %5226 = vmatpush.msra.mxu0 0.0
    %5227 = vmatpush.msra.mxu0 0.0
    %5228 = vmatpush.msra.mxu0 0.0
    %5229 = vmatpush.msra.mxu0 0.0
    %5230 = vmatpush.msra.mxu0 %v5210
    %5231 = vmatmul.f32.gmra.mxu0 %v5213
    %v5232 = vpop.f32.mrf.mxu0
    %v5233 = vadd.f32 0.0, %v5232
    %5234 = vdwg.mxu0
    %5236 = vrot.lane.b32.xlu0 %v5103, 8
    %v5237 = vpop.permute.xlu0 %5236
    %5240 = vrot.lane.b32.xlu0 %v5168, 16
    %v5241 = vpop.permute.xlu0 %5240
    %5244 = vrot.lane.b32.xlu0 %v5233, 24
    %v5245 = vpop.permute.xlu0 %5244
    %v5247 = vsel %vm500, %v5038, %v5237
    %v5248 = vsel %vm771, %v5247, %v5241
    %v5249 = vsel %vm773, %v5248, %v5245
    %v5251 = vrot.slane %v5249, 4
    %v5253 = vsel %vm2408, %v4976, %v5251
    %v5255 = vperm.slane %v4702, 0
    %v5258 = vsel %vm425, %v5253, 0
    %v5261 = vsel %vm425, %v4697, 0
    %v5264 = vsel %vm425, %v4698, 0
    %v5267 = vsel %vm425, %v4699, 0
    %v5270 = vsel %vm425, %v4700, 0
    %5272 = vmatpush.xpose.msra.mxu0 0.0
    %5273 = vmatpush.xpose.msra.mxu0 0.0
    %5274 = vmatpush.xpose.msra.mxu0 0.0
    %5275 = vmatpush.xpose.msra.mxu0 0.0
    %5276 = vmatpush.xpose.msra.mxu0 0.0
    %5277 = vmatpush.xpose.msra.mxu0 0.0
    %5278 = vmatpush.xpose.msra.mxu0 0.0
    %5279 = vmatpush.xpose.msra.mxu0 0.0
    %5280 = vmatpush.xpose.msra.mxu0 0.0
    %5281 = vmatpush.xpose.msra.mxu0 0.0
    %5282 = vmatpush.xpose.msra.mxu0 0.0
    %5283 = vmatpush.xpose.msra.mxu0 0.0
    %5284 = vmatpush.xpose.msra.mxu0 %v5270
    %5285 = vmatpush.xpose.msra.mxu0 %v5267
    %5286 = vmatpush.xpose.msra.mxu0 %v5264
    %5287 = vmatpush.xpose.msra.mxu0 %v5261
    %5288 = vmatmul.f32.gmra.mxu0 %v5258
    %v5289 = vpop.f32.mrf.mxu0
    %v5290 = vadd.f32 %v5255, %v5289
    %5291 = vdwg.mxu0
    %v5292 = vadd.f32 %v4589, %v5290
    %s5293 = scalar_lea.vmem %s79, 1
    %v5294 = vld [vmem:[%s5293] sm:$0x1]
    %s5295 = scalar_lea.vmem %s81, 1
    %v5296 = vld [vmem:[%s5295] sm:$0x1]
    %v5297 = vsel %vm425, %v5292, 0.0
    %5298 = vadd.xlane.f32.xlu0 %v5297
    %v5299 = vpop.xlane.xlu0 %5298
    %v5300 = vmul.f32 %v5299, %v1111
    %v5301 = vsub.f32 %v5292, %v5300
    %v5302 = vmul.f32 %v5301, %v5301
    %v5303 = vsel %vm425, %v5302, 0.0
    %5304 = vadd.xlane.f32.xlu0 %v5303
    %v5305 = vpop.xlane.xlu0 %5304
    %v5306 = vmul.f32 %v5305, %v1111
    %v5307 = vadd.f32 %v5306, 1e-05
    %v5308 = vrsqrt.pop %v5307
    %v5309 = vmul.f32 %v5308, %v5307
    %v5310 = vmul.f32 %v5309, %v5308
    %v5311 = vmul.f32 0.5, %v5310
    %v5312 = vsub.f32 1.5, %v5311
    %v5313 = vmul.f32 %v5308, %v5312
    %vm5314 = vweird.f32 %v5307
    %vm5315 = vweird.f32 %v5308
    %vm5316 = vmor %vm5314, %vm5315
    %v5317 = vsel %vm5316, %v5308, %v5313
    %v5318 = vmul.f32 %v5301, %v5317
    %v5320 = vperm.slane %v5294, 0
    %v5322 = vmul.f32 %v5318, %v5320
    %v5324 = vperm.slane %v5296, 0
    %v5326 = vadd.f32 %v5322, %v5324
    %s5327 = scalar_lea.vmem [#allocation17], 64
    %v5328 = vld [vmem:[%s5327] sm:$0xff]
    %v5329 = vld [vmem:[%s5327 + $0x8] sm:$0xff]
    %v5330 = vld [vmem:[%s5327 + $0x10] sm:$0xff]
    %v5331 = vld [vmem:[%s5327 + $0x18] sm:$0xff]
    %v5332 = vld [vmem:[%s5327 + $0x20] sm:$0xff]
    %v5333 = vld [vmem:[%s5327 + $0x28] sm:$0xff]
    %v5334 = vld [vmem:[%s5327 + $0x30] sm:$0xff]
    %v5335 = vld [vmem:[%s5327 + $0x38] sm:$0xff]
    %s5336 = scalar_lea.vmem %s69, 1
    %v5337 = vld [vmem:[%s5336] sm:$0x1]
    %v5339 = vperm.slane %v5337, 0
    %v5342 = vsel %vm425, %v5326, 0
    %v5345 = vsel %vm425, %v5328, 0
    %v5348 = vsel %vm425, %v5329, 0
    %v5351 = vsel %vm425, %v5330, 0
    %v5354 = vsel %vm425, %v5331, 0
    %v5357 = vsel %vm425, %v5332, 0
    %v5360 = vsel %vm425, %v5333, 0
    %v5363 = vsel %vm425, %v5334, 0
    %v5366 = vsel %vm425, %v5335, 0
    %5368 = vmatpush.xpose.msra.mxu0 0.0
    %5369 = vmatpush.xpose.msra.mxu0 0.0
    %5370 = vmatpush.xpose.msra.mxu0 0.0
    %5371 = vmatpush.xpose.msra.mxu0 0.0
    %5372 = vmatpush.xpose.msra.mxu0 0.0
    %5373 = vmatpush.xpose.msra.mxu0 0.0
    %5374 = vmatpush.xpose.msra.mxu0 0.0
    %5375 = vmatpush.xpose.msra.mxu0 0.0
    %5376 = vmatpush.xpose.msra.mxu0 %v5366
    %5377 = vmatpush.xpose.msra.mxu0 %v5363
    %5378 = vmatpush.xpose.msra.mxu0 %v5360
    %5379 = vmatpush.xpose.msra.mxu0 %v5357
    %5380 = vmatpush.xpose.msra.mxu0 %v5354
    %5381 = vmatpush.xpose.msra.mxu0 %v5351
    %5382 = vmatpush.xpose.msra.mxu0 %v5348
    %5383 = vmatpush.xpose.msra.mxu0 %v5345
    %5384 = vmatmul.f32.gmra.mxu0 %v5342
    %v5385 = vpop.f32.mrf.mxu0
    %v5386 = vadd.f32 %v5339, %v5385
    %5387 = vdwg.mxu0
    %v5388 = vmax.f32 %v5386, 0.0
    %s5389 = scalar_lea.vmem [#allocation19], 32
    %v5390 = vld [vmem:[%s5389] sm:$0xff]
    %v5391 = vld [vmem:[%s5389 + $0x8] sm:$0xff]
    %v5392 = vld [vmem:[%s5389 + $0x10] sm:$0xff]
    %v5393 = vld [vmem:[%s5389 + $0x18] sm:$0xff]
    %s5394 = scalar_lea.vmem %s73, 1
    %v5395 = vld [vmem:[%s5394] sm:$0x1]
    %v5397 = vperm.slane %v5395, 0
    %v5400 = vsel %vm1235, %v5388, 0
    %v5403 = vsel %vm1235, %v5390, 0
    %v5406 = vsel %vm1235, %v5391, 0
    %v5409 = vsel %vm1235, %v5392, 0
    %v5412 = vsel %vm1235, %v5393, 0
    %5414 = vmatpush.xpose.msra.mxu0 0.0
    %5415 = vmatpush.xpose.msra.mxu0 0.0
    %5416 = vmatpush.xpose.msra.mxu0 0.0
    %5417 = vmatpush.xpose.msra.mxu0 0.0
    %5418 = vmatpush.xpose.msra.mxu0 0.0
    %5419 = vmatpush.xpose.msra.mxu0 0.0
    %5420 = vmatpush.xpose.msra.mxu0 0.0
    %5421 = vmatpush.xpose.msra.mxu0 0.0
    %5422 = vmatpush.xpose.msra.mxu0 0.0
    %5423 = vmatpush.xpose.msra.mxu0 0.0
    %5424 = vmatpush.xpose.msra.mxu0 0.0
    %5425 = vmatpush.xpose.msra.mxu0 0.0
    %5426 = vmatpush.xpose.msra.mxu0 %v5412
    %5427 = vmatpush.xpose.msra.mxu0 %v5409
    %5428 = vmatpush.xpose.msra.mxu0 %v5406
    %5429 = vmatpush.xpose.msra.mxu0 %v5403
    %5430 = vmatmul.f32.gmra.mxu0 %v5400
    %v5431 = vpop.f32.mrf.mxu0
    %v5432 = vadd.f32 %v5397, %v5431
    %5433 = vdwg.mxu0
    %v5434 = vadd.f32 %v5326, %v5432
    %s5435 = scalar_lea.vmem %s83, 1
    %v5436 = vld [vmem:[%s5435] sm:$0x1]
    %s5437 = scalar_lea.vmem %s85, 1
    %v5438 = vld [vmem:[%s5437] sm:$0x1]
    %v5439 = vsel %vm425, %v5434, 0.0
    %5440 = vadd.xlane.f32.xlu0 %v5439
    %v5441 = vpop.xlane.xlu0 %5440
    %v5442 = vmul.f32 %v5441, %v1111
    %v5443 = vsub.f32 %v5434, %v5442
    %v5444 = vmul.f32 %v5443, %v5443
    %v5445 = vsel %vm425, %v5444, 0.0
    %5446 = vadd.xlane.f32.xlu0 %v5445
    %v5447 = vpop.xlane.xlu0 %5446
    %v5448 = vmul.f32 %v5447, %v1111
    %v5449 = vadd.f32 %v5448, 1e-05
    %v5450 = vrsqrt.pop %v5449
    %v5451 = vmul.f32 %v5450, %v5449
    %v5452 = vmul.f32 %v5451, %v5450
    %v5453 = vmul.f32 0.5, %v5452
    %v5454 = vsub.f32 1.5, %v5453
    %v5455 = vmul.f32 %v5450, %v5454
    %vm5456 = vweird.f32 %v5449
    %vm5457 = vweird.f32 %v5450
    %vm5458 = vmor %vm5456, %vm5457
    %v5459 = vsel %vm5458, %v5450, %v5455
    %v5460 = vmul.f32 %v5443, %v5459
    %v5462 = vperm.slane %v5436, 0
    %v5464 = vmul.f32 %v5460, %v5462
    %v5466 = vperm.slane %v5438, 0
    %v5468 = vadd.f32 %v5464, %v5466
    %v5469 = vld [vmem:[%s19] sm:$0x1]
    %v5471 = vperm.slane %v5469, 0
    %v5473 = vmul.f32 %v5468, %v5471
    %v5474 = vsel %vm425, %v5473, 0.0
    %5475 = vadd.xlane.f32.xlu0 %v5474
    %v5476 = vpop.xlane.xlu0 %5475
    %v5477 = vld [vmem:[#allocation2] sm:$0x1]
    %v5479 = vperm.slane %v5477, 0
    %v5481 = vadd.f32 %v5476, %v5479
    %vm5482 = vcmask 7168
    %5483 = vst.msk [vmem:[%s87] sm:$0xff] %vm5482, %v5481
    // Predicated region
    $region218: #{my_transformer_forward.1} parent=1 // pred_check
      _
    $region219: #{my_transformer_forward.1} parent=1 // pred_check_branch
      %5485 = sbr.rel (0) target = $region221
    $region220: #{my_transformer_forward.1} parent=1 // pred_region
      _
    $region221: #{my_transformer_forward.1} parent=1 // pred_fallthru
      _
    // Predicated region
    $region222: #{my_transformer_forward.1} parent=1 // pred_check
      _
    $region223: #{my_transformer_forward.1} parent=1 // pred_check_branch
      %5487 = sbr.rel (0) target = $region225
    $region224: #{my_transformer_forward.1} parent=1 // pred_region
      _
    $region225: #{my_transformer_forward.1} parent=1 // pred_fallthru
      _
    %5488 = vsyncpa [#allocation4], 1
    %5489 = vsyncpa [#allocation6], 1
    %5490 = vsyncpa [#allocation9], 1
    %5491 = vsyncpa [#allocation12], 1
    %5492 = vsyncpa [#allocation15], 1
    %5493 = vsyncpa [#allocation18], 1

</llo_original>
